<compile_context>
chip_gen: v6e
topology: v6e:2x2x1
jax: 0.10.0
libtpu: 0.0.40
codegen_flags: <defaults>
</compile_context>

<pallas_src>
import functools

import jax
import jax.numpy as jnp
from jax.experimental import pallas as pl
from jax.experimental.pallas import tpu as pltpu

HIDDEN = 256      # LSTM hidden size (fixed by the module)
FC = 512          # inner feature size (fixed by the module)
NEG_SLOPE = 0.2   # LeakyReLU slope
MAX_TC = 32       # max timesteps per streamed chunk (raise to 64 on v6e if desired)


def _leaky(v):
    # max-form LeakyReLU (identical math for slope in (0, 1))
    return jnp.maximum(v, NEG_SLOPE * v)


def encoder_kernel(
    g1_ref,                 # (B, tc, 4H)  precomputed x @ W_ih1 + (b_ih1 + b_hh1), chunked over T
    whh1_ref,               # (H, 4H)      layer-1 recurrent weight
    wih2_ref,               # (H, 4H)      layer-2 input weight (kept separate from W_hh2)
    whh2_ref,               # (H, 4H)      layer-2 recurrent weight
    b2_ref,                 # (1, 4H)      layer-2 fused bias
    wfc_ref, bfc_ref,       # (H, F), (1, F)      Linear(256 -> 512)
    wh1_ref, bh1_ref,       # (F, 2F), (1, 2F)    fused mu/log_sigma first head layer
    wh2_ref, bh2_ref,       # (2F, 2Lp), (1, 2Lp) block-diagonal fused second head layer
    out_ref,                # (B, 2Lp)            [mu_padded | log_sigma_padded]
    state_ref,              # scratch (4, B, H):  h1, c1, h2, c2 (persists across grid steps)
    h1_buf_ref,             # scratch (B, tc, H): layer-1 hidden states for this chunk
    g2_buf_ref,             # scratch (B, tc, 4H): layer-2 gate pre-activations (batched GEMM)
    *, total_t, mask_tail,
):
    H = HIDDEN
    B, tc, _ = g1_ref.shape
    chunk = pl.program_id(0)

    @pl.when(chunk == 0)
    def _init():
        state_ref[...] = jnp.zeros_like(state_ref)

    # State lives in vregs for the whole chunk: one VMEM read here, one write-back
    # at the end (no per-step load/store on the serial dependency chain).
    h1 = state_ref[0]
    c1 = state_ref[1]
    h2 = state_ref[2]
    c2 = state_ref[3]

    # Loop-invariant weight loads hoisted out of the unrolled recurrences.
    whh1 = whh1_ref[...]
    whh2 = whh2_ref[...]
    wih2 = wih2_ref[...]
    b2 = b2_ref[...]

    def gates(g, c_prev):
        # PyTorch gate order: i, f, g, o
        i = jax.nn.sigmoid(g[:, 0 * H:1 * H])
        f = jax.nn.sigmoid(g[:, 1 * H:2 * H])
        gg = jnp.tanh(g[:, 2 * H:3 * H])
        o = jax.nn.sigmoid(g[:, 3 * H:4 * H])
        c_new = f * c_prev + i * gg
        h_new = o * jnp.tanh(c_new)
        return h_new, c_new

    # ---- pass 1: layer-1 recurrence over the chunk (one small matmul per step) ----
    for t in range(tc):
        g1 = g1_ref[:, t, :] + jnp.dot(h1, whh1, preferred_element_type=jnp.float32)
        h1_new, c1_new = gates(g1, c1)
        if mask_tail:
            valid = (chunk * tc + t) < total_t
            h1_new = jnp.where(valid, h1_new, h1)
            c1_new = jnp.where(valid, c1_new, c1)
        h1_buf_ref[:, t, :] = h1_new       # off the critical h1->h1 chain
        h1, c1 = h1_new, c1_new

    # ---- layer-2 input projection: one well-shaped GEMM per batch row per chunk ----
    # (tc rows per matmul instead of B=2 rows per timestep.)
    for b in range(B):
        g2_buf_ref[b] = (
            jnp.dot(h1_buf_ref[b], wih2, preferred_element_type=jnp.float32) + b2
        )

    # ---- pass 2: layer-2 recurrence (only h2 @ W_hh2 on the serial chain) ----
    for t in range(tc):
        g2 = g2_buf_ref[:, t, :] + jnp.dot(h2, whh2, preferred_element_type=jnp.float32)
        h2_new, c2_new = gates(g2, c2)
        if mask_tail:
            valid = (chunk * tc + t) < total_t
            h2_new = jnp.where(valid, h2_new, h2)
            c2_new = jnp.where(valid, c2_new, c2)
        h2, c2 = h2_new, c2_new

    # Single state write-back for the next chunk.
    state_ref[0] = h1
    state_ref[1] = c1
    state_ref[2] = h2
    state_ref[3] = c2

    # KeepHidden() + PickLast() + fused MLP heads, only after the final chunk.
    @pl.when(chunk == pl.num_programs(0) - 1)
    def _heads():
        z = _leaky(jnp.dot(h2, wfc_ref[...],
                           preferred_element_type=jnp.float32) + bfc_ref[...])
        hcat = _leaky(jnp.dot(z, wh1_ref[...],
                              preferred_element_type=jnp.float32) + bh1_ref[...])
        out_ref[...] = (jnp.dot(hcat, wh2_ref[...],
                                preferred_element_type=jnp.float32) + bh2_ref[...])


@jax.jit
def encoder_forward(x, params):
    """x: (B, T, D) float32. Returns (mu, log_sigma), each (B, latent_dim)."""
    B, T, D = x.shape
    H, F = HIDDEN, FC
    L = params["wmu2"].shape[1]
    Lp = ((L + 127) // 128) * 128            # lane-dense padded per-head width

    # ---- wrapper-side hoisting / weight fusion (plain XLA, runs once) ----
    # Layer-1 input projection for ALL timesteps as one big GEMM, bias folded in.
    # Laid out (B, T, 4H) so streamed chunks are sublane-dense (no B=2 padding).
    g1 = jnp.einsum("btd,dg->btg", x, params["wih1"]) + params["b1"]        # (B, T, 4H)

    # Fused head layer 1: [W_mu1 | W_ls1].
    wh1 = jnp.concatenate([params["wmu1"], params["wls1"]], axis=1)         # (F, 2F)
    bh1 = jnp.concatenate([params["bmu1"], params["bls1"]], axis=1)         # (1, 2F)

    # Fused head layer 2: block-diagonal, each head padded to a lane multiple.
    zpad = jnp.zeros((F, Lp), jnp.float32)
    wmu2p = jnp.pad(params["wmu2"], ((0, 0), (0, Lp - L)))
    wls2p = jnp.pad(params["wls2"], ((0, 0), (0, Lp - L)))
    wh2 = jnp.concatenate(
        [jnp.concatenate([wmu2p, zpad], axis=1),
         jnp.concatenate([zpad, wls2p], axis=1)], axis=0)                   # (2F, 2Lp)
    bh2 = jnp.concatenate(
        [jnp.pad(params["bmu2"], ((0, 0), (0, Lp - L))),
         jnp.pad(params["bls2"], ((0, 0), (0, Lp - L)))], axis=1)           # (1, 2Lp)

    # Remainder-tolerant chunking: tc = min(T, MAX_TC); tail steps masked in-kernel.
    tc = min(T, MAX_TC)
    nchunks = -(-T // tc)
    T_pad = nchunks * tc
    mask_tail = (T_pad != T)
    if mask_tail:
        # Padded timesteps are never applied to the state (masked with jnp.where),
        # so the pad values are irrelevant.
        g1 = jnp.pad(g1, ((0, 0), (0, T_pad - T), (0, 0)))

    def full_spec(arr):
        nd = arr.ndim
        return pl.BlockSpec(arr.shape, lambda t, _nd=nd: (0,) * _nd)

    kernel = functools.partial(encoder_kernel, total_t=T, mask_tail=mask_tail)

    out = pl.pallas_call(
        kernel,
        out_shape=jax.ShapeDtypeStruct((B, 2 * Lp), jnp.float32),
        grid=(nchunks,),
        in_specs=[
            pl.BlockSpec((B, tc, 4 * H), lambda t: (0, t, 0)),   # streamed G1 chunks
            full_spec(params["whh1"]),
            full_spec(params["wih2"]), full_spec(params["whh2"]),
            full_spec(params["b2"]),
            full_spec(params["wfc"]), full_spec(params["bfc"]),
            full_spec(wh1), full_spec(bh1),
            full_spec(wh2), full_spec(bh2),
        ],
        out_specs=pl.BlockSpec((B, 2 * Lp), lambda t: (0, 0)),
        scratch_shapes=[
            pltpu.VMEM((4, B, HIDDEN), jnp.float32),             # persistent LSTM state
            pltpu.VMEM((B, tc, HIDDEN), jnp.float32),            # layer-1 h for the chunk
            pltpu.VMEM((B, tc, 4 * HIDDEN), jnp.float32),        # layer-2 gate pre-acts
        ],
        compiler_params=pltpu.CompilerParams(
            dimension_semantics=("arbitrary",),                  # sequential recurrence
            vmem_limit_bytes=32 * 1024 * 1024,                   # kernel needs ~15 MiB
        ),
    )(g1, params["whh1"], params["wih2"], params["whh2"], params["b2"],
      params["wfc"], params["bfc"], wh1, bh1, wh2, bh2)

    mu = out[:, :L]
    log_sigma = out[:, Lp:Lp + L]
    return mu, log_sigma


def init_params(key, input_size, latent_dim):
    """Deterministic synthetic parameters (shapes match the PyTorch module)."""
    def uniform(key, shape, fan_in):
        bound = 1.0 / jnp.sqrt(jnp.float32(fan_in))
        return jax.random.uniform(key, shape, jnp.float32, -bound, bound)

    keys = jax.random.split(key, 20)
    H, F = HIDDEN, FC
    p = {}
    # LSTM layer 1 (weights stored transposed: (in, 4H)); bias = b_ih + b_hh fused.
    p["wih1"] = uniform(keys[0], (input_size, 4 * H), H)
    p["whh1"] = uniform(keys[1], (H, 4 * H), H)
    p["b1"] = uniform(keys[2], (1, 4 * H), H) + uniform(keys[3], (1, 4 * H), H)
    # LSTM layer 2
    p["wih2"] = uniform(keys[4], (H, 4 * H), H)
    p["whh2"] = uniform(keys[5], (H, 4 * H), H)
    p["b2"] = uniform(keys[6], (1, 4 * H), H) + uniform(keys[7], (1, 4 * H), H)
    # Linear(256 -> 512)
    p["wfc"] = uniform(keys[8], (H, F), H)
    p["bfc"] = uniform(keys[9], (1, F), H)
    # mu head
    p["wmu1"] = uniform(keys[10], (F, F), F)
    p["bmu1"] = uniform(keys[11], (1, F), F)
    p["wmu2"] = uniform(keys[12], (F, latent_dim), F)
    p["bmu2"] = uniform(keys[13], (1, latent_dim), F)
    # log_sigma head
    p["wls1"] = uniform(keys[14], (F, F), F)
    p["bls1"] = uniform(keys[15], (1, F), F)
    p["wls2"] = uniform(keys[16], (F, latent_dim), F)
    p["bls2"] = uniform(keys[17], (1, latent_dim), F)
    return p


def reference_forward(x, p):
    """Pure-JAX reference reproducing the PyTorch forward semantics."""
    B, T, D = x.shape
    H = HIDDEN
    h1 = jnp.zeros((B, H), jnp.float32)
    c1 = jnp.zeros((B, H), jnp.float32)
    h2 = jnp.zeros((B, H), jnp.float32)
    c2 = jnp.zeros((B, H), jnp.float32)

    def cell(xt, h, c, wih, whh, b):
        g = xt @ wih + h @ whh + b
        i = jax.nn.sigmoid(g[:, :H])
        f = jax.nn.sigmoid(g[:, H:2 * H])
        gg = jnp.tanh(g[:, 2 * H:3 * H])
        o = jax.nn.sigmoid(g[:, 3 * H:])
        c = f * c + i * gg
        h = o * jnp.tanh(c)
        return h, c

    for t in range(T):
        h1, c1 = cell(x[:, t, :], h1, c1, p["wih1"], p["whh1"], p["b1"])
        h2, c2 = cell(h1, h2, c2, p["wih2"], p["whh2"], p["b2"])

    z = _leaky(h2 @ p["wfc"] + p["bfc"])
    mu = _leaky(z @ p["wmu1"] + p["bmu1"]) @ p["wmu2"] + p["bmu2"]
    ls = _leaky(z @ p["wls1"] + p["bls1"]) @ p["wls2"] + p["bls2"]
    return mu, ls


if __name__ == "__main__":
    B, T, INPUT_SIZE, LATENT = 2, 8, 32, 16

    key = jax.random.PRNGKey(0)
    kx, kp = jax.random.split(key)
    x = jax.random.normal(kx, (B, T, INPUT_SIZE), jnp.float32)
    params = init_params(kp, INPUT_SIZE, LATENT)

    mu, log_sigma = encoder_forward(x, params)
    jax.block_until_ready((mu, log_sigma))

    mu_ref, ls_ref = reference_forward(x, params)
    assert mu.shape == (B, LATENT) and log_sigma.shape == (B, LATENT)
    assert jnp.allclose(mu, mu_ref, atol=1e-4, rtol=1e-4)
    assert jnp.allclose(log_sigma, ls_ref, atol=1e-4, rtol=1e-4)

    print("KERNEL_OK")
</pallas_src>

<mosaic_0001>
module attributes {stable_mosaic.version = 11 : i64} {
  func.func @encoder_kernel(%arg0: i32, %arg1: memref<2x8x1024xf32, #tpu.memory_space<vmem>>, %arg2: memref<256x1024xf32, #tpu.memory_space<vmem>>, %arg3: memref<256x1024xf32, #tpu.memory_space<vmem>>, %arg4: memref<256x1024xf32, #tpu.memory_space<vmem>>, %arg5: memref<1x1024xf32, #tpu.memory_space<vmem>>, %arg6: memref<256x512xf32, #tpu.memory_space<vmem>>, %arg7: memref<1x512xf32, #tpu.memory_space<vmem>>, %arg8: memref<512x1024xf32, #tpu.memory_space<vmem>>, %arg9: memref<1x1024xf32, #tpu.memory_space<vmem>>, %arg10: memref<1024x256xf32, #tpu.memory_space<vmem>>, %arg11: memref<1x256xf32, #tpu.memory_space<vmem>>, %arg12: memref<2x256xf32, #tpu.memory_space<vmem>>, %arg13: memref<4x2x256xf32, #tpu.memory_space<vmem>>, %arg14: memref<2x8x256xf32, #tpu.memory_space<vmem>>, %arg15: memref<2x8x1024xf32, #tpu.memory_space<vmem>>) attributes {dimension_semantics = [#tpu.dimension_semantics<arbitrary>], iteration_bounds = array<i64: 1>, scalar_prefetch = 0 : i64, scratch_operands = 3 : i64, tpu.core_type = #tpu.core_type<tc>, window_params = [{transform_indices = @transform_0, window_bounds = array<i64: 2, 8, 1024>}, {pipeline_mode = #tpu.pipeline_mode<synchronous>, transform_indices = @transform_1, window_bounds = array<i64: 256, 1024>}, {pipeline_mode = #tpu.pipeline_mode<synchronous>, transform_indices = @transform_2, window_bounds = array<i64: 256, 1024>}, {pipeline_mode = #tpu.pipeline_mode<synchronous>, transform_indices = @transform_3, window_bounds = array<i64: 256, 1024>}, {pipeline_mode = #tpu.pipeline_mode<synchronous>, transform_indices = @transform_4, window_bounds = array<i64: 1, 1024>}, {pipeline_mode = #tpu.pipeline_mode<synchronous>, transform_indices = @transform_5, window_bounds = array<i64: 256, 512>}, {pipeline_mode = #tpu.pipeline_mode<synchronous>, transform_indices = @transform_6, window_bounds = array<i64: 1, 512>}, {pipeline_mode = #tpu.pipeline_mode<synchronous>, transform_indices = @transform_7, window_bounds = array<i64: 512, 1024>}, {pipeline_mode = #tpu.pipeline_mode<synchronous>, transform_indices = @transform_8, window_bounds = array<i64: 1, 1024>}, {pipeline_mode = #tpu.pipeline_mode<synchronous>, transform_indices = @transform_9, window_bounds = array<i64: 1024, 256>}, {pipeline_mode = #tpu.pipeline_mode<synchronous>, transform_indices = @transform_10, window_bounds = array<i64: 1, 256>}, {pipeline_mode = #tpu.pipeline_mode<synchronous>, transform_indices = @transform_11, window_bounds = array<i64: 2, 256>}]} {
    %c0_i32 = arith.constant 0 : i32
    %0 = arith.cmpi eq, %arg0, %c0_i32 : i32
    %1 = arith.extui %0 : i1 to i32
    %c0_i32_0 = arith.constant 0 : i32
    %2 = arith.cmpi ne, %1, %c0_i32_0 : i32
    scf.if %2 {
      %cst_176 = arith.constant 0.000000e+00 : f32
      %534 = vector.broadcast %cst_176 : f32 to vector<4x2x256xf32>
      %c0_177 = arith.constant 0 : index
      %c0_178 = arith.constant 0 : index
      %c0_179 = arith.constant 0 : index
      %535 = vector.load %arg13[%c0_177, %c0_178, %c0_179] : memref<4x2x256xf32, #tpu.memory_space<vmem>>, vector<4x2x256xf32>
      tpu.vector_store %arg13[%c0_177, %c0_178, %c0_179], %534 {strides = array<i32>} : memref<4x2x256xf32, #tpu.memory_space<vmem>>, vector<4x2x256xf32>,
    } else {
    }
    %c0 = arith.constant 0 : index
    %c0_1 = arith.constant 0 : index
    %c0_2 = arith.constant 0 : index
    %3 = vector.load %arg13[%c0, %c0_1, %c0_2] : memref<4x2x256xf32, #tpu.memory_space<vmem>>, vector<1x2x256xf32>
    %4 = vector.shape_cast %3 : vector<1x2x256xf32> to vector<2x256xf32>
    %c1 = arith.constant 1 : index
    %c0_3 = arith.constant 0 : index
    %c0_4 = arith.constant 0 : index
    %5 = vector.load %arg13[%c1, %c0_3, %c0_4] : memref<4x2x256xf32, #tpu.memory_space<vmem>>, vector<1x2x256xf32>
    %6 = vector.shape_cast %5 : vector<1x2x256xf32> to vector<2x256xf32>
    %c2 = arith.constant 2 : index
    %c0_5 = arith.constant 0 : index
    %c0_6 = arith.constant 0 : index
    %7 = vector.load %arg13[%c2, %c0_5, %c0_6] : memref<4x2x256xf32, #tpu.memory_space<vmem>>, vector<1x2x256xf32>
    %8 = vector.shape_cast %7 : vector<1x2x256xf32> to vector<2x256xf32>
    %c3 = arith.constant 3 : index
    %c0_7 = arith.constant 0 : index
    %c0_8 = arith.constant 0 : index
    %9 = vector.load %arg13[%c3, %c0_7, %c0_8] : memref<4x2x256xf32, #tpu.memory_space<vmem>>, vector<1x2x256xf32>
    %10 = vector.shape_cast %9 : vector<1x2x256xf32> to vector<2x256xf32>
    %c0_9 = arith.constant 0 : index
    %c0_10 = arith.constant 0 : index
    %11 = vector.load %arg2[%c0_9, %c0_10] : memref<256x1024xf32, #tpu.memory_space<vmem>>, vector<256x1024xf32>
    %c0_11 = arith.constant 0 : index
    %c0_12 = arith.constant 0 : index
    %12 = vector.load %arg4[%c0_11, %c0_12] : memref<256x1024xf32, #tpu.memory_space<vmem>>, vector<256x1024xf32>
    %c0_13 = arith.constant 0 : index
    %c0_14 = arith.constant 0 : index
    %13 = vector.load %arg3[%c0_13, %c0_14] : memref<256x1024xf32, #tpu.memory_space<vmem>>, vector<256x1024xf32>
    %c0_15 = arith.constant 0 : index
    %c0_16 = arith.constant 0 : index
    %14 = vector.load %arg5[%c0_15, %c0_16] : memref<1x1024xf32, #tpu.memory_space<vmem>>, vector<1x1024xf32>
    %c0_17 = arith.constant 0 : index
    %c0_18 = arith.constant 0 : index
    %c0_19 = arith.constant 0 : index
    %15 = vector.load %arg1[%c0_17, %c0_18, %c0_19] : memref<2x8x1024xf32, #tpu.memory_space<vmem>>, vector<2x1x1024xf32>
    %16 = vector.shape_cast %15 : vector<2x1x1024xf32> to vector<2x1024xf32>
    %cst = arith.constant dense<0.000000e+00> : vector<2x1024xf32>
    %17 = tpu.matmul %4, %11, %cst {dimension_numbers = #tpu.dot_dimension_numbers<[1], [0], [0], [1], [0, 0, 1, 1], [], []>} : vector<2x256xf32>, vector<256x1024xf32>, vector<2x1024xf32> -> vector<2x1024xf32>
    %18 = arith.addf %16, %17 : vector<2x1024xf32>
    %19 = vector.extract_strided_slice %18 {offsets = [0, 0], sizes = [2, 256], strides = [1, 1]} : vector<2x1024xf32> to vector<2x256xf32>
    %20 = arith.negf %19 : vector<2x256xf32>
    %21 = math.exp %20 : vector<2x256xf32>
    %cst_20 = arith.constant 1.000000e+00 : f32
    %22 = vector.broadcast %cst_20 : f32 to vector<2x256xf32>
    %23 = arith.addf %22, %21 : vector<2x256xf32>
    %24 = arith.divf %22, %23 : vector<2x256xf32>
    %25 = vector.extract_strided_slice %18 {offsets = [0, 256], sizes = [2, 256], strides = [1, 1]} : vector<2x1024xf32> to vector<2x256xf32>
    %26 = arith.negf %25 : vector<2x256xf32>
    %27 = math.exp %26 : vector<2x256xf32>
    %cst_21 = arith.constant 1.000000e+00 : f32
    %28 = vector.broadcast %cst_21 : f32 to vector<2x256xf32>
    %29 = arith.addf %28, %27 : vector<2x256xf32>
    %30 = arith.divf %28, %29 : vector<2x256xf32>
    %31 = vector.extract_strided_slice %18 {offsets = [0, 512], sizes = [2, 256], strides = [1, 1]} : vector<2x1024xf32> to vector<2x256xf32>
    %32 = math.tanh %31 : vector<2x256xf32>
    %33 = vector.extract_strided_slice %18 {offsets = [0, 768], sizes = [2, 256], strides = [1, 1]} : vector<2x1024xf32> to vector<2x256xf32>
    %34 = arith.negf %33 : vector<2x256xf32>
    %35 = math.exp %34 : vector<2x256xf32>
    %cst_22 = arith.constant 1.000000e+00 : f32
    %36 = vector.broadcast %cst_22 : f32 to vector<2x256xf32>
    %37 = arith.addf %36, %35 : vector<2x256xf32>
    %38 = arith.divf %36, %37 : vector<2x256xf32>
    %39 = arith.mulf %30, %6 : vector<2x256xf32>
    %40 = arith.mulf %24, %32 : vector<2x256xf32>
    %41 = arith.addf %39, %40 : vector<2x256xf32>
    %42 = math.tanh %41 : vector<2x256xf32>
    %43 = arith.mulf %38, %42 : vector<2x256xf32>
    %c0_23 = arith.constant 0 : index
    %c0_24 = arith.constant 0 : index
    %c0_25 = arith.constant 0 : index
    %44 = vector.load %arg14[%c0_23, %c0_24, %c0_25] : memref<2x8x256xf32, #tpu.memory_space<vmem>>, vector<2x1x256xf32>
    %45 = vector.shape_cast %44 : vector<2x1x256xf32> to vector<2x256xf32>
    %46 = vector.shape_cast %43 : vector<2x256xf32> to vector<2x1x256xf32>
    tpu.vector_store %arg14[%c0_23, %c0_24, %c0_25], %46 {strides = array<i32>} : memref<2x8x256xf32, #tpu.memory_space<vmem>>, vector<2x1x256xf32>,
    %c0_26 = arith.constant 0 : index
    %c1_27 = arith.constant 1 : index
    %c0_28 = arith.constant 0 : index
    %47 = vector.load %arg1[%c0_26, %c1_27, %c0_28] : memref<2x8x1024xf32, #tpu.memory_space<vmem>>, vector<2x1x1024xf32>
    %48 = vector.shape_cast %47 : vector<2x1x1024xf32> to vector<2x1024xf32>
    %cst_29 = arith.constant dense<0.000000e+00> : vector<2x1024xf32>
    %49 = tpu.matmul %43, %11, %cst_29 {dimension_numbers = #tpu.dot_dimension_numbers<[1], [0], [0], [1], [0, 0, 1, 1], [], []>} : vector<2x256xf32>, vector<256x1024xf32>, vector<2x1024xf32> -> vector<2x1024xf32>
    %50 = arith.addf %48, %49 : vector<2x1024xf32>
    %51 = vector.extract_strided_slice %50 {offsets = [0, 0], sizes = [2, 256], strides = [1, 1]} : vector<2x1024xf32> to vector<2x256xf32>
    %52 = arith.negf %51 : vector<2x256xf32>
    %53 = math.exp %52 : vector<2x256xf32>
    %cst_30 = arith.constant 1.000000e+00 : f32
    %54 = vector.broadcast %cst_30 : f32 to vector<2x256xf32>
    %55 = arith.addf %54, %53 : vector<2x256xf32>
    %56 = arith.divf %54, %55 : vector<2x256xf32>
    %57 = vector.extract_strided_slice %50 {offsets = [0, 256], sizes = [2, 256], strides = [1, 1]} : vector<2x1024xf32> to vector<2x256xf32>
    %58 = arith.negf %57 : vector<2x256xf32>
    %59 = math.exp %58 : vector<2x256xf32>
    %cst_31 = arith.constant 1.000000e+00 : f32
    %60 = vector.broadcast %cst_31 : f32 to vector<2x256xf32>
    %61 = arith.addf %60, %59 : vector<2x256xf32>
    %62 = arith.divf %60, %61 : vector<2x256xf32>
    %63 = vector.extract_strided_slice %50 {offsets = [0, 512], sizes = [2, 256], strides = [1, 1]} : vector<2x1024xf32> to vector<2x256xf32>
    %64 = math.tanh %63 : vector<2x256xf32>
    %65 = vector.extract_strided_slice %50 {offsets = [0, 768], sizes = [2, 256], strides = [1, 1]} : vector<2x1024xf32> to vector<2x256xf32>
    %66 = arith.negf %65 : vector<2x256xf32>
    %67 = math.exp %66 : vector<2x256xf32>
    %cst_32 = arith.constant 1.000000e+00 : f32
    %68 = vector.broadcast %cst_32 : f32 to vector<2x256xf32>
    %69 = arith.addf %68, %67 : vector<2x256xf32>
    %70 = arith.divf %68, %69 : vector<2x256xf32>
    %71 = arith.mulf %62, %41 : vector<2x256xf32>
    %72 = arith.mulf %56, %64 : vector<2x256xf32>
    %73 = arith.addf %71, %72 : vector<2x256xf32>
    %74 = math.tanh %73 : vector<2x256xf32>
    %75 = arith.mulf %70, %74 : vector<2x256xf32>
    %c0_33 = arith.constant 0 : index
    %c1_34 = arith.constant 1 : index
    %c0_35 = arith.constant 0 : index
    %76 = vector.load %arg14[%c0_33, %c1_34, %c0_35] : memref<2x8x256xf32, #tpu.memory_space<vmem>>, vector<2x1x256xf32>
    %77 = vector.shape_cast %76 : vector<2x1x256xf32> to vector<2x256xf32>
    %78 = vector.shape_cast %75 : vector<2x256xf32> to vector<2x1x256xf32>
    tpu.vector_store %arg14[%c0_33, %c1_34, %c0_35], %78 {strides = array<i32>} : memref<2x8x256xf32, #tpu.memory_space<vmem>>, vector<2x1x256xf32>,
    %c0_36 = arith.constant 0 : index
    %c2_37 = arith.constant 2 : index
    %c0_38 = arith.constant 0 : index
    %79 = vector.load %arg1[%c0_36, %c2_37, %c0_38] : memref<2x8x1024xf32, #tpu.memory_space<vmem>>, vector<2x1x1024xf32>
    %80 = vector.shape_cast %79 : vector<2x1x1024xf32> to vector<2x1024xf32>
    %cst_39 = arith.constant dense<0.000000e+00> : vector<2x1024xf32>
    %81 = tpu.matmul %75, %11, %cst_39 {dimension_numbers = #tpu.dot_dimension_numbers<[1], [0], [0], [1], [0, 0, 1, 1], [], []>} : vector<2x256xf32>, vector<256x1024xf32>, vector<2x1024xf32> -> vector<2x1024xf32>
    %82 = arith.addf %80, %81 : vector<2x1024xf32>
    %83 = vector.extract_strided_slice %82 {offsets = [0, 0], sizes = [2, 256], strides = [1, 1]} : vector<2x1024xf32> to vector<2x256xf32>
    %84 = arith.negf %83 : vector<2x256xf32>
    %85 = math.exp %84 : vector<2x256xf32>
    %cst_40 = arith.constant 1.000000e+00 : f32
    %86 = vector.broadcast %cst_40 : f32 to vector<2x256xf32>
    %87 = arith.addf %86, %85 : vector<2x256xf32>
    %88 = arith.divf %86, %87 : vector<2x256xf32>
    %89 = vector.extract_strided_slice %82 {offsets = [0, 256], sizes = [2, 256], strides = [1, 1]} : vector<2x1024xf32> to vector<2x256xf32>
    %90 = arith.negf %89 : vector<2x256xf32>
    %91 = math.exp %90 : vector<2x256xf32>
    %cst_41 = arith.constant 1.000000e+00 : f32
    %92 = vector.broadcast %cst_41 : f32 to vector<2x256xf32>
    %93 = arith.addf %92, %91 : vector<2x256xf32>
    %94 = arith.divf %92, %93 : vector<2x256xf32>
    %95 = vector.extract_strided_slice %82 {offsets = [0, 512], sizes = [2, 256], strides = [1, 1]} : vector<2x1024xf32> to vector<2x256xf32>
    %96 = math.tanh %95 : vector<2x256xf32>
    %97 = vector.extract_strided_slice %82 {offsets = [0, 768], sizes = [2, 256], strides = [1, 1]} : vector<2x1024xf32> to vector<2x256xf32>
    %98 = arith.negf %97 : vector<2x256xf32>
    %99 = math.exp %98 : vector<2x256xf32>
    %cst_42 = arith.constant 1.000000e+00 : f32
    %100 = vector.broadcast %cst_42 : f32 to vector<2x256xf32>
    %101 = arith.addf %100, %99 : vector<2x256xf32>
    %102 = arith.divf %100, %101 : vector<2x256xf32>
    %103 = arith.mulf %94, %73 : vector<2x256xf32>
    %104 = arith.mulf %88, %96 : vector<2x256xf32>
    %105 = arith.addf %103, %104 : vector<2x256xf32>
    %106 = math.tanh %105 : vector<2x256xf32>
    %107 = arith.mulf %102, %106 : vector<2x256xf32>
    %c0_43 = arith.constant 0 : index
    %c2_44 = arith.constant 2 : index
    %c0_45 = arith.constant 0 : index
    %108 = vector.load %arg14[%c0_43, %c2_44, %c0_45] : memref<2x8x256xf32, #tpu.memory_space<vmem>>, vector<2x1x256xf32>
    %109 = vector.shape_cast %108 : vector<2x1x256xf32> to vector<2x256xf32>
    %110 = vector.shape_cast %107 : vector<2x256xf32> to vector<2x1x256xf32>
    tpu.vector_store %arg14[%c0_43, %c2_44, %c0_45], %110 {strides = array<i32>} : memref<2x8x256xf32, #tpu.memory_space<vmem>>, vector<2x1x256xf32>,
    %c0_46 = arith.constant 0 : index
    %c3_47 = arith.constant 3 : index
    %c0_48 = arith.constant 0 : index
    %111 = vector.load %arg1[%c0_46, %c3_47, %c0_48] : memref<2x8x1024xf32, #tpu.memory_space<vmem>>, vector<2x1x1024xf32>
    %112 = vector.shape_cast %111 : vector<2x1x1024xf32> to vector<2x1024xf32>
    %cst_49 = arith.constant dense<0.000000e+00> : vector<2x1024xf32>
    %113 = tpu.matmul %107, %11, %cst_49 {dimension_numbers = #tpu.dot_dimension_numbers<[1], [0], [0], [1], [0, 0, 1, 1], [], []>} : vector<2x256xf32>, vector<256x1024xf32>, vector<2x1024xf32> -> vector<2x1024xf32>
    %114 = arith.addf %112, %113 : vector<2x1024xf32>
    %115 = vector.extract_strided_slice %114 {offsets = [0, 0], sizes = [2, 256], strides = [1, 1]} : vector<2x1024xf32> to vector<2x256xf32>
    %116 = arith.negf %115 : vector<2x256xf32>
    %117 = math.exp %116 : vector<2x256xf32>
    %cst_50 = arith.constant 1.000000e+00 : f32
    %118 = vector.broadcast %cst_50 : f32 to vector<2x256xf32>
    %119 = arith.addf %118, %117 : vector<2x256xf32>
    %120 = arith.divf %118, %119 : vector<2x256xf32>
    %121 = vector.extract_strided_slice %114 {offsets = [0, 256], sizes = [2, 256], strides = [1, 1]} : vector<2x1024xf32> to vector<2x256xf32>
    %122 = arith.negf %121 : vector<2x256xf32>
    %123 = math.exp %122 : vector<2x256xf32>
    %cst_51 = arith.constant 1.000000e+00 : f32
    %124 = vector.broadcast %cst_51 : f32 to vector<2x256xf32>
    %125 = arith.addf %124, %123 : vector<2x256xf32>
    %126 = arith.divf %124, %125 : vector<2x256xf32>
    %127 = vector.extract_strided_slice %114 {offsets = [0, 512], sizes = [2, 256], strides = [1, 1]} : vector<2x1024xf32> to vector<2x256xf32>
    %128 = math.tanh %127 : vector<2x256xf32>
    %129 = vector.extract_strided_slice %114 {offsets = [0, 768], sizes = [2, 256], strides = [1, 1]} : vector<2x1024xf32> to vector<2x256xf32>
    %130 = arith.negf %129 : vector<2x256xf32>
    %131 = math.exp %130 : vector<2x256xf32>
    %cst_52 = arith.constant 1.000000e+00 : f32
    %132 = vector.broadcast %cst_52 : f32 to vector<2x256xf32>
    %133 = arith.addf %132, %131 : vector<2x256xf32>
    %134 = arith.divf %132, %133 : vector<2x256xf32>
    %135 = arith.mulf %126, %105 : vector<2x256xf32>
    %136 = arith.mulf %120, %128 : vector<2x256xf32>
    %137 = arith.addf %135, %136 : vector<2x256xf32>
    %138 = math.tanh %137 : vector<2x256xf32>
    %139 = arith.mulf %134, %138 : vector<2x256xf32>
    %c0_53 = arith.constant 0 : index
    %c3_54 = arith.constant 3 : index
    %c0_55 = arith.constant 0 : index
    %140 = vector.load %arg14[%c0_53, %c3_54, %c0_55] : memref<2x8x256xf32, #tpu.memory_space<vmem>>, vector<2x1x256xf32>
    %141 = vector.shape_cast %140 : vector<2x1x256xf32> to vector<2x256xf32>
    %142 = vector.shape_cast %139 : vector<2x256xf32> to vector<2x1x256xf32>
    tpu.vector_store %arg14[%c0_53, %c3_54, %c0_55], %142 {strides = array<i32>} : memref<2x8x256xf32, #tpu.memory_space<vmem>>, vector<2x1x256xf32>,
    %c0_56 = arith.constant 0 : index
    %c4 = arith.constant 4 : index
    %c0_57 = arith.constant 0 : index
    %143 = vector.load %arg1[%c0_56, %c4, %c0_57] : memref<2x8x1024xf32, #tpu.memory_space<vmem>>, vector<2x1x1024xf32>
    %144 = vector.shape_cast %143 : vector<2x1x1024xf32> to vector<2x1024xf32>
    %cst_58 = arith.constant dense<0.000000e+00> : vector<2x1024xf32>
    %145 = tpu.matmul %139, %11, %cst_58 {dimension_numbers = #tpu.dot_dimension_numbers<[1], [0], [0], [1], [0, 0, 1, 1], [], []>} : vector<2x256xf32>, vector<256x1024xf32>, vector<2x1024xf32> -> vector<2x1024xf32>
    %146 = arith.addf %144, %145 : vector<2x1024xf32>
    %147 = vector.extract_strided_slice %146 {offsets = [0, 0], sizes = [2, 256], strides = [1, 1]} : vector<2x1024xf32> to vector<2x256xf32>
    %148 = arith.negf %147 : vector<2x256xf32>
    %149 = math.exp %148 : vector<2x256xf32>
    %cst_59 = arith.constant 1.000000e+00 : f32
    %150 = vector.broadcast %cst_59 : f32 to vector<2x256xf32>
    %151 = arith.addf %150, %149 : vector<2x256xf32>
    %152 = arith.divf %150, %151 : vector<2x256xf32>
    %153 = vector.extract_strided_slice %146 {offsets = [0, 256], sizes = [2, 256], strides = [1, 1]} : vector<2x1024xf32> to vector<2x256xf32>
    %154 = arith.negf %153 : vector<2x256xf32>
    %155 = math.exp %154 : vector<2x256xf32>
    %cst_60 = arith.constant 1.000000e+00 : f32
    %156 = vector.broadcast %cst_60 : f32 to vector<2x256xf32>
    %157 = arith.addf %156, %155 : vector<2x256xf32>
    %158 = arith.divf %156, %157 : vector<2x256xf32>
    %159 = vector.extract_strided_slice %146 {offsets = [0, 512], sizes = [2, 256], strides = [1, 1]} : vector<2x1024xf32> to vector<2x256xf32>
    %160 = math.tanh %159 : vector<2x256xf32>
    %161 = vector.extract_strided_slice %146 {offsets = [0, 768], sizes = [2, 256], strides = [1, 1]} : vector<2x1024xf32> to vector<2x256xf32>
    %162 = arith.negf %161 : vector<2x256xf32>
    %163 = math.exp %162 : vector<2x256xf32>
    %cst_61 = arith.constant 1.000000e+00 : f32
    %164 = vector.broadcast %cst_61 : f32 to vector<2x256xf32>
    %165 = arith.addf %164, %163 : vector<2x256xf32>
    %166 = arith.divf %164, %165 : vector<2x256xf32>
    %167 = arith.mulf %158, %137 : vector<2x256xf32>
    %168 = arith.mulf %152, %160 : vector<2x256xf32>
    %169 = arith.addf %167, %168 : vector<2x256xf32>
    %170 = math.tanh %169 : vector<2x256xf32>
    %171 = arith.mulf %166, %170 : vector<2x256xf32>
    %c0_62 = arith.constant 0 : index
    %c4_63 = arith.constant 4 : index
    %c0_64 = arith.constant 0 : index
    %172 = vector.load %arg14[%c0_62, %c4_63, %c0_64] : memref<2x8x256xf32, #tpu.memory_space<vmem>>, vector<2x1x256xf32>
    %173 = vector.shape_cast %172 : vector<2x1x256xf32> to vector<2x256xf32>
    %174 = vector.shape_cast %171 : vector<2x256xf32> to vector<2x1x256xf32>
    tpu.vector_store %arg14[%c0_62, %c4_63, %c0_64], %174 {strides = array<i32>} : memref<2x8x256xf32, #tpu.memory_space<vmem>>, vector<2x1x256xf32>,
    %c0_65 = arith.constant 0 : index
    %c5 = arith.constant 5 : index
    %c0_66 = arith.constant 0 : index
    %175 = vector.load %arg1[%c0_65, %c5, %c0_66] : memref<2x8x1024xf32, #tpu.memory_space<vmem>>, vector<2x1x1024xf32>
    %176 = vector.shape_cast %175 : vector<2x1x1024xf32> to vector<2x1024xf32>
    %cst_67 = arith.constant dense<0.000000e+00> : vector<2x1024xf32>
    %177 = tpu.matmul %171, %11, %cst_67 {dimension_numbers = #tpu.dot_dimension_numbers<[1], [0], [0], [1], [0, 0, 1, 1], [], []>} : vector<2x256xf32>, vector<256x1024xf32>, vector<2x1024xf32> -> vector<2x1024xf32>
    %178 = arith.addf %176, %177 : vector<2x1024xf32>
    %179 = vector.extract_strided_slice %178 {offsets = [0, 0], sizes = [2, 256], strides = [1, 1]} : vector<2x1024xf32> to vector<2x256xf32>
    %180 = arith.negf %179 : vector<2x256xf32>
    %181 = math.exp %180 : vector<2x256xf32>
    %cst_68 = arith.constant 1.000000e+00 : f32
    %182 = vector.broadcast %cst_68 : f32 to vector<2x256xf32>
    %183 = arith.addf %182, %181 : vector<2x256xf32>
    %184 = arith.divf %182, %183 : vector<2x256xf32>
    %185 = vector.extract_strided_slice %178 {offsets = [0, 256], sizes = [2, 256], strides = [1, 1]} : vector<2x1024xf32> to vector<2x256xf32>
    %186 = arith.negf %185 : vector<2x256xf32>
    %187 = math.exp %186 : vector<2x256xf32>
    %cst_69 = arith.constant 1.000000e+00 : f32
    %188 = vector.broadcast %cst_69 : f32 to vector<2x256xf32>
    %189 = arith.addf %188, %187 : vector<2x256xf32>
    %190 = arith.divf %188, %189 : vector<2x256xf32>
    %191 = vector.extract_strided_slice %178 {offsets = [0, 512], sizes = [2, 256], strides = [1, 1]} : vector<2x1024xf32> to vector<2x256xf32>
    %192 = math.tanh %191 : vector<2x256xf32>
    %193 = vector.extract_strided_slice %178 {offsets = [0, 768], sizes = [2, 256], strides = [1, 1]} : vector<2x1024xf32> to vector<2x256xf32>
    %194 = arith.negf %193 : vector<2x256xf32>
    %195 = math.exp %194 : vector<2x256xf32>
    %cst_70 = arith.constant 1.000000e+00 : f32
    %196 = vector.broadcast %cst_70 : f32 to vector<2x256xf32>
    %197 = arith.addf %196, %195 : vector<2x256xf32>
    %198 = arith.divf %196, %197 : vector<2x256xf32>
    %199 = arith.mulf %190, %169 : vector<2x256xf32>
    %200 = arith.mulf %184, %192 : vector<2x256xf32>
    %201 = arith.addf %199, %200 : vector<2x256xf32>
    %202 = math.tanh %201 : vector<2x256xf32>
    %203 = arith.mulf %198, %202 : vector<2x256xf32>
    %c0_71 = arith.constant 0 : index
    %c5_72 = arith.constant 5 : index
    %c0_73 = arith.constant 0 : index
    %204 = vector.load %arg14[%c0_71, %c5_72, %c0_73] : memref<2x8x256xf32, #tpu.memory_space<vmem>>, vector<2x1x256xf32>
    %205 = vector.shape_cast %204 : vector<2x1x256xf32> to vector<2x256xf32>
    %206 = vector.shape_cast %203 : vector<2x256xf32> to vector<2x1x256xf32>
    tpu.vector_store %arg14[%c0_71, %c5_72, %c0_73], %206 {strides = array<i32>} : memref<2x8x256xf32, #tpu.memory_space<vmem>>, vector<2x1x256xf32>,
    %c0_74 = arith.constant 0 : index
    %c6 = arith.constant 6 : index
    %c0_75 = arith.constant 0 : index
    %207 = vector.load %arg1[%c0_74, %c6, %c0_75] : memref<2x8x1024xf32, #tpu.memory_space<vmem>>, vector<2x1x1024xf32>
    %208 = vector.shape_cast %207 : vector<2x1x1024xf32> to vector<2x1024xf32>
    %cst_76 = arith.constant dense<0.000000e+00> : vector<2x1024xf32>
    %209 = tpu.matmul %203, %11, %cst_76 {dimension_numbers = #tpu.dot_dimension_numbers<[1], [0], [0], [1], [0, 0, 1, 1], [], []>} : vector<2x256xf32>, vector<256x1024xf32>, vector<2x1024xf32> -> vector<2x1024xf32>
    %210 = arith.addf %208, %209 : vector<2x1024xf32>
    %211 = vector.extract_strided_slice %210 {offsets = [0, 0], sizes = [2, 256], strides = [1, 1]} : vector<2x1024xf32> to vector<2x256xf32>
    %212 = arith.negf %211 : vector<2x256xf32>
    %213 = math.exp %212 : vector<2x256xf32>
    %cst_77 = arith.constant 1.000000e+00 : f32
    %214 = vector.broadcast %cst_77 : f32 to vector<2x256xf32>
    %215 = arith.addf %214, %213 : vector<2x256xf32>
    %216 = arith.divf %214, %215 : vector<2x256xf32>
    %217 = vector.extract_strided_slice %210 {offsets = [0, 256], sizes = [2, 256], strides = [1, 1]} : vector<2x1024xf32> to vector<2x256xf32>
    %218 = arith.negf %217 : vector<2x256xf32>
    %219 = math.exp %218 : vector<2x256xf32>
    %cst_78 = arith.constant 1.000000e+00 : f32
    %220 = vector.broadcast %cst_78 : f32 to vector<2x256xf32>
    %221 = arith.addf %220, %219 : vector<2x256xf32>
    %222 = arith.divf %220, %221 : vector<2x256xf32>
    %223 = vector.extract_strided_slice %210 {offsets = [0, 512], sizes = [2, 256], strides = [1, 1]} : vector<2x1024xf32> to vector<2x256xf32>
    %224 = math.tanh %223 : vector<2x256xf32>
    %225 = vector.extract_strided_slice %210 {offsets = [0, 768], sizes = [2, 256], strides = [1, 1]} : vector<2x1024xf32> to vector<2x256xf32>
    %226 = arith.negf %225 : vector<2x256xf32>
    %227 = math.exp %226 : vector<2x256xf32>
    %cst_79 = arith.constant 1.000000e+00 : f32
    %228 = vector.broadcast %cst_79 : f32 to vector<2x256xf32>
    %229 = arith.addf %228, %227 : vector<2x256xf32>
    %230 = arith.divf %228, %229 : vector<2x256xf32>
    %231 = arith.mulf %222, %201 : vector<2x256xf32>
    %232 = arith.mulf %216, %224 : vector<2x256xf32>
    %233 = arith.addf %231, %232 : vector<2x256xf32>
    %234 = math.tanh %233 : vector<2x256xf32>
    %235 = arith.mulf %230, %234 : vector<2x256xf32>
    %c0_80 = arith.constant 0 : index
    %c6_81 = arith.constant 6 : index
    %c0_82 = arith.constant 0 : index
    %236 = vector.load %arg14[%c0_80, %c6_81, %c0_82] : memref<2x8x256xf32, #tpu.memory_space<vmem>>, vector<2x1x256xf32>
    %237 = vector.shape_cast %236 : vector<2x1x256xf32> to vector<2x256xf32>
    %238 = vector.shape_cast %235 : vector<2x256xf32> to vector<2x1x256xf32>
    tpu.vector_store %arg14[%c0_80, %c6_81, %c0_82], %238 {strides = array<i32>} : memref<2x8x256xf32, #tpu.memory_space<vmem>>, vector<2x1x256xf32>,
    %c0_83 = arith.constant 0 : index
    %c7 = arith.constant 7 : index
    %c0_84 = arith.constant 0 : index
    %239 = vector.load %arg1[%c0_83, %c7, %c0_84] : memref<2x8x1024xf32, #tpu.memory_space<vmem>>, vector<2x1x1024xf32>
    %240 = vector.shape_cast %239 : vector<2x1x1024xf32> to vector<2x1024xf32>
    %cst_85 = arith.constant dense<0.000000e+00> : vector<2x1024xf32>
    %241 = tpu.matmul %235, %11, %cst_85 {dimension_numbers = #tpu.dot_dimension_numbers<[1], [0], [0], [1], [0, 0, 1, 1], [], []>} : vector<2x256xf32>, vector<256x1024xf32>, vector<2x1024xf32> -> vector<2x1024xf32>
    %242 = arith.addf %240, %241 : vector<2x1024xf32>
    %243 = vector.extract_strided_slice %242 {offsets = [0, 0], sizes = [2, 256], strides = [1, 1]} : vector<2x1024xf32> to vector<2x256xf32>
    %244 = arith.negf %243 : vector<2x256xf32>
    %245 = math.exp %244 : vector<2x256xf32>
    %cst_86 = arith.constant 1.000000e+00 : f32
    %246 = vector.broadcast %cst_86 : f32 to vector<2x256xf32>
    %247 = arith.addf %246, %245 : vector<2x256xf32>
    %248 = arith.divf %246, %247 : vector<2x256xf32>
    %249 = vector.extract_strided_slice %242 {offsets = [0, 256], sizes = [2, 256], strides = [1, 1]} : vector<2x1024xf32> to vector<2x256xf32>
    %250 = arith.negf %249 : vector<2x256xf32>
    %251 = math.exp %250 : vector<2x256xf32>
    %cst_87 = arith.constant 1.000000e+00 : f32
    %252 = vector.broadcast %cst_87 : f32 to vector<2x256xf32>
    %253 = arith.addf %252, %251 : vector<2x256xf32>
    %254 = arith.divf %252, %253 : vector<2x256xf32>
    %255 = vector.extract_strided_slice %242 {offsets = [0, 512], sizes = [2, 256], strides = [1, 1]} : vector<2x1024xf32> to vector<2x256xf32>
    %256 = math.tanh %255 : vector<2x256xf32>
    %257 = vector.extract_strided_slice %242 {offsets = [0, 768], sizes = [2, 256], strides = [1, 1]} : vector<2x1024xf32> to vector<2x256xf32>
    %258 = arith.negf %257 : vector<2x256xf32>
    %259 = math.exp %258 : vector<2x256xf32>
    %cst_88 = arith.constant 1.000000e+00 : f32
    %260 = vector.broadcast %cst_88 : f32 to vector<2x256xf32>
    %261 = arith.addf %260, %259 : vector<2x256xf32>
    %262 = arith.divf %260, %261 : vector<2x256xf32>
    %263 = arith.mulf %254, %233 : vector<2x256xf32>
    %264 = arith.mulf %248, %256 : vector<2x256xf32>
    %265 = arith.addf %263, %264 : vector<2x256xf32>
    %266 = math.tanh %265 : vector<2x256xf32>
    %267 = arith.mulf %262, %266 : vector<2x256xf32>
    %c0_89 = arith.constant 0 : index
    %c7_90 = arith.constant 7 : index
    %c0_91 = arith.constant 0 : index
    %268 = vector.load %arg14[%c0_89, %c7_90, %c0_91] : memref<2x8x256xf32, #tpu.memory_space<vmem>>, vector<2x1x256xf32>
    %269 = vector.shape_cast %268 : vector<2x1x256xf32> to vector<2x256xf32>
    %270 = vector.shape_cast %267 : vector<2x256xf32> to vector<2x1x256xf32>
    tpu.vector_store %arg14[%c0_89, %c7_90, %c0_91], %270 {strides = array<i32>} : memref<2x8x256xf32, #tpu.memory_space<vmem>>, vector<2x1x256xf32>,
    %c0_92 = arith.constant 0 : index
    %c0_93 = arith.constant 0 : index
    %c0_94 = arith.constant 0 : index
    %271 = vector.load %arg14[%c0_92, %c0_93, %c0_94] : memref<2x8x256xf32, #tpu.memory_space<vmem>>, vector<1x8x256xf32>
    %272 = vector.shape_cast %271 : vector<1x8x256xf32> to vector<8x256xf32>
    %cst_95 = arith.constant dense<0.000000e+00> : vector<8x1024xf32>
    %273 = tpu.matmul %272, %13, %cst_95 {dimension_numbers = #tpu.dot_dimension_numbers<[1], [0], [0], [1], [0, 0, 1, 1], [], []>} : vector<8x256xf32>, vector<256x1024xf32>, vector<8x1024xf32> -> vector<8x1024xf32>
    %274 = vector.broadcast %14 : vector<1x1024xf32> to vector<8x1024xf32>
    %275 = arith.addf %273, %274 : vector<8x1024xf32>
    %c0_96 = arith.constant 0 : index
    %c0_97 = arith.constant 0 : index
    %c0_98 = arith.constant 0 : index
    %276 = vector.load %arg15[%c0_96, %c0_97, %c0_98] : memref<2x8x1024xf32, #tpu.memory_space<vmem>>, vector<1x8x1024xf32>
    %277 = vector.shape_cast %276 : vector<1x8x1024xf32> to vector<8x1024xf32>
    %278 = vector.shape_cast %275 : vector<8x1024xf32> to vector<1x8x1024xf32>
    tpu.vector_store %arg15[%c0_96, %c0_97, %c0_98], %278 {strides = array<i32>} : memref<2x8x1024xf32, #tpu.memory_space<vmem>>, vector<1x8x1024xf32>,
    %c1_99 = arith.constant 1 : index
    %c0_100 = arith.constant 0 : index
    %c0_101 = arith.constant 0 : index
    %279 = vector.load %arg14[%c1_99, %c0_100, %c0_101] : memref<2x8x256xf32, #tpu.memory_space<vmem>>, vector<1x8x256xf32>
    %280 = vector.shape_cast %279 : vector<1x8x256xf32> to vector<8x256xf32>
    %cst_102 = arith.constant dense<0.000000e+00> : vector<8x1024xf32>
    %281 = tpu.matmul %280, %13, %cst_102 {dimension_numbers = #tpu.dot_dimension_numbers<[1], [0], [0], [1], [0, 0, 1, 1], [], []>} : vector<8x256xf32>, vector<256x1024xf32>, vector<8x1024xf32> -> vector<8x1024xf32>
    %282 = vector.broadcast %14 : vector<1x1024xf32> to vector<8x1024xf32>
    %283 = arith.addf %281, %282 : vector<8x1024xf32>
    %c1_103 = arith.constant 1 : index
    %c0_104 = arith.constant 0 : index
    %c0_105 = arith.constant 0 : index
    %284 = vector.load %arg15[%c1_103, %c0_104, %c0_105] : memref<2x8x1024xf32, #tpu.memory_space<vmem>>, vector<1x8x1024xf32>
    %285 = vector.shape_cast %284 : vector<1x8x1024xf32> to vector<8x1024xf32>
    %286 = vector.shape_cast %283 : vector<8x1024xf32> to vector<1x8x1024xf32>
    tpu.vector_store %arg15[%c1_103, %c0_104, %c0_105], %286 {strides = array<i32>} : memref<2x8x1024xf32, #tpu.memory_space<vmem>>, vector<1x8x1024xf32>,
    %c0_106 = arith.constant 0 : index
    %c0_107 = arith.constant 0 : index
    %c0_108 = arith.constant 0 : index
    %287 = vector.load %arg15[%c0_106, %c0_107, %c0_108] : memref<2x8x1024xf32, #tpu.memory_space<vmem>>, vector<2x1x1024xf32>
    %288 = vector.shape_cast %287 : vector<2x1x1024xf32> to vector<2x1024xf32>
    %cst_109 = arith.constant dense<0.000000e+00> : vector<2x1024xf32>
    %289 = tpu.matmul %8, %12, %cst_109 {dimension_numbers = #tpu.dot_dimension_numbers<[1], [0], [0], [1], [0, 0, 1, 1], [], []>} : vector<2x256xf32>, vector<256x1024xf32>, vector<2x1024xf32> -> vector<2x1024xf32>
    %290 = arith.addf %288, %289 : vector<2x1024xf32>
    %291 = vector.extract_strided_slice %290 {offsets = [0, 0], sizes = [2, 256], strides = [1, 1]} : vector<2x1024xf32> to vector<2x256xf32>
    %292 = arith.negf %291 : vector<2x256xf32>
    %293 = math.exp %292 : vector<2x256xf32>
    %cst_110 = arith.constant 1.000000e+00 : f32
    %294 = vector.broadcast %cst_110 : f32 to vector<2x256xf32>
    %295 = arith.addf %294, %293 : vector<2x256xf32>
    %296 = arith.divf %294, %295 : vector<2x256xf32>
    %297 = vector.extract_strided_slice %290 {offsets = [0, 256], sizes = [2, 256], strides = [1, 1]} : vector<2x1024xf32> to vector<2x256xf32>
    %298 = arith.negf %297 : vector<2x256xf32>
    %299 = math.exp %298 : vector<2x256xf32>
    %cst_111 = arith.constant 1.000000e+00 : f32
    %300 = vector.broadcast %cst_111 : f32 to vector<2x256xf32>
    %301 = arith.addf %300, %299 : vector<2x256xf32>
    %302 = arith.divf %300, %301 : vector<2x256xf32>
    %303 = vector.extract_strided_slice %290 {offsets = [0, 512], sizes = [2, 256], strides = [1, 1]} : vector<2x1024xf32> to vector<2x256xf32>
    %304 = math.tanh %303 : vector<2x256xf32>
    %305 = vector.extract_strided_slice %290 {offsets = [0, 768], sizes = [2, 256], strides = [1, 1]} : vector<2x1024xf32> to vector<2x256xf32>
    %306 = arith.negf %305 : vector<2x256xf32>
    %307 = math.exp %306 : vector<2x256xf32>
    %cst_112 = arith.constant 1.000000e+00 : f32
    %308 = vector.broadcast %cst_112 : f32 to vector<2x256xf32>
    %309 = arith.addf %308, %307 : vector<2x256xf32>
    %310 = arith.divf %308, %309 : vector<2x256xf32>
    %311 = arith.mulf %302, %10 : vector<2x256xf32>
    %312 = arith.mulf %296, %304 : vector<2x256xf32>
    %313 = arith.addf %311, %312 : vector<2x256xf32>
    %314 = math.tanh %313 : vector<2x256xf32>
    %315 = arith.mulf %310, %314 : vector<2x256xf32>
    %c0_113 = arith.constant 0 : index
    %c1_114 = arith.constant 1 : index
    %c0_115 = arith.constant 0 : index
    %316 = vector.load %arg15[%c0_113, %c1_114, %c0_115] : memref<2x8x1024xf32, #tpu.memory_space<vmem>>, vector<2x1x1024xf32>
    %317 = vector.shape_cast %316 : vector<2x1x1024xf32> to vector<2x1024xf32>
    %cst_116 = arith.constant dense<0.000000e+00> : vector<2x1024xf32>
    %318 = tpu.matmul %315, %12, %cst_116 {dimension_numbers = #tpu.dot_dimension_numbers<[1], [0], [0], [1], [0, 0, 1, 1], [], []>} : vector<2x256xf32>, vector<256x1024xf32>, vector<2x1024xf32> -> vector<2x1024xf32>
    %319 = arith.addf %317, %318 : vector<2x1024xf32>
    %320 = vector.extract_strided_slice %319 {offsets = [0, 0], sizes = [2, 256], strides = [1, 1]} : vector<2x1024xf32> to vector<2x256xf32>
    %321 = arith.negf %320 : vector<2x256xf32>
    %322 = math.exp %321 : vector<2x256xf32>
    %cst_117 = arith.constant 1.000000e+00 : f32
    %323 = vector.broadcast %cst_117 : f32 to vector<2x256xf32>
    %324 = arith.addf %323, %322 : vector<2x256xf32>
    %325 = arith.divf %323, %324 : vector<2x256xf32>
    %326 = vector.extract_strided_slice %319 {offsets = [0, 256], sizes = [2, 256], strides = [1, 1]} : vector<2x1024xf32> to vector<2x256xf32>
    %327 = arith.negf %326 : vector<2x256xf32>
    %328 = math.exp %327 : vector<2x256xf32>
    %cst_118 = arith.constant 1.000000e+00 : f32
    %329 = vector.broadcast %cst_118 : f32 to vector<2x256xf32>
    %330 = arith.addf %329, %328 : vector<2x256xf32>
    %331 = arith.divf %329, %330 : vector<2x256xf32>
    %332 = vector.extract_strided_slice %319 {offsets = [0, 512], sizes = [2, 256], strides = [1, 1]} : vector<2x1024xf32> to vector<2x256xf32>
    %333 = math.tanh %332 : vector<2x256xf32>
    %334 = vector.extract_strided_slice %319 {offsets = [0, 768], sizes = [2, 256], strides = [1, 1]} : vector<2x1024xf32> to vector<2x256xf32>
    %335 = arith.negf %334 : vector<2x256xf32>
    %336 = math.exp %335 : vector<2x256xf32>
    %cst_119 = arith.constant 1.000000e+00 : f32
    %337 = vector.broadcast %cst_119 : f32 to vector<2x256xf32>
    %338 = arith.addf %337, %336 : vector<2x256xf32>
    %339 = arith.divf %337, %338 : vector<2x256xf32>
    %340 = arith.mulf %331, %313 : vector<2x256xf32>
    %341 = arith.mulf %325, %333 : vector<2x256xf32>
    %342 = arith.addf %340, %341 : vector<2x256xf32>
    %343 = math.tanh %342 : vector<2x256xf32>
    %344 = arith.mulf %339, %343 : vector<2x256xf32>
    %c0_120 = arith.constant 0 : index
    %c2_121 = arith.constant 2 : index
    %c0_122 = arith.constant 0 : index
    %345 = vector.load %arg15[%c0_120, %c2_121, %c0_122] : memref<2x8x1024xf32, #tpu.memory_space<vmem>>, vector<2x1x1024xf32>
    %346 = vector.shape_cast %345 : vector<2x1x1024xf32> to vector<2x1024xf32>
    %cst_123 = arith.constant dense<0.000000e+00> : vector<2x1024xf32>
    %347 = tpu.matmul %344, %12, %cst_123 {dimension_numbers = #tpu.dot_dimension_numbers<[1], [0], [0], [1], [0, 0, 1, 1], [], []>} : vector<2x256xf32>, vector<256x1024xf32>, vector<2x1024xf32> -> vector<2x1024xf32>
    %348 = arith.addf %346, %347 : vector<2x1024xf32>
    %349 = vector.extract_strided_slice %348 {offsets = [0, 0], sizes = [2, 256], strides = [1, 1]} : vector<2x1024xf32> to vector<2x256xf32>
    %350 = arith.negf %349 : vector<2x256xf32>
    %351 = math.exp %350 : vector<2x256xf32>
    %cst_124 = arith.constant 1.000000e+00 : f32
    %352 = vector.broadcast %cst_124 : f32 to vector<2x256xf32>
    %353 = arith.addf %352, %351 : vector<2x256xf32>
    %354 = arith.divf %352, %353 : vector<2x256xf32>
    %355 = vector.extract_strided_slice %348 {offsets = [0, 256], sizes = [2, 256], strides = [1, 1]} : vector<2x1024xf32> to vector<2x256xf32>
    %356 = arith.negf %355 : vector<2x256xf32>
    %357 = math.exp %356 : vector<2x256xf32>
    %cst_125 = arith.constant 1.000000e+00 : f32
    %358 = vector.broadcast %cst_125 : f32 to vector<2x256xf32>
    %359 = arith.addf %358, %357 : vector<2x256xf32>
    %360 = arith.divf %358, %359 : vector<2x256xf32>
    %361 = vector.extract_strided_slice %348 {offsets = [0, 512], sizes = [2, 256], strides = [1, 1]} : vector<2x1024xf32> to vector<2x256xf32>
    %362 = math.tanh %361 : vector<2x256xf32>
    %363 = vector.extract_strided_slice %348 {offsets = [0, 768], sizes = [2, 256], strides = [1, 1]} : vector<2x1024xf32> to vector<2x256xf32>
    %364 = arith.negf %363 : vector<2x256xf32>
    %365 = math.exp %364 : vector<2x256xf32>
    %cst_126 = arith.constant 1.000000e+00 : f32
    %366 = vector.broadcast %cst_126 : f32 to vector<2x256xf32>
    %367 = arith.addf %366, %365 : vector<2x256xf32>
    %368 = arith.divf %366, %367 : vector<2x256xf32>
    %369 = arith.mulf %360, %342 : vector<2x256xf32>
    %370 = arith.mulf %354, %362 : vector<2x256xf32>
    %371 = arith.addf %369, %370 : vector<2x256xf32>
    %372 = math.tanh %371 : vector<2x256xf32>
    %373 = arith.mulf %368, %372 : vector<2x256xf32>
    %c0_127 = arith.constant 0 : index
    %c3_128 = arith.constant 3 : index
    %c0_129 = arith.constant 0 : index
    %374 = vector.load %arg15[%c0_127, %c3_128, %c0_129] : memref<2x8x1024xf32, #tpu.memory_space<vmem>>, vector<2x1x1024xf32>
    %375 = vector.shape_cast %374 : vector<2x1x1024xf32> to vector<2x1024xf32>
    %cst_130 = arith.constant dense<0.000000e+00> : vector<2x1024xf32>
    %376 = tpu.matmul %373, %12, %cst_130 {dimension_numbers = #tpu.dot_dimension_numbers<[1], [0], [0], [1], [0, 0, 1, 1], [], []>} : vector<2x256xf32>, vector<256x1024xf32>, vector<2x1024xf32> -> vector<2x1024xf32>
    %377 = arith.addf %375, %376 : vector<2x1024xf32>
    %378 = vector.extract_strided_slice %377 {offsets = [0, 0], sizes = [2, 256], strides = [1, 1]} : vector<2x1024xf32> to vector<2x256xf32>
    %379 = arith.negf %378 : vector<2x256xf32>
    %380 = math.exp %379 : vector<2x256xf32>
    %cst_131 = arith.constant 1.000000e+00 : f32
    %381 = vector.broadcast %cst_131 : f32 to vector<2x256xf32>
    %382 = arith.addf %381, %380 : vector<2x256xf32>
    %383 = arith.divf %381, %382 : vector<2x256xf32>
    %384 = vector.extract_strided_slice %377 {offsets = [0, 256], sizes = [2, 256], strides = [1, 1]} : vector<2x1024xf32> to vector<2x256xf32>
    %385 = arith.negf %384 : vector<2x256xf32>
    %386 = math.exp %385 : vector<2x256xf32>
    %cst_132 = arith.constant 1.000000e+00 : f32
    %387 = vector.broadcast %cst_132 : f32 to vector<2x256xf32>
    %388 = arith.addf %387, %386 : vector<2x256xf32>
    %389 = arith.divf %387, %388 : vector<2x256xf32>
    %390 = vector.extract_strided_slice %377 {offsets = [0, 512], sizes = [2, 256], strides = [1, 1]} : vector<2x1024xf32> to vector<2x256xf32>
    %391 = math.tanh %390 : vector<2x256xf32>
    %392 = vector.extract_strided_slice %377 {offsets = [0, 768], sizes = [2, 256], strides = [1, 1]} : vector<2x1024xf32> to vector<2x256xf32>
    %393 = arith.negf %392 : vector<2x256xf32>
    %394 = math.exp %393 : vector<2x256xf32>
    %cst_133 = arith.constant 1.000000e+00 : f32
    %395 = vector.broadcast %cst_133 : f32 to vector<2x256xf32>
    %396 = arith.addf %395, %394 : vector<2x256xf32>
    %397 = arith.divf %395, %396 : vector<2x256xf32>
    %398 = arith.mulf %389, %371 : vector<2x256xf32>
    %399 = arith.mulf %383, %391 : vector<2x256xf32>
    %400 = arith.addf %398, %399 : vector<2x256xf32>
    %401 = math.tanh %400 : vector<2x256xf32>
    %402 = arith.mulf %397, %401 : vector<2x256xf32>
    %c0_134 = arith.constant 0 : index
    %c4_135 = arith.constant 4 : index
    %c0_136 = arith.constant 0 : index
    %403 = vector.load %arg15[%c0_134, %c4_135, %c0_136] : memref<2x8x1024xf32, #tpu.memory_space<vmem>>, vector<2x1x1024xf32>
    %404 = vector.shape_cast %403 : vector<2x1x1024xf32> to vector<2x1024xf32>
    %cst_137 = arith.constant dense<0.000000e+00> : vector<2x1024xf32>
    %405 = tpu.matmul %402, %12, %cst_137 {dimension_numbers = #tpu.dot_dimension_numbers<[1], [0], [0], [1], [0, 0, 1, 1], [], []>} : vector<2x256xf32>, vector<256x1024xf32>, vector<2x1024xf32> -> vector<2x1024xf32>
    %406 = arith.addf %404, %405 : vector<2x1024xf32>
    %407 = vector.extract_strided_slice %406 {offsets = [0, 0], sizes = [2, 256], strides = [1, 1]} : vector<2x1024xf32> to vector<2x256xf32>
    %408 = arith.negf %407 : vector<2x256xf32>
    %409 = math.exp %408 : vector<2x256xf32>
    %cst_138 = arith.constant 1.000000e+00 : f32
    %410 = vector.broadcast %cst_138 : f32 to vector<2x256xf32>
    %411 = arith.addf %410, %409 : vector<2x256xf32>
    %412 = arith.divf %410, %411 : vector<2x256xf32>
    %413 = vector.extract_strided_slice %406 {offsets = [0, 256], sizes = [2, 256], strides = [1, 1]} : vector<2x1024xf32> to vector<2x256xf32>
    %414 = arith.negf %413 : vector<2x256xf32>
    %415 = math.exp %414 : vector<2x256xf32>
    %cst_139 = arith.constant 1.000000e+00 : f32
    %416 = vector.broadcast %cst_139 : f32 to vector<2x256xf32>
    %417 = arith.addf %416, %415 : vector<2x256xf32>
    %418 = arith.divf %416, %417 : vector<2x256xf32>
    %419 = vector.extract_strided_slice %406 {offsets = [0, 512], sizes = [2, 256], strides = [1, 1]} : vector<2x1024xf32> to vector<2x256xf32>
    %420 = math.tanh %419 : vector<2x256xf32>
    %421 = vector.extract_strided_slice %406 {offsets = [0, 768], sizes = [2, 256], strides = [1, 1]} : vector<2x1024xf32> to vector<2x256xf32>
    %422 = arith.negf %421 : vector<2x256xf32>
    %423 = math.exp %422 : vector<2x256xf32>
    %cst_140 = arith.constant 1.000000e+00 : f32
    %424 = vector.broadcast %cst_140 : f32 to vector<2x256xf32>
    %425 = arith.addf %424, %423 : vector<2x256xf32>
    %426 = arith.divf %424, %425 : vector<2x256xf32>
    %427 = arith.mulf %418, %400 : vector<2x256xf32>
    %428 = arith.mulf %412, %420 : vector<2x256xf32>
    %429 = arith.addf %427, %428 : vector<2x256xf32>
    %430 = math.tanh %429 : vector<2x256xf32>
    %431 = arith.mulf %426, %430 : vector<2x256xf32>
    %c0_141 = arith.constant 0 : index
    %c5_142 = arith.constant 5 : index
    %c0_143 = arith.constant 0 : index
    %432 = vector.load %arg15[%c0_141, %c5_142, %c0_143] : memref<2x8x1024xf32, #tpu.memory_space<vmem>>, vector<2x1x1024xf32>
    %433 = vector.shape_cast %432 : vector<2x1x1024xf32> to vector<2x1024xf32>
    %cst_144 = arith.constant dense<0.000000e+00> : vector<2x1024xf32>
    %434 = tpu.matmul %431, %12, %cst_144 {dimension_numbers = #tpu.dot_dimension_numbers<[1], [0], [0], [1], [0, 0, 1, 1], [], []>} : vector<2x256xf32>, vector<256x1024xf32>, vector<2x1024xf32> -> vector<2x1024xf32>
    %435 = arith.addf %433, %434 : vector<2x1024xf32>
    %436 = vector.extract_strided_slice %435 {offsets = [0, 0], sizes = [2, 256], strides = [1, 1]} : vector<2x1024xf32> to vector<2x256xf32>
    %437 = arith.negf %436 : vector<2x256xf32>
    %438 = math.exp %437 : vector<2x256xf32>
    %cst_145 = arith.constant 1.000000e+00 : f32
    %439 = vector.broadcast %cst_145 : f32 to vector<2x256xf32>
    %440 = arith.addf %439, %438 : vector<2x256xf32>
    %441 = arith.divf %439, %440 : vector<2x256xf32>
    %442 = vector.extract_strided_slice %435 {offsets = [0, 256], sizes = [2, 256], strides = [1, 1]} : vector<2x1024xf32> to vector<2x256xf32>
    %443 = arith.negf %442 : vector<2x256xf32>
    %444 = math.exp %443 : vector<2x256xf32>
    %cst_146 = arith.constant 1.000000e+00 : f32
    %445 = vector.broadcast %cst_146 : f32 to vector<2x256xf32>
    %446 = arith.addf %445, %444 : vector<2x256xf32>
    %447 = arith.divf %445, %446 : vector<2x256xf32>
    %448 = vector.extract_strided_slice %435 {offsets = [0, 512], sizes = [2, 256], strides = [1, 1]} : vector<2x1024xf32> to vector<2x256xf32>
    %449 = math.tanh %448 : vector<2x256xf32>
    %450 = vector.extract_strided_slice %435 {offsets = [0, 768], sizes = [2, 256], strides = [1, 1]} : vector<2x1024xf32> to vector<2x256xf32>
    %451 = arith.negf %450 : vector<2x256xf32>
    %452 = math.exp %451 : vector<2x256xf32>
    %cst_147 = arith.constant 1.000000e+00 : f32
    %453 = vector.broadcast %cst_147 : f32 to vector<2x256xf32>
    %454 = arith.addf %453, %452 : vector<2x256xf32>
    %455 = arith.divf %453, %454 : vector<2x256xf32>
    %456 = arith.mulf %447, %429 : vector<2x256xf32>
    %457 = arith.mulf %441, %449 : vector<2x256xf32>
    %458 = arith.addf %456, %457 : vector<2x256xf32>
    %459 = math.tanh %458 : vector<2x256xf32>
    %460 = arith.mulf %455, %459 : vector<2x256xf32>
    %c0_148 = arith.constant 0 : index
    %c6_149 = arith.constant 6 : index
    %c0_150 = arith.constant 0 : index
    %461 = vector.load %arg15[%c0_148, %c6_149, %c0_150] : memref<2x8x1024xf32, #tpu.memory_space<vmem>>, vector<2x1x1024xf32>
    %462 = vector.shape_cast %461 : vector<2x1x1024xf32> to vector<2x1024xf32>
    %cst_151 = arith.constant dense<0.000000e+00> : vector<2x1024xf32>
    %463 = tpu.matmul %460, %12, %cst_151 {dimension_numbers = #tpu.dot_dimension_numbers<[1], [0], [0], [1], [0, 0, 1, 1], [], []>} : vector<2x256xf32>, vector<256x1024xf32>, vector<2x1024xf32> -> vector<2x1024xf32>
    %464 = arith.addf %462, %463 : vector<2x1024xf32>
    %465 = vector.extract_strided_slice %464 {offsets = [0, 0], sizes = [2, 256], strides = [1, 1]} : vector<2x1024xf32> to vector<2x256xf32>
    %466 = arith.negf %465 : vector<2x256xf32>
    %467 = math.exp %466 : vector<2x256xf32>
    %cst_152 = arith.constant 1.000000e+00 : f32
    %468 = vector.broadcast %cst_152 : f32 to vector<2x256xf32>
    %469 = arith.addf %468, %467 : vector<2x256xf32>
    %470 = arith.divf %468, %469 : vector<2x256xf32>
    %471 = vector.extract_strided_slice %464 {offsets = [0, 256], sizes = [2, 256], strides = [1, 1]} : vector<2x1024xf32> to vector<2x256xf32>
    %472 = arith.negf %471 : vector<2x256xf32>
    %473 = math.exp %472 : vector<2x256xf32>
    %cst_153 = arith.constant 1.000000e+00 : f32
    %474 = vector.broadcast %cst_153 : f32 to vector<2x256xf32>
    %475 = arith.addf %474, %473 : vector<2x256xf32>
    %476 = arith.divf %474, %475 : vector<2x256xf32>
    %477 = vector.extract_strided_slice %464 {offsets = [0, 512], sizes = [2, 256], strides = [1, 1]} : vector<2x1024xf32> to vector<2x256xf32>
    %478 = math.tanh %477 : vector<2x256xf32>
    %479 = vector.extract_strided_slice %464 {offsets = [0, 768], sizes = [2, 256], strides = [1, 1]} : vector<2x1024xf32> to vector<2x256xf32>
    %480 = arith.negf %479 : vector<2x256xf32>
    %481 = math.exp %480 : vector<2x256xf32>
    %cst_154 = arith.constant 1.000000e+00 : f32
    %482 = vector.broadcast %cst_154 : f32 to vector<2x256xf32>
    %483 = arith.addf %482, %481 : vector<2x256xf32>
    %484 = arith.divf %482, %483 : vector<2x256xf32>
    %485 = arith.mulf %476, %458 : vector<2x256xf32>
    %486 = arith.mulf %470, %478 : vector<2x256xf32>
    %487 = arith.addf %485, %486 : vector<2x256xf32>
    %488 = math.tanh %487 : vector<2x256xf32>
    %489 = arith.mulf %484, %488 : vector<2x256xf32>
    %c0_155 = arith.constant 0 : index
    %c7_156 = arith.constant 7 : index
    %c0_157 = arith.constant 0 : index
    %490 = vector.load %arg15[%c0_155, %c7_156, %c0_157] : memref<2x8x1024xf32, #tpu.memory_space<vmem>>, vector<2x1x1024xf32>
    %491 = vector.shape_cast %490 : vector<2x1x1024xf32> to vector<2x1024xf32>
    %cst_158 = arith.constant dense<0.000000e+00> : vector<2x1024xf32>
    %492 = tpu.matmul %489, %12, %cst_158 {dimension_numbers = #tpu.dot_dimension_numbers<[1], [0], [0], [1], [0, 0, 1, 1], [], []>} : vector<2x256xf32>, vector<256x1024xf32>, vector<2x1024xf32> -> vector<2x1024xf32>
    %493 = arith.addf %491, %492 : vector<2x1024xf32>
    %494 = vector.extract_strided_slice %493 {offsets = [0, 0], sizes = [2, 256], strides = [1, 1]} : vector<2x1024xf32> to vector<2x256xf32>
    %495 = arith.negf %494 : vector<2x256xf32>
    %496 = math.exp %495 : vector<2x256xf32>
    %cst_159 = arith.constant 1.000000e+00 : f32
    %497 = vector.broadcast %cst_159 : f32 to vector<2x256xf32>
    %498 = arith.addf %497, %496 : vector<2x256xf32>
    %499 = arith.divf %497, %498 : vector<2x256xf32>
    %500 = vector.extract_strided_slice %493 {offsets = [0, 256], sizes = [2, 256], strides = [1, 1]} : vector<2x1024xf32> to vector<2x256xf32>
    %501 = arith.negf %500 : vector<2x256xf32>
    %502 = math.exp %501 : vector<2x256xf32>
    %cst_160 = arith.constant 1.000000e+00 : f32
    %503 = vector.broadcast %cst_160 : f32 to vector<2x256xf32>
    %504 = arith.addf %503, %502 : vector<2x256xf32>
    %505 = arith.divf %503, %504 : vector<2x256xf32>
    %506 = vector.extract_strided_slice %493 {offsets = [0, 512], sizes = [2, 256], strides = [1, 1]} : vector<2x1024xf32> to vector<2x256xf32>
    %507 = math.tanh %506 : vector<2x256xf32>
    %508 = vector.extract_strided_slice %493 {offsets = [0, 768], sizes = [2, 256], strides = [1, 1]} : vector<2x1024xf32> to vector<2x256xf32>
    %509 = arith.negf %508 : vector<2x256xf32>
    %510 = math.exp %509 : vector<2x256xf32>
    %cst_161 = arith.constant 1.000000e+00 : f32
    %511 = vector.broadcast %cst_161 : f32 to vector<2x256xf32>
    %512 = arith.addf %511, %510 : vector<2x256xf32>
    %513 = arith.divf %511, %512 : vector<2x256xf32>
    %514 = arith.mulf %505, %487 : vector<2x256xf32>
    %515 = arith.mulf %499, %507 : vector<2x256xf32>
    %516 = arith.addf %514, %515 : vector<2x256xf32>
    %517 = math.tanh %516 : vector<2x256xf32>
    %518 = arith.mulf %513, %517 : vector<2x256xf32>
    %c0_162 = arith.constant 0 : index
    %c0_163 = arith.constant 0 : index
    %c0_164 = arith.constant 0 : index
    %519 = vector.load %arg13[%c0_162, %c0_163, %c0_164] : memref<4x2x256xf32, #tpu.memory_space<vmem>>, vector<1x2x256xf32>
    %520 = vector.shape_cast %519 : vector<1x2x256xf32> to vector<2x256xf32>
    %521 = vector.shape_cast %267 : vector<2x256xf32> to vector<1x2x256xf32>
    tpu.vector_store %arg13[%c0_162, %c0_163, %c0_164], %521 {strides = array<i32>} : memref<4x2x256xf32, #tpu.memory_space<vmem>>, vector<1x2x256xf32>,
    %c1_165 = arith.constant 1 : index
    %c0_166 = arith.constant 0 : index
    %c0_167 = arith.constant 0 : index
    %522 = vector.load %arg13[%c1_165, %c0_166, %c0_167] : memref<4x2x256xf32, #tpu.memory_space<vmem>>, vector<1x2x256xf32>
    %523 = vector.shape_cast %522 : vector<1x2x256xf32> to vector<2x256xf32>
    %524 = vector.shape_cast %265 : vector<2x256xf32> to vector<1x2x256xf32>
    tpu.vector_store %arg13[%c1_165, %c0_166, %c0_167], %524 {strides = array<i32>} : memref<4x2x256xf32, #tpu.memory_space<vmem>>, vector<1x2x256xf32>,
    %c2_168 = arith.constant 2 : index
    %c0_169 = arith.constant 0 : index
    %c0_170 = arith.constant 0 : index
    %525 = vector.load %arg13[%c2_168, %c0_169, %c0_170] : memref<4x2x256xf32, #tpu.memory_space<vmem>>, vector<1x2x256xf32>
    %526 = vector.shape_cast %525 : vector<1x2x256xf32> to vector<2x256xf32>
    %527 = vector.shape_cast %518 : vector<2x256xf32> to vector<1x2x256xf32>
    tpu.vector_store %arg13[%c2_168, %c0_169, %c0_170], %527 {strides = array<i32>} : memref<4x2x256xf32, #tpu.memory_space<vmem>>, vector<1x2x256xf32>,
    %c3_171 = arith.constant 3 : index
    %c0_172 = arith.constant 0 : index
    %c0_173 = arith.constant 0 : index
    %528 = vector.load %arg13[%c3_171, %c0_172, %c0_173] : memref<4x2x256xf32, #tpu.memory_space<vmem>>, vector<1x2x256xf32>
    %529 = vector.shape_cast %528 : vector<1x2x256xf32> to vector<2x256xf32>
    %530 = vector.shape_cast %516 : vector<2x256xf32> to vector<1x2x256xf32>
    tpu.vector_store %arg13[%c3_171, %c0_172, %c0_173], %530 {strides = array<i32>} : memref<4x2x256xf32, #tpu.memory_space<vmem>>, vector<1x2x256xf32>,
    %c0_i32_174 = arith.constant 0 : i32
    %531 = arith.cmpi eq, %arg0, %c0_i32_174 : i32
    %532 = arith.extui %531 : i1 to i32
    %c0_i32_175 = arith.constant 0 : i32
    %533 = arith.cmpi ne, %532, %c0_i32_175 : i32
    scf.if %533 {
      %c0_176 = arith.constant 0 : index
      %c0_177 = arith.constant 0 : index
      %534 = vector.load %arg6[%c0_176, %c0_177] : memref<256x512xf32, #tpu.memory_space<vmem>>, vector<256x512xf32>
      %cst_178 = arith.constant dense<0.000000e+00> : vector<2x512xf32>
      %535 = tpu.matmul %518, %534, %cst_178 {dimension_numbers = #tpu.dot_dimension_numbers<[1], [0], [0], [1], [0, 0, 1, 1], [], []>} : vector<2x256xf32>, vector<256x512xf32>, vector<2x512xf32> -> vector<2x512xf32>
      %c0_179 = arith.constant 0 : index
      %c0_180 = arith.constant 0 : index
      %536 = vector.load %arg7[%c0_179, %c0_180] : memref<1x512xf32, #tpu.memory_space<vmem>>, vector<1x512xf32>
      %537 = vector.broadcast %536 : vector<1x512xf32> to vector<2x512xf32>
      %538 = arith.addf %535, %537 : vector<2x512xf32>
      %cst_181 = arith.constant 2.000000e-01 : f32
      %539 = vector.broadcast %cst_181 : f32 to vector<2x512xf32>
      %540 = arith.mulf %539, %538 : vector<2x512xf32>
      %541 = arith.maximumf %538, %540 : vector<2x512xf32>
      %c0_182 = arith.constant 0 : index
      %c0_183 = arith.constant 0 : index
      %542 = vector.load %arg8[%c0_182, %c0_183] : memref<512x1024xf32, #tpu.memory_space<vmem>>, vector<512x1024xf32>
      %cst_184 = arith.constant dense<0.000000e+00> : vector<2x1024xf32>
      %543 = tpu.matmul %541, %542, %cst_184 {dimension_numbers = #tpu.dot_dimension_numbers<[1], [0], [0], [1], [0, 0, 1, 1], [], []>} : vector<2x512xf32>, vector<512x1024xf32>, vector<2x1024xf32> -> vector<2x1024xf32>
      %c0_185 = arith.constant 0 : index
      %c0_186 = arith.constant 0 : index
      %544 = vector.load %arg9[%c0_185, %c0_186] : memref<1x1024xf32, #tpu.memory_space<vmem>>, vector<1x1024xf32>
      %545 = vector.broadcast %544 : vector<1x1024xf32> to vector<2x1024xf32>
      %546 = arith.addf %543, %545 : vector<2x1024xf32>
      %cst_187 = arith.constant 2.000000e-01 : f32
      %547 = vector.broadcast %cst_187 : f32 to vector<2x1024xf32>
      %548 = arith.mulf %547, %546 : vector<2x1024xf32>
      %549 = arith.maximumf %546, %548 : vector<2x1024xf32>
      %c0_188 = arith.constant 0 : index
      %c0_189 = arith.constant 0 : index
      %550 = vector.load %arg10[%c0_188, %c0_189] : memref<1024x256xf32, #tpu.memory_space<vmem>>, vector<1024x256xf32>
      %cst_190 = arith.constant dense<0.000000e+00> : vector<2x256xf32>
      %551 = tpu.matmul %549, %550, %cst_190 {dimension_numbers = #tpu.dot_dimension_numbers<[1], [0], [0], [1], [0, 0, 1, 1], [], []>} : vector<2x1024xf32>, vector<1024x256xf32>, vector<2x256xf32> -> vector<2x256xf32>
      %c0_191 = arith.constant 0 : index
      %c0_192 = arith.constant 0 : index
      %552 = vector.load %arg11[%c0_191, %c0_192] : memref<1x256xf32, #tpu.memory_space<vmem>>, vector<1x256xf32>
      %553 = vector.broadcast %552 : vector<1x256xf32> to vector<2x256xf32>
      %554 = arith.addf %551, %553 : vector<2x256xf32>
      %c0_193 = arith.constant 0 : index
      %c0_194 = arith.constant 0 : index
      %555 = vector.load %arg12[%c0_193, %c0_194] : memref<2x256xf32, #tpu.memory_space<vmem>>, vector<2x256xf32>
      tpu.vector_store %arg12[%c0_193, %c0_194], %554 {strides = array<i32>} : memref<2x256xf32, #tpu.memory_space<vmem>>, vector<2x256xf32>,
    } else {
    }
    return
  }
  func.func @transform_0(%arg0: i32) -> (i32, i32, i32) {
    %c0_i32 = arith.constant 0 : i32
    %c0_i32_0 = arith.constant 0 : i32
    %c0_i32_1 = arith.constant 0 : i32
    return %c0_i32, %arg0, %c0_i32_0 : i32, i32, i32
  }
  func.func @transform_1(%arg0: i32) -> (i32, i32) {
    %c0_i32 = arith.constant 0 : i32
    %c0_i32_0 = arith.constant 0 : i32
    %c0_i32_1 = arith.constant 0 : i32
    return %c0_i32, %c0_i32_0 : i32, i32
  }
  func.func @transform_2(%arg0: i32) -> (i32, i32) {
    %c0_i32 = arith.constant 0 : i32
    %c0_i32_0 = arith.constant 0 : i32
    %c0_i32_1 = arith.constant 0 : i32
    return %c0_i32, %c0_i32_0 : i32, i32
  }
  func.func @transform_3(%arg0: i32) -> (i32, i32) {
    %c0_i32 = arith.constant 0 : i32
    %c0_i32_0 = arith.constant 0 : i32
    %c0_i32_1 = arith.constant 0 : i32
    return %c0_i32, %c0_i32_0 : i32, i32
  }
  func.func @transform_4(%arg0: i32) -> (i32, i32) {
    %c0_i32 = arith.constant 0 : i32
    %c0_i32_0 = arith.constant 0 : i32
    %c0_i32_1 = arith.constant 0 : i32
    return %c0_i32, %c0_i32_0 : i32, i32
  }
  func.func @transform_5(%arg0: i32) -> (i32, i32) {
    %c0_i32 = arith.constant 0 : i32
    %c0_i32_0 = arith.constant 0 : i32
    %c0_i32_1 = arith.constant 0 : i32
    return %c0_i32, %c0_i32_0 : i32, i32
  }
  func.func @transform_6(%arg0: i32) -> (i32, i32) {
    %c0_i32 = arith.constant 0 : i32
    %c0_i32_0 = arith.constant 0 : i32
    %c0_i32_1 = arith.constant 0 : i32
    return %c0_i32, %c0_i32_0 : i32, i32
  }
  func.func @transform_7(%arg0: i32) -> (i32, i32) {
    %c0_i32 = arith.constant 0 : i32
    %c0_i32_0 = arith.constant 0 : i32
    %c0_i32_1 = arith.constant 0 : i32
    return %c0_i32, %c0_i32_0 : i32, i32
  }
  func.func @transform_8(%arg0: i32) -> (i32, i32) {
    %c0_i32 = arith.constant 0 : i32
    %c0_i32_0 = arith.constant 0 : i32
    %c0_i32_1 = arith.constant 0 : i32
    return %c0_i32, %c0_i32_0 : i32, i32
  }
  func.func @transform_9(%arg0: i32) -> (i32, i32) {
    %c0_i32 = arith.constant 0 : i32
    %c0_i32_0 = arith.constant 0 : i32
    %c0_i32_1 = arith.constant 0 : i32
    return %c0_i32, %c0_i32_0 : i32, i32
  }
  func.func @transform_10(%arg0: i32) -> (i32, i32) {
    %c0_i32 = arith.constant 0 : i32
    %c0_i32_0 = arith.constant 0 : i32
    %c0_i32_1 = arith.constant 0 : i32
    return %c0_i32, %c0_i32_0 : i32, i32
  }
  func.func @transform_11(%arg0: i32) -> (i32, i32) {
    %c0_i32 = arith.constant 0 : i32
    %c0_i32_0 = arith.constant 0 : i32
    %c0_i32_1 = arith.constant 0 : i32
    return %c0_i32, %c0_i32_0 : i32, i32
  }
}

</mosaic_0001>

<llo_original>
// kernel: encoder_forward.1
$region0: #{encoder_forward.1}
  #allocation0 [shape = 'u32[]', space=smem, size = 0x4, offset = 0x4, fixed_abs, tag = 'smem constant byte address 0x4 - core index']
  #allocation1 [shape = 'u32[144,128]{1,0:T(1,128)}', space=vmem, size = 0x12000, scoped, tag = 'internal scratch']
  #allocation2 [shape = 'f32[4,2,256]{2,1,0:T(2,128)}', space=vmem, size = 0x2000, scoped, tag = 'scratch operand']
  #allocation3 [shape = 'f32[2,8,256]{2,1,0:T(8,128)}', space=vmem, size = 0x4000, scoped, tag = 'scratch operand']
  #allocation4 [shape = 'f32[2,8,1024]{2,1,0:T(8,128)}', space=vmem, size = 0x10000, scoped, tag = 'scratch operand']
  %s0 = inlined_call_operand.vmem [shape: f32[2,8,1024], index: 0, kind: input, shape index: {}]
  %s1 = inlined_call_operand.vmem [shape: f32[256,1024], index: 1, kind: input, shape index: {}]
  %s2 = inlined_call_operand.vmem [shape: f32[256,1024], index: 2, kind: input, shape index: {}]
  %s3 = inlined_call_operand.vmem [shape: f32[256,1024], index: 3, kind: input, shape index: {}]
  %s4 = inlined_call_operand.vmem [shape: f32[1,1024], index: 4, kind: input, shape index: {}]
  %s5 = inlined_call_operand.vmem [shape: f32[256,512], index: 5, kind: input, shape index: {}]
  %s6 = inlined_call_operand.vmem [shape: f32[1,512], index: 6, kind: input, shape index: {}]
  %s7 = inlined_call_operand.vmem [shape: f32[512,1024], index: 7, kind: input, shape index: {}]
  %s8 = inlined_call_operand.vmem [shape: f32[1,1024], index: 8, kind: input, shape index: {}]
  %s9 = inlined_call_operand.vmem [shape: f32[1024,256], index: 9, kind: input, shape index: {}]
  %s10 = inlined_call_operand.vmem [shape: f32[1,256], index: 10, kind: input, shape index: {}]
  %s11 = inlined_call_operand.vmem [shape: f32[2,256], index: 11, kind: output, shape index: {}]
  %s12 = sld [smem:[#allocation0]]
  $region62: #{encoder_forward.1} parent=0
    _
  %s14 = ssub.s32 1, %s12
  %s15 = scalar_select 0, %s14, %s12
  // Predicated region
  $region2: #{encoder_forward.1} parent=0 // pred_check
    _
  $region3: #{encoder_forward.1} parent=0 // pred_check_branch
    %17 = sbr.rel (0) target = $region5
  $region4: #{encoder_forward.1} parent=0 // pred_region
    _
  $region5: #{encoder_forward.1} parent=0 // pred_fallthru
    _
  // Predicated region
  $region6: #{encoder_forward.1} parent=0 // pred_check
    _
  $region7: #{encoder_forward.1} parent=0 // pred_check_branch
    %19 = sbr.rel (0) target = $region9
  $region8: #{encoder_forward.1} parent=0 // pred_region
    _
  $region9: #{encoder_forward.1} parent=0 // pred_fallthru
    _
  // Predicated region
  $region10: #{encoder_forward.1} parent=0 // pred_check
    _
  $region11: #{encoder_forward.1} parent=0 // pred_check_branch
    %21 = sbr.rel (0) target = $region13
  $region12: #{encoder_forward.1} parent=0 // pred_region
    _
  $region13: #{encoder_forward.1} parent=0 // pred_fallthru
    _
  // Predicated region
  $region14: #{encoder_forward.1} parent=0 // pred_check
    _
  $region15: #{encoder_forward.1} parent=0 // pred_check_branch
    %23 = sbr.rel (0) target = $region17
  $region16: #{encoder_forward.1} parent=0 // pred_region
    _
  $region17: #{encoder_forward.1} parent=0 // pred_fallthru
    _
  // Predicated region
  $region18: #{encoder_forward.1} parent=0 // pred_check
    _
  $region19: #{encoder_forward.1} parent=0 // pred_check_branch
    %25 = sbr.rel (0) target = $region21
  $region20: #{encoder_forward.1} parent=0 // pred_region
    _
  $region21: #{encoder_forward.1} parent=0 // pred_fallthru
    _
  // Predicated region
  $region22: #{encoder_forward.1} parent=0 // pred_check
    _
  $region23: #{encoder_forward.1} parent=0 // pred_check_branch
    %27 = sbr.rel (0) target = $region25
  $region24: #{encoder_forward.1} parent=0 // pred_region
    _
  $region25: #{encoder_forward.1} parent=0 // pred_fallthru
    _
  // Predicated region
  $region26: #{encoder_forward.1} parent=0 // pred_check
    _
  $region27: #{encoder_forward.1} parent=0 // pred_check_branch
    %29 = sbr.rel (0) target = $region29
  $region28: #{encoder_forward.1} parent=0 // pred_region
    _
  $region29: #{encoder_forward.1} parent=0 // pred_fallthru
    _
  // Predicated region
  $region30: #{encoder_forward.1} parent=0 // pred_check
    _
  $region31: #{encoder_forward.1} parent=0 // pred_check_branch
    %31 = sbr.rel (0) target = $region33
  $region32: #{encoder_forward.1} parent=0 // pred_region
    _
  $region33: #{encoder_forward.1} parent=0 // pred_fallthru
    _
  // Predicated region
  $region34: #{encoder_forward.1} parent=0 // pred_check
    _
  $region35: #{encoder_forward.1} parent=0 // pred_check_branch
    %33 = sbr.rel (0) target = $region37
  $region36: #{encoder_forward.1} parent=0 // pred_region
    _
  $region37: #{encoder_forward.1} parent=0 // pred_fallthru
    _
  // Predicated region
  $region38: #{encoder_forward.1} parent=0 // pred_check
    _
  $region39: #{encoder_forward.1} parent=0 // pred_check_branch
    %35 = sbr.rel (0) target = $region41
  $region40: #{encoder_forward.1} parent=0 // pred_region
    _
  $region41: #{encoder_forward.1} parent=0 // pred_fallthru
    _
  // Predicated region
  $region42: #{encoder_forward.1} parent=0 // pred_check
    _
  $region43: #{encoder_forward.1} parent=0 // pred_check_branch
    %37 = sbr.rel (0) target = $region45
  $region44: #{encoder_forward.1} parent=0 // pred_region
    _
  $region45: #{encoder_forward.1} parent=0 // pred_fallthru
    _
  %p38 = scmp.eq.s32.totalorder 0, 0
  // Predicated region
  $region46: #{encoder_forward.1} parent=0 // pred_check
    %p39 = pneg %p38
  $region47: #{encoder_forward.1} parent=0 // pred_check_branch
    %41 = sbr.rel (%p39) target = $region49
  $region48: #{encoder_forward.1} parent=0 // pred_region
    %42 = vst [vmem:[#allocation2] sm:$0xf] 0.0
    %43 = vst [vmem:[#allocation2 + $0x4] sm:$0xf] 0.0
    %44 = vst [vmem:[#allocation2 + $0x8] sm:$0xf] 0.0
    %45 = vst [vmem:[#allocation2 + $0xc] sm:$0xf] 0.0
  $region49: #{encoder_forward.1} parent=0 // pred_fallthru
    _
  %v46 = vld [vmem:[#allocation2] sm:$0xf]
  %s47 = scalar_lea.vmem [#allocation2], 4
  %v48 = vld [vmem:[%s47] sm:$0xf]
  %s49 = scalar_lea.vmem [#allocation2], 8
  %v50 = vld [vmem:[%s49] sm:$0xf]
  %s51 = scalar_lea.vmem [#allocation2], 12
  %v52 = vld [vmem:[%s51] sm:$0xf]
  %v53 = vld [vmem:[%s1] sm:$0xff]
  %v54 = vld [vmem:[%s1 + $0x8] sm:$0xff]
  %v55 = vld [vmem:[%s1 + $0x10] sm:$0xff]
  %v56 = vld [vmem:[%s1 + $0x18] sm:$0xff]
  %v57 = vld [vmem:[%s1 + $0x20] sm:$0xff]
  %v58 = vld [vmem:[%s1 + $0x28] sm:$0xff]
  %v59 = vld [vmem:[%s1 + $0x30] sm:$0xff]
  %v60 = vld [vmem:[%s1 + $0x38] sm:$0xff]
  %v61 = vld [vmem:[%s1 + $0x40] sm:$0xff]
  %v62 = vld [vmem:[%s1 + $0x48] sm:$0xff]
  %v63 = vld [vmem:[%s1 + $0x50] sm:$0xff]
  %v64 = vld [vmem:[%s1 + $0x58] sm:$0xff]
  %v65 = vld [vmem:[%s1 + $0x60] sm:$0xff]
  %v66 = vld [vmem:[%s1 + $0x68] sm:$0xff]
  %v67 = vld [vmem:[%s1 + $0x70] sm:$0xff]
  %v68 = vld [vmem:[%s1 + $0x78] sm:$0xff]
  %v69 = vld [vmem:[%s1 + $0x80] sm:$0xff]
  %v70 = vld [vmem:[%s1 + $0x88] sm:$0xff]
  %v71 = vld [vmem:[%s1 + $0x90] sm:$0xff]
  %v72 = vld [vmem:[%s1 + $0x98] sm:$0xff]
  %v73 = vld [vmem:[%s1 + $0xa0] sm:$0xff]
  %v74 = vld [vmem:[%s1 + $0xa8] sm:$0xff]
  %v75 = vld [vmem:[%s1 + $0xb0] sm:$0xff]
  %v76 = vld [vmem:[%s1 + $0xb8] sm:$0xff]
  %v77 = vld [vmem:[%s1 + $0xc0] sm:$0xff]
  %v78 = vld [vmem:[%s1 + $0xc8] sm:$0xff]
  %v79 = vld [vmem:[%s1 + $0xd0] sm:$0xff]
  %v80 = vld [vmem:[%s1 + $0xd8] sm:$0xff]
  %v81 = vld [vmem:[%s1 + $0xe0] sm:$0xff]
  %v82 = vld [vmem:[%s1 + $0xe8] sm:$0xff]
  %v83 = vld [vmem:[%s1 + $0xf0] sm:$0xff]
  %v84 = vld [vmem:[%s1 + $0xf8] sm:$0xff]
  %v85 = vld [vmem:[%s1 + $0x100] sm:$0xff]
  %v86 = vld [vmem:[%s1 + $0x108] sm:$0xff]
  %v87 = vld [vmem:[%s1 + $0x110] sm:$0xff]
  %v88 = vld [vmem:[%s1 + $0x118] sm:$0xff]
  %v89 = vld [vmem:[%s1 + $0x120] sm:$0xff]
  %v90 = vld [vmem:[%s1 + $0x128] sm:$0xff]
  %v91 = vld [vmem:[%s1 + $0x130] sm:$0xff]
  %v92 = vld [vmem:[%s1 + $0x138] sm:$0xff]
  %v93 = vld [vmem:[%s1 + $0x140] sm:$0xff]
  %v94 = vld [vmem:[%s1 + $0x148] sm:$0xff]
  %v95 = vld [vmem:[%s1 + $0x150] sm:$0xff]
  %v96 = vld [vmem:[%s1 + $0x158] sm:$0xff]
  %v97 = vld [vmem:[%s1 + $0x160] sm:$0xff]
  %v98 = vld [vmem:[%s1 + $0x168] sm:$0xff]
  %v99 = vld [vmem:[%s1 + $0x170] sm:$0xff]
  %v100 = vld [vmem:[%s1 + $0x178] sm:$0xff]
  %v101 = vld [vmem:[%s1 + $0x180] sm:$0xff]
  %v102 = vld [vmem:[%s1 + $0x188] sm:$0xff]
  %v103 = vld [vmem:[%s1 + $0x190] sm:$0xff]
  %v104 = vld [vmem:[%s1 + $0x198] sm:$0xff]
  %v105 = vld [vmem:[%s1 + $0x1a0] sm:$0xff]
  %v106 = vld [vmem:[%s1 + $0x1a8] sm:$0xff]
  %v107 = vld [vmem:[%s1 + $0x1b0] sm:$0xff]
  %v108 = vld [vmem:[%s1 + $0x1b8] sm:$0xff]
  %v109 = vld [vmem:[%s1 + $0x1c0] sm:$0xff]
  %v110 = vld [vmem:[%s1 + $0x1c8] sm:$0xff]
  %v111 = vld [vmem:[%s1 + $0x1d0] sm:$0xff]
  %v112 = vld [vmem:[%s1 + $0x1d8] sm:$0xff]
  %v113 = vld [vmem:[%s1 + $0x1e0] sm:$0xff]
  %v114 = vld [vmem:[%s1 + $0x1e8] sm:$0xff]
  %v115 = vld [vmem:[%s1 + $0x1f0] sm:$0xff]
  %v116 = vld [vmem:[%s1 + $0x1f8] sm:$0xff]
  %v117 = vld [vmem:[%s1 + $0x200] sm:$0xff]
  %v118 = vld [vmem:[%s1 + $0x208] sm:$0xff]
  %v119 = vld [vmem:[%s1 + $0x210] sm:$0xff]
  %v120 = vld [vmem:[%s1 + $0x218] sm:$0xff]
  %v121 = vld [vmem:[%s1 + $0x220] sm:$0xff]
  %v122 = vld [vmem:[%s1 + $0x228] sm:$0xff]
  %v123 = vld [vmem:[%s1 + $0x230] sm:$0xff]
  %v124 = vld [vmem:[%s1 + $0x238] sm:$0xff]
  %v125 = vld [vmem:[%s1 + $0x240] sm:$0xff]
  %v126 = vld [vmem:[%s1 + $0x248] sm:$0xff]
  %v127 = vld [vmem:[%s1 + $0x250] sm:$0xff]
  %v128 = vld [vmem:[%s1 + $0x258] sm:$0xff]
  %v129 = vld [vmem:[%s1 + $0x260] sm:$0xff]
  %v130 = vld [vmem:[%s1 + $0x268] sm:$0xff]
  %v131 = vld [vmem:[%s1 + $0x270] sm:$0xff]
  %v132 = vld [vmem:[%s1 + $0x278] sm:$0xff]
  %v133 = vld [vmem:[%s1 + $0x280] sm:$0xff]
  %v134 = vld [vmem:[%s1 + $0x288] sm:$0xff]
  %v135 = vld [vmem:[%s1 + $0x290] sm:$0xff]
  %v136 = vld [vmem:[%s1 + $0x298] sm:$0xff]
  %v137 = vld [vmem:[%s1 + $0x2a0] sm:$0xff]
  %v138 = vld [vmem:[%s1 + $0x2a8] sm:$0xff]
  %v139 = vld [vmem:[%s1 + $0x2b0] sm:$0xff]
  %v140 = vld [vmem:[%s1 + $0x2b8] sm:$0xff]
  %v141 = vld [vmem:[%s1 + $0x2c0] sm:$0xff]
  %v142 = vld [vmem:[%s1 + $0x2c8] sm:$0xff]
  %v143 = vld [vmem:[%s1 + $0x2d0] sm:$0xff]
  %v144 = vld [vmem:[%s1 + $0x2d8] sm:$0xff]
  %v145 = vld [vmem:[%s1 + $0x2e0] sm:$0xff]
  %v146 = vld [vmem:[%s1 + $0x2e8] sm:$0xff]
  %v147 = vld [vmem:[%s1 + $0x2f0] sm:$0xff]
  %v148 = vld [vmem:[%s1 + $0x2f8] sm:$0xff]
  %v149 = vld [vmem:[%s1 + $0x300] sm:$0xff]
  %v150 = vld [vmem:[%s1 + $0x308] sm:$0xff]
  %v151 = vld [vmem:[%s1 + $0x310] sm:$0xff]
  %v152 = vld [vmem:[%s1 + $0x318] sm:$0xff]
  %v153 = vld [vmem:[%s1 + $0x320] sm:$0xff]
  %v154 = vld [vmem:[%s1 + $0x328] sm:$0xff]
  %v155 = vld [vmem:[%s1 + $0x330] sm:$0xff]
  %v156 = vld [vmem:[%s1 + $0x338] sm:$0xff]
  %v157 = vld [vmem:[%s1 + $0x340] sm:$0xff]
  %v158 = vld [vmem:[%s1 + $0x348] sm:$0xff]
  %v159 = vld [vmem:[%s1 + $0x350] sm:$0xff]
  %v160 = vld [vmem:[%s1 + $0x358] sm:$0xff]
  %v161 = vld [vmem:[%s1 + $0x360] sm:$0xff]
  %v162 = vld [vmem:[%s1 + $0x368] sm:$0xff]
  %v163 = vld [vmem:[%s1 + $0x370] sm:$0xff]
  %v164 = vld [vmem:[%s1 + $0x378] sm:$0xff]
  %v165 = vld [vmem:[%s1 + $0x380] sm:$0xff]
  %v166 = vld [vmem:[%s1 + $0x388] sm:$0xff]
  %v167 = vld [vmem:[%s1 + $0x390] sm:$0xff]
  %v168 = vld [vmem:[%s1 + $0x398] sm:$0xff]
  %v169 = vld [vmem:[%s1 + $0x3a0] sm:$0xff]
  %v170 = vld [vmem:[%s1 + $0x3a8] sm:$0xff]
  %v171 = vld [vmem:[%s1 + $0x3b0] sm:$0xff]
  %v172 = vld [vmem:[%s1 + $0x3b8] sm:$0xff]
  %v173 = vld [vmem:[%s1 + $0x3c0] sm:$0xff]
  %v174 = vld [vmem:[%s1 + $0x3c8] sm:$0xff]
  %v175 = vld [vmem:[%s1 + $0x3d0] sm:$0xff]
  %v176 = vld [vmem:[%s1 + $0x3d8] sm:$0xff]
  %v177 = vld [vmem:[%s1 + $0x3e0] sm:$0xff]
  %v178 = vld [vmem:[%s1 + $0x3e8] sm:$0xff]
  %v179 = vld [vmem:[%s1 + $0x3f0] sm:$0xff]
  %v180 = vld [vmem:[%s1 + $0x3f8] sm:$0xff]
  %v181 = vld [vmem:[%s1 + $0x400] sm:$0xff]
  %v182 = vld [vmem:[%s1 + $0x408] sm:$0xff]
  %v183 = vld [vmem:[%s1 + $0x410] sm:$0xff]
  %v184 = vld [vmem:[%s1 + $0x418] sm:$0xff]
  %v185 = vld [vmem:[%s1 + $0x420] sm:$0xff]
  %v186 = vld [vmem:[%s1 + $0x428] sm:$0xff]
  %v187 = vld [vmem:[%s1 + $0x430] sm:$0xff]
  %v188 = vld [vmem:[%s1 + $0x438] sm:$0xff]
  %v189 = vld [vmem:[%s1 + $0x440] sm:$0xff]
  %v190 = vld [vmem:[%s1 + $0x448] sm:$0xff]
  %v191 = vld [vmem:[%s1 + $0x450] sm:$0xff]
  %v192 = vld [vmem:[%s1 + $0x458] sm:$0xff]
  %v193 = vld [vmem:[%s1 + $0x460] sm:$0xff]
  %v194 = vld [vmem:[%s1 + $0x468] sm:$0xff]
  %v195 = vld [vmem:[%s1 + $0x470] sm:$0xff]
  %v196 = vld [vmem:[%s1 + $0x478] sm:$0xff]
  %v197 = vld [vmem:[%s1 + $0x480] sm:$0xff]
  %v198 = vld [vmem:[%s1 + $0x488] sm:$0xff]
  %v199 = vld [vmem:[%s1 + $0x490] sm:$0xff]
  %v200 = vld [vmem:[%s1 + $0x498] sm:$0xff]
  %v201 = vld [vmem:[%s1 + $0x4a0] sm:$0xff]
  %v202 = vld [vmem:[%s1 + $0x4a8] sm:$0xff]
  %v203 = vld [vmem:[%s1 + $0x4b0] sm:$0xff]
  %v204 = vld [vmem:[%s1 + $0x4b8] sm:$0xff]
  %v205 = vld [vmem:[%s1 + $0x4c0] sm:$0xff]
  %v206 = vld [vmem:[%s1 + $0x4c8] sm:$0xff]
  %v207 = vld [vmem:[%s1 + $0x4d0] sm:$0xff]
  %v208 = vld [vmem:[%s1 + $0x4d8] sm:$0xff]
  %v209 = vld [vmem:[%s1 + $0x4e0] sm:$0xff]
  %v210 = vld [vmem:[%s1 + $0x4e8] sm:$0xff]
  %v211 = vld [vmem:[%s1 + $0x4f0] sm:$0xff]
  %v212 = vld [vmem:[%s1 + $0x4f8] sm:$0xff]
  %v213 = vld [vmem:[%s1 + $0x500] sm:$0xff]
  %v214 = vld [vmem:[%s1 + $0x508] sm:$0xff]
  %v215 = vld [vmem:[%s1 + $0x510] sm:$0xff]
  %v216 = vld [vmem:[%s1 + $0x518] sm:$0xff]
  %v217 = vld [vmem:[%s1 + $0x520] sm:$0xff]
  %v218 = vld [vmem:[%s1 + $0x528] sm:$0xff]
  %v219 = vld [vmem:[%s1 + $0x530] sm:$0xff]
  %v220 = vld [vmem:[%s1 + $0x538] sm:$0xff]
  %v221 = vld [vmem:[%s1 + $0x540] sm:$0xff]
  %v222 = vld [vmem:[%s1 + $0x548] sm:$0xff]
  %v223 = vld [vmem:[%s1 + $0x550] sm:$0xff]
  %v224 = vld [vmem:[%s1 + $0x558] sm:$0xff]
  %v225 = vld [vmem:[%s1 + $0x560] sm:$0xff]
  %v226 = vld [vmem:[%s1 + $0x568] sm:$0xff]
  %v227 = vld [vmem:[%s1 + $0x570] sm:$0xff]
  %v228 = vld [vmem:[%s1 + $0x578] sm:$0xff]
  %v229 = vld [vmem:[%s1 + $0x580] sm:$0xff]
  %v230 = vld [vmem:[%s1 + $0x588] sm:$0xff]
  %v231 = vld [vmem:[%s1 + $0x590] sm:$0xff]
  %v232 = vld [vmem:[%s1 + $0x598] sm:$0xff]
  %v233 = vld [vmem:[%s1 + $0x5a0] sm:$0xff]
  %v234 = vld [vmem:[%s1 + $0x5a8] sm:$0xff]
  %v235 = vld [vmem:[%s1 + $0x5b0] sm:$0xff]
  %v236 = vld [vmem:[%s1 + $0x5b8] sm:$0xff]
  %v237 = vld [vmem:[%s1 + $0x5c0] sm:$0xff]
  %v238 = vld [vmem:[%s1 + $0x5c8] sm:$0xff]
  %v239 = vld [vmem:[%s1 + $0x5d0] sm:$0xff]
  %v240 = vld [vmem:[%s1 + $0x5d8] sm:$0xff]
  %v241 = vld [vmem:[%s1 + $0x5e0] sm:$0xff]
  %v242 = vld [vmem:[%s1 + $0x5e8] sm:$0xff]
  %v243 = vld [vmem:[%s1 + $0x5f0] sm:$0xff]
  %v244 = vld [vmem:[%s1 + $0x5f8] sm:$0xff]
  %v245 = vld [vmem:[%s1 + $0x600] sm:$0xff]
  %v246 = vld [vmem:[%s1 + $0x608] sm:$0xff]
  %v247 = vld [vmem:[%s1 + $0x610] sm:$0xff]
  %v248 = vld [vmem:[%s1 + $0x618] sm:$0xff]
  %v249 = vld [vmem:[%s1 + $0x620] sm:$0xff]
  %v250 = vld [vmem:[%s1 + $0x628] sm:$0xff]
  %v251 = vld [vmem:[%s1 + $0x630] sm:$0xff]
  %v252 = vld [vmem:[%s1 + $0x638] sm:$0xff]
  %v253 = vld [vmem:[%s1 + $0x640] sm:$0xff]
  %v254 = vld [vmem:[%s1 + $0x648] sm:$0xff]
  %v255 = vld [vmem:[%s1 + $0x650] sm:$0xff]
  %v256 = vld [vmem:[%s1 + $0x658] sm:$0xff]
  %v257 = vld [vmem:[%s1 + $0x660] sm:$0xff]
  %v258 = vld [vmem:[%s1 + $0x668] sm:$0xff]
  %v259 = vld [vmem:[%s1 + $0x670] sm:$0xff]
  %v260 = vld [vmem:[%s1 + $0x678] sm:$0xff]
  %v261 = vld [vmem:[%s1 + $0x680] sm:$0xff]
  %v262 = vld [vmem:[%s1 + $0x688] sm:$0xff]
  %v263 = vld [vmem:[%s1 + $0x690] sm:$0xff]
  %v264 = vld [vmem:[%s1 + $0x698] sm:$0xff]
  %v265 = vld [vmem:[%s1 + $0x6a0] sm:$0xff]
  %v266 = vld [vmem:[%s1 + $0x6a8] sm:$0xff]
  %v267 = vld [vmem:[%s1 + $0x6b0] sm:$0xff]
  %v268 = vld [vmem:[%s1 + $0x6b8] sm:$0xff]
  %v269 = vld [vmem:[%s1 + $0x6c0] sm:$0xff]
  %v270 = vld [vmem:[%s1 + $0x6c8] sm:$0xff]
  %v271 = vld [vmem:[%s1 + $0x6d0] sm:$0xff]
  %v272 = vld [vmem:[%s1 + $0x6d8] sm:$0xff]
  %v273 = vld [vmem:[%s1 + $0x6e0] sm:$0xff]
  %v274 = vld [vmem:[%s1 + $0x6e8] sm:$0xff]
  %v275 = vld [vmem:[%s1 + $0x6f0] sm:$0xff]
  %v276 = vld [vmem:[%s1 + $0x6f8] sm:$0xff]
  %v277 = vld [vmem:[%s1 + $0x700] sm:$0xff]
  %v278 = vld [vmem:[%s1 + $0x708] sm:$0xff]
  %v279 = vld [vmem:[%s1 + $0x710] sm:$0xff]
  %v280 = vld [vmem:[%s1 + $0x718] sm:$0xff]
  %v281 = vld [vmem:[%s1 + $0x720] sm:$0xff]
  %v282 = vld [vmem:[%s1 + $0x728] sm:$0xff]
  %v283 = vld [vmem:[%s1 + $0x730] sm:$0xff]
  %v284 = vld [vmem:[%s1 + $0x738] sm:$0xff]
  %v285 = vld [vmem:[%s1 + $0x740] sm:$0xff]
  %v286 = vld [vmem:[%s1 + $0x748] sm:$0xff]
  %v287 = vld [vmem:[%s1 + $0x750] sm:$0xff]
  %v288 = vld [vmem:[%s1 + $0x758] sm:$0xff]
  %v289 = vld [vmem:[%s1 + $0x760] sm:$0xff]
  %v290 = vld [vmem:[%s1 + $0x768] sm:$0xff]
  %v291 = vld [vmem:[%s1 + $0x770] sm:$0xff]
  %v292 = vld [vmem:[%s1 + $0x778] sm:$0xff]
  %v293 = vld [vmem:[%s1 + $0x780] sm:$0xff]
  %v294 = vld [vmem:[%s1 + $0x788] sm:$0xff]
  %v295 = vld [vmem:[%s1 + $0x790] sm:$0xff]
  %v296 = vld [vmem:[%s1 + $0x798] sm:$0xff]
  %v297 = vld [vmem:[%s1 + $0x7a0] sm:$0xff]
  %v298 = vld [vmem:[%s1 + $0x7a8] sm:$0xff]
  %v299 = vld [vmem:[%s1 + $0x7b0] sm:$0xff]
  %v300 = vld [vmem:[%s1 + $0x7b8] sm:$0xff]
  %v301 = vld [vmem:[%s1 + $0x7c0] sm:$0xff]
  %v302 = vld [vmem:[%s1 + $0x7c8] sm:$0xff]
  %v303 = vld [vmem:[%s1 + $0x7d0] sm:$0xff]
  %v304 = vld [vmem:[%s1 + $0x7d8] sm:$0xff]
  %v305 = vld [vmem:[%s1 + $0x7e0] sm:$0xff]
  %v306 = vld [vmem:[%s1 + $0x7e8] sm:$0xff]
  %v307 = vld [vmem:[%s1 + $0x7f0] sm:$0xff]
  %v308 = vld [vmem:[%s1 + $0x7f8] sm:$0xff]
  %v309 = vld [vmem:[%s3] sm:$0xff]
  %v310 = vld [vmem:[%s3 + $0x8] sm:$0xff]
  %v311 = vld [vmem:[%s3 + $0x10] sm:$0xff]
  %v312 = vld [vmem:[%s3 + $0x18] sm:$0xff]
  %v313 = vld [vmem:[%s3 + $0x20] sm:$0xff]
  %v314 = vld [vmem:[%s3 + $0x28] sm:$0xff]
  %v315 = vld [vmem:[%s3 + $0x30] sm:$0xff]
  %v316 = vld [vmem:[%s3 + $0x38] sm:$0xff]
  %v317 = vld [vmem:[%s3 + $0x40] sm:$0xff]
  %v318 = vld [vmem:[%s3 + $0x48] sm:$0xff]
  %v319 = vld [vmem:[%s3 + $0x50] sm:$0xff]
  %v320 = vld [vmem:[%s3 + $0x58] sm:$0xff]
  %v321 = vld [vmem:[%s3 + $0x60] sm:$0xff]
  %v322 = vld [vmem:[%s3 + $0x68] sm:$0xff]
  %v323 = vld [vmem:[%s3 + $0x70] sm:$0xff]
  %v324 = vld [vmem:[%s3 + $0x78] sm:$0xff]
  %v325 = vld [vmem:[%s3 + $0x80] sm:$0xff]
  %v326 = vld [vmem:[%s3 + $0x88] sm:$0xff]
  %v327 = vld [vmem:[%s3 + $0x90] sm:$0xff]
  %v328 = vld [vmem:[%s3 + $0x98] sm:$0xff]
  %v329 = vld [vmem:[%s3 + $0xa0] sm:$0xff]
  %v330 = vld [vmem:[%s3 + $0xa8] sm:$0xff]
  %v331 = vld [vmem:[%s3 + $0xb0] sm:$0xff]
  %v332 = vld [vmem:[%s3 + $0xb8] sm:$0xff]
  %v333 = vld [vmem:[%s3 + $0xc0] sm:$0xff]
  %v334 = vld [vmem:[%s3 + $0xc8] sm:$0xff]
  %v335 = vld [vmem:[%s3 + $0xd0] sm:$0xff]
  %v336 = vld [vmem:[%s3 + $0xd8] sm:$0xff]
  %v337 = vld [vmem:[%s3 + $0xe0] sm:$0xff]
  %v338 = vld [vmem:[%s3 + $0xe8] sm:$0xff]
  %v339 = vld [vmem:[%s3 + $0xf0] sm:$0xff]
  %v340 = vld [vmem:[%s3 + $0xf8] sm:$0xff]
  %v341 = vld [vmem:[%s3 + $0x100] sm:$0xff]
  %v342 = vld [vmem:[%s3 + $0x108] sm:$0xff]
  %v343 = vld [vmem:[%s3 + $0x110] sm:$0xff]
  %v344 = vld [vmem:[%s3 + $0x118] sm:$0xff]
  %v345 = vld [vmem:[%s3 + $0x120] sm:$0xff]
  %v346 = vld [vmem:[%s3 + $0x128] sm:$0xff]
  %v347 = vld [vmem:[%s3 + $0x130] sm:$0xff]
  %v348 = vld [vmem:[%s3 + $0x138] sm:$0xff]
  %v349 = vld [vmem:[%s3 + $0x140] sm:$0xff]
  %v350 = vld [vmem:[%s3 + $0x148] sm:$0xff]
  %v351 = vld [vmem:[%s3 + $0x150] sm:$0xff]
  %v352 = vld [vmem:[%s3 + $0x158] sm:$0xff]
  %v353 = vld [vmem:[%s3 + $0x160] sm:$0xff]
  %v354 = vld [vmem:[%s3 + $0x168] sm:$0xff]
  %v355 = vld [vmem:[%s3 + $0x170] sm:$0xff]
  %v356 = vld [vmem:[%s3 + $0x178] sm:$0xff]
  %v357 = vld [vmem:[%s3 + $0x180] sm:$0xff]
  %v358 = vld [vmem:[%s3 + $0x188] sm:$0xff]
  %v359 = vld [vmem:[%s3 + $0x190] sm:$0xff]
  %v360 = vld [vmem:[%s3 + $0x198] sm:$0xff]
  %v361 = vld [vmem:[%s3 + $0x1a0] sm:$0xff]
  %v362 = vld [vmem:[%s3 + $0x1a8] sm:$0xff]
  %v363 = vld [vmem:[%s3 + $0x1b0] sm:$0xff]
  %v364 = vld [vmem:[%s3 + $0x1b8] sm:$0xff]
  %v365 = vld [vmem:[%s3 + $0x1c0] sm:$0xff]
  %v366 = vld [vmem:[%s3 + $0x1c8] sm:$0xff]
  %v367 = vld [vmem:[%s3 + $0x1d0] sm:$0xff]
  %v368 = vld [vmem:[%s3 + $0x1d8] sm:$0xff]
  %v369 = vld [vmem:[%s3 + $0x1e0] sm:$0xff]
  %v370 = vld [vmem:[%s3 + $0x1e8] sm:$0xff]
  %v371 = vld [vmem:[%s3 + $0x1f0] sm:$0xff]
  %v372 = vld [vmem:[%s3 + $0x1f8] sm:$0xff]
  %v373 = vld [vmem:[%s3 + $0x200] sm:$0xff]
  %v374 = vld [vmem:[%s3 + $0x208] sm:$0xff]
  %v375 = vld [vmem:[%s3 + $0x210] sm:$0xff]
  %v376 = vld [vmem:[%s3 + $0x218] sm:$0xff]
  %v377 = vld [vmem:[%s3 + $0x220] sm:$0xff]
  %v378 = vld [vmem:[%s3 + $0x228] sm:$0xff]
  %v379 = vld [vmem:[%s3 + $0x230] sm:$0xff]
  %v380 = vld [vmem:[%s3 + $0x238] sm:$0xff]
  %v381 = vld [vmem:[%s3 + $0x240] sm:$0xff]
  %v382 = vld [vmem:[%s3 + $0x248] sm:$0xff]
  %v383 = vld [vmem:[%s3 + $0x250] sm:$0xff]
  %v384 = vld [vmem:[%s3 + $0x258] sm:$0xff]
  %v385 = vld [vmem:[%s3 + $0x260] sm:$0xff]
  %v386 = vld [vmem:[%s3 + $0x268] sm:$0xff]
  %v387 = vld [vmem:[%s3 + $0x270] sm:$0xff]
  %v388 = vld [vmem:[%s3 + $0x278] sm:$0xff]
  %v389 = vld [vmem:[%s3 + $0x280] sm:$0xff]
  %v390 = vld [vmem:[%s3 + $0x288] sm:$0xff]
  %v391 = vld [vmem:[%s3 + $0x290] sm:$0xff]
  %v392 = vld [vmem:[%s3 + $0x298] sm:$0xff]
  %v393 = vld [vmem:[%s3 + $0x2a0] sm:$0xff]
  %v394 = vld [vmem:[%s3 + $0x2a8] sm:$0xff]
  %v395 = vld [vmem:[%s3 + $0x2b0] sm:$0xff]
  %v396 = vld [vmem:[%s3 + $0x2b8] sm:$0xff]
  %v397 = vld [vmem:[%s3 + $0x2c0] sm:$0xff]
  %v398 = vld [vmem:[%s3 + $0x2c8] sm:$0xff]
  %v399 = vld [vmem:[%s3 + $0x2d0] sm:$0xff]
  %v400 = vld [vmem:[%s3 + $0x2d8] sm:$0xff]
  %v401 = vld [vmem:[%s3 + $0x2e0] sm:$0xff]
  %v402 = vld [vmem:[%s3 + $0x2e8] sm:$0xff]
  %v403 = vld [vmem:[%s3 + $0x2f0] sm:$0xff]
  %v404 = vld [vmem:[%s3 + $0x2f8] sm:$0xff]
  %v405 = vld [vmem:[%s3 + $0x300] sm:$0xff]
  %v406 = vld [vmem:[%s3 + $0x308] sm:$0xff]
  %v407 = vld [vmem:[%s3 + $0x310] sm:$0xff]
  %v408 = vld [vmem:[%s3 + $0x318] sm:$0xff]
  %v409 = vld [vmem:[%s3 + $0x320] sm:$0xff]
  %v410 = vld [vmem:[%s3 + $0x328] sm:$0xff]
  %v411 = vld [vmem:[%s3 + $0x330] sm:$0xff]
  %v412 = vld [vmem:[%s3 + $0x338] sm:$0xff]
  %v413 = vld [vmem:[%s3 + $0x340] sm:$0xff]
  %v414 = vld [vmem:[%s3 + $0x348] sm:$0xff]
  %v415 = vld [vmem:[%s3 + $0x350] sm:$0xff]
  %v416 = vld [vmem:[%s3 + $0x358] sm:$0xff]
  %v417 = vld [vmem:[%s3 + $0x360] sm:$0xff]
  %v418 = vld [vmem:[%s3 + $0x368] sm:$0xff]
  %v419 = vld [vmem:[%s3 + $0x370] sm:$0xff]
  %v420 = vld [vmem:[%s3 + $0x378] sm:$0xff]
  %v421 = vld [vmem:[%s3 + $0x380] sm:$0xff]
  %v422 = vld [vmem:[%s3 + $0x388] sm:$0xff]
  %v423 = vld [vmem:[%s3 + $0x390] sm:$0xff]
  %v424 = vld [vmem:[%s3 + $0x398] sm:$0xff]
  %v425 = vld [vmem:[%s3 + $0x3a0] sm:$0xff]
  %v426 = vld [vmem:[%s3 + $0x3a8] sm:$0xff]
  %v427 = vld [vmem:[%s3 + $0x3b0] sm:$0xff]
  %v428 = vld [vmem:[%s3 + $0x3b8] sm:$0xff]
  %v429 = vld [vmem:[%s3 + $0x3c0] sm:$0xff]
  %v430 = vld [vmem:[%s3 + $0x3c8] sm:$0xff]
  %v431 = vld [vmem:[%s3 + $0x3d0] sm:$0xff]
  %v432 = vld [vmem:[%s3 + $0x3d8] sm:$0xff]
  %v433 = vld [vmem:[%s3 + $0x3e0] sm:$0xff]
  %v434 = vld [vmem:[%s3 + $0x3e8] sm:$0xff]
  %v435 = vld [vmem:[%s3 + $0x3f0] sm:$0xff]
  %v436 = vld [vmem:[%s3 + $0x3f8] sm:$0xff]
  %v437 = vld [vmem:[%s3 + $0x400] sm:$0xff]
  %v438 = vld [vmem:[%s3 + $0x408] sm:$0xff]
  %v439 = vld [vmem:[%s3 + $0x410] sm:$0xff]
  %v440 = vld [vmem:[%s3 + $0x418] sm:$0xff]
  %v441 = vld [vmem:[%s3 + $0x420] sm:$0xff]
  %v442 = vld [vmem:[%s3 + $0x428] sm:$0xff]
  %v443 = vld [vmem:[%s3 + $0x430] sm:$0xff]
  %v444 = vld [vmem:[%s3 + $0x438] sm:$0xff]
  %v445 = vld [vmem:[%s3 + $0x440] sm:$0xff]
  %v446 = vld [vmem:[%s3 + $0x448] sm:$0xff]
  %v447 = vld [vmem:[%s3 + $0x450] sm:$0xff]
  %v448 = vld [vmem:[%s3 + $0x458] sm:$0xff]
  %v449 = vld [vmem:[%s3 + $0x460] sm:$0xff]
  %v450 = vld [vmem:[%s3 + $0x468] sm:$0xff]
  %v451 = vld [vmem:[%s3 + $0x470] sm:$0xff]
  %v452 = vld [vmem:[%s3 + $0x478] sm:$0xff]
  %v453 = vld [vmem:[%s3 + $0x480] sm:$0xff]
  %v454 = vld [vmem:[%s3 + $0x488] sm:$0xff]
  %v455 = vld [vmem:[%s3 + $0x490] sm:$0xff]
  %v456 = vld [vmem:[%s3 + $0x498] sm:$0xff]
  %v457 = vld [vmem:[%s3 + $0x4a0] sm:$0xff]
  %v458 = vld [vmem:[%s3 + $0x4a8] sm:$0xff]
  %v459 = vld [vmem:[%s3 + $0x4b0] sm:$0xff]
  %v460 = vld [vmem:[%s3 + $0x4b8] sm:$0xff]
  %v461 = vld [vmem:[%s3 + $0x4c0] sm:$0xff]
  %v462 = vld [vmem:[%s3 + $0x4c8] sm:$0xff]
  %v463 = vld [vmem:[%s3 + $0x4d0] sm:$0xff]
  %v464 = vld [vmem:[%s3 + $0x4d8] sm:$0xff]
  %v465 = vld [vmem:[%s3 + $0x4e0] sm:$0xff]
  %v466 = vld [vmem:[%s3 + $0x4e8] sm:$0xff]
  %v467 = vld [vmem:[%s3 + $0x4f0] sm:$0xff]
  %v468 = vld [vmem:[%s3 + $0x4f8] sm:$0xff]
  %v469 = vld [vmem:[%s3 + $0x500] sm:$0xff]
  %v470 = vld [vmem:[%s3 + $0x508] sm:$0xff]
  %v471 = vld [vmem:[%s3 + $0x510] sm:$0xff]
  %v472 = vld [vmem:[%s3 + $0x518] sm:$0xff]
  %v473 = vld [vmem:[%s3 + $0x520] sm:$0xff]
  %v474 = vld [vmem:[%s3 + $0x528] sm:$0xff]
  %v475 = vld [vmem:[%s3 + $0x530] sm:$0xff]
  %v476 = vld [vmem:[%s3 + $0x538] sm:$0xff]
  %v477 = vld [vmem:[%s3 + $0x540] sm:$0xff]
  %v478 = vld [vmem:[%s3 + $0x548] sm:$0xff]
  %v479 = vld [vmem:[%s3 + $0x550] sm:$0xff]
  %v480 = vld [vmem:[%s3 + $0x558] sm:$0xff]
  %v481 = vld [vmem:[%s3 + $0x560] sm:$0xff]
  %v482 = vld [vmem:[%s3 + $0x568] sm:$0xff]
  %v483 = vld [vmem:[%s3 + $0x570] sm:$0xff]
  %v484 = vld [vmem:[%s3 + $0x578] sm:$0xff]
  %v485 = vld [vmem:[%s3 + $0x580] sm:$0xff]
  %v486 = vld [vmem:[%s3 + $0x588] sm:$0xff]
  %v487 = vld [vmem:[%s3 + $0x590] sm:$0xff]
  %v488 = vld [vmem:[%s3 + $0x598] sm:$0xff]
  %v489 = vld [vmem:[%s3 + $0x5a0] sm:$0xff]
  %v490 = vld [vmem:[%s3 + $0x5a8] sm:$0xff]
  %v491 = vld [vmem:[%s3 + $0x5b0] sm:$0xff]
  %v492 = vld [vmem:[%s3 + $0x5b8] sm:$0xff]
  %v493 = vld [vmem:[%s3 + $0x5c0] sm:$0xff]
  %v494 = vld [vmem:[%s3 + $0x5c8] sm:$0xff]
  %v495 = vld [vmem:[%s3 + $0x5d0] sm:$0xff]
  %v496 = vld [vmem:[%s3 + $0x5d8] sm:$0xff]
  %v497 = vld [vmem:[%s3 + $0x5e0] sm:$0xff]
  %v498 = vld [vmem:[%s3 + $0x5e8] sm:$0xff]
  %v499 = vld [vmem:[%s3 + $0x5f0] sm:$0xff]
  %v500 = vld [vmem:[%s3 + $0x5f8] sm:$0xff]
  %v501 = vld [vmem:[%s3 + $0x600] sm:$0xff]
  %v502 = vld [vmem:[%s3 + $0x608] sm:$0xff]
  %v503 = vld [vmem:[%s3 + $0x610] sm:$0xff]
  %v504 = vld [vmem:[%s3 + $0x618] sm:$0xff]
  %v505 = vld [vmem:[%s3 + $0x620] sm:$0xff]
  %v506 = vld [vmem:[%s3 + $0x628] sm:$0xff]
  %v507 = vld [vmem:[%s3 + $0x630] sm:$0xff]
  %v508 = vld [vmem:[%s3 + $0x638] sm:$0xff]
  %v509 = vld [vmem:[%s3 + $0x640] sm:$0xff]
  %v510 = vld [vmem:[%s3 + $0x648] sm:$0xff]
  %v511 = vld [vmem:[%s3 + $0x650] sm:$0xff]
  %v512 = vld [vmem:[%s3 + $0x658] sm:$0xff]
  %v513 = vld [vmem:[%s3 + $0x660] sm:$0xff]
  %v514 = vld [vmem:[%s3 + $0x668] sm:$0xff]
  %v515 = vld [vmem:[%s3 + $0x670] sm:$0xff]
  %v516 = vld [vmem:[%s3 + $0x678] sm:$0xff]
  %v517 = vld [vmem:[%s3 + $0x680] sm:$0xff]
  %v518 = vld [vmem:[%s3 + $0x688] sm:$0xff]
  %v519 = vld [vmem:[%s3 + $0x690] sm:$0xff]
  %v520 = vld [vmem:[%s3 + $0x698] sm:$0xff]
  %v521 = vld [vmem:[%s3 + $0x6a0] sm:$0xff]
  %v522 = vld [vmem:[%s3 + $0x6a8] sm:$0xff]
  %v523 = vld [vmem:[%s3 + $0x6b0] sm:$0xff]
  %v524 = vld [vmem:[%s3 + $0x6b8] sm:$0xff]
  %v525 = vld [vmem:[%s3 + $0x6c0] sm:$0xff]
  %v526 = vld [vmem:[%s3 + $0x6c8] sm:$0xff]
  %v527 = vld [vmem:[%s3 + $0x6d0] sm:$0xff]
  %v528 = vld [vmem:[%s3 + $0x6d8] sm:$0xff]
  %v529 = vld [vmem:[%s3 + $0x6e0] sm:$0xff]
  %v530 = vld [vmem:[%s3 + $0x6e8] sm:$0xff]
  %v531 = vld [vmem:[%s3 + $0x6f0] sm:$0xff]
  %v532 = vld [vmem:[%s3 + $0x6f8] sm:$0xff]
  %v533 = vld [vmem:[%s3 + $0x700] sm:$0xff]
  %v534 = vld [vmem:[%s3 + $0x708] sm:$0xff]
  %v535 = vld [vmem:[%s3 + $0x710] sm:$0xff]
  %v536 = vld [vmem:[%s3 + $0x718] sm:$0xff]
  %v537 = vld [vmem:[%s3 + $0x720] sm:$0xff]
  %v538 = vld [vmem:[%s3 + $0x728] sm:$0xff]
  %v539 = vld [vmem:[%s3 + $0x730] sm:$0xff]
  %v540 = vld [vmem:[%s3 + $0x738] sm:$0xff]
  %v541 = vld [vmem:[%s3 + $0x740] sm:$0xff]
  %v542 = vld [vmem:[%s3 + $0x748] sm:$0xff]
  %v543 = vld [vmem:[%s3 + $0x750] sm:$0xff]
  %v544 = vld [vmem:[%s3 + $0x758] sm:$0xff]
  %v545 = vld [vmem:[%s3 + $0x760] sm:$0xff]
  %v546 = vld [vmem:[%s3 + $0x768] sm:$0xff]
  %v547 = vld [vmem:[%s3 + $0x770] sm:$0xff]
  %v548 = vld [vmem:[%s3 + $0x778] sm:$0xff]
  %v549 = vld [vmem:[%s3 + $0x780] sm:$0xff]
  %v550 = vld [vmem:[%s3 + $0x788] sm:$0xff]
  %v551 = vld [vmem:[%s3 + $0x790] sm:$0xff]
  %v552 = vld [vmem:[%s3 + $0x798] sm:$0xff]
  %v553 = vld [vmem:[%s3 + $0x7a0] sm:$0xff]
  %v554 = vld [vmem:[%s3 + $0x7a8] sm:$0xff]
  %v555 = vld [vmem:[%s3 + $0x7b0] sm:$0xff]
  %v556 = vld [vmem:[%s3 + $0x7b8] sm:$0xff]
  %v557 = vld [vmem:[%s3 + $0x7c0] sm:$0xff]
  %v558 = vld [vmem:[%s3 + $0x7c8] sm:$0xff]
  %v559 = vld [vmem:[%s3 + $0x7d0] sm:$0xff]
  %v560 = vld [vmem:[%s3 + $0x7d8] sm:$0xff]
  %v561 = vld [vmem:[%s3 + $0x7e0] sm:$0xff]
  %v562 = vld [vmem:[%s3 + $0x7e8] sm:$0xff]
  %v563 = vld [vmem:[%s3 + $0x7f0] sm:$0xff]
  %v564 = vld [vmem:[%s3 + $0x7f8] sm:$0xff]
  %v565 = vld [vmem:[%s2] sm:$0xff]
  %v566 = vld [vmem:[%s2 + $0x8] sm:$0xff]
  %v567 = vld [vmem:[%s2 + $0x10] sm:$0xff]
  %v568 = vld [vmem:[%s2 + $0x18] sm:$0xff]
  %v569 = vld [vmem:[%s2 + $0x20] sm:$0xff]
  %v570 = vld [vmem:[%s2 + $0x28] sm:$0xff]
  %v571 = vld [vmem:[%s2 + $0x30] sm:$0xff]
  %v572 = vld [vmem:[%s2 + $0x38] sm:$0xff]
  %v573 = vld [vmem:[%s2 + $0x40] sm:$0xff]
  %v574 = vld [vmem:[%s2 + $0x48] sm:$0xff]
  %v575 = vld [vmem:[%s2 + $0x50] sm:$0xff]
  %v576 = vld [vmem:[%s2 + $0x58] sm:$0xff]
  %v577 = vld [vmem:[%s2 + $0x60] sm:$0xff]
  %v578 = vld [vmem:[%s2 + $0x68] sm:$0xff]
  %v579 = vld [vmem:[%s2 + $0x70] sm:$0xff]
  %v580 = vld [vmem:[%s2 + $0x78] sm:$0xff]
  %v581 = vld [vmem:[%s2 + $0x80] sm:$0xff]
  %v582 = vld [vmem:[%s2 + $0x88] sm:$0xff]
  %v583 = vld [vmem:[%s2 + $0x90] sm:$0xff]
  %v584 = vld [vmem:[%s2 + $0x98] sm:$0xff]
  %v585 = vld [vmem:[%s2 + $0xa0] sm:$0xff]
  %v586 = vld [vmem:[%s2 + $0xa8] sm:$0xff]
  %v587 = vld [vmem:[%s2 + $0xb0] sm:$0xff]
  %v588 = vld [vmem:[%s2 + $0xb8] sm:$0xff]
  %v589 = vld [vmem:[%s2 + $0xc0] sm:$0xff]
  %v590 = vld [vmem:[%s2 + $0xc8] sm:$0xff]
  %v591 = vld [vmem:[%s2 + $0xd0] sm:$0xff]
  %v592 = vld [vmem:[%s2 + $0xd8] sm:$0xff]
  %v593 = vld [vmem:[%s2 + $0xe0] sm:$0xff]
  %v594 = vld [vmem:[%s2 + $0xe8] sm:$0xff]
  %v595 = vld [vmem:[%s2 + $0xf0] sm:$0xff]
  %v596 = vld [vmem:[%s2 + $0xf8] sm:$0xff]
  %v597 = vld [vmem:[%s2 + $0x100] sm:$0xff]
  %v598 = vld [vmem:[%s2 + $0x108] sm:$0xff]
  %v599 = vld [vmem:[%s2 + $0x110] sm:$0xff]
  %v600 = vld [vmem:[%s2 + $0x118] sm:$0xff]
  %v601 = vld [vmem:[%s2 + $0x120] sm:$0xff]
  %v602 = vld [vmem:[%s2 + $0x128] sm:$0xff]
  %v603 = vld [vmem:[%s2 + $0x130] sm:$0xff]
  %v604 = vld [vmem:[%s2 + $0x138] sm:$0xff]
  %v605 = vld [vmem:[%s2 + $0x140] sm:$0xff]
  %v606 = vld [vmem:[%s2 + $0x148] sm:$0xff]
  %v607 = vld [vmem:[%s2 + $0x150] sm:$0xff]
  %v608 = vld [vmem:[%s2 + $0x158] sm:$0xff]
  %v609 = vld [vmem:[%s2 + $0x160] sm:$0xff]
  %v610 = vld [vmem:[%s2 + $0x168] sm:$0xff]
  %v611 = vld [vmem:[%s2 + $0x170] sm:$0xff]
  %v612 = vld [vmem:[%s2 + $0x178] sm:$0xff]
  %v613 = vld [vmem:[%s2 + $0x180] sm:$0xff]
  %v614 = vld [vmem:[%s2 + $0x188] sm:$0xff]
  %v615 = vld [vmem:[%s2 + $0x190] sm:$0xff]
  %v616 = vld [vmem:[%s2 + $0x198] sm:$0xff]
  %v617 = vld [vmem:[%s2 + $0x1a0] sm:$0xff]
  %v618 = vld [vmem:[%s2 + $0x1a8] sm:$0xff]
  %v619 = vld [vmem:[%s2 + $0x1b0] sm:$0xff]
  %v620 = vld [vmem:[%s2 + $0x1b8] sm:$0xff]
  %v621 = vld [vmem:[%s2 + $0x1c0] sm:$0xff]
  %v622 = vld [vmem:[%s2 + $0x1c8] sm:$0xff]
  %v623 = vld [vmem:[%s2 + $0x1d0] sm:$0xff]
  %v624 = vld [vmem:[%s2 + $0x1d8] sm:$0xff]
  %v625 = vld [vmem:[%s2 + $0x1e0] sm:$0xff]
  %v626 = vld [vmem:[%s2 + $0x1e8] sm:$0xff]
  %v627 = vld [vmem:[%s2 + $0x1f0] sm:$0xff]
  %v628 = vld [vmem:[%s2 + $0x1f8] sm:$0xff]
  %v629 = vld [vmem:[%s2 + $0x200] sm:$0xff]
  %v630 = vld [vmem:[%s2 + $0x208] sm:$0xff]
  %v631 = vld [vmem:[%s2 + $0x210] sm:$0xff]
  %v632 = vld [vmem:[%s2 + $0x218] sm:$0xff]
  %v633 = vld [vmem:[%s2 + $0x220] sm:$0xff]
  %v634 = vld [vmem:[%s2 + $0x228] sm:$0xff]
  %v635 = vld [vmem:[%s2 + $0x230] sm:$0xff]
  %v636 = vld [vmem:[%s2 + $0x238] sm:$0xff]
  %v637 = vld [vmem:[%s2 + $0x240] sm:$0xff]
  %v638 = vld [vmem:[%s2 + $0x248] sm:$0xff]
  %v639 = vld [vmem:[%s2 + $0x250] sm:$0xff]
  %v640 = vld [vmem:[%s2 + $0x258] sm:$0xff]
  %v641 = vld [vmem:[%s2 + $0x260] sm:$0xff]
  %v642 = vld [vmem:[%s2 + $0x268] sm:$0xff]
  %v643 = vld [vmem:[%s2 + $0x270] sm:$0xff]
  %v644 = vld [vmem:[%s2 + $0x278] sm:$0xff]
  %v645 = vld [vmem:[%s2 + $0x280] sm:$0xff]
  %v646 = vld [vmem:[%s2 + $0x288] sm:$0xff]
  %v647 = vld [vmem:[%s2 + $0x290] sm:$0xff]
  %v648 = vld [vmem:[%s2 + $0x298] sm:$0xff]
  %v649 = vld [vmem:[%s2 + $0x2a0] sm:$0xff]
  %v650 = vld [vmem:[%s2 + $0x2a8] sm:$0xff]
  %v651 = vld [vmem:[%s2 + $0x2b0] sm:$0xff]
  %v652 = vld [vmem:[%s2 + $0x2b8] sm:$0xff]
  %v653 = vld [vmem:[%s2 + $0x2c0] sm:$0xff]
  %v654 = vld [vmem:[%s2 + $0x2c8] sm:$0xff]
  %v655 = vld [vmem:[%s2 + $0x2d0] sm:$0xff]
  %v656 = vld [vmem:[%s2 + $0x2d8] sm:$0xff]
  %v657 = vld [vmem:[%s2 + $0x2e0] sm:$0xff]
  %v658 = vld [vmem:[%s2 + $0x2e8] sm:$0xff]
  %v659 = vld [vmem:[%s2 + $0x2f0] sm:$0xff]
  %v660 = vld [vmem:[%s2 + $0x2f8] sm:$0xff]
  %v661 = vld [vmem:[%s2 + $0x300] sm:$0xff]
  %v662 = vld [vmem:[%s2 + $0x308] sm:$0xff]
  %v663 = vld [vmem:[%s2 + $0x310] sm:$0xff]
  %v664 = vld [vmem:[%s2 + $0x318] sm:$0xff]
  %v665 = vld [vmem:[%s2 + $0x320] sm:$0xff]
  %v666 = vld [vmem:[%s2 + $0x328] sm:$0xff]
  %v667 = vld [vmem:[%s2 + $0x330] sm:$0xff]
  %v668 = vld [vmem:[%s2 + $0x338] sm:$0xff]
  %v669 = vld [vmem:[%s2 + $0x340] sm:$0xff]
  %v670 = vld [vmem:[%s2 + $0x348] sm:$0xff]
  %v671 = vld [vmem:[%s2 + $0x350] sm:$0xff]
  %v672 = vld [vmem:[%s2 + $0x358] sm:$0xff]
  %v673 = vld [vmem:[%s2 + $0x360] sm:$0xff]
  %v674 = vld [vmem:[%s2 + $0x368] sm:$0xff]
  %v675 = vld [vmem:[%s2 + $0x370] sm:$0xff]
  %v676 = vld [vmem:[%s2 + $0x378] sm:$0xff]
  %v677 = vld [vmem:[%s2 + $0x380] sm:$0xff]
  %v678 = vld [vmem:[%s2 + $0x388] sm:$0xff]
  %v679 = vld [vmem:[%s2 + $0x390] sm:$0xff]
  %v680 = vld [vmem:[%s2 + $0x398] sm:$0xff]
  %v681 = vld [vmem:[%s2 + $0x3a0] sm:$0xff]
  %v682 = vld [vmem:[%s2 + $0x3a8] sm:$0xff]
  %v683 = vld [vmem:[%s2 + $0x3b0] sm:$0xff]
  %v684 = vld [vmem:[%s2 + $0x3b8] sm:$0xff]
  %v685 = vld [vmem:[%s2 + $0x3c0] sm:$0xff]
  %v686 = vld [vmem:[%s2 + $0x3c8] sm:$0xff]
  %v687 = vld [vmem:[%s2 + $0x3d0] sm:$0xff]
  %v688 = vld [vmem:[%s2 + $0x3d8] sm:$0xff]
  %v689 = vld [vmem:[%s2 + $0x3e0] sm:$0xff]
  %v690 = vld [vmem:[%s2 + $0x3e8] sm:$0xff]
  %v691 = vld [vmem:[%s2 + $0x3f0] sm:$0xff]
  %v692 = vld [vmem:[%s2 + $0x3f8] sm:$0xff]
  %v693 = vld [vmem:[%s2 + $0x400] sm:$0xff]
  %v694 = vld [vmem:[%s2 + $0x408] sm:$0xff]
  %v695 = vld [vmem:[%s2 + $0x410] sm:$0xff]
  %v696 = vld [vmem:[%s2 + $0x418] sm:$0xff]
  %v697 = vld [vmem:[%s2 + $0x420] sm:$0xff]
  %v698 = vld [vmem:[%s2 + $0x428] sm:$0xff]
  %v699 = vld [vmem:[%s2 + $0x430] sm:$0xff]
  %v700 = vld [vmem:[%s2 + $0x438] sm:$0xff]
  %v701 = vld [vmem:[%s2 + $0x440] sm:$0xff]
  %v702 = vld [vmem:[%s2 + $0x448] sm:$0xff]
  %v703 = vld [vmem:[%s2 + $0x450] sm:$0xff]
  %v704 = vld [vmem:[%s2 + $0x458] sm:$0xff]
  %v705 = vld [vmem:[%s2 + $0x460] sm:$0xff]
  %v706 = vld [vmem:[%s2 + $0x468] sm:$0xff]
  %v707 = vld [vmem:[%s2 + $0x470] sm:$0xff]
  %v708 = vld [vmem:[%s2 + $0x478] sm:$0xff]
  %v709 = vld [vmem:[%s2 + $0x480] sm:$0xff]
  %v710 = vld [vmem:[%s2 + $0x488] sm:$0xff]
  %v711 = vld [vmem:[%s2 + $0x490] sm:$0xff]
  %v712 = vld [vmem:[%s2 + $0x498] sm:$0xff]
  %v713 = vld [vmem:[%s2 + $0x4a0] sm:$0xff]
  %v714 = vld [vmem:[%s2 + $0x4a8] sm:$0xff]
  %v715 = vld [vmem:[%s2 + $0x4b0] sm:$0xff]
  %v716 = vld [vmem:[%s2 + $0x4b8] sm:$0xff]
  %v717 = vld [vmem:[%s2 + $0x4c0] sm:$0xff]
  %v718 = vld [vmem:[%s2 + $0x4c8] sm:$0xff]
  %v719 = vld [vmem:[%s2 + $0x4d0] sm:$0xff]
  %v720 = vld [vmem:[%s2 + $0x4d8] sm:$0xff]
  %v721 = vld [vmem:[%s2 + $0x4e0] sm:$0xff]
  %v722 = vld [vmem:[%s2 + $0x4e8] sm:$0xff]
  %v723 = vld [vmem:[%s2 + $0x4f0] sm:$0xff]
  %v724 = vld [vmem:[%s2 + $0x4f8] sm:$0xff]
  %v725 = vld [vmem:[%s2 + $0x500] sm:$0xff]
  %v726 = vld [vmem:[%s2 + $0x508] sm:$0xff]
  %v727 = vld [vmem:[%s2 + $0x510] sm:$0xff]
  %v728 = vld [vmem:[%s2 + $0x518] sm:$0xff]
  %v729 = vld [vmem:[%s2 + $0x520] sm:$0xff]
  %v730 = vld [vmem:[%s2 + $0x528] sm:$0xff]
  %v731 = vld [vmem:[%s2 + $0x530] sm:$0xff]
  %v732 = vld [vmem:[%s2 + $0x538] sm:$0xff]
  %v733 = vld [vmem:[%s2 + $0x540] sm:$0xff]
  %v734 = vld [vmem:[%s2 + $0x548] sm:$0xff]
  %v735 = vld [vmem:[%s2 + $0x550] sm:$0xff]
  %v736 = vld [vmem:[%s2 + $0x558] sm:$0xff]
  %v737 = vld [vmem:[%s2 + $0x560] sm:$0xff]
  %v738 = vld [vmem:[%s2 + $0x568] sm:$0xff]
  %v739 = vld [vmem:[%s2 + $0x570] sm:$0xff]
  %v740 = vld [vmem:[%s2 + $0x578] sm:$0xff]
  %v741 = vld [vmem:[%s2 + $0x580] sm:$0xff]
  %v742 = vld [vmem:[%s2 + $0x588] sm:$0xff]
  %v743 = vld [vmem:[%s2 + $0x590] sm:$0xff]
  %v744 = vld [vmem:[%s2 + $0x598] sm:$0xff]
  %v745 = vld [vmem:[%s2 + $0x5a0] sm:$0xff]
  %v746 = vld [vmem:[%s2 + $0x5a8] sm:$0xff]
  %v747 = vld [vmem:[%s2 + $0x5b0] sm:$0xff]
  %v748 = vld [vmem:[%s2 + $0x5b8] sm:$0xff]
  %v749 = vld [vmem:[%s2 + $0x5c0] sm:$0xff]
  %v750 = vld [vmem:[%s2 + $0x5c8] sm:$0xff]
  %v751 = vld [vmem:[%s2 + $0x5d0] sm:$0xff]
  %v752 = vld [vmem:[%s2 + $0x5d8] sm:$0xff]
  %v753 = vld [vmem:[%s2 + $0x5e0] sm:$0xff]
  %v754 = vld [vmem:[%s2 + $0x5e8] sm:$0xff]
  %v755 = vld [vmem:[%s2 + $0x5f0] sm:$0xff]
  %v756 = vld [vmem:[%s2 + $0x5f8] sm:$0xff]
  %v757 = vld [vmem:[%s2 + $0x600] sm:$0xff]
  %v758 = vld [vmem:[%s2 + $0x608] sm:$0xff]
  %v759 = vld [vmem:[%s2 + $0x610] sm:$0xff]
  %v760 = vld [vmem:[%s2 + $0x618] sm:$0xff]
  %v761 = vld [vmem:[%s2 + $0x620] sm:$0xff]
  %v762 = vld [vmem:[%s2 + $0x628] sm:$0xff]
  %v763 = vld [vmem:[%s2 + $0x630] sm:$0xff]
  %v764 = vld [vmem:[%s2 + $0x638] sm:$0xff]
  %v765 = vld [vmem:[%s2 + $0x640] sm:$0xff]
  %v766 = vld [vmem:[%s2 + $0x648] sm:$0xff]
  %v767 = vld [vmem:[%s2 + $0x650] sm:$0xff]
  %v768 = vld [vmem:[%s2 + $0x658] sm:$0xff]
  %v769 = vld [vmem:[%s2 + $0x660] sm:$0xff]
  %v770 = vld [vmem:[%s2 + $0x668] sm:$0xff]
  %v771 = vld [vmem:[%s2 + $0x670] sm:$0xff]
  %v772 = vld [vmem:[%s2 + $0x678] sm:$0xff]
  %v773 = vld [vmem:[%s2 + $0x680] sm:$0xff]
  %v774 = vld [vmem:[%s2 + $0x688] sm:$0xff]
  %v775 = vld [vmem:[%s2 + $0x690] sm:$0xff]
  %v776 = vld [vmem:[%s2 + $0x698] sm:$0xff]
  %v777 = vld [vmem:[%s2 + $0x6a0] sm:$0xff]
  %v778 = vld [vmem:[%s2 + $0x6a8] sm:$0xff]
  %v779 = vld [vmem:[%s2 + $0x6b0] sm:$0xff]
  %v780 = vld [vmem:[%s2 + $0x6b8] sm:$0xff]
  %v781 = vld [vmem:[%s2 + $0x6c0] sm:$0xff]
  %v782 = vld [vmem:[%s2 + $0x6c8] sm:$0xff]
  %v783 = vld [vmem:[%s2 + $0x6d0] sm:$0xff]
  %v784 = vld [vmem:[%s2 + $0x6d8] sm:$0xff]
  %v785 = vld [vmem:[%s2 + $0x6e0] sm:$0xff]
  %v786 = vld [vmem:[%s2 + $0x6e8] sm:$0xff]
  %v787 = vld [vmem:[%s2 + $0x6f0] sm:$0xff]
  %v788 = vld [vmem:[%s2 + $0x6f8] sm:$0xff]
  %v789 = vld [vmem:[%s2 + $0x700] sm:$0xff]
  %v790 = vld [vmem:[%s2 + $0x708] sm:$0xff]
  %v791 = vld [vmem:[%s2 + $0x710] sm:$0xff]
  %v792 = vld [vmem:[%s2 + $0x718] sm:$0xff]
  %v793 = vld [vmem:[%s2 + $0x720] sm:$0xff]
  %v794 = vld [vmem:[%s2 + $0x728] sm:$0xff]
  %v795 = vld [vmem:[%s2 + $0x730] sm:$0xff]
  %v796 = vld [vmem:[%s2 + $0x738] sm:$0xff]
  %v797 = vld [vmem:[%s2 + $0x740] sm:$0xff]
  %v798 = vld [vmem:[%s2 + $0x748] sm:$0xff]
  %v799 = vld [vmem:[%s2 + $0x750] sm:$0xff]
  %v800 = vld [vmem:[%s2 + $0x758] sm:$0xff]
  %v801 = vld [vmem:[%s2 + $0x760] sm:$0xff]
  %v802 = vld [vmem:[%s2 + $0x768] sm:$0xff]
  %v803 = vld [vmem:[%s2 + $0x770] sm:$0xff]
  %v804 = vld [vmem:[%s2 + $0x778] sm:$0xff]
  %v805 = vld [vmem:[%s2 + $0x780] sm:$0xff]
  %v806 = vld [vmem:[%s2 + $0x788] sm:$0xff]
  %v807 = vld [vmem:[%s2 + $0x790] sm:$0xff]
  %v808 = vld [vmem:[%s2 + $0x798] sm:$0xff]
  %v809 = vld [vmem:[%s2 + $0x7a0] sm:$0xff]
  %v810 = vld [vmem:[%s2 + $0x7a8] sm:$0xff]
  %v811 = vld [vmem:[%s2 + $0x7b0] sm:$0xff]
  %v812 = vld [vmem:[%s2 + $0x7b8] sm:$0xff]
  %v813 = vld [vmem:[%s2 + $0x7c0] sm:$0xff]
  %v814 = vld [vmem:[%s2 + $0x7c8] sm:$0xff]
  %v815 = vld [vmem:[%s2 + $0x7d0] sm:$0xff]
  %v816 = vld [vmem:[%s2 + $0x7d8] sm:$0xff]
  %v817 = vld [vmem:[%s2 + $0x7e0] sm:$0xff]
  %v818 = vld [vmem:[%s2 + $0x7e8] sm:$0xff]
  %v819 = vld [vmem:[%s2 + $0x7f0] sm:$0xff]
  %v820 = vld [vmem:[%s2 + $0x7f8] sm:$0xff]
  %v821 = vld [vmem:[%s4] sm:$0xff]
  %v822 = vld [vmem:[%s0] ss:$8 sm:$0xf]
  %v823 = vld [vmem:[%s0] ss:$8 sm:$0xf0]
  %v824 = vor.u32 %v822, %v823
  %s825 = scalar_lea.vmem %s0, 64
  %v826 = vld [vmem:[%s825] ss:$8 sm:$0xf]
  %v827 = vld [vmem:[%s825] ss:$8 sm:$0xf0]
  %v828 = vor.u32 %v826, %v827
  %v831 = vunpack.c.l.s4 1983009808
  %v832 = vunpack.c.0.s8 %v831
  %v833 = vlaneseq
  %v834 = vshrl.u32 %v833, 7
  %v835 = vsub.s32 %v832, %v834
  %v836 = vrot.slane %v46, %v835
  %v837 = vcombine.high %v836, %v836
  %840 = vmatprep.subr.mxu0 %v174
  %841 = vmatpush1.msra.mxu0 %v173
  %842 = vmatprep.subr.mxu0 %v166
  %843 = vmatpush1.msra.mxu0 %v165
  %844 = vmatprep.subr.mxu0 %v158
  %845 = vmatpush1.msra.mxu0 %v157
  %846 = vmatprep.subr.mxu0 %v150
  %847 = vmatpush1.msra.mxu0 %v149
  %848 = vmatprep.subr.mxu0 %v142
  %849 = vmatpush1.msra.mxu0 %v141
  %850 = vmatprep.subr.mxu0 %v134
  %851 = vmatpush1.msra.mxu0 %v133
  %852 = vmatprep.subr.mxu0 %v126
  %853 = vmatpush1.msra.mxu0 %v125
  %854 = vmatprep.subr.mxu0 %v118
  %855 = vmatpush1.msra.mxu0 %v117
  %856 = vmatprep.subr.mxu0 %v110
  %857 = vmatpush1.msra.mxu0 %v109
  %858 = vmatprep.subr.mxu0 %v102
  %859 = vmatpush1.msra.mxu0 %v101
  %860 = vmatprep.subr.mxu0 %v94
  %861 = vmatpush1.msra.mxu0 %v93
  %862 = vmatprep.subr.mxu0 %v86
  %863 = vmatpush1.msra.mxu0 %v85
  %864 = vmatprep.subr.mxu0 %v78
  %865 = vmatpush1.msra.mxu0 %v77
  %866 = vmatprep.subr.mxu0 %v70
  %867 = vmatpush1.msra.mxu0 %v69
  %868 = vmatprep.subr.mxu0 %v62
  %869 = vmatpush1.msra.mxu0 %v61
  %870 = vmatprep.subr.mxu0 %v54
  %871 = vmatpush1.msra.mxu0 %v53
  %872 = vmatprep.subr.mxu0 %v302
  %873 = vmatpush2.msra.mxu0 %v301
  %874 = vmatprep.subr.mxu0 %v294
  %875 = vmatpush2.msra.mxu0 %v293
  %876 = vmatprep.subr.mxu0 %v286
  %877 = vmatpush2.msra.mxu0 %v285
  %878 = vmatprep.subr.mxu0 %v278
  %879 = vmatpush2.msra.mxu0 %v277
  %880 = vmatprep.subr.mxu0 %v270
  %881 = vmatpush2.msra.mxu0 %v269
  %882 = vmatprep.subr.mxu0 %v262
  %883 = vmatpush2.msra.mxu0 %v261
  %884 = vmatprep.subr.mxu0 %v254
  %885 = vmatpush2.msra.mxu0 %v253
  %886 = vmatprep.subr.mxu0 %v246
  %887 = vmatpush2.msra.mxu0 %v245
  %888 = vmatprep.subr.mxu0 %v238
  %889 = vmatpush2.msra.mxu0 %v237
  %890 = vmatprep.subr.mxu0 %v230
  %891 = vmatpush2.msra.mxu0 %v229
  %892 = vmatprep.subr.mxu0 %v222
  %893 = vmatpush2.msra.mxu0 %v221
  %894 = vmatprep.subr.mxu0 %v214
  %895 = vmatpush2.msra.mxu0 %v213
  %896 = vmatprep.subr.mxu0 %v206
  %897 = vmatpush2.msra.mxu0 %v205
  %898 = vmatprep.subr.mxu0 %v198
  %899 = vmatpush2.msra.mxu0 %v197
  %900 = vmatprep.subr.mxu0 %v190
  %901 = vmatpush2.msra.mxu0 %v189
  %902 = vmatprep.subr.mxu0 %v182
  %903 = vmatpush2.msra.mxu0 %v181
  %904 = vmatprep.mubr.f32.mxu0 %v837
  %905 = vmatmul.mubr.f32.gmra.mxu0 %v836
  %v906 = vpop.f32.mrf.mxu0
  %v907 = vadd.f32 0.0, %v906
  %v908 = vpop.f32.mrf.mxu0
  %v909 = vadd.f32 0.0, %v908
  %910 = vdwg.mxu0
  %911 = vmatprep.subr.mxu0 %v176
  %912 = vmatpush1.msra.mxu0 %v175
  %913 = vmatprep.subr.mxu0 %v168
  %914 = vmatpush1.msra.mxu0 %v167
  %915 = vmatprep.subr.mxu0 %v160
  %916 = vmatpush1.msra.mxu0 %v159
  %917 = vmatprep.subr.mxu0 %v152
  %918 = vmatpush1.msra.mxu0 %v151
  %919 = vmatprep.subr.mxu0 %v144
  %920 = vmatpush1.msra.mxu0 %v143
  %921 = vmatprep.subr.mxu0 %v136
  %922 = vmatpush1.msra.mxu0 %v135
  %923 = vmatprep.subr.mxu0 %v128
  %924 = vmatpush1.msra.mxu0 %v127
  %925 = vmatprep.subr.mxu0 %v120
  %926 = vmatpush1.msra.mxu0 %v119
  %927 = vmatprep.subr.mxu0 %v112
  %928 = vmatpush1.msra.mxu0 %v111
  %929 = vmatprep.subr.mxu0 %v104
  %930 = vmatpush1.msra.mxu0 %v103
  %931 = vmatprep.subr.mxu0 %v96
  %932 = vmatpush1.msra.mxu0 %v95
  %933 = vmatprep.subr.mxu0 %v88
  %934 = vmatpush1.msra.mxu0 %v87
  %935 = vmatprep.subr.mxu0 %v80
  %936 = vmatpush1.msra.mxu0 %v79
  %937 = vmatprep.subr.mxu0 %v72
  %938 = vmatpush1.msra.mxu0 %v71
  %939 = vmatprep.subr.mxu0 %v64
  %940 = vmatpush1.msra.mxu0 %v63
  %941 = vmatprep.subr.mxu0 %v56
  %942 = vmatpush1.msra.mxu0 %v55
  %943 = vmatprep.subr.mxu0 %v304
  %944 = vmatpush2.msra.mxu0 %v303
  %945 = vmatprep.subr.mxu0 %v296
  %946 = vmatpush2.msra.mxu0 %v295
  %947 = vmatprep.subr.mxu0 %v288
  %948 = vmatpush2.msra.mxu0 %v287
  %949 = vmatprep.subr.mxu0 %v280
  %950 = vmatpush2.msra.mxu0 %v279
  %951 = vmatprep.subr.mxu0 %v272
  %952 = vmatpush2.msra.mxu0 %v271
  %953 = vmatprep.subr.mxu0 %v264
  %954 = vmatpush2.msra.mxu0 %v263
  %955 = vmatprep.subr.mxu0 %v256
  %956 = vmatpush2.msra.mxu0 %v255
  %957 = vmatprep.subr.mxu0 %v248
  %958 = vmatpush2.msra.mxu0 %v247
  %959 = vmatprep.subr.mxu0 %v240
  %960 = vmatpush2.msra.mxu0 %v239
  %961 = vmatprep.subr.mxu0 %v232
  %962 = vmatpush2.msra.mxu0 %v231
  %963 = vmatprep.subr.mxu0 %v224
  %964 = vmatpush2.msra.mxu0 %v223
  %965 = vmatprep.subr.mxu0 %v216
  %966 = vmatpush2.msra.mxu0 %v215
  %967 = vmatprep.subr.mxu0 %v208
  %968 = vmatpush2.msra.mxu0 %v207
  %969 = vmatprep.subr.mxu0 %v200
  %970 = vmatpush2.msra.mxu0 %v199
  %971 = vmatprep.subr.mxu0 %v192
  %972 = vmatpush2.msra.mxu0 %v191
  %973 = vmatprep.subr.mxu0 %v184
  %974 = vmatpush2.msra.mxu0 %v183
  %975 = vmatprep.mubr.f32.mxu0 %v837
  %976 = vmatmul.mubr.f32.gmra.mxu0 %v836
  %v977 = vpop.f32.mrf.mxu0
  %v978 = vadd.f32 0.0, %v977
  %v979 = vpop.f32.mrf.mxu0
  %v980 = vadd.f32 0.0, %v979
  %981 = vdwg.mxu0
  %982 = vmatprep.subr.mxu0 %v178
  %983 = vmatpush1.msra.mxu0 %v177
  %984 = vmatprep.subr.mxu0 %v170
  %985 = vmatpush1.msra.mxu0 %v169
  %986 = vmatprep.subr.mxu0 %v162
  %987 = vmatpush1.msra.mxu0 %v161
  %988 = vmatprep.subr.mxu0 %v154
  %989 = vmatpush1.msra.mxu0 %v153
  %990 = vmatprep.subr.mxu0 %v146
  %991 = vmatpush1.msra.mxu0 %v145
  %992 = vmatprep.subr.mxu0 %v138
  %993 = vmatpush1.msra.mxu0 %v137
  %994 = vmatprep.subr.mxu0 %v130
  %995 = vmatpush1.msra.mxu0 %v129
  %996 = vmatprep.subr.mxu0 %v122
  %997 = vmatpush1.msra.mxu0 %v121
  %998 = vmatprep.subr.mxu0 %v114
  %999 = vmatpush1.msra.mxu0 %v113
  %1000 = vmatprep.subr.mxu0 %v106
  %1001 = vmatpush1.msra.mxu0 %v105
  %1002 = vmatprep.subr.mxu0 %v98
  %1003 = vmatpush1.msra.mxu0 %v97
  %1004 = vmatprep.subr.mxu0 %v90
  %1005 = vmatpush1.msra.mxu0 %v89
  %1006 = vmatprep.subr.mxu0 %v82
  %1007 = vmatpush1.msra.mxu0 %v81
  %1008 = vmatprep.subr.mxu0 %v74
  %1009 = vmatpush1.msra.mxu0 %v73
  %1010 = vmatprep.subr.mxu0 %v66
  %1011 = vmatpush1.msra.mxu0 %v65
  %1012 = vmatprep.subr.mxu0 %v58
  %1013 = vmatpush1.msra.mxu0 %v57
  %1014 = vmatprep.subr.mxu0 %v306
  %1015 = vmatpush2.msra.mxu0 %v305
  %1016 = vmatprep.subr.mxu0 %v298
  %1017 = vmatpush2.msra.mxu0 %v297
  %1018 = vmatprep.subr.mxu0 %v290
  %1019 = vmatpush2.msra.mxu0 %v289
  %1020 = vmatprep.subr.mxu0 %v282
  %1021 = vmatpush2.msra.mxu0 %v281
  %1022 = vmatprep.subr.mxu0 %v274
  %1023 = vmatpush2.msra.mxu0 %v273
  %1024 = vmatprep.subr.mxu0 %v266
  %1025 = vmatpush2.msra.mxu0 %v265
  %1026 = vmatprep.subr.mxu0 %v258
  %1027 = vmatpush2.msra.mxu0 %v257
  %1028 = vmatprep.subr.mxu0 %v250
  %1029 = vmatpush2.msra.mxu0 %v249
  %1030 = vmatprep.subr.mxu0 %v242
  %1031 = vmatpush2.msra.mxu0 %v241
  %1032 = vmatprep.subr.mxu0 %v234
  %1033 = vmatpush2.msra.mxu0 %v233
  %1034 = vmatprep.subr.mxu0 %v226
  %1035 = vmatpush2.msra.mxu0 %v225
  %1036 = vmatprep.subr.mxu0 %v218
  %1037 = vmatpush2.msra.mxu0 %v217
  %1038 = vmatprep.subr.mxu0 %v210
  %1039 = vmatpush2.msra.mxu0 %v209
  %1040 = vmatprep.subr.mxu0 %v202
  %1041 = vmatpush2.msra.mxu0 %v201
  %1042 = vmatprep.subr.mxu0 %v194
  %1043 = vmatpush2.msra.mxu0 %v193
  %1044 = vmatprep.subr.mxu0 %v186
  %1045 = vmatpush2.msra.mxu0 %v185
  %1046 = vmatprep.mubr.f32.mxu0 %v837
  %1047 = vmatmul.mubr.f32.gmra.mxu0 %v836
  %v1048 = vpop.f32.mrf.mxu0
  %v1049 = vadd.f32 0.0, %v1048
  %v1050 = vpop.f32.mrf.mxu0
  %v1051 = vadd.f32 0.0, %v1050
  %1052 = vdwg.mxu0
  %1053 = vmatprep.subr.mxu0 %v180
  %1054 = vmatpush1.msra.mxu0 %v179
  %1055 = vmatprep.subr.mxu0 %v172
  %1056 = vmatpush1.msra.mxu0 %v171
  %1057 = vmatprep.subr.mxu0 %v164
  %1058 = vmatpush1.msra.mxu0 %v163
  %1059 = vmatprep.subr.mxu0 %v156
  %1060 = vmatpush1.msra.mxu0 %v155
  %1061 = vmatprep.subr.mxu0 %v148
  %1062 = vmatpush1.msra.mxu0 %v147
  %1063 = vmatprep.subr.mxu0 %v140
  %1064 = vmatpush1.msra.mxu0 %v139
  %1065 = vmatprep.subr.mxu0 %v132
  %1066 = vmatpush1.msra.mxu0 %v131
  %1067 = vmatprep.subr.mxu0 %v124
  %1068 = vmatpush1.msra.mxu0 %v123
  %1069 = vmatprep.subr.mxu0 %v116
  %1070 = vmatpush1.msra.mxu0 %v115
  %1071 = vmatprep.subr.mxu0 %v108
  %1072 = vmatpush1.msra.mxu0 %v107
  %1073 = vmatprep.subr.mxu0 %v100
  %1074 = vmatpush1.msra.mxu0 %v99
  %1075 = vmatprep.subr.mxu0 %v92
  %1076 = vmatpush1.msra.mxu0 %v91
  %1077 = vmatprep.subr.mxu0 %v84
  %1078 = vmatpush1.msra.mxu0 %v83
  %1079 = vmatprep.subr.mxu0 %v76
  %1080 = vmatpush1.msra.mxu0 %v75
  %1081 = vmatprep.subr.mxu0 %v68
  %1082 = vmatpush1.msra.mxu0 %v67
  %1083 = vmatprep.subr.mxu0 %v60
  %1084 = vmatpush1.msra.mxu0 %v59
  %1085 = vmatprep.subr.mxu0 %v308
  %1086 = vmatpush2.msra.mxu0 %v307
  %1087 = vmatprep.subr.mxu0 %v300
  %1088 = vmatpush2.msra.mxu0 %v299
  %1089 = vmatprep.subr.mxu0 %v292
  %1090 = vmatpush2.msra.mxu0 %v291
  %1091 = vmatprep.subr.mxu0 %v284
  %1092 = vmatpush2.msra.mxu0 %v283
  %1093 = vmatprep.subr.mxu0 %v276
  %1094 = vmatpush2.msra.mxu0 %v275
  %1095 = vmatprep.subr.mxu0 %v268
  %1096 = vmatpush2.msra.mxu0 %v267
  %1097 = vmatprep.subr.mxu0 %v260
  %1098 = vmatpush2.msra.mxu0 %v259
  %1099 = vmatprep.subr.mxu0 %v252
  %1100 = vmatpush2.msra.mxu0 %v251
  %1101 = vmatprep.subr.mxu0 %v244
  %1102 = vmatpush2.msra.mxu0 %v243
  %1103 = vmatprep.subr.mxu0 %v236
  %1104 = vmatpush2.msra.mxu0 %v235
  %1105 = vmatprep.subr.mxu0 %v228
  %1106 = vmatpush2.msra.mxu0 %v227
  %1107 = vmatprep.subr.mxu0 %v220
  %1108 = vmatpush2.msra.mxu0 %v219
  %1109 = vmatprep.subr.mxu0 %v212
  %1110 = vmatpush2.msra.mxu0 %v211
  %1111 = vmatprep.subr.mxu0 %v204
  %1112 = vmatpush2.msra.mxu0 %v203
  %1113 = vmatprep.subr.mxu0 %v196
  %1114 = vmatpush2.msra.mxu0 %v195
  %1115 = vmatprep.subr.mxu0 %v188
  %1116 = vmatpush2.msra.mxu0 %v187
  %1117 = vmatprep.mubr.f32.mxu0 %v837
  %1118 = vmatmul.mubr.f32.gmra.mxu0 %v836
  %v1119 = vpop.f32.mrf.mxu0
  %v1120 = vadd.f32 0.0, %v1119
  %v1121 = vpop.f32.mrf.mxu0
  %v1122 = vadd.f32 0.0, %v1121
  %1123 = vdwg.mxu0
  %v1132 = vcombine.low %v907, %v909
  %v1133 = vcombine.low %v978, %v980
  %v1134 = vcombine.low %v1049, %v1051
  %v1135 = vcombine.low %v1120, %v1122
  %v1137 = vunpack.c.l.s4 1966171168
  %v1138 = vunpack.c.0.s8 %v1137
  %v1139 = vlaneseq
  %v1140 = vshrl.u32 %v1139, 7
  %v1141 = vsub.s32 %v1138, %v1140
  %v1142 = vrot.slane %v1132, %v1141
  %v1144 = vunpack.c.l.s4 1966171168
  %v1145 = vunpack.c.0.s8 %v1144
  %v1146 = vlaneseq
  %v1147 = vshrl.u32 %v1146, 7
  %v1148 = vsub.s32 %v1145, %v1147
  %v1149 = vrot.slane %v1133, %v1148
  %v1151 = vunpack.c.l.s4 1966171168
  %v1152 = vunpack.c.0.s8 %v1151
  %v1153 = vlaneseq
  %v1154 = vshrl.u32 %v1153, 7
  %v1155 = vsub.s32 %v1152, %v1154
  %v1156 = vrot.slane %v1134, %v1155
  %v1158 = vunpack.c.l.s4 1966171168
  %v1159 = vunpack.c.0.s8 %v1158
  %v1160 = vlaneseq
  %v1161 = vshrl.u32 %v1160, 7
  %v1162 = vsub.s32 %v1159, %v1161
  %v1163 = vrot.slane %v1135, %v1162
  %v1164 = vcombine.low %v1142, %v1149
  %v1165 = vcombine.high %v1142, %v1149
  %v1166 = vcombine.low %v1156, %v1163
  %v1167 = vcombine.high %v1156, %v1163
  %v1169 = vunpack.c.l.s4 1966171168
  %v1170 = vunpack.c.0.s8 %v1169
  %v1171 = vlaneseq
  %v1172 = vshrl.u32 %v1171, 7
  %v1173 = vsub.s32 %v1170, %v1172
  %v1174 = vrot.slane %v1164, %v1173
  %v1176 = vunpack.c.l.s4 1966171168
  %v1177 = vunpack.c.0.s8 %v1176
  %v1178 = vlaneseq
  %v1179 = vshrl.u32 %v1178, 7
  %v1180 = vsub.s32 %v1177, %v1179
  %v1181 = vrot.slane %v1165, %v1180
  %v1183 = vunpack.c.l.s4 1966171168
  %v1184 = vunpack.c.0.s8 %v1183
  %v1185 = vlaneseq
  %v1186 = vshrl.u32 %v1185, 7
  %v1187 = vsub.s32 %v1184, %v1186
  %v1188 = vrot.slane %v1166, %v1187
  %v1190 = vunpack.c.l.s4 1966171168
  %v1191 = vunpack.c.0.s8 %v1190
  %v1192 = vlaneseq
  %v1193 = vshrl.u32 %v1192, 7
  %v1194 = vsub.s32 %v1191, %v1193
  %v1195 = vrot.slane %v1167, %v1194
  %v1196 = vcombine.low %v1174, %v1188
  %v1197 = vcombine.low %v1181, %v1195
  %v1200 = vadd.f32 %v824, %v1196
  %v1201 = vadd.f32 %v828, %v1197
  %v1202 = vxor.u32 %v1200, 2147483648
  %v1203 = vxor.u32 %v1201, 2147483648
  %v1204 = vmul.f32 %v1202, 1.442695
  %v1205 = vpow.pop %v1204
  %v1206 = vmul.f32 %v1203, 1.442695
  %v1207 = vpow.pop %v1206
  %v1208 = vadd.f32 %v1205, 1.0
  %v1209 = vadd.f32 %v1207, 1.0
  %v1210 = vrcp.pop %v1208
  %v1211 = vmul.f32 1.0, %v1210
  %v1212 = vrcp.pop %v1209
  %v1213 = vmul.f32 1.0, %v1212
  %v1216 = vrot.slane %v1200, 2
  %v1217 = vrot.slane %v1201, 2
  %v1220 = vxor.u32 %v1216, 2147483648
  %v1221 = vxor.u32 %v1217, 2147483648
  %v1222 = vmul.f32 %v1220, 1.442695
  %v1223 = vpow.pop %v1222
  %v1224 = vmul.f32 %v1221, 1.442695
  %v1225 = vpow.pop %v1224
  %v1226 = vadd.f32 %v1223, 1.0
  %v1227 = vadd.f32 %v1225, 1.0
  %v1228 = vrcp.pop %v1226
  %v1229 = vmul.f32 1.0, %v1228
  %v1230 = vrcp.pop %v1227
  %v1231 = vmul.f32 1.0, %v1230
  %v1232 = vrot.slane %v1200, 4
  %v1233 = vrot.slane %v1201, 4
  %v1236 = vtanh.pop %v1232
  %v1237 = vtanh.pop %v1233
  %v1238 = vrot.slane %v1200, 6
  %v1239 = vrot.slane %v1201, 6
  %v1242 = vxor.u32 %v1238, 2147483648
  %v1243 = vxor.u32 %v1239, 2147483648
  %v1244 = vmul.f32 %v1242, 1.442695
  %v1245 = vpow.pop %v1244
  %v1246 = vmul.f32 %v1243, 1.442695
  %v1247 = vpow.pop %v1246
  %v1248 = vadd.f32 %v1245, 1.0
  %v1249 = vadd.f32 %v1247, 1.0
  %v1250 = vrcp.pop %v1248
  %v1251 = vmul.f32 1.0, %v1250
  %v1252 = vrcp.pop %v1249
  %v1253 = vmul.f32 1.0, %v1252
  %v1256 = vunpack.c.l.s4 1966171168
  %v1257 = vunpack.c.0.s8 %v1256
  %v1258 = vlaneseq
  %v1259 = vshrl.u32 %v1258, 7
  %v1260 = vsub.s32 %v1257, %v1259
  %v1261 = vrot.slane %v48, %v1260
  %v1262 = vcombine.high %v1261, %v1261
  %v1265 = vmul.f32 %v1229, %v1261
  %v1266 = vmul.f32 %v1231, %v1262
  %v1267 = vmul.f32 %v1211, %v1236
  %v1268 = vmul.f32 %v1213, %v1237
  %v1269 = vadd.f32 %v1265, %v1267
  %v1270 = vadd.f32 %v1266, %v1268
  %v1271 = vtanh.pop %v1269
  %v1272 = vtanh.pop %v1270
  %v1273 = vmul.f32 %v1251, %v1271
  %v1274 = vmul.f32 %v1253, %v1272
  %v1275 = vlaneseq
  %vm1276 = vcmp.ge.s32.totalorder %v1275, 0
  %vm1277 = vcmp.lt.s32.totalorder %v1275, 256
  %vm1278 = vmand %vm1276, %vm1277
  %1279 = vst.msk [vmem:[#allocation3] ss:$8 sm:$0x3] %vm1278, %v1273
  %1280 = vst.msk [vmem:[#allocation3] ss:$8 sm:$0x0] %vm1278, %v1273
  %s1281 = scalar_lea.vmem [#allocation3], 16
  %1282 = vst.msk [vmem:[%s1281] ss:$8 sm:$0x3] %vm1278, %v1274
  %1283 = vst.msk [vmem:[%s1281] ss:$8 sm:$0x0] %vm1278, %v1274
  %s1284 = scalar_lea.vmem %s0, 1
  %v1285 = vld [vmem:[%s1284] ss:$8 sm:$0xf]
  %v1286 = vld [vmem:[%s1284] ss:$8 sm:$0xf0]
  %v1287 = vor.u32 %v1285, %v1286
  %s1288 = scalar_lea.vmem %s0, 65
  %v1289 = vld [vmem:[%s1288] ss:$8 sm:$0xf]
  %v1290 = vld [vmem:[%s1288] ss:$8 sm:$0xf0]
  %v1291 = vor.u32 %v1289, %v1290
  %v1294 = vcombine.low %v1273, %v1274
  %v1296 = vunpack.c.l.s4 1966171168
  %v1297 = vunpack.c.0.s8 %v1296
  %v1298 = vlaneseq
  %v1299 = vshrl.u32 %v1298, 7
  %v1300 = vsub.s32 %v1297, %v1299
  %v1301 = vrot.slane %v1294, %v1300
  %v1302 = vcombine.high %v1301, %v1301
  %v1304 = vunpack.c.l.s4 1966171168
  %v1305 = vunpack.c.0.s8 %v1304
  %v1306 = vlaneseq
  %v1307 = vshrl.u32 %v1306, 7
  %v1308 = vsub.s32 %v1305, %v1307
  %v1309 = vrot.slane %v1301, %v1308
  %v1311 = vunpack.c.l.s4 1966171168
  %v1312 = vunpack.c.0.s8 %v1311
  %v1313 = vlaneseq
  %v1314 = vshrl.u32 %v1313, 7
  %v1315 = vsub.s32 %v1312, %v1314
  %v1316 = vrot.slane %v1302, %v1315
  %1319 = vmatprep.subr.mxu0 %v174
  %1320 = vmatpush1.msra.mxu0 %v173
  %1321 = vmatprep.subr.mxu0 %v166
  %1322 = vmatpush1.msra.mxu0 %v165
  %1323 = vmatprep.subr.mxu0 %v158
  %1324 = vmatpush1.msra.mxu0 %v157
  %1325 = vmatprep.subr.mxu0 %v150
  %1326 = vmatpush1.msra.mxu0 %v149
  %1327 = vmatprep.subr.mxu0 %v142
  %1328 = vmatpush1.msra.mxu0 %v141
  %1329 = vmatprep.subr.mxu0 %v134
  %1330 = vmatpush1.msra.mxu0 %v133
  %1331 = vmatprep.subr.mxu0 %v126
  %1332 = vmatpush1.msra.mxu0 %v125
  %1333 = vmatprep.subr.mxu0 %v118
  %1334 = vmatpush1.msra.mxu0 %v117
  %1335 = vmatprep.subr.mxu0 %v110
  %1336 = vmatpush1.msra.mxu0 %v109
  %1337 = vmatprep.subr.mxu0 %v102
  %1338 = vmatpush1.msra.mxu0 %v101
  %1339 = vmatprep.subr.mxu0 %v94
  %1340 = vmatpush1.msra.mxu0 %v93
  %1341 = vmatprep.subr.mxu0 %v86
  %1342 = vmatpush1.msra.mxu0 %v85
  %1343 = vmatprep.subr.mxu0 %v78
  %1344 = vmatpush1.msra.mxu0 %v77
  %1345 = vmatprep.subr.mxu0 %v70
  %1346 = vmatpush1.msra.mxu0 %v69
  %1347 = vmatprep.subr.mxu0 %v62
  %1348 = vmatpush1.msra.mxu0 %v61
  %1349 = vmatprep.subr.mxu0 %v54
  %1350 = vmatpush1.msra.mxu0 %v53
  %1351 = vmatprep.subr.mxu0 %v302
  %1352 = vmatpush2.msra.mxu0 %v301
  %1353 = vmatprep.subr.mxu0 %v294
  %1354 = vmatpush2.msra.mxu0 %v293
  %1355 = vmatprep.subr.mxu0 %v286
  %1356 = vmatpush2.msra.mxu0 %v285
  %1357 = vmatprep.subr.mxu0 %v278
  %1358 = vmatpush2.msra.mxu0 %v277
  %1359 = vmatprep.subr.mxu0 %v270
  %1360 = vmatpush2.msra.mxu0 %v269
  %1361 = vmatprep.subr.mxu0 %v262
  %1362 = vmatpush2.msra.mxu0 %v261
  %1363 = vmatprep.subr.mxu0 %v254
  %1364 = vmatpush2.msra.mxu0 %v253
  %1365 = vmatprep.subr.mxu0 %v246
  %1366 = vmatpush2.msra.mxu0 %v245
  %1367 = vmatprep.subr.mxu0 %v238
  %1368 = vmatpush2.msra.mxu0 %v237
  %1369 = vmatprep.subr.mxu0 %v230
  %1370 = vmatpush2.msra.mxu0 %v229
  %1371 = vmatprep.subr.mxu0 %v222
  %1372 = vmatpush2.msra.mxu0 %v221
  %1373 = vmatprep.subr.mxu0 %v214
  %1374 = vmatpush2.msra.mxu0 %v213
  %1375 = vmatprep.subr.mxu0 %v206
  %1376 = vmatpush2.msra.mxu0 %v205
  %1377 = vmatprep.subr.mxu0 %v198
  %1378 = vmatpush2.msra.mxu0 %v197
  %1379 = vmatprep.subr.mxu0 %v190
  %1380 = vmatpush2.msra.mxu0 %v189
  %1381 = vmatprep.subr.mxu0 %v182
  %1382 = vmatpush2.msra.mxu0 %v181
  %1383 = vmatprep.mubr.f32.mxu0 %v1316
  %1384 = vmatmul.mubr.f32.gmra.mxu0 %v1309
  %v1385 = vpop.f32.mrf.mxu0
  %v1386 = vadd.f32 0.0, %v1385
  %v1387 = vpop.f32.mrf.mxu0
  %v1388 = vadd.f32 0.0, %v1387
  %1389 = vdwg.mxu0
  %1390 = vmatprep.subr.mxu0 %v176
  %1391 = vmatpush1.msra.mxu0 %v175
  %1392 = vmatprep.subr.mxu0 %v168
  %1393 = vmatpush1.msra.mxu0 %v167
  %1394 = vmatprep.subr.mxu0 %v160
  %1395 = vmatpush1.msra.mxu0 %v159
  %1396 = vmatprep.subr.mxu0 %v152
  %1397 = vmatpush1.msra.mxu0 %v151
  %1398 = vmatprep.subr.mxu0 %v144
  %1399 = vmatpush1.msra.mxu0 %v143
  %1400 = vmatprep.subr.mxu0 %v136
  %1401 = vmatpush1.msra.mxu0 %v135
  %1402 = vmatprep.subr.mxu0 %v128
  %1403 = vmatpush1.msra.mxu0 %v127
  %1404 = vmatprep.subr.mxu0 %v120
  %1405 = vmatpush1.msra.mxu0 %v119
  %1406 = vmatprep.subr.mxu0 %v112
  %1407 = vmatpush1.msra.mxu0 %v111
  %1408 = vmatprep.subr.mxu0 %v104
  %1409 = vmatpush1.msra.mxu0 %v103
  %1410 = vmatprep.subr.mxu0 %v96
  %1411 = vmatpush1.msra.mxu0 %v95
  %1412 = vmatprep.subr.mxu0 %v88
  %1413 = vmatpush1.msra.mxu0 %v87
  %1414 = vmatprep.subr.mxu0 %v80
  %1415 = vmatpush1.msra.mxu0 %v79
  %1416 = vmatprep.subr.mxu0 %v72
  %1417 = vmatpush1.msra.mxu0 %v71
  %1418 = vmatprep.subr.mxu0 %v64
  %1419 = vmatpush1.msra.mxu0 %v63
  %1420 = vmatprep.subr.mxu0 %v56
  %1421 = vmatpush1.msra.mxu0 %v55
  %1422 = vmatprep.subr.mxu0 %v304
  %1423 = vmatpush2.msra.mxu0 %v303
  %1424 = vmatprep.subr.mxu0 %v296
  %1425 = vmatpush2.msra.mxu0 %v295
  %1426 = vmatprep.subr.mxu0 %v288
  %1427 = vmatpush2.msra.mxu0 %v287
  %1428 = vmatprep.subr.mxu0 %v280
  %1429 = vmatpush2.msra.mxu0 %v279
  %1430 = vmatprep.subr.mxu0 %v272
  %1431 = vmatpush2.msra.mxu0 %v271
  %1432 = vmatprep.subr.mxu0 %v264
  %1433 = vmatpush2.msra.mxu0 %v263
  %1434 = vmatprep.subr.mxu0 %v256
  %1435 = vmatpush2.msra.mxu0 %v255
  %1436 = vmatprep.subr.mxu0 %v248
  %1437 = vmatpush2.msra.mxu0 %v247
  %1438 = vmatprep.subr.mxu0 %v240
  %1439 = vmatpush2.msra.mxu0 %v239
  %1440 = vmatprep.subr.mxu0 %v232
  %1441 = vmatpush2.msra.mxu0 %v231
  %1442 = vmatprep.subr.mxu0 %v224
  %1443 = vmatpush2.msra.mxu0 %v223
  %1444 = vmatprep.subr.mxu0 %v216
  %1445 = vmatpush2.msra.mxu0 %v215
  %1446 = vmatprep.subr.mxu0 %v208
  %1447 = vmatpush2.msra.mxu0 %v207
  %1448 = vmatprep.subr.mxu0 %v200
  %1449 = vmatpush2.msra.mxu0 %v199
  %1450 = vmatprep.subr.mxu0 %v192
  %1451 = vmatpush2.msra.mxu0 %v191
  %1452 = vmatprep.subr.mxu0 %v184
  %1453 = vmatpush2.msra.mxu0 %v183
  %1454 = vmatprep.mubr.f32.mxu0 %v1316
  %1455 = vmatmul.mubr.f32.gmra.mxu0 %v1309
  %v1456 = vpop.f32.mrf.mxu0
  %v1457 = vadd.f32 0.0, %v1456
  %v1458 = vpop.f32.mrf.mxu0
  %v1459 = vadd.f32 0.0, %v1458
  %1460 = vdwg.mxu0
  %1461 = vmatprep.subr.mxu0 %v178
  %1462 = vmatpush1.msra.mxu0 %v177
  %1463 = vmatprep.subr.mxu0 %v170
  %1464 = vmatpush1.msra.mxu0 %v169
  %1465 = vmatprep.subr.mxu0 %v162
  %1466 = vmatpush1.msra.mxu0 %v161
  %1467 = vmatprep.subr.mxu0 %v154
  %1468 = vmatpush1.msra.mxu0 %v153
  %1469 = vmatprep.subr.mxu0 %v146
  %1470 = vmatpush1.msra.mxu0 %v145
  %1471 = vmatprep.subr.mxu0 %v138
  %1472 = vmatpush1.msra.mxu0 %v137
  %1473 = vmatprep.subr.mxu0 %v130
  %1474 = vmatpush1.msra.mxu0 %v129
  %1475 = vmatprep.subr.mxu0 %v122
  %1476 = vmatpush1.msra.mxu0 %v121
  %1477 = vmatprep.subr.mxu0 %v114
  %1478 = vmatpush1.msra.mxu0 %v113
  %1479 = vmatprep.subr.mxu0 %v106
  %1480 = vmatpush1.msra.mxu0 %v105
  %1481 = vmatprep.subr.mxu0 %v98
  %1482 = vmatpush1.msra.mxu0 %v97
  %1483 = vmatprep.subr.mxu0 %v90
  %1484 = vmatpush1.msra.mxu0 %v89
  %1485 = vmatprep.subr.mxu0 %v82
  %1486 = vmatpush1.msra.mxu0 %v81
  %1487 = vmatprep.subr.mxu0 %v74
  %1488 = vmatpush1.msra.mxu0 %v73
  %1489 = vmatprep.subr.mxu0 %v66
  %1490 = vmatpush1.msra.mxu0 %v65
  %1491 = vmatprep.subr.mxu0 %v58
  %1492 = vmatpush1.msra.mxu0 %v57
  %1493 = vmatprep.subr.mxu0 %v306
  %1494 = vmatpush2.msra.mxu0 %v305
  %1495 = vmatprep.subr.mxu0 %v298
  %1496 = vmatpush2.msra.mxu0 %v297
  %1497 = vmatprep.subr.mxu0 %v290
  %1498 = vmatpush2.msra.mxu0 %v289
  %1499 = vmatprep.subr.mxu0 %v282
  %1500 = vmatpush2.msra.mxu0 %v281
  %1501 = vmatprep.subr.mxu0 %v274
  %1502 = vmatpush2.msra.mxu0 %v273
  %1503 = vmatprep.subr.mxu0 %v266
  %1504 = vmatpush2.msra.mxu0 %v265
  %1505 = vmatprep.subr.mxu0 %v258
  %1506 = vmatpush2.msra.mxu0 %v257
  %1507 = vmatprep.subr.mxu0 %v250
  %1508 = vmatpush2.msra.mxu0 %v249
  %1509 = vmatprep.subr.mxu0 %v242
  %1510 = vmatpush2.msra.mxu0 %v241
  %1511 = vmatprep.subr.mxu0 %v234
  %1512 = vmatpush2.msra.mxu0 %v233
  %1513 = vmatprep.subr.mxu0 %v226
  %1514 = vmatpush2.msra.mxu0 %v225
  %1515 = vmatprep.subr.mxu0 %v218
  %1516 = vmatpush2.msra.mxu0 %v217
  %1517 = vmatprep.subr.mxu0 %v210
  %1518 = vmatpush2.msra.mxu0 %v209
  %1519 = vmatprep.subr.mxu0 %v202
  %1520 = vmatpush2.msra.mxu0 %v201
  %1521 = vmatprep.subr.mxu0 %v194
  %1522 = vmatpush2.msra.mxu0 %v193
  %1523 = vmatprep.subr.mxu0 %v186
  %1524 = vmatpush2.msra.mxu0 %v185
  %1525 = vmatprep.mubr.f32.mxu0 %v1316
  %1526 = vmatmul.mubr.f32.gmra.mxu0 %v1309
  %v1527 = vpop.f32.mrf.mxu0
  %v1528 = vadd.f32 0.0, %v1527
  %v1529 = vpop.f32.mrf.mxu0
  %v1530 = vadd.f32 0.0, %v1529
  %1531 = vdwg.mxu0
  %1532 = vmatprep.subr.mxu0 %v180
  %1533 = vmatpush1.msra.mxu0 %v179
  %1534 = vmatprep.subr.mxu0 %v172
  %1535 = vmatpush1.msra.mxu0 %v171
  %1536 = vmatprep.subr.mxu0 %v164
  %1537 = vmatpush1.msra.mxu0 %v163
  %1538 = vmatprep.subr.mxu0 %v156
  %1539 = vmatpush1.msra.mxu0 %v155
  %1540 = vmatprep.subr.mxu0 %v148
  %1541 = vmatpush1.msra.mxu0 %v147
  %1542 = vmatprep.subr.mxu0 %v140
  %1543 = vmatpush1.msra.mxu0 %v139
  %1544 = vmatprep.subr.mxu0 %v132
  %1545 = vmatpush1.msra.mxu0 %v131
  %1546 = vmatprep.subr.mxu0 %v124
  %1547 = vmatpush1.msra.mxu0 %v123
  %1548 = vmatprep.subr.mxu0 %v116
  %1549 = vmatpush1.msra.mxu0 %v115
  %1550 = vmatprep.subr.mxu0 %v108
  %1551 = vmatpush1.msra.mxu0 %v107
  %1552 = vmatprep.subr.mxu0 %v100
  %1553 = vmatpush1.msra.mxu0 %v99
  %1554 = vmatprep.subr.mxu0 %v92
  %1555 = vmatpush1.msra.mxu0 %v91
  %1556 = vmatprep.subr.mxu0 %v84
  %1557 = vmatpush1.msra.mxu0 %v83
  %1558 = vmatprep.subr.mxu0 %v76
  %1559 = vmatpush1.msra.mxu0 %v75
  %1560 = vmatprep.subr.mxu0 %v68
  %1561 = vmatpush1.msra.mxu0 %v67
  %1562 = vmatprep.subr.mxu0 %v60
  %1563 = vmatpush1.msra.mxu0 %v59
  %1564 = vmatprep.subr.mxu0 %v308
  %1565 = vmatpush2.msra.mxu0 %v307
  %1566 = vmatprep.subr.mxu0 %v300
  %1567 = vmatpush2.msra.mxu0 %v299
  %1568 = vmatprep.subr.mxu0 %v292
  %1569 = vmatpush2.msra.mxu0 %v291
  %1570 = vmatprep.subr.mxu0 %v284
  %1571 = vmatpush2.msra.mxu0 %v283
  %1572 = vmatprep.subr.mxu0 %v276
  %1573 = vmatpush2.msra.mxu0 %v275
  %1574 = vmatprep.subr.mxu0 %v268
  %1575 = vmatpush2.msra.mxu0 %v267
  %1576 = vmatprep.subr.mxu0 %v260
  %1577 = vmatpush2.msra.mxu0 %v259
  %1578 = vmatprep.subr.mxu0 %v252
  %1579 = vmatpush2.msra.mxu0 %v251
  %1580 = vmatprep.subr.mxu0 %v244
  %1581 = vmatpush2.msra.mxu0 %v243
  %1582 = vmatprep.subr.mxu0 %v236
  %1583 = vmatpush2.msra.mxu0 %v235
  %1584 = vmatprep.subr.mxu0 %v228
  %1585 = vmatpush2.msra.mxu0 %v227
  %1586 = vmatprep.subr.mxu0 %v220
  %1587 = vmatpush2.msra.mxu0 %v219
  %1588 = vmatprep.subr.mxu0 %v212
  %1589 = vmatpush2.msra.mxu0 %v211
  %1590 = vmatprep.subr.mxu0 %v204
  %1591 = vmatpush2.msra.mxu0 %v203
  %1592 = vmatprep.subr.mxu0 %v196
  %1593 = vmatpush2.msra.mxu0 %v195
  %1594 = vmatprep.subr.mxu0 %v188
  %1595 = vmatpush2.msra.mxu0 %v187
  %1596 = vmatprep.mubr.f32.mxu0 %v1316
  %1597 = vmatmul.mubr.f32.gmra.mxu0 %v1309
  %v1598 = vpop.f32.mrf.mxu0
  %v1599 = vadd.f32 0.0, %v1598
  %v1600 = vpop.f32.mrf.mxu0
  %v1601 = vadd.f32 0.0, %v1600
  %1602 = vdwg.mxu0
  %v1611 = vcombine.low %v1386, %v1388
  %v1612 = vcombine.low %v1457, %v1459
  %v1613 = vcombine.low %v1528, %v1530
  %v1614 = vcombine.low %v1599, %v1601
  %v1616 = vunpack.c.l.s4 1966171168
  %v1617 = vunpack.c.0.s8 %v1616
  %v1618 = vlaneseq
  %v1619 = vshrl.u32 %v1618, 7
  %v1620 = vsub.s32 %v1617, %v1619
  %v1621 = vrot.slane %v1611, %v1620
  %v1623 = vunpack.c.l.s4 1966171168
  %v1624 = vunpack.c.0.s8 %v1623
  %v1625 = vlaneseq
  %v1626 = vshrl.u32 %v1625, 7
  %v1627 = vsub.s32 %v1624, %v1626
  %v1628 = vrot.slane %v1612, %v1627
  %v1630 = vunpack.c.l.s4 1966171168
  %v1631 = vunpack.c.0.s8 %v1630
  %v1632 = vlaneseq
  %v1633 = vshrl.u32 %v1632, 7
  %v1634 = vsub.s32 %v1631, %v1633
  %v1635 = vrot.slane %v1613, %v1634
  %v1637 = vunpack.c.l.s4 1966171168
  %v1638 = vunpack.c.0.s8 %v1637
  %v1639 = vlaneseq
  %v1640 = vshrl.u32 %v1639, 7
  %v1641 = vsub.s32 %v1638, %v1640
  %v1642 = vrot.slane %v1614, %v1641
  %v1643 = vcombine.low %v1621, %v1628
  %v1644 = vcombine.high %v1621, %v1628
  %v1645 = vcombine.low %v1635, %v1642
  %v1646 = vcombine.high %v1635, %v1642
  %v1648 = vunpack.c.l.s4 1966171168
  %v1649 = vunpack.c.0.s8 %v1648
  %v1650 = vlaneseq
  %v1651 = vshrl.u32 %v1650, 7
  %v1652 = vsub.s32 %v1649, %v1651
  %v1653 = vrot.slane %v1643, %v1652
  %v1655 = vunpack.c.l.s4 1966171168
  %v1656 = vunpack.c.0.s8 %v1655
  %v1657 = vlaneseq
  %v1658 = vshrl.u32 %v1657, 7
  %v1659 = vsub.s32 %v1656, %v1658
  %v1660 = vrot.slane %v1644, %v1659
  %v1662 = vunpack.c.l.s4 1966171168
  %v1663 = vunpack.c.0.s8 %v1662
  %v1664 = vlaneseq
  %v1665 = vshrl.u32 %v1664, 7
  %v1666 = vsub.s32 %v1663, %v1665
  %v1667 = vrot.slane %v1645, %v1666
  %v1669 = vunpack.c.l.s4 1966171168
  %v1670 = vunpack.c.0.s8 %v1669
  %v1671 = vlaneseq
  %v1672 = vshrl.u32 %v1671, 7
  %v1673 = vsub.s32 %v1670, %v1672
  %v1674 = vrot.slane %v1646, %v1673
  %v1675 = vcombine.low %v1653, %v1667
  %v1676 = vcombine.low %v1660, %v1674
  %v1679 = vadd.f32 %v1287, %v1675
  %v1680 = vadd.f32 %v1291, %v1676
  %v1681 = vxor.u32 %v1679, 2147483648
  %v1682 = vxor.u32 %v1680, 2147483648
  %v1683 = vmul.f32 %v1681, 1.442695
  %v1684 = vpow.pop %v1683
  %v1685 = vmul.f32 %v1682, 1.442695
  %v1686 = vpow.pop %v1685
  %v1687 = vadd.f32 %v1684, 1.0
  %v1688 = vadd.f32 %v1686, 1.0
  %v1689 = vrcp.pop %v1687
  %v1690 = vmul.f32 1.0, %v1689
  %v1691 = vrcp.pop %v1688
  %v1692 = vmul.f32 1.0, %v1691
  %v1695 = vrot.slane %v1679, 2
  %v1696 = vrot.slane %v1680, 2
  %v1699 = vxor.u32 %v1695, 2147483648
  %v1700 = vxor.u32 %v1696, 2147483648
  %v1701 = vmul.f32 %v1699, 1.442695
  %v1702 = vpow.pop %v1701
  %v1703 = vmul.f32 %v1700, 1.442695
  %v1704 = vpow.pop %v1703
  %v1705 = vadd.f32 %v1702, 1.0
  %v1706 = vadd.f32 %v1704, 1.0
  %v1707 = vrcp.pop %v1705
  %v1708 = vmul.f32 1.0, %v1707
  %v1709 = vrcp.pop %v1706
  %v1710 = vmul.f32 1.0, %v1709
  %v1711 = vrot.slane %v1679, 4
  %v1712 = vrot.slane %v1680, 4
  %v1715 = vtanh.pop %v1711
  %v1716 = vtanh.pop %v1712
  %v1717 = vrot.slane %v1679, 6
  %v1718 = vrot.slane %v1680, 6
  %v1721 = vxor.u32 %v1717, 2147483648
  %v1722 = vxor.u32 %v1718, 2147483648
  %v1723 = vmul.f32 %v1721, 1.442695
  %v1724 = vpow.pop %v1723
  %v1725 = vmul.f32 %v1722, 1.442695
  %v1726 = vpow.pop %v1725
  %v1727 = vadd.f32 %v1724, 1.0
  %v1728 = vadd.f32 %v1726, 1.0
  %v1729 = vrcp.pop %v1727
  %v1730 = vmul.f32 1.0, %v1729
  %v1731 = vrcp.pop %v1728
  %v1732 = vmul.f32 1.0, %v1731
  %v1733 = vmul.f32 %v1708, %v1269
  %v1734 = vmul.f32 %v1710, %v1270
  %v1735 = vmul.f32 %v1690, %v1715
  %v1736 = vmul.f32 %v1692, %v1716
  %v1737 = vadd.f32 %v1733, %v1735
  %v1738 = vadd.f32 %v1734, %v1736
  %v1739 = vtanh.pop %v1737
  %v1740 = vtanh.pop %v1738
  %v1741 = vmul.f32 %v1730, %v1739
  %v1742 = vmul.f32 %v1732, %v1740
  %s1743 = scalar_lea.vmem [#allocation3], 1
  %1744 = vst.msk [vmem:[%s1743] ss:$8 sm:$0x3] %vm1278, %v1741
  %1745 = vst.msk [vmem:[%s1743] ss:$8 sm:$0x0] %vm1278, %v1741
  %s1746 = scalar_lea.vmem [#allocation3], 17
  %1747 = vst.msk [vmem:[%s1746] ss:$8 sm:$0x3] %vm1278, %v1742
  %1748 = vst.msk [vmem:[%s1746] ss:$8 sm:$0x0] %vm1278, %v1742
  %s1749 = scalar_lea.vmem %s0, 2
  %v1750 = vld [vmem:[%s1749] ss:$8 sm:$0xf]
  %v1751 = vld [vmem:[%s1749] ss:$8 sm:$0xf0]
  %v1752 = vor.u32 %v1750, %v1751
  %s1753 = scalar_lea.vmem %s0, 66
  %v1754 = vld [vmem:[%s1753] ss:$8 sm:$0xf]
  %v1755 = vld [vmem:[%s1753] ss:$8 sm:$0xf0]
  %v1756 = vor.u32 %v1754, %v1755
  %v1759 = vcombine.low %v1741, %v1742
  %v1761 = vunpack.c.l.s4 1966171168
  %v1762 = vunpack.c.0.s8 %v1761
  %v1763 = vlaneseq
  %v1764 = vshrl.u32 %v1763, 7
  %v1765 = vsub.s32 %v1762, %v1764
  %v1766 = vrot.slane %v1759, %v1765
  %v1767 = vcombine.high %v1766, %v1766
  %v1769 = vunpack.c.l.s4 1966171168
  %v1770 = vunpack.c.0.s8 %v1769
  %v1771 = vlaneseq
  %v1772 = vshrl.u32 %v1771, 7
  %v1773 = vsub.s32 %v1770, %v1772
  %v1774 = vrot.slane %v1766, %v1773
  %v1776 = vunpack.c.l.s4 1966171168
  %v1777 = vunpack.c.0.s8 %v1776
  %v1778 = vlaneseq
  %v1779 = vshrl.u32 %v1778, 7
  %v1780 = vsub.s32 %v1777, %v1779
  %v1781 = vrot.slane %v1767, %v1780
  %1784 = vmatprep.subr.mxu0 %v174
  %1785 = vmatpush1.msra.mxu0 %v173
  %1786 = vmatprep.subr.mxu0 %v166
  %1787 = vmatpush1.msra.mxu0 %v165
  %1788 = vmatprep.subr.mxu0 %v158
  %1789 = vmatpush1.msra.mxu0 %v157
  %1790 = vmatprep.subr.mxu0 %v150
  %1791 = vmatpush1.msra.mxu0 %v149
  %1792 = vmatprep.subr.mxu0 %v142
  %1793 = vmatpush1.msra.mxu0 %v141
  %1794 = vmatprep.subr.mxu0 %v134
  %1795 = vmatpush1.msra.mxu0 %v133
  %1796 = vmatprep.subr.mxu0 %v126
  %1797 = vmatpush1.msra.mxu0 %v125
  %1798 = vmatprep.subr.mxu0 %v118
  %1799 = vmatpush1.msra.mxu0 %v117
  %1800 = vmatprep.subr.mxu0 %v110
  %1801 = vmatpush1.msra.mxu0 %v109
  %1802 = vmatprep.subr.mxu0 %v102
  %1803 = vmatpush1.msra.mxu0 %v101
  %1804 = vmatprep.subr.mxu0 %v94
  %1805 = vmatpush1.msra.mxu0 %v93
  %1806 = vmatprep.subr.mxu0 %v86
  %1807 = vmatpush1.msra.mxu0 %v85
  %1808 = vmatprep.subr.mxu0 %v78
  %1809 = vmatpush1.msra.mxu0 %v77
  %1810 = vmatprep.subr.mxu0 %v70
  %1811 = vmatpush1.msra.mxu0 %v69
  %1812 = vmatprep.subr.mxu0 %v62
  %1813 = vmatpush1.msra.mxu0 %v61
  %1814 = vmatprep.subr.mxu0 %v54
  %1815 = vmatpush1.msra.mxu0 %v53
  %1816 = vmatprep.subr.mxu0 %v302
  %1817 = vmatpush2.msra.mxu0 %v301
  %1818 = vmatprep.subr.mxu0 %v294
  %1819 = vmatpush2.msra.mxu0 %v293
  %1820 = vmatprep.subr.mxu0 %v286
  %1821 = vmatpush2.msra.mxu0 %v285
  %1822 = vmatprep.subr.mxu0 %v278
  %1823 = vmatpush2.msra.mxu0 %v277
  %1824 = vmatprep.subr.mxu0 %v270
  %1825 = vmatpush2.msra.mxu0 %v269
  %1826 = vmatprep.subr.mxu0 %v262
  %1827 = vmatpush2.msra.mxu0 %v261
  %1828 = vmatprep.subr.mxu0 %v254
  %1829 = vmatpush2.msra.mxu0 %v253
  %1830 = vmatprep.subr.mxu0 %v246
  %1831 = vmatpush2.msra.mxu0 %v245
  %1832 = vmatprep.subr.mxu0 %v238
  %1833 = vmatpush2.msra.mxu0 %v237
  %1834 = vmatprep.subr.mxu0 %v230
  %1835 = vmatpush2.msra.mxu0 %v229
  %1836 = vmatprep.subr.mxu0 %v222
  %1837 = vmatpush2.msra.mxu0 %v221
  %1838 = vmatprep.subr.mxu0 %v214
  %1839 = vmatpush2.msra.mxu0 %v213
  %1840 = vmatprep.subr.mxu0 %v206
  %1841 = vmatpush2.msra.mxu0 %v205
  %1842 = vmatprep.subr.mxu0 %v198
  %1843 = vmatpush2.msra.mxu0 %v197
  %1844 = vmatprep.subr.mxu0 %v190
  %1845 = vmatpush2.msra.mxu0 %v189
  %1846 = vmatprep.subr.mxu0 %v182
  %1847 = vmatpush2.msra.mxu0 %v181
  %1848 = vmatprep.mubr.f32.mxu0 %v1781
  %1849 = vmatmul.mubr.f32.gmra.mxu0 %v1774
  %v1850 = vpop.f32.mrf.mxu0
  %v1851 = vadd.f32 0.0, %v1850
  %v1852 = vpop.f32.mrf.mxu0
  %v1853 = vadd.f32 0.0, %v1852
  %1854 = vdwg.mxu0
  %1855 = vmatprep.subr.mxu0 %v176
  %1856 = vmatpush1.msra.mxu0 %v175
  %1857 = vmatprep.subr.mxu0 %v168
  %1858 = vmatpush1.msra.mxu0 %v167
  %1859 = vmatprep.subr.mxu0 %v160
  %1860 = vmatpush1.msra.mxu0 %v159
  %1861 = vmatprep.subr.mxu0 %v152
  %1862 = vmatpush1.msra.mxu0 %v151
  %1863 = vmatprep.subr.mxu0 %v144
  %1864 = vmatpush1.msra.mxu0 %v143
  %1865 = vmatprep.subr.mxu0 %v136
  %1866 = vmatpush1.msra.mxu0 %v135
  %1867 = vmatprep.subr.mxu0 %v128
  %1868 = vmatpush1.msra.mxu0 %v127
  %1869 = vmatprep.subr.mxu0 %v120
  %1870 = vmatpush1.msra.mxu0 %v119
  %1871 = vmatprep.subr.mxu0 %v112
  %1872 = vmatpush1.msra.mxu0 %v111
  %1873 = vmatprep.subr.mxu0 %v104
  %1874 = vmatpush1.msra.mxu0 %v103
  %1875 = vmatprep.subr.mxu0 %v96
  %1876 = vmatpush1.msra.mxu0 %v95
  %1877 = vmatprep.subr.mxu0 %v88
  %1878 = vmatpush1.msra.mxu0 %v87
  %1879 = vmatprep.subr.mxu0 %v80
  %1880 = vmatpush1.msra.mxu0 %v79
  %1881 = vmatprep.subr.mxu0 %v72
  %1882 = vmatpush1.msra.mxu0 %v71
  %1883 = vmatprep.subr.mxu0 %v64
  %1884 = vmatpush1.msra.mxu0 %v63
  %1885 = vmatprep.subr.mxu0 %v56
  %1886 = vmatpush1.msra.mxu0 %v55
  %1887 = vmatprep.subr.mxu0 %v304
  %1888 = vmatpush2.msra.mxu0 %v303
  %1889 = vmatprep.subr.mxu0 %v296
  %1890 = vmatpush2.msra.mxu0 %v295
  %1891 = vmatprep.subr.mxu0 %v288
  %1892 = vmatpush2.msra.mxu0 %v287
  %1893 = vmatprep.subr.mxu0 %v280
  %1894 = vmatpush2.msra.mxu0 %v279
  %1895 = vmatprep.subr.mxu0 %v272
  %1896 = vmatpush2.msra.mxu0 %v271
  %1897 = vmatprep.subr.mxu0 %v264
  %1898 = vmatpush2.msra.mxu0 %v263
  %1899 = vmatprep.subr.mxu0 %v256
  %1900 = vmatpush2.msra.mxu0 %v255
  %1901 = vmatprep.subr.mxu0 %v248
  %1902 = vmatpush2.msra.mxu0 %v247
  %1903 = vmatprep.subr.mxu0 %v240
  %1904 = vmatpush2.msra.mxu0 %v239
  %1905 = vmatprep.subr.mxu0 %v232
  %1906 = vmatpush2.msra.mxu0 %v231
  %1907 = vmatprep.subr.mxu0 %v224
  %1908 = vmatpush2.msra.mxu0 %v223
  %1909 = vmatprep.subr.mxu0 %v216
  %1910 = vmatpush2.msra.mxu0 %v215
  %1911 = vmatprep.subr.mxu0 %v208
  %1912 = vmatpush2.msra.mxu0 %v207
  %1913 = vmatprep.subr.mxu0 %v200
  %1914 = vmatpush2.msra.mxu0 %v199
  %1915 = vmatprep.subr.mxu0 %v192
  %1916 = vmatpush2.msra.mxu0 %v191
  %1917 = vmatprep.subr.mxu0 %v184
  %1918 = vmatpush2.msra.mxu0 %v183
  %1919 = vmatprep.mubr.f32.mxu0 %v1781
  %1920 = vmatmul.mubr.f32.gmra.mxu0 %v1774
  %v1921 = vpop.f32.mrf.mxu0
  %v1922 = vadd.f32 0.0, %v1921
  %v1923 = vpop.f32.mrf.mxu0
  %v1924 = vadd.f32 0.0, %v1923
  %1925 = vdwg.mxu0
  %1926 = vmatprep.subr.mxu0 %v178
  %1927 = vmatpush1.msra.mxu0 %v177
  %1928 = vmatprep.subr.mxu0 %v170
  %1929 = vmatpush1.msra.mxu0 %v169
  %1930 = vmatprep.subr.mxu0 %v162
  %1931 = vmatpush1.msra.mxu0 %v161
  %1932 = vmatprep.subr.mxu0 %v154
  %1933 = vmatpush1.msra.mxu0 %v153
  %1934 = vmatprep.subr.mxu0 %v146
  %1935 = vmatpush1.msra.mxu0 %v145
  %1936 = vmatprep.subr.mxu0 %v138
  %1937 = vmatpush1.msra.mxu0 %v137
  %1938 = vmatprep.subr.mxu0 %v130
  %1939 = vmatpush1.msra.mxu0 %v129
  %1940 = vmatprep.subr.mxu0 %v122
  %1941 = vmatpush1.msra.mxu0 %v121
  %1942 = vmatprep.subr.mxu0 %v114
  %1943 = vmatpush1.msra.mxu0 %v113
  %1944 = vmatprep.subr.mxu0 %v106
  %1945 = vmatpush1.msra.mxu0 %v105
  %1946 = vmatprep.subr.mxu0 %v98
  %1947 = vmatpush1.msra.mxu0 %v97
  %1948 = vmatprep.subr.mxu0 %v90
  %1949 = vmatpush1.msra.mxu0 %v89
  %1950 = vmatprep.subr.mxu0 %v82
  %1951 = vmatpush1.msra.mxu0 %v81
  %1952 = vmatprep.subr.mxu0 %v74
  %1953 = vmatpush1.msra.mxu0 %v73
  %1954 = vmatprep.subr.mxu0 %v66
  %1955 = vmatpush1.msra.mxu0 %v65
  %1956 = vmatprep.subr.mxu0 %v58
  %1957 = vmatpush1.msra.mxu0 %v57
  %1958 = vmatprep.subr.mxu0 %v306
  %1959 = vmatpush2.msra.mxu0 %v305
  %1960 = vmatprep.subr.mxu0 %v298
  %1961 = vmatpush2.msra.mxu0 %v297
  %1962 = vmatprep.subr.mxu0 %v290
  %1963 = vmatpush2.msra.mxu0 %v289
  %1964 = vmatprep.subr.mxu0 %v282
  %1965 = vmatpush2.msra.mxu0 %v281
  %1966 = vmatprep.subr.mxu0 %v274
  %1967 = vmatpush2.msra.mxu0 %v273
  %1968 = vmatprep.subr.mxu0 %v266
  %1969 = vmatpush2.msra.mxu0 %v265
  %1970 = vmatprep.subr.mxu0 %v258
  %1971 = vmatpush2.msra.mxu0 %v257
  %1972 = vmatprep.subr.mxu0 %v250
  %1973 = vmatpush2.msra.mxu0 %v249
  %1974 = vmatprep.subr.mxu0 %v242
  %1975 = vmatpush2.msra.mxu0 %v241
  %1976 = vmatprep.subr.mxu0 %v234
  %1977 = vmatpush2.msra.mxu0 %v233
  %1978 = vmatprep.subr.mxu0 %v226
  %1979 = vmatpush2.msra.mxu0 %v225
  %1980 = vmatprep.subr.mxu0 %v218
  %1981 = vmatpush2.msra.mxu0 %v217
  %1982 = vmatprep.subr.mxu0 %v210
  %1983 = vmatpush2.msra.mxu0 %v209
  %1984 = vmatprep.subr.mxu0 %v202
  %1985 = vmatpush2.msra.mxu0 %v201
  %1986 = vmatprep.subr.mxu0 %v194
  %1987 = vmatpush2.msra.mxu0 %v193
  %1988 = vmatprep.subr.mxu0 %v186
  %1989 = vmatpush2.msra.mxu0 %v185
  %1990 = vmatprep.mubr.f32.mxu0 %v1781
  %1991 = vmatmul.mubr.f32.gmra.mxu0 %v1774
  %v1992 = vpop.f32.mrf.mxu0
  %v1993 = vadd.f32 0.0, %v1992
  %v1994 = vpop.f32.mrf.mxu0
  %v1995 = vadd.f32 0.0, %v1994
  %1996 = vdwg.mxu0
  %1997 = vmatprep.subr.mxu0 %v180
  %1998 = vmatpush1.msra.mxu0 %v179
  %1999 = vmatprep.subr.mxu0 %v172
  %2000 = vmatpush1.msra.mxu0 %v171
  %2001 = vmatprep.subr.mxu0 %v164
  %2002 = vmatpush1.msra.mxu0 %v163
  %2003 = vmatprep.subr.mxu0 %v156
  %2004 = vmatpush1.msra.mxu0 %v155
  %2005 = vmatprep.subr.mxu0 %v148
  %2006 = vmatpush1.msra.mxu0 %v147
  %2007 = vmatprep.subr.mxu0 %v140
  %2008 = vmatpush1.msra.mxu0 %v139
  %2009 = vmatprep.subr.mxu0 %v132
  %2010 = vmatpush1.msra.mxu0 %v131
  %2011 = vmatprep.subr.mxu0 %v124
  %2012 = vmatpush1.msra.mxu0 %v123
  %2013 = vmatprep.subr.mxu0 %v116
  %2014 = vmatpush1.msra.mxu0 %v115
  %2015 = vmatprep.subr.mxu0 %v108
  %2016 = vmatpush1.msra.mxu0 %v107
  %2017 = vmatprep.subr.mxu0 %v100
  %2018 = vmatpush1.msra.mxu0 %v99
  %2019 = vmatprep.subr.mxu0 %v92
  %2020 = vmatpush1.msra.mxu0 %v91
  %2021 = vmatprep.subr.mxu0 %v84
  %2022 = vmatpush1.msra.mxu0 %v83
  %2023 = vmatprep.subr.mxu0 %v76
  %2024 = vmatpush1.msra.mxu0 %v75
  %2025 = vmatprep.subr.mxu0 %v68
  %2026 = vmatpush1.msra.mxu0 %v67
  %2027 = vmatprep.subr.mxu0 %v60
  %2028 = vmatpush1.msra.mxu0 %v59
  %2029 = vmatprep.subr.mxu0 %v308
  %2030 = vmatpush2.msra.mxu0 %v307
  %2031 = vmatprep.subr.mxu0 %v300
  %2032 = vmatpush2.msra.mxu0 %v299
  %2033 = vmatprep.subr.mxu0 %v292
  %2034 = vmatpush2.msra.mxu0 %v291
  %2035 = vmatprep.subr.mxu0 %v284
  %2036 = vmatpush2.msra.mxu0 %v283
  %2037 = vmatprep.subr.mxu0 %v276
  %2038 = vmatpush2.msra.mxu0 %v275
  %2039 = vmatprep.subr.mxu0 %v268
  %2040 = vmatpush2.msra.mxu0 %v267
  %2041 = vmatprep.subr.mxu0 %v260
  %2042 = vmatpush2.msra.mxu0 %v259
  %2043 = vmatprep.subr.mxu0 %v252
  %2044 = vmatpush2.msra.mxu0 %v251
  %2045 = vmatprep.subr.mxu0 %v244
  %2046 = vmatpush2.msra.mxu0 %v243
  %2047 = vmatprep.subr.mxu0 %v236
  %2048 = vmatpush2.msra.mxu0 %v235
  %2049 = vmatprep.subr.mxu0 %v228
  %2050 = vmatpush2.msra.mxu0 %v227
  %2051 = vmatprep.subr.mxu0 %v220
  %2052 = vmatpush2.msra.mxu0 %v219
  %2053 = vmatprep.subr.mxu0 %v212
  %2054 = vmatpush2.msra.mxu0 %v211
  %2055 = vmatprep.subr.mxu0 %v204
  %2056 = vmatpush2.msra.mxu0 %v203
  %2057 = vmatprep.subr.mxu0 %v196
  %2058 = vmatpush2.msra.mxu0 %v195
  %2059 = vmatprep.subr.mxu0 %v188
  %2060 = vmatpush2.msra.mxu0 %v187
  %2061 = vmatprep.mubr.f32.mxu0 %v1781
  %2062 = vmatmul.mubr.f32.gmra.mxu0 %v1774
  %v2063 = vpop.f32.mrf.mxu0
  %v2064 = vadd.f32 0.0, %v2063
  %v2065 = vpop.f32.mrf.mxu0
  %v2066 = vadd.f32 0.0, %v2065
  %2067 = vdwg.mxu0
  %v2076 = vcombine.low %v1851, %v1853
  %v2077 = vcombine.low %v1922, %v1924
  %v2078 = vcombine.low %v1993, %v1995
  %v2079 = vcombine.low %v2064, %v2066
  %v2081 = vunpack.c.l.s4 1966171168
  %v2082 = vunpack.c.0.s8 %v2081
  %v2083 = vlaneseq
  %v2084 = vshrl.u32 %v2083, 7
  %v2085 = vsub.s32 %v2082, %v2084
  %v2086 = vrot.slane %v2076, %v2085
  %v2088 = vunpack.c.l.s4 1966171168
  %v2089 = vunpack.c.0.s8 %v2088
  %v2090 = vlaneseq
  %v2091 = vshrl.u32 %v2090, 7
  %v2092 = vsub.s32 %v2089, %v2091
  %v2093 = vrot.slane %v2077, %v2092
  %v2095 = vunpack.c.l.s4 1966171168
  %v2096 = vunpack.c.0.s8 %v2095
  %v2097 = vlaneseq
  %v2098 = vshrl.u32 %v2097, 7
  %v2099 = vsub.s32 %v2096, %v2098
  %v2100 = vrot.slane %v2078, %v2099
  %v2102 = vunpack.c.l.s4 1966171168
  %v2103 = vunpack.c.0.s8 %v2102
  %v2104 = vlaneseq
  %v2105 = vshrl.u32 %v2104, 7
  %v2106 = vsub.s32 %v2103, %v2105
  %v2107 = vrot.slane %v2079, %v2106
  %v2108 = vcombine.low %v2086, %v2093
  %v2109 = vcombine.high %v2086, %v2093
  %v2110 = vcombine.low %v2100, %v2107
  %v2111 = vcombine.high %v2100, %v2107
  %v2113 = vunpack.c.l.s4 1966171168
  %v2114 = vunpack.c.0.s8 %v2113
  %v2115 = vlaneseq
  %v2116 = vshrl.u32 %v2115, 7
  %v2117 = vsub.s32 %v2114, %v2116
  %v2118 = vrot.slane %v2108, %v2117
  %v2120 = vunpack.c.l.s4 1966171168
  %v2121 = vunpack.c.0.s8 %v2120
  %v2122 = vlaneseq
  %v2123 = vshrl.u32 %v2122, 7
  %v2124 = vsub.s32 %v2121, %v2123
  %v2125 = vrot.slane %v2109, %v2124
  %v2127 = vunpack.c.l.s4 1966171168
  %v2128 = vunpack.c.0.s8 %v2127
  %v2129 = vlaneseq
  %v2130 = vshrl.u32 %v2129, 7
  %v2131 = vsub.s32 %v2128, %v2130
  %v2132 = vrot.slane %v2110, %v2131
  %v2134 = vunpack.c.l.s4 1966171168
  %v2135 = vunpack.c.0.s8 %v2134
  %v2136 = vlaneseq
  %v2137 = vshrl.u32 %v2136, 7
  %v2138 = vsub.s32 %v2135, %v2137
  %v2139 = vrot.slane %v2111, %v2138
  %v2140 = vcombine.low %v2118, %v2132
  %v2141 = vcombine.low %v2125, %v2139
  %v2144 = vadd.f32 %v1752, %v2140
  %v2145 = vadd.f32 %v1756, %v2141
  %v2146 = vxor.u32 %v2144, 2147483648
  %v2147 = vxor.u32 %v2145, 2147483648
  %v2148 = vmul.f32 %v2146, 1.442695
  %v2149 = vpow.pop %v2148
  %v2150 = vmul.f32 %v2147, 1.442695
  %v2151 = vpow.pop %v2150
  %v2152 = vadd.f32 %v2149, 1.0
  %v2153 = vadd.f32 %v2151, 1.0
  %v2154 = vrcp.pop %v2152
  %v2155 = vmul.f32 1.0, %v2154
  %v2156 = vrcp.pop %v2153
  %v2157 = vmul.f32 1.0, %v2156
  %v2160 = vrot.slane %v2144, 2
  %v2161 = vrot.slane %v2145, 2
  %v2164 = vxor.u32 %v2160, 2147483648
  %v2165 = vxor.u32 %v2161, 2147483648
  %v2166 = vmul.f32 %v2164, 1.442695
  %v2167 = vpow.pop %v2166
  %v2168 = vmul.f32 %v2165, 1.442695
  %v2169 = vpow.pop %v2168
  %v2170 = vadd.f32 %v2167, 1.0
  %v2171 = vadd.f32 %v2169, 1.0
  %v2172 = vrcp.pop %v2170
  %v2173 = vmul.f32 1.0, %v2172
  %v2174 = vrcp.pop %v2171
  %v2175 = vmul.f32 1.0, %v2174
  %v2176 = vrot.slane %v2144, 4
  %v2177 = vrot.slane %v2145, 4
  %v2180 = vtanh.pop %v2176
  %v2181 = vtanh.pop %v2177
  %v2182 = vrot.slane %v2144, 6
  %v2183 = vrot.slane %v2145, 6
  %v2186 = vxor.u32 %v2182, 2147483648
  %v2187 = vxor.u32 %v2183, 2147483648
  %v2188 = vmul.f32 %v2186, 1.442695
  %v2189 = vpow.pop %v2188
  %v2190 = vmul.f32 %v2187, 1.442695
  %v2191 = vpow.pop %v2190
  %v2192 = vadd.f32 %v2189, 1.0
  %v2193 = vadd.f32 %v2191, 1.0
  %v2194 = vrcp.pop %v2192
  %v2195 = vmul.f32 1.0, %v2194
  %v2196 = vrcp.pop %v2193
  %v2197 = vmul.f32 1.0, %v2196
  %v2198 = vmul.f32 %v2173, %v1737
  %v2199 = vmul.f32 %v2175, %v1738
  %v2200 = vmul.f32 %v2155, %v2180
  %v2201 = vmul.f32 %v2157, %v2181
  %v2202 = vadd.f32 %v2198, %v2200
  %v2203 = vadd.f32 %v2199, %v2201
  %v2204 = vtanh.pop %v2202
  %v2205 = vtanh.pop %v2203
  %v2206 = vmul.f32 %v2195, %v2204
  %v2207 = vmul.f32 %v2197, %v2205
  %s2208 = scalar_lea.vmem [#allocation3], 2
  %2209 = vst.msk [vmem:[%s2208] ss:$8 sm:$0x3] %vm1278, %v2206
  %2210 = vst.msk [vmem:[%s2208] ss:$8 sm:$0x0] %vm1278, %v2206
  %s2211 = scalar_lea.vmem [#allocation3], 18
  %2212 = vst.msk [vmem:[%s2211] ss:$8 sm:$0x3] %vm1278, %v2207
  %2213 = vst.msk [vmem:[%s2211] ss:$8 sm:$0x0] %vm1278, %v2207
  %s2214 = scalar_lea.vmem %s0, 3
  %v2215 = vld [vmem:[%s2214] ss:$8 sm:$0xf]
  %v2216 = vld [vmem:[%s2214] ss:$8 sm:$0xf0]
  %v2217 = vor.u32 %v2215, %v2216
  %s2218 = scalar_lea.vmem %s0, 67
  %v2219 = vld [vmem:[%s2218] ss:$8 sm:$0xf]
  %v2220 = vld [vmem:[%s2218] ss:$8 sm:$0xf0]
  %v2221 = vor.u32 %v2219, %v2220
  %v2224 = vcombine.low %v2206, %v2207
  %v2226 = vunpack.c.l.s4 1966171168
  %v2227 = vunpack.c.0.s8 %v2226
  %v2228 = vlaneseq
  %v2229 = vshrl.u32 %v2228, 7
  %v2230 = vsub.s32 %v2227, %v2229
  %v2231 = vrot.slane %v2224, %v2230
  %v2232 = vcombine.high %v2231, %v2231
  %v2234 = vunpack.c.l.s4 1966171168
  %v2235 = vunpack.c.0.s8 %v2234
  %v2236 = vlaneseq
  %v2237 = vshrl.u32 %v2236, 7
  %v2238 = vsub.s32 %v2235, %v2237
  %v2239 = vrot.slane %v2231, %v2238
  %v2241 = vunpack.c.l.s4 1966171168
  %v2242 = vunpack.c.0.s8 %v2241
  %v2243 = vlaneseq
  %v2244 = vshrl.u32 %v2243, 7
  %v2245 = vsub.s32 %v2242, %v2244
  %v2246 = vrot.slane %v2232, %v2245
  %2249 = vmatprep.subr.mxu0 %v174
  %2250 = vmatpush1.msra.mxu0 %v173
  %2251 = vmatprep.subr.mxu0 %v166
  %2252 = vmatpush1.msra.mxu0 %v165
  %2253 = vmatprep.subr.mxu0 %v158
  %2254 = vmatpush1.msra.mxu0 %v157
  %2255 = vmatprep.subr.mxu0 %v150
  %2256 = vmatpush1.msra.mxu0 %v149
  %2257 = vmatprep.subr.mxu0 %v142
  %2258 = vmatpush1.msra.mxu0 %v141
  %2259 = vmatprep.subr.mxu0 %v134
  %2260 = vmatpush1.msra.mxu0 %v133
  %2261 = vmatprep.subr.mxu0 %v126
  %2262 = vmatpush1.msra.mxu0 %v125
  %2263 = vmatprep.subr.mxu0 %v118
  %2264 = vmatpush1.msra.mxu0 %v117
  %2265 = vmatprep.subr.mxu0 %v110
  %2266 = vmatpush1.msra.mxu0 %v109
  %2267 = vmatprep.subr.mxu0 %v102
  %2268 = vmatpush1.msra.mxu0 %v101
  %2269 = vmatprep.subr.mxu0 %v94
  %2270 = vmatpush1.msra.mxu0 %v93
  %2271 = vmatprep.subr.mxu0 %v86
  %2272 = vmatpush1.msra.mxu0 %v85
  %2273 = vmatprep.subr.mxu0 %v78
  %2274 = vmatpush1.msra.mxu0 %v77
  %2275 = vmatprep.subr.mxu0 %v70
  %2276 = vmatpush1.msra.mxu0 %v69
  %2277 = vmatprep.subr.mxu0 %v62
  %2278 = vmatpush1.msra.mxu0 %v61
  %2279 = vmatprep.subr.mxu0 %v54
  %2280 = vmatpush1.msra.mxu0 %v53
  %2281 = vmatprep.subr.mxu0 %v302
  %2282 = vmatpush2.msra.mxu0 %v301
  %2283 = vmatprep.subr.mxu0 %v294
  %2284 = vmatpush2.msra.mxu0 %v293
  %2285 = vmatprep.subr.mxu0 %v286
  %2286 = vmatpush2.msra.mxu0 %v285
  %2287 = vmatprep.subr.mxu0 %v278
  %2288 = vmatpush2.msra.mxu0 %v277
  %2289 = vmatprep.subr.mxu0 %v270
  %2290 = vmatpush2.msra.mxu0 %v269
  %2291 = vmatprep.subr.mxu0 %v262
  %2292 = vmatpush2.msra.mxu0 %v261
  %2293 = vmatprep.subr.mxu0 %v254
  %2294 = vmatpush2.msra.mxu0 %v253
  %2295 = vmatprep.subr.mxu0 %v246
  %2296 = vmatpush2.msra.mxu0 %v245
  %2297 = vmatprep.subr.mxu0 %v238
  %2298 = vmatpush2.msra.mxu0 %v237
  %2299 = vmatprep.subr.mxu0 %v230
  %2300 = vmatpush2.msra.mxu0 %v229
  %2301 = vmatprep.subr.mxu0 %v222
  %2302 = vmatpush2.msra.mxu0 %v221
  %2303 = vmatprep.subr.mxu0 %v214
  %2304 = vmatpush2.msra.mxu0 %v213
  %2305 = vmatprep.subr.mxu0 %v206
  %2306 = vmatpush2.msra.mxu0 %v205
  %2307 = vmatprep.subr.mxu0 %v198
  %2308 = vmatpush2.msra.mxu0 %v197
  %2309 = vmatprep.subr.mxu0 %v190
  %2310 = vmatpush2.msra.mxu0 %v189
  %2311 = vmatprep.subr.mxu0 %v182
  %2312 = vmatpush2.msra.mxu0 %v181
  %2313 = vmatprep.mubr.f32.mxu0 %v2246
  %2314 = vmatmul.mubr.f32.gmra.mxu0 %v2239
  %v2315 = vpop.f32.mrf.mxu0
  %v2316 = vadd.f32 0.0, %v2315
  %v2317 = vpop.f32.mrf.mxu0
  %v2318 = vadd.f32 0.0, %v2317
  %2319 = vdwg.mxu0
  %2320 = vmatprep.subr.mxu0 %v176
  %2321 = vmatpush1.msra.mxu0 %v175
  %2322 = vmatprep.subr.mxu0 %v168
  %2323 = vmatpush1.msra.mxu0 %v167
  %2324 = vmatprep.subr.mxu0 %v160
  %2325 = vmatpush1.msra.mxu0 %v159
  %2326 = vmatprep.subr.mxu0 %v152
  %2327 = vmatpush1.msra.mxu0 %v151
  %2328 = vmatprep.subr.mxu0 %v144
  %2329 = vmatpush1.msra.mxu0 %v143
  %2330 = vmatprep.subr.mxu0 %v136
  %2331 = vmatpush1.msra.mxu0 %v135
  %2332 = vmatprep.subr.mxu0 %v128
  %2333 = vmatpush1.msra.mxu0 %v127
  %2334 = vmatprep.subr.mxu0 %v120
  %2335 = vmatpush1.msra.mxu0 %v119
  %2336 = vmatprep.subr.mxu0 %v112
  %2337 = vmatpush1.msra.mxu0 %v111
  %2338 = vmatprep.subr.mxu0 %v104
  %2339 = vmatpush1.msra.mxu0 %v103
  %2340 = vmatprep.subr.mxu0 %v96
  %2341 = vmatpush1.msra.mxu0 %v95
  %2342 = vmatprep.subr.mxu0 %v88
  %2343 = vmatpush1.msra.mxu0 %v87
  %2344 = vmatprep.subr.mxu0 %v80
  %2345 = vmatpush1.msra.mxu0 %v79
  %2346 = vmatprep.subr.mxu0 %v72
  %2347 = vmatpush1.msra.mxu0 %v71
  %2348 = vmatprep.subr.mxu0 %v64
  %2349 = vmatpush1.msra.mxu0 %v63
  %2350 = vmatprep.subr.mxu0 %v56
  %2351 = vmatpush1.msra.mxu0 %v55
  %2352 = vmatprep.subr.mxu0 %v304
  %2353 = vmatpush2.msra.mxu0 %v303
  %2354 = vmatprep.subr.mxu0 %v296
  %2355 = vmatpush2.msra.mxu0 %v295
  %2356 = vmatprep.subr.mxu0 %v288
  %2357 = vmatpush2.msra.mxu0 %v287
  %2358 = vmatprep.subr.mxu0 %v280
  %2359 = vmatpush2.msra.mxu0 %v279
  %2360 = vmatprep.subr.mxu0 %v272
  %2361 = vmatpush2.msra.mxu0 %v271
  %2362 = vmatprep.subr.mxu0 %v264
  %2363 = vmatpush2.msra.mxu0 %v263
  %2364 = vmatprep.subr.mxu0 %v256
  %2365 = vmatpush2.msra.mxu0 %v255
  %2366 = vmatprep.subr.mxu0 %v248
  %2367 = vmatpush2.msra.mxu0 %v247
  %2368 = vmatprep.subr.mxu0 %v240
  %2369 = vmatpush2.msra.mxu0 %v239
  %2370 = vmatprep.subr.mxu0 %v232
  %2371 = vmatpush2.msra.mxu0 %v231
  %2372 = vmatprep.subr.mxu0 %v224
  %2373 = vmatpush2.msra.mxu0 %v223
  %2374 = vmatprep.subr.mxu0 %v216
  %2375 = vmatpush2.msra.mxu0 %v215
  %2376 = vmatprep.subr.mxu0 %v208
  %2377 = vmatpush2.msra.mxu0 %v207
  %2378 = vmatprep.subr.mxu0 %v200
  %2379 = vmatpush2.msra.mxu0 %v199
  %2380 = vmatprep.subr.mxu0 %v192
  %2381 = vmatpush2.msra.mxu0 %v191
  %2382 = vmatprep.subr.mxu0 %v184
  %2383 = vmatpush2.msra.mxu0 %v183
  %2384 = vmatprep.mubr.f32.mxu0 %v2246
  %2385 = vmatmul.mubr.f32.gmra.mxu0 %v2239
  %v2386 = vpop.f32.mrf.mxu0
  %v2387 = vadd.f32 0.0, %v2386
  %v2388 = vpop.f32.mrf.mxu0
  %v2389 = vadd.f32 0.0, %v2388
  %2390 = vdwg.mxu0
  %2391 = vmatprep.subr.mxu0 %v178
  %2392 = vmatpush1.msra.mxu0 %v177
  %2393 = vmatprep.subr.mxu0 %v170
  %2394 = vmatpush1.msra.mxu0 %v169
  %2395 = vmatprep.subr.mxu0 %v162
  %2396 = vmatpush1.msra.mxu0 %v161
  %2397 = vmatprep.subr.mxu0 %v154
  %2398 = vmatpush1.msra.mxu0 %v153
  %2399 = vmatprep.subr.mxu0 %v146
  %2400 = vmatpush1.msra.mxu0 %v145
  %2401 = vmatprep.subr.mxu0 %v138
  %2402 = vmatpush1.msra.mxu0 %v137
  %2403 = vmatprep.subr.mxu0 %v130
  %2404 = vmatpush1.msra.mxu0 %v129
  %2405 = vmatprep.subr.mxu0 %v122
  %2406 = vmatpush1.msra.mxu0 %v121
  %2407 = vmatprep.subr.mxu0 %v114
  %2408 = vmatpush1.msra.mxu0 %v113
  %2409 = vmatprep.subr.mxu0 %v106
  %2410 = vmatpush1.msra.mxu0 %v105
  %2411 = vmatprep.subr.mxu0 %v98
  %2412 = vmatpush1.msra.mxu0 %v97
  %2413 = vmatprep.subr.mxu0 %v90
  %2414 = vmatpush1.msra.mxu0 %v89
  %2415 = vmatprep.subr.mxu0 %v82
  %2416 = vmatpush1.msra.mxu0 %v81
  %2417 = vmatprep.subr.mxu0 %v74
  %2418 = vmatpush1.msra.mxu0 %v73
  %2419 = vmatprep.subr.mxu0 %v66
  %2420 = vmatpush1.msra.mxu0 %v65
  %2421 = vmatprep.subr.mxu0 %v58
  %2422 = vmatpush1.msra.mxu0 %v57
  %2423 = vmatprep.subr.mxu0 %v306
  %2424 = vmatpush2.msra.mxu0 %v305
  %2425 = vmatprep.subr.mxu0 %v298
  %2426 = vmatpush2.msra.mxu0 %v297
  %2427 = vmatprep.subr.mxu0 %v290
  %2428 = vmatpush2.msra.mxu0 %v289
  %2429 = vmatprep.subr.mxu0 %v282
  %2430 = vmatpush2.msra.mxu0 %v281
  %2431 = vmatprep.subr.mxu0 %v274
  %2432 = vmatpush2.msra.mxu0 %v273
  %2433 = vmatprep.subr.mxu0 %v266
  %2434 = vmatpush2.msra.mxu0 %v265
  %2435 = vmatprep.subr.mxu0 %v258
  %2436 = vmatpush2.msra.mxu0 %v257
  %2437 = vmatprep.subr.mxu0 %v250
  %2438 = vmatpush2.msra.mxu0 %v249
  %2439 = vmatprep.subr.mxu0 %v242
  %2440 = vmatpush2.msra.mxu0 %v241
  %2441 = vmatprep.subr.mxu0 %v234
  %2442 = vmatpush2.msra.mxu0 %v233
  %2443 = vmatprep.subr.mxu0 %v226
  %2444 = vmatpush2.msra.mxu0 %v225
  %2445 = vmatprep.subr.mxu0 %v218
  %2446 = vmatpush2.msra.mxu0 %v217
  %2447 = vmatprep.subr.mxu0 %v210
  %2448 = vmatpush2.msra.mxu0 %v209
  %2449 = vmatprep.subr.mxu0 %v202
  %2450 = vmatpush2.msra.mxu0 %v201
  %2451 = vmatprep.subr.mxu0 %v194
  %2452 = vmatpush2.msra.mxu0 %v193
  %2453 = vmatprep.subr.mxu0 %v186
  %2454 = vmatpush2.msra.mxu0 %v185
  %2455 = vmatprep.mubr.f32.mxu0 %v2246
  %2456 = vmatmul.mubr.f32.gmra.mxu0 %v2239
  %v2457 = vpop.f32.mrf.mxu0
  %v2458 = vadd.f32 0.0, %v2457
  %v2459 = vpop.f32.mrf.mxu0
  %v2460 = vadd.f32 0.0, %v2459
  %2461 = vdwg.mxu0
  %2462 = vmatprep.subr.mxu0 %v180
  %2463 = vmatpush1.msra.mxu0 %v179
  %2464 = vmatprep.subr.mxu0 %v172
  %2465 = vmatpush1.msra.mxu0 %v171
  %2466 = vmatprep.subr.mxu0 %v164
  %2467 = vmatpush1.msra.mxu0 %v163
  %2468 = vmatprep.subr.mxu0 %v156
  %2469 = vmatpush1.msra.mxu0 %v155
  %2470 = vmatprep.subr.mxu0 %v148
  %2471 = vmatpush1.msra.mxu0 %v147
  %2472 = vmatprep.subr.mxu0 %v140
  %2473 = vmatpush1.msra.mxu0 %v139
  %2474 = vmatprep.subr.mxu0 %v132
  %2475 = vmatpush1.msra.mxu0 %v131
  %2476 = vmatprep.subr.mxu0 %v124
  %2477 = vmatpush1.msra.mxu0 %v123
  %2478 = vmatprep.subr.mxu0 %v116
  %2479 = vmatpush1.msra.mxu0 %v115
  %2480 = vmatprep.subr.mxu0 %v108
  %2481 = vmatpush1.msra.mxu0 %v107
  %2482 = vmatprep.subr.mxu0 %v100
  %2483 = vmatpush1.msra.mxu0 %v99
  %2484 = vmatprep.subr.mxu0 %v92
  %2485 = vmatpush1.msra.mxu0 %v91
  %2486 = vmatprep.subr.mxu0 %v84
  %2487 = vmatpush1.msra.mxu0 %v83
  %2488 = vmatprep.subr.mxu0 %v76
  %2489 = vmatpush1.msra.mxu0 %v75
  %2490 = vmatprep.subr.mxu0 %v68
  %2491 = vmatpush1.msra.mxu0 %v67
  %2492 = vmatprep.subr.mxu0 %v60
  %2493 = vmatpush1.msra.mxu0 %v59
  %2494 = vmatprep.subr.mxu0 %v308
  %2495 = vmatpush2.msra.mxu0 %v307
  %2496 = vmatprep.subr.mxu0 %v300
  %2497 = vmatpush2.msra.mxu0 %v299
  %2498 = vmatprep.subr.mxu0 %v292
  %2499 = vmatpush2.msra.mxu0 %v291
  %2500 = vmatprep.subr.mxu0 %v284
  %2501 = vmatpush2.msra.mxu0 %v283
  %2502 = vmatprep.subr.mxu0 %v276
  %2503 = vmatpush2.msra.mxu0 %v275
  %2504 = vmatprep.subr.mxu0 %v268
  %2505 = vmatpush2.msra.mxu0 %v267
  %2506 = vmatprep.subr.mxu0 %v260
  %2507 = vmatpush2.msra.mxu0 %v259
  %2508 = vmatprep.subr.mxu0 %v252
  %2509 = vmatpush2.msra.mxu0 %v251
  %2510 = vmatprep.subr.mxu0 %v244
  %2511 = vmatpush2.msra.mxu0 %v243
  %2512 = vmatprep.subr.mxu0 %v236
  %2513 = vmatpush2.msra.mxu0 %v235
  %2514 = vmatprep.subr.mxu0 %v228
  %2515 = vmatpush2.msra.mxu0 %v227
  %2516 = vmatprep.subr.mxu0 %v220
  %2517 = vmatpush2.msra.mxu0 %v219
  %2518 = vmatprep.subr.mxu0 %v212
  %2519 = vmatpush2.msra.mxu0 %v211
  %2520 = vmatprep.subr.mxu0 %v204
  %2521 = vmatpush2.msra.mxu0 %v203
  %2522 = vmatprep.subr.mxu0 %v196
  %2523 = vmatpush2.msra.mxu0 %v195
  %2524 = vmatprep.subr.mxu0 %v188
  %2525 = vmatpush2.msra.mxu0 %v187
  %2526 = vmatprep.mubr.f32.mxu0 %v2246
  %2527 = vmatmul.mubr.f32.gmra.mxu0 %v2239
  %v2528 = vpop.f32.mrf.mxu0
  %v2529 = vadd.f32 0.0, %v2528
  %v2530 = vpop.f32.mrf.mxu0
  %v2531 = vadd.f32 0.0, %v2530
  %2532 = vdwg.mxu0
  %v2541 = vcombine.low %v2316, %v2318
  %v2542 = vcombine.low %v2387, %v2389
  %v2543 = vcombine.low %v2458, %v2460
  %v2544 = vcombine.low %v2529, %v2531
  %v2546 = vunpack.c.l.s4 1966171168
  %v2547 = vunpack.c.0.s8 %v2546
  %v2548 = vlaneseq
  %v2549 = vshrl.u32 %v2548, 7
  %v2550 = vsub.s32 %v2547, %v2549
  %v2551 = vrot.slane %v2541, %v2550
  %v2553 = vunpack.c.l.s4 1966171168
  %v2554 = vunpack.c.0.s8 %v2553
  %v2555 = vlaneseq
  %v2556 = vshrl.u32 %v2555, 7
  %v2557 = vsub.s32 %v2554, %v2556
  %v2558 = vrot.slane %v2542, %v2557
  %v2560 = vunpack.c.l.s4 1966171168
  %v2561 = vunpack.c.0.s8 %v2560
  %v2562 = vlaneseq
  %v2563 = vshrl.u32 %v2562, 7
  %v2564 = vsub.s32 %v2561, %v2563
  %v2565 = vrot.slane %v2543, %v2564
  %v2567 = vunpack.c.l.s4 1966171168
  %v2568 = vunpack.c.0.s8 %v2567
  %v2569 = vlaneseq
  %v2570 = vshrl.u32 %v2569, 7
  %v2571 = vsub.s32 %v2568, %v2570
  %v2572 = vrot.slane %v2544, %v2571
  %v2573 = vcombine.low %v2551, %v2558
  %v2574 = vcombine.high %v2551, %v2558
  %v2575 = vcombine.low %v2565, %v2572
  %v2576 = vcombine.high %v2565, %v2572
  %v2578 = vunpack.c.l.s4 1966171168
  %v2579 = vunpack.c.0.s8 %v2578
  %v2580 = vlaneseq
  %v2581 = vshrl.u32 %v2580, 7
  %v2582 = vsub.s32 %v2579, %v2581
  %v2583 = vrot.slane %v2573, %v2582
  %v2585 = vunpack.c.l.s4 1966171168
  %v2586 = vunpack.c.0.s8 %v2585
  %v2587 = vlaneseq
  %v2588 = vshrl.u32 %v2587, 7
  %v2589 = vsub.s32 %v2586, %v2588
  %v2590 = vrot.slane %v2574, %v2589
  %v2592 = vunpack.c.l.s4 1966171168
  %v2593 = vunpack.c.0.s8 %v2592
  %v2594 = vlaneseq
  %v2595 = vshrl.u32 %v2594, 7
  %v2596 = vsub.s32 %v2593, %v2595
  %v2597 = vrot.slane %v2575, %v2596
  %v2599 = vunpack.c.l.s4 1966171168
  %v2600 = vunpack.c.0.s8 %v2599
  %v2601 = vlaneseq
  %v2602 = vshrl.u32 %v2601, 7
  %v2603 = vsub.s32 %v2600, %v2602
  %v2604 = vrot.slane %v2576, %v2603
  %v2605 = vcombine.low %v2583, %v2597
  %v2606 = vcombine.low %v2590, %v2604
  %v2609 = vadd.f32 %v2217, %v2605
  %v2610 = vadd.f32 %v2221, %v2606
  %v2611 = vxor.u32 %v2609, 2147483648
  %v2612 = vxor.u32 %v2610, 2147483648
  %v2613 = vmul.f32 %v2611, 1.442695
  %v2614 = vpow.pop %v2613
  %v2615 = vmul.f32 %v2612, 1.442695
  %v2616 = vpow.pop %v2615
  %v2617 = vadd.f32 %v2614, 1.0
  %v2618 = vadd.f32 %v2616, 1.0
  %v2619 = vrcp.pop %v2617
  %v2620 = vmul.f32 1.0, %v2619
  %v2621 = vrcp.pop %v2618
  %v2622 = vmul.f32 1.0, %v2621
  %v2625 = vrot.slane %v2609, 2
  %v2626 = vrot.slane %v2610, 2
  %v2629 = vxor.u32 %v2625, 2147483648
  %v2630 = vxor.u32 %v2626, 2147483648
  %v2631 = vmul.f32 %v2629, 1.442695
  %v2632 = vpow.pop %v2631
  %v2633 = vmul.f32 %v2630, 1.442695
  %v2634 = vpow.pop %v2633
  %v2635 = vadd.f32 %v2632, 1.0
  %v2636 = vadd.f32 %v2634, 1.0
  %v2637 = vrcp.pop %v2635
  %v2638 = vmul.f32 1.0, %v2637
  %v2639 = vrcp.pop %v2636
  %v2640 = vmul.f32 1.0, %v2639
  %v2641 = vrot.slane %v2609, 4
  %v2642 = vrot.slane %v2610, 4
  %v2645 = vtanh.pop %v2641
  %v2646 = vtanh.pop %v2642
  %v2647 = vrot.slane %v2609, 6
  %v2648 = vrot.slane %v2610, 6
  %v2651 = vxor.u32 %v2647, 2147483648
  %v2652 = vxor.u32 %v2648, 2147483648
  %v2653 = vmul.f32 %v2651, 1.442695
  %v2654 = vpow.pop %v2653
  %v2655 = vmul.f32 %v2652, 1.442695
  %v2656 = vpow.pop %v2655
  %v2657 = vadd.f32 %v2654, 1.0
  %v2658 = vadd.f32 %v2656, 1.0
  %v2659 = vrcp.pop %v2657
  %v2660 = vmul.f32 1.0, %v2659
  %v2661 = vrcp.pop %v2658
  %v2662 = vmul.f32 1.0, %v2661
  %v2663 = vmul.f32 %v2638, %v2202
  %v2664 = vmul.f32 %v2640, %v2203
  %v2665 = vmul.f32 %v2620, %v2645
  %v2666 = vmul.f32 %v2622, %v2646
  %v2667 = vadd.f32 %v2663, %v2665
  %v2668 = vadd.f32 %v2664, %v2666
  %v2669 = vtanh.pop %v2667
  %v2670 = vtanh.pop %v2668
  %v2671 = vmul.f32 %v2660, %v2669
  %v2672 = vmul.f32 %v2662, %v2670
  %s2673 = scalar_lea.vmem [#allocation3], 3
  %2674 = vst.msk [vmem:[%s2673] ss:$8 sm:$0x3] %vm1278, %v2671
  %2675 = vst.msk [vmem:[%s2673] ss:$8 sm:$0x0] %vm1278, %v2671
  %s2676 = scalar_lea.vmem [#allocation3], 19
  %2677 = vst.msk [vmem:[%s2676] ss:$8 sm:$0x3] %vm1278, %v2672
  %2678 = vst.msk [vmem:[%s2676] ss:$8 sm:$0x0] %vm1278, %v2672
  %s2679 = scalar_lea.vmem %s0, 4
  %v2680 = vld [vmem:[%s2679] ss:$8 sm:$0xf]
  %v2681 = vld [vmem:[%s2679] ss:$8 sm:$0xf0]
  %v2682 = vor.u32 %v2680, %v2681
  %s2683 = scalar_lea.vmem %s0, 68
  %v2684 = vld [vmem:[%s2683] ss:$8 sm:$0xf]
  %v2685 = vld [vmem:[%s2683] ss:$8 sm:$0xf0]
  %v2686 = vor.u32 %v2684, %v2685
  %v2689 = vcombine.low %v2671, %v2672
  %v2691 = vunpack.c.l.s4 1966171168
  %v2692 = vunpack.c.0.s8 %v2691
  %v2693 = vlaneseq
  %v2694 = vshrl.u32 %v2693, 7
  %v2695 = vsub.s32 %v2692, %v2694
  %v2696 = vrot.slane %v2689, %v2695
  %v2697 = vcombine.high %v2696, %v2696
  %v2699 = vunpack.c.l.s4 1966171168
  %v2700 = vunpack.c.0.s8 %v2699
  %v2701 = vlaneseq
  %v2702 = vshrl.u32 %v2701, 7
  %v2703 = vsub.s32 %v2700, %v2702
  %v2704 = vrot.slane %v2696, %v2703
  %v2706 = vunpack.c.l.s4 1966171168
  %v2707 = vunpack.c.0.s8 %v2706
  %v2708 = vlaneseq
  %v2709 = vshrl.u32 %v2708, 7
  %v2710 = vsub.s32 %v2707, %v2709
  %v2711 = vrot.slane %v2697, %v2710
  %2714 = vmatprep.subr.mxu0 %v174
  %2715 = vmatpush1.msra.mxu0 %v173
  %2716 = vmatprep.subr.mxu0 %v166
  %2717 = vmatpush1.msra.mxu0 %v165
  %2718 = vmatprep.subr.mxu0 %v158
  %2719 = vmatpush1.msra.mxu0 %v157
  %2720 = vmatprep.subr.mxu0 %v150
  %2721 = vmatpush1.msra.mxu0 %v149
  %2722 = vmatprep.subr.mxu0 %v142
  %2723 = vmatpush1.msra.mxu0 %v141
  %2724 = vmatprep.subr.mxu0 %v134
  %2725 = vmatpush1.msra.mxu0 %v133
  %2726 = vmatprep.subr.mxu0 %v126
  %2727 = vmatpush1.msra.mxu0 %v125
  %2728 = vmatprep.subr.mxu0 %v118
  %2729 = vmatpush1.msra.mxu0 %v117
  %2730 = vmatprep.subr.mxu0 %v110
  %2731 = vmatpush1.msra.mxu0 %v109
  %2732 = vmatprep.subr.mxu0 %v102
  %2733 = vmatpush1.msra.mxu0 %v101
  %2734 = vmatprep.subr.mxu0 %v94
  %2735 = vmatpush1.msra.mxu0 %v93
  %2736 = vmatprep.subr.mxu0 %v86
  %2737 = vmatpush1.msra.mxu0 %v85
  %2738 = vmatprep.subr.mxu0 %v78
  %2739 = vmatpush1.msra.mxu0 %v77
  %2740 = vmatprep.subr.mxu0 %v70
  %2741 = vmatpush1.msra.mxu0 %v69
  %2742 = vmatprep.subr.mxu0 %v62
  %2743 = vmatpush1.msra.mxu0 %v61
  %2744 = vmatprep.subr.mxu0 %v54
  %2745 = vmatpush1.msra.mxu0 %v53
  %2746 = vmatprep.subr.mxu0 %v302
  %2747 = vmatpush2.msra.mxu0 %v301
  %2748 = vmatprep.subr.mxu0 %v294
  %2749 = vmatpush2.msra.mxu0 %v293
  %2750 = vmatprep.subr.mxu0 %v286
  %2751 = vmatpush2.msra.mxu0 %v285
  %2752 = vmatprep.subr.mxu0 %v278
  %2753 = vmatpush2.msra.mxu0 %v277
  %2754 = vmatprep.subr.mxu0 %v270
  %2755 = vmatpush2.msra.mxu0 %v269
  %2756 = vmatprep.subr.mxu0 %v262
  %2757 = vmatpush2.msra.mxu0 %v261
  %2758 = vmatprep.subr.mxu0 %v254
  %2759 = vmatpush2.msra.mxu0 %v253
  %2760 = vmatprep.subr.mxu0 %v246
  %2761 = vmatpush2.msra.mxu0 %v245
  %2762 = vmatprep.subr.mxu0 %v238
  %2763 = vmatpush2.msra.mxu0 %v237
  %2764 = vmatprep.subr.mxu0 %v230
  %2765 = vmatpush2.msra.mxu0 %v229
  %2766 = vmatprep.subr.mxu0 %v222
  %2767 = vmatpush2.msra.mxu0 %v221
  %2768 = vmatprep.subr.mxu0 %v214
  %2769 = vmatpush2.msra.mxu0 %v213
  %2770 = vmatprep.subr.mxu0 %v206
  %2771 = vmatpush2.msra.mxu0 %v205
  %2772 = vmatprep.subr.mxu0 %v198
  %2773 = vmatpush2.msra.mxu0 %v197
  %2774 = vmatprep.subr.mxu0 %v190
  %2775 = vmatpush2.msra.mxu0 %v189
  %2776 = vmatprep.subr.mxu0 %v182
  %2777 = vmatpush2.msra.mxu0 %v181
  %2778 = vmatprep.mubr.f32.mxu0 %v2711
  %2779 = vmatmul.mubr.f32.gmra.mxu0 %v2704
  %v2780 = vpop.f32.mrf.mxu0
  %v2781 = vadd.f32 0.0, %v2780
  %v2782 = vpop.f32.mrf.mxu0
  %v2783 = vadd.f32 0.0, %v2782
  %2784 = vdwg.mxu0
  %2785 = vmatprep.subr.mxu0 %v176
  %2786 = vmatpush1.msra.mxu0 %v175
  %2787 = vmatprep.subr.mxu0 %v168
  %2788 = vmatpush1.msra.mxu0 %v167
  %2789 = vmatprep.subr.mxu0 %v160
  %2790 = vmatpush1.msra.mxu0 %v159
  %2791 = vmatprep.subr.mxu0 %v152
  %2792 = vmatpush1.msra.mxu0 %v151
  %2793 = vmatprep.subr.mxu0 %v144
  %2794 = vmatpush1.msra.mxu0 %v143
  %2795 = vmatprep.subr.mxu0 %v136
  %2796 = vmatpush1.msra.mxu0 %v135
  %2797 = vmatprep.subr.mxu0 %v128
  %2798 = vmatpush1.msra.mxu0 %v127
  %2799 = vmatprep.subr.mxu0 %v120
  %2800 = vmatpush1.msra.mxu0 %v119
  %2801 = vmatprep.subr.mxu0 %v112
  %2802 = vmatpush1.msra.mxu0 %v111
  %2803 = vmatprep.subr.mxu0 %v104
  %2804 = vmatpush1.msra.mxu0 %v103
  %2805 = vmatprep.subr.mxu0 %v96
  %2806 = vmatpush1.msra.mxu0 %v95
  %2807 = vmatprep.subr.mxu0 %v88
  %2808 = vmatpush1.msra.mxu0 %v87
  %2809 = vmatprep.subr.mxu0 %v80
  %2810 = vmatpush1.msra.mxu0 %v79
  %2811 = vmatprep.subr.mxu0 %v72
  %2812 = vmatpush1.msra.mxu0 %v71
  %2813 = vmatprep.subr.mxu0 %v64
  %2814 = vmatpush1.msra.mxu0 %v63
  %2815 = vmatprep.subr.mxu0 %v56
  %2816 = vmatpush1.msra.mxu0 %v55
  %2817 = vmatprep.subr.mxu0 %v304
  %2818 = vmatpush2.msra.mxu0 %v303
  %2819 = vmatprep.subr.mxu0 %v296
  %2820 = vmatpush2.msra.mxu0 %v295
  %2821 = vmatprep.subr.mxu0 %v288
  %2822 = vmatpush2.msra.mxu0 %v287
  %2823 = vmatprep.subr.mxu0 %v280
  %2824 = vmatpush2.msra.mxu0 %v279
  %2825 = vmatprep.subr.mxu0 %v272
  %2826 = vmatpush2.msra.mxu0 %v271
  %2827 = vmatprep.subr.mxu0 %v264
  %2828 = vmatpush2.msra.mxu0 %v263
  %2829 = vmatprep.subr.mxu0 %v256
  %2830 = vmatpush2.msra.mxu0 %v255
  %2831 = vmatprep.subr.mxu0 %v248
  %2832 = vmatpush2.msra.mxu0 %v247
  %2833 = vmatprep.subr.mxu0 %v240
  %2834 = vmatpush2.msra.mxu0 %v239
  %2835 = vmatprep.subr.mxu0 %v232
  %2836 = vmatpush2.msra.mxu0 %v231
  %2837 = vmatprep.subr.mxu0 %v224
  %2838 = vmatpush2.msra.mxu0 %v223
  %2839 = vmatprep.subr.mxu0 %v216
  %2840 = vmatpush2.msra.mxu0 %v215
  %2841 = vmatprep.subr.mxu0 %v208
  %2842 = vmatpush2.msra.mxu0 %v207
  %2843 = vmatprep.subr.mxu0 %v200
  %2844 = vmatpush2.msra.mxu0 %v199
  %2845 = vmatprep.subr.mxu0 %v192
  %2846 = vmatpush2.msra.mxu0 %v191
  %2847 = vmatprep.subr.mxu0 %v184
  %2848 = vmatpush2.msra.mxu0 %v183
  %2849 = vmatprep.mubr.f32.mxu0 %v2711
  %2850 = vmatmul.mubr.f32.gmra.mxu0 %v2704
  %v2851 = vpop.f32.mrf.mxu0
  %v2852 = vadd.f32 0.0, %v2851
  %v2853 = vpop.f32.mrf.mxu0
  %v2854 = vadd.f32 0.0, %v2853
  %2855 = vdwg.mxu0
  %2856 = vmatprep.subr.mxu0 %v178
  %2857 = vmatpush1.msra.mxu0 %v177
  %2858 = vmatprep.subr.mxu0 %v170
  %2859 = vmatpush1.msra.mxu0 %v169
  %2860 = vmatprep.subr.mxu0 %v162
  %2861 = vmatpush1.msra.mxu0 %v161
  %2862 = vmatprep.subr.mxu0 %v154
  %2863 = vmatpush1.msra.mxu0 %v153
  %2864 = vmatprep.subr.mxu0 %v146
  %2865 = vmatpush1.msra.mxu0 %v145
  %2866 = vmatprep.subr.mxu0 %v138
  %2867 = vmatpush1.msra.mxu0 %v137
  %2868 = vmatprep.subr.mxu0 %v130
  %2869 = vmatpush1.msra.mxu0 %v129
  %2870 = vmatprep.subr.mxu0 %v122
  %2871 = vmatpush1.msra.mxu0 %v121
  %2872 = vmatprep.subr.mxu0 %v114
  %2873 = vmatpush1.msra.mxu0 %v113
  %2874 = vmatprep.subr.mxu0 %v106
  %2875 = vmatpush1.msra.mxu0 %v105
  %2876 = vmatprep.subr.mxu0 %v98
  %2877 = vmatpush1.msra.mxu0 %v97
  %2878 = vmatprep.subr.mxu0 %v90
  %2879 = vmatpush1.msra.mxu0 %v89
  %2880 = vmatprep.subr.mxu0 %v82
  %2881 = vmatpush1.msra.mxu0 %v81
  %2882 = vmatprep.subr.mxu0 %v74
  %2883 = vmatpush1.msra.mxu0 %v73
  %2884 = vmatprep.subr.mxu0 %v66
  %2885 = vmatpush1.msra.mxu0 %v65
  %2886 = vmatprep.subr.mxu0 %v58
  %2887 = vmatpush1.msra.mxu0 %v57
  %2888 = vmatprep.subr.mxu0 %v306
  %2889 = vmatpush2.msra.mxu0 %v305
  %2890 = vmatprep.subr.mxu0 %v298
  %2891 = vmatpush2.msra.mxu0 %v297
  %2892 = vmatprep.subr.mxu0 %v290
  %2893 = vmatpush2.msra.mxu0 %v289
  %2894 = vmatprep.subr.mxu0 %v282
  %2895 = vmatpush2.msra.mxu0 %v281
  %2896 = vmatprep.subr.mxu0 %v274
  %2897 = vmatpush2.msra.mxu0 %v273
  %2898 = vmatprep.subr.mxu0 %v266
  %2899 = vmatpush2.msra.mxu0 %v265
  %2900 = vmatprep.subr.mxu0 %v258
  %2901 = vmatpush2.msra.mxu0 %v257
  %2902 = vmatprep.subr.mxu0 %v250
  %2903 = vmatpush2.msra.mxu0 %v249
  %2904 = vmatprep.subr.mxu0 %v242
  %2905 = vmatpush2.msra.mxu0 %v241
  %2906 = vmatprep.subr.mxu0 %v234
  %2907 = vmatpush2.msra.mxu0 %v233
  %2908 = vmatprep.subr.mxu0 %v226
  %2909 = vmatpush2.msra.mxu0 %v225
  %2910 = vmatprep.subr.mxu0 %v218
  %2911 = vmatpush2.msra.mxu0 %v217
  %2912 = vmatprep.subr.mxu0 %v210
  %2913 = vmatpush2.msra.mxu0 %v209
  %2914 = vmatprep.subr.mxu0 %v202
  %2915 = vmatpush2.msra.mxu0 %v201
  %2916 = vmatprep.subr.mxu0 %v194
  %2917 = vmatpush2.msra.mxu0 %v193
  %2918 = vmatprep.subr.mxu0 %v186
  %2919 = vmatpush2.msra.mxu0 %v185
  %2920 = vmatprep.mubr.f32.mxu0 %v2711
  %2921 = vmatmul.mubr.f32.gmra.mxu0 %v2704
  %v2922 = vpop.f32.mrf.mxu0
  %v2923 = vadd.f32 0.0, %v2922
  %v2924 = vpop.f32.mrf.mxu0
  %v2925 = vadd.f32 0.0, %v2924
  %2926 = vdwg.mxu0
  %2927 = vmatprep.subr.mxu0 %v180
  %2928 = vmatpush1.msra.mxu0 %v179
  %2929 = vmatprep.subr.mxu0 %v172
  %2930 = vmatpush1.msra.mxu0 %v171
  %2931 = vmatprep.subr.mxu0 %v164
  %2932 = vmatpush1.msra.mxu0 %v163
  %2933 = vmatprep.subr.mxu0 %v156
  %2934 = vmatpush1.msra.mxu0 %v155
  %2935 = vmatprep.subr.mxu0 %v148
  %2936 = vmatpush1.msra.mxu0 %v147
  %2937 = vmatprep.subr.mxu0 %v140
  %2938 = vmatpush1.msra.mxu0 %v139
  %2939 = vmatprep.subr.mxu0 %v132
  %2940 = vmatpush1.msra.mxu0 %v131
  %2941 = vmatprep.subr.mxu0 %v124
  %2942 = vmatpush1.msra.mxu0 %v123
  %2943 = vmatprep.subr.mxu0 %v116
  %2944 = vmatpush1.msra.mxu0 %v115
  %2945 = vmatprep.subr.mxu0 %v108
  %2946 = vmatpush1.msra.mxu0 %v107
  %2947 = vmatprep.subr.mxu0 %v100
  %2948 = vmatpush1.msra.mxu0 %v99
  %2949 = vmatprep.subr.mxu0 %v92
  %2950 = vmatpush1.msra.mxu0 %v91
  %2951 = vmatprep.subr.mxu0 %v84
  %2952 = vmatpush1.msra.mxu0 %v83
  %2953 = vmatprep.subr.mxu0 %v76
  %2954 = vmatpush1.msra.mxu0 %v75
  %2955 = vmatprep.subr.mxu0 %v68
  %2956 = vmatpush1.msra.mxu0 %v67
  %2957 = vmatprep.subr.mxu0 %v60
  %2958 = vmatpush1.msra.mxu0 %v59
  %2959 = vmatprep.subr.mxu0 %v308
  %2960 = vmatpush2.msra.mxu0 %v307
  %2961 = vmatprep.subr.mxu0 %v300
  %2962 = vmatpush2.msra.mxu0 %v299
  %2963 = vmatprep.subr.mxu0 %v292
  %2964 = vmatpush2.msra.mxu0 %v291
  %2965 = vmatprep.subr.mxu0 %v284
  %2966 = vmatpush2.msra.mxu0 %v283
  %2967 = vmatprep.subr.mxu0 %v276
  %2968 = vmatpush2.msra.mxu0 %v275
  %2969 = vmatprep.subr.mxu0 %v268
  %2970 = vmatpush2.msra.mxu0 %v267
  %2971 = vmatprep.subr.mxu0 %v260
  %2972 = vmatpush2.msra.mxu0 %v259
  %2973 = vmatprep.subr.mxu0 %v252
  %2974 = vmatpush2.msra.mxu0 %v251
  %2975 = vmatprep.subr.mxu0 %v244
  %2976 = vmatpush2.msra.mxu0 %v243
  %2977 = vmatprep.subr.mxu0 %v236
  %2978 = vmatpush2.msra.mxu0 %v235
  %2979 = vmatprep.subr.mxu0 %v228
  %2980 = vmatpush2.msra.mxu0 %v227
  %2981 = vmatprep.subr.mxu0 %v220
  %2982 = vmatpush2.msra.mxu0 %v219
  %2983 = vmatprep.subr.mxu0 %v212
  %2984 = vmatpush2.msra.mxu0 %v211
  %2985 = vmatprep.subr.mxu0 %v204
  %2986 = vmatpush2.msra.mxu0 %v203
  %2987 = vmatprep.subr.mxu0 %v196
  %2988 = vmatpush2.msra.mxu0 %v195
  %2989 = vmatprep.subr.mxu0 %v188
  %2990 = vmatpush2.msra.mxu0 %v187
  %2991 = vmatprep.mubr.f32.mxu0 %v2711
  %2992 = vmatmul.mubr.f32.gmra.mxu0 %v2704
  %v2993 = vpop.f32.mrf.mxu0
  %v2994 = vadd.f32 0.0, %v2993
  %v2995 = vpop.f32.mrf.mxu0
  %v2996 = vadd.f32 0.0, %v2995
  %2997 = vdwg.mxu0
  %v3006 = vcombine.low %v2781, %v2783
  %v3007 = vcombine.low %v2852, %v2854
  %v3008 = vcombine.low %v2923, %v2925
  %v3009 = vcombine.low %v2994, %v2996
  %v3011 = vunpack.c.l.s4 1966171168
  %v3012 = vunpack.c.0.s8 %v3011
  %v3013 = vlaneseq
  %v3014 = vshrl.u32 %v3013, 7
  %v3015 = vsub.s32 %v3012, %v3014
  %v3016 = vrot.slane %v3006, %v3015
  %v3018 = vunpack.c.l.s4 1966171168
  %v3019 = vunpack.c.0.s8 %v3018
  %v3020 = vlaneseq
  %v3021 = vshrl.u32 %v3020, 7
  %v3022 = vsub.s32 %v3019, %v3021
  %v3023 = vrot.slane %v3007, %v3022
  %v3025 = vunpack.c.l.s4 1966171168
  %v3026 = vunpack.c.0.s8 %v3025
  %v3027 = vlaneseq
  %v3028 = vshrl.u32 %v3027, 7
  %v3029 = vsub.s32 %v3026, %v3028
  %v3030 = vrot.slane %v3008, %v3029
  %v3032 = vunpack.c.l.s4 1966171168
  %v3033 = vunpack.c.0.s8 %v3032
  %v3034 = vlaneseq
  %v3035 = vshrl.u32 %v3034, 7
  %v3036 = vsub.s32 %v3033, %v3035
  %v3037 = vrot.slane %v3009, %v3036
  %v3038 = vcombine.low %v3016, %v3023
  %v3039 = vcombine.high %v3016, %v3023
  %v3040 = vcombine.low %v3030, %v3037
  %v3041 = vcombine.high %v3030, %v3037
  %v3043 = vunpack.c.l.s4 1966171168
  %v3044 = vunpack.c.0.s8 %v3043
  %v3045 = vlaneseq
  %v3046 = vshrl.u32 %v3045, 7
  %v3047 = vsub.s32 %v3044, %v3046
  %v3048 = vrot.slane %v3038, %v3047
  %v3050 = vunpack.c.l.s4 1966171168
  %v3051 = vunpack.c.0.s8 %v3050
  %v3052 = vlaneseq
  %v3053 = vshrl.u32 %v3052, 7
  %v3054 = vsub.s32 %v3051, %v3053
  %v3055 = vrot.slane %v3039, %v3054
  %v3057 = vunpack.c.l.s4 1966171168
  %v3058 = vunpack.c.0.s8 %v3057
  %v3059 = vlaneseq
  %v3060 = vshrl.u32 %v3059, 7
  %v3061 = vsub.s32 %v3058, %v3060
  %v3062 = vrot.slane %v3040, %v3061
  %v3064 = vunpack.c.l.s4 1966171168
  %v3065 = vunpack.c.0.s8 %v3064
  %v3066 = vlaneseq
  %v3067 = vshrl.u32 %v3066, 7
  %v3068 = vsub.s32 %v3065, %v3067
  %v3069 = vrot.slane %v3041, %v3068
  %v3070 = vcombine.low %v3048, %v3062
  %v3071 = vcombine.low %v3055, %v3069
  %v3074 = vadd.f32 %v2682, %v3070
  %v3075 = vadd.f32 %v2686, %v3071
  %v3076 = vxor.u32 %v3074, 2147483648
  %v3077 = vxor.u32 %v3075, 2147483648
  %v3078 = vmul.f32 %v3076, 1.442695
  %v3079 = vpow.pop %v3078
  %v3080 = vmul.f32 %v3077, 1.442695
  %v3081 = vpow.pop %v3080
  %v3082 = vadd.f32 %v3079, 1.0
  %v3083 = vadd.f32 %v3081, 1.0
  %v3084 = vrcp.pop %v3082
  %v3085 = vmul.f32 1.0, %v3084
  %v3086 = vrcp.pop %v3083
  %v3087 = vmul.f32 1.0, %v3086
  %v3090 = vrot.slane %v3074, 2
  %v3091 = vrot.slane %v3075, 2
  %v3094 = vxor.u32 %v3090, 2147483648
  %v3095 = vxor.u32 %v3091, 2147483648
  %v3096 = vmul.f32 %v3094, 1.442695
  %v3097 = vpow.pop %v3096
  %v3098 = vmul.f32 %v3095, 1.442695
  %v3099 = vpow.pop %v3098
  %v3100 = vadd.f32 %v3097, 1.0
  %v3101 = vadd.f32 %v3099, 1.0
  %v3102 = vrcp.pop %v3100
  %v3103 = vmul.f32 1.0, %v3102
  %v3104 = vrcp.pop %v3101
  %v3105 = vmul.f32 1.0, %v3104
  %v3106 = vrot.slane %v3074, 4
  %v3107 = vrot.slane %v3075, 4
  %v3110 = vtanh.pop %v3106
  %v3111 = vtanh.pop %v3107
  %v3112 = vrot.slane %v3074, 6
  %v3113 = vrot.slane %v3075, 6
  %v3116 = vxor.u32 %v3112, 2147483648
  %v3117 = vxor.u32 %v3113, 2147483648
  %v3118 = vmul.f32 %v3116, 1.442695
  %v3119 = vpow.pop %v3118
  %v3120 = vmul.f32 %v3117, 1.442695
  %v3121 = vpow.pop %v3120
  %v3122 = vadd.f32 %v3119, 1.0
  %v3123 = vadd.f32 %v3121, 1.0
  %v3124 = vrcp.pop %v3122
  %v3125 = vmul.f32 1.0, %v3124
  %v3126 = vrcp.pop %v3123
  %v3127 = vmul.f32 1.0, %v3126
  %v3128 = vmul.f32 %v3103, %v2667
  %v3129 = vmul.f32 %v3105, %v2668
  %v3130 = vmul.f32 %v3085, %v3110
  %v3131 = vmul.f32 %v3087, %v3111
  %v3132 = vadd.f32 %v3128, %v3130
  %v3133 = vadd.f32 %v3129, %v3131
  %v3134 = vtanh.pop %v3132
  %v3135 = vtanh.pop %v3133
  %v3136 = vmul.f32 %v3125, %v3134
  %v3137 = vmul.f32 %v3127, %v3135
  %s3138 = scalar_lea.vmem [#allocation3], 4
  %3139 = vst.msk [vmem:[%s3138] ss:$8 sm:$0x3] %vm1278, %v3136
  %3140 = vst.msk [vmem:[%s3138] ss:$8 sm:$0x0] %vm1278, %v3136
  %s3141 = scalar_lea.vmem [#allocation3], 20
  %3142 = vst.msk [vmem:[%s3141] ss:$8 sm:$0x3] %vm1278, %v3137
  %3143 = vst.msk [vmem:[%s3141] ss:$8 sm:$0x0] %vm1278, %v3137
  %s3144 = scalar_lea.vmem %s0, 5
  %v3145 = vld [vmem:[%s3144] ss:$8 sm:$0xf]
  %v3146 = vld [vmem:[%s3144] ss:$8 sm:$0xf0]
  %v3147 = vor.u32 %v3145, %v3146
  %s3148 = scalar_lea.vmem %s0, 69
  %v3149 = vld [vmem:[%s3148] ss:$8 sm:$0xf]
  %v3150 = vld [vmem:[%s3148] ss:$8 sm:$0xf0]
  %v3151 = vor.u32 %v3149, %v3150
  %v3154 = vcombine.low %v3136, %v3137
  %v3156 = vunpack.c.l.s4 1966171168
  %v3157 = vunpack.c.0.s8 %v3156
  %v3158 = vlaneseq
  %v3159 = vshrl.u32 %v3158, 7
  %v3160 = vsub.s32 %v3157, %v3159
  %v3161 = vrot.slane %v3154, %v3160
  %v3162 = vcombine.high %v3161, %v3161
  %v3164 = vunpack.c.l.s4 1966171168
  %v3165 = vunpack.c.0.s8 %v3164
  %v3166 = vlaneseq
  %v3167 = vshrl.u32 %v3166, 7
  %v3168 = vsub.s32 %v3165, %v3167
  %v3169 = vrot.slane %v3161, %v3168
  %v3171 = vunpack.c.l.s4 1966171168
  %v3172 = vunpack.c.0.s8 %v3171
  %v3173 = vlaneseq
  %v3174 = vshrl.u32 %v3173, 7
  %v3175 = vsub.s32 %v3172, %v3174
  %v3176 = vrot.slane %v3162, %v3175
  %3179 = vmatprep.subr.mxu0 %v174
  %3180 = vmatpush1.msra.mxu0 %v173
  %3181 = vmatprep.subr.mxu0 %v166
  %3182 = vmatpush1.msra.mxu0 %v165
  %3183 = vmatprep.subr.mxu0 %v158
  %3184 = vmatpush1.msra.mxu0 %v157
  %3185 = vmatprep.subr.mxu0 %v150
  %3186 = vmatpush1.msra.mxu0 %v149
  %3187 = vmatprep.subr.mxu0 %v142
  %3188 = vmatpush1.msra.mxu0 %v141
  %3189 = vmatprep.subr.mxu0 %v134
  %3190 = vmatpush1.msra.mxu0 %v133
  %3191 = vmatprep.subr.mxu0 %v126
  %3192 = vmatpush1.msra.mxu0 %v125
  %3193 = vmatprep.subr.mxu0 %v118
  %3194 = vmatpush1.msra.mxu0 %v117
  %3195 = vmatprep.subr.mxu0 %v110
  %3196 = vmatpush1.msra.mxu0 %v109
  %3197 = vmatprep.subr.mxu0 %v102
  %3198 = vmatpush1.msra.mxu0 %v101
  %3199 = vmatprep.subr.mxu0 %v94
  %3200 = vmatpush1.msra.mxu0 %v93
  %3201 = vmatprep.subr.mxu0 %v86
  %3202 = vmatpush1.msra.mxu0 %v85
  %3203 = vmatprep.subr.mxu0 %v78
  %3204 = vmatpush1.msra.mxu0 %v77
  %3205 = vmatprep.subr.mxu0 %v70
  %3206 = vmatpush1.msra.mxu0 %v69
  %3207 = vmatprep.subr.mxu0 %v62
  %3208 = vmatpush1.msra.mxu0 %v61
  %3209 = vmatprep.subr.mxu0 %v54
  %3210 = vmatpush1.msra.mxu0 %v53
  %3211 = vmatprep.subr.mxu0 %v302
  %3212 = vmatpush2.msra.mxu0 %v301
  %3213 = vmatprep.subr.mxu0 %v294
  %3214 = vmatpush2.msra.mxu0 %v293
  %3215 = vmatprep.subr.mxu0 %v286
  %3216 = vmatpush2.msra.mxu0 %v285
  %3217 = vmatprep.subr.mxu0 %v278
  %3218 = vmatpush2.msra.mxu0 %v277
  %3219 = vmatprep.subr.mxu0 %v270
  %3220 = vmatpush2.msra.mxu0 %v269
  %3221 = vmatprep.subr.mxu0 %v262
  %3222 = vmatpush2.msra.mxu0 %v261
  %3223 = vmatprep.subr.mxu0 %v254
  %3224 = vmatpush2.msra.mxu0 %v253
  %3225 = vmatprep.subr.mxu0 %v246
  %3226 = vmatpush2.msra.mxu0 %v245
  %3227 = vmatprep.subr.mxu0 %v238
  %3228 = vmatpush2.msra.mxu0 %v237
  %3229 = vmatprep.subr.mxu0 %v230
  %3230 = vmatpush2.msra.mxu0 %v229
  %3231 = vmatprep.subr.mxu0 %v222
  %3232 = vmatpush2.msra.mxu0 %v221
  %3233 = vmatprep.subr.mxu0 %v214
  %3234 = vmatpush2.msra.mxu0 %v213
  %3235 = vmatprep.subr.mxu0 %v206
  %3236 = vmatpush2.msra.mxu0 %v205
  %3237 = vmatprep.subr.mxu0 %v198
  %3238 = vmatpush2.msra.mxu0 %v197
  %3239 = vmatprep.subr.mxu0 %v190
  %3240 = vmatpush2.msra.mxu0 %v189
  %3241 = vmatprep.subr.mxu0 %v182
  %3242 = vmatpush2.msra.mxu0 %v181
  %3243 = vmatprep.mubr.f32.mxu0 %v3176
  %3244 = vmatmul.mubr.f32.gmra.mxu0 %v3169
  %v3245 = vpop.f32.mrf.mxu0
  %v3246 = vadd.f32 0.0, %v3245
  %v3247 = vpop.f32.mrf.mxu0
  %v3248 = vadd.f32 0.0, %v3247
  %3249 = vdwg.mxu0
  %3250 = vmatprep.subr.mxu0 %v176
  %3251 = vmatpush1.msra.mxu0 %v175
  %3252 = vmatprep.subr.mxu0 %v168
  %3253 = vmatpush1.msra.mxu0 %v167
  %3254 = vmatprep.subr.mxu0 %v160
  %3255 = vmatpush1.msra.mxu0 %v159
  %3256 = vmatprep.subr.mxu0 %v152
  %3257 = vmatpush1.msra.mxu0 %v151
  %3258 = vmatprep.subr.mxu0 %v144
  %3259 = vmatpush1.msra.mxu0 %v143
  %3260 = vmatprep.subr.mxu0 %v136
  %3261 = vmatpush1.msra.mxu0 %v135
  %3262 = vmatprep.subr.mxu0 %v128
  %3263 = vmatpush1.msra.mxu0 %v127
  %3264 = vmatprep.subr.mxu0 %v120
  %3265 = vmatpush1.msra.mxu0 %v119
  %3266 = vmatprep.subr.mxu0 %v112
  %3267 = vmatpush1.msra.mxu0 %v111
  %3268 = vmatprep.subr.mxu0 %v104
  %3269 = vmatpush1.msra.mxu0 %v103
  %3270 = vmatprep.subr.mxu0 %v96
  %3271 = vmatpush1.msra.mxu0 %v95
  %3272 = vmatprep.subr.mxu0 %v88
  %3273 = vmatpush1.msra.mxu0 %v87
  %3274 = vmatprep.subr.mxu0 %v80
  %3275 = vmatpush1.msra.mxu0 %v79
  %3276 = vmatprep.subr.mxu0 %v72
  %3277 = vmatpush1.msra.mxu0 %v71
  %3278 = vmatprep.subr.mxu0 %v64
  %3279 = vmatpush1.msra.mxu0 %v63
  %3280 = vmatprep.subr.mxu0 %v56
  %3281 = vmatpush1.msra.mxu0 %v55
  %3282 = vmatprep.subr.mxu0 %v304
  %3283 = vmatpush2.msra.mxu0 %v303
  %3284 = vmatprep.subr.mxu0 %v296
  %3285 = vmatpush2.msra.mxu0 %v295
  %3286 = vmatprep.subr.mxu0 %v288
  %3287 = vmatpush2.msra.mxu0 %v287
  %3288 = vmatprep.subr.mxu0 %v280
  %3289 = vmatpush2.msra.mxu0 %v279
  %3290 = vmatprep.subr.mxu0 %v272
  %3291 = vmatpush2.msra.mxu0 %v271
  %3292 = vmatprep.subr.mxu0 %v264
  %3293 = vmatpush2.msra.mxu0 %v263
  %3294 = vmatprep.subr.mxu0 %v256
  %3295 = vmatpush2.msra.mxu0 %v255
  %3296 = vmatprep.subr.mxu0 %v248
  %3297 = vmatpush2.msra.mxu0 %v247
  %3298 = vmatprep.subr.mxu0 %v240
  %3299 = vmatpush2.msra.mxu0 %v239
  %3300 = vmatprep.subr.mxu0 %v232
  %3301 = vmatpush2.msra.mxu0 %v231
  %3302 = vmatprep.subr.mxu0 %v224
  %3303 = vmatpush2.msra.mxu0 %v223
  %3304 = vmatprep.subr.mxu0 %v216
  %3305 = vmatpush2.msra.mxu0 %v215
  %3306 = vmatprep.subr.mxu0 %v208
  %3307 = vmatpush2.msra.mxu0 %v207
  %3308 = vmatprep.subr.mxu0 %v200
  %3309 = vmatpush2.msra.mxu0 %v199
  %3310 = vmatprep.subr.mxu0 %v192
  %3311 = vmatpush2.msra.mxu0 %v191
  %3312 = vmatprep.subr.mxu0 %v184
  %3313 = vmatpush2.msra.mxu0 %v183
  %3314 = vmatprep.mubr.f32.mxu0 %v3176
  %3315 = vmatmul.mubr.f32.gmra.mxu0 %v3169
  %v3316 = vpop.f32.mrf.mxu0
  %v3317 = vadd.f32 0.0, %v3316
  %v3318 = vpop.f32.mrf.mxu0
  %v3319 = vadd.f32 0.0, %v3318
  %3320 = vdwg.mxu0
  %3321 = vmatprep.subr.mxu0 %v178
  %3322 = vmatpush1.msra.mxu0 %v177
  %3323 = vmatprep.subr.mxu0 %v170
  %3324 = vmatpush1.msra.mxu0 %v169
  %3325 = vmatprep.subr.mxu0 %v162
  %3326 = vmatpush1.msra.mxu0 %v161
  %3327 = vmatprep.subr.mxu0 %v154
  %3328 = vmatpush1.msra.mxu0 %v153
  %3329 = vmatprep.subr.mxu0 %v146
  %3330 = vmatpush1.msra.mxu0 %v145
  %3331 = vmatprep.subr.mxu0 %v138
  %3332 = vmatpush1.msra.mxu0 %v137
  %3333 = vmatprep.subr.mxu0 %v130
  %3334 = vmatpush1.msra.mxu0 %v129
  %3335 = vmatprep.subr.mxu0 %v122
  %3336 = vmatpush1.msra.mxu0 %v121
  %3337 = vmatprep.subr.mxu0 %v114
  %3338 = vmatpush1.msra.mxu0 %v113
  %3339 = vmatprep.subr.mxu0 %v106
  %3340 = vmatpush1.msra.mxu0 %v105
  %3341 = vmatprep.subr.mxu0 %v98
  %3342 = vmatpush1.msra.mxu0 %v97
  %3343 = vmatprep.subr.mxu0 %v90
  %3344 = vmatpush1.msra.mxu0 %v89
  %3345 = vmatprep.subr.mxu0 %v82
  %3346 = vmatpush1.msra.mxu0 %v81
  %3347 = vmatprep.subr.mxu0 %v74
  %3348 = vmatpush1.msra.mxu0 %v73
  %3349 = vmatprep.subr.mxu0 %v66
  %3350 = vmatpush1.msra.mxu0 %v65
  %3351 = vmatprep.subr.mxu0 %v58
  %3352 = vmatpush1.msra.mxu0 %v57
  %3353 = vmatprep.subr.mxu0 %v306
  %3354 = vmatpush2.msra.mxu0 %v305
  %3355 = vmatprep.subr.mxu0 %v298
  %3356 = vmatpush2.msra.mxu0 %v297
  %3357 = vmatprep.subr.mxu0 %v290
  %3358 = vmatpush2.msra.mxu0 %v289
  %3359 = vmatprep.subr.mxu0 %v282
  %3360 = vmatpush2.msra.mxu0 %v281
  %3361 = vmatprep.subr.mxu0 %v274
  %3362 = vmatpush2.msra.mxu0 %v273
  %3363 = vmatprep.subr.mxu0 %v266
  %3364 = vmatpush2.msra.mxu0 %v265
  %3365 = vmatprep.subr.mxu0 %v258
  %3366 = vmatpush2.msra.mxu0 %v257
  %3367 = vmatprep.subr.mxu0 %v250
  %3368 = vmatpush2.msra.mxu0 %v249
  %3369 = vmatprep.subr.mxu0 %v242
  %3370 = vmatpush2.msra.mxu0 %v241
  %3371 = vmatprep.subr.mxu0 %v234
  %3372 = vmatpush2.msra.mxu0 %v233
  %3373 = vmatprep.subr.mxu0 %v226
  %3374 = vmatpush2.msra.mxu0 %v225
  %3375 = vmatprep.subr.mxu0 %v218
  %3376 = vmatpush2.msra.mxu0 %v217
  %3377 = vmatprep.subr.mxu0 %v210
  %3378 = vmatpush2.msra.mxu0 %v209
  %3379 = vmatprep.subr.mxu0 %v202
  %3380 = vmatpush2.msra.mxu0 %v201
  %3381 = vmatprep.subr.mxu0 %v194
  %3382 = vmatpush2.msra.mxu0 %v193
  %3383 = vmatprep.subr.mxu0 %v186
  %3384 = vmatpush2.msra.mxu0 %v185
  %3385 = vmatprep.mubr.f32.mxu0 %v3176
  %3386 = vmatmul.mubr.f32.gmra.mxu0 %v3169
  %v3387 = vpop.f32.mrf.mxu0
  %v3388 = vadd.f32 0.0, %v3387
  %v3389 = vpop.f32.mrf.mxu0
  %v3390 = vadd.f32 0.0, %v3389
  %3391 = vdwg.mxu0
  %3392 = vmatprep.subr.mxu0 %v180
  %3393 = vmatpush1.msra.mxu0 %v179
  %3394 = vmatprep.subr.mxu0 %v172
  %3395 = vmatpush1.msra.mxu0 %v171
  %3396 = vmatprep.subr.mxu0 %v164
  %3397 = vmatpush1.msra.mxu0 %v163
  %3398 = vmatprep.subr.mxu0 %v156
  %3399 = vmatpush1.msra.mxu0 %v155
  %3400 = vmatprep.subr.mxu0 %v148
  %3401 = vmatpush1.msra.mxu0 %v147
  %3402 = vmatprep.subr.mxu0 %v140
  %3403 = vmatpush1.msra.mxu0 %v139
  %3404 = vmatprep.subr.mxu0 %v132
  %3405 = vmatpush1.msra.mxu0 %v131
  %3406 = vmatprep.subr.mxu0 %v124
  %3407 = vmatpush1.msra.mxu0 %v123
  %3408 = vmatprep.subr.mxu0 %v116
  %3409 = vmatpush1.msra.mxu0 %v115
  %3410 = vmatprep.subr.mxu0 %v108
  %3411 = vmatpush1.msra.mxu0 %v107
  %3412 = vmatprep.subr.mxu0 %v100
  %3413 = vmatpush1.msra.mxu0 %v99
  %3414 = vmatprep.subr.mxu0 %v92
  %3415 = vmatpush1.msra.mxu0 %v91
  %3416 = vmatprep.subr.mxu0 %v84
  %3417 = vmatpush1.msra.mxu0 %v83
  %3418 = vmatprep.subr.mxu0 %v76
  %3419 = vmatpush1.msra.mxu0 %v75
  %3420 = vmatprep.subr.mxu0 %v68
  %3421 = vmatpush1.msra.mxu0 %v67
  %3422 = vmatprep.subr.mxu0 %v60
  %3423 = vmatpush1.msra.mxu0 %v59
  %3424 = vmatprep.subr.mxu0 %v308
  %3425 = vmatpush2.msra.mxu0 %v307
  %3426 = vmatprep.subr.mxu0 %v300
  %3427 = vmatpush2.msra.mxu0 %v299
  %3428 = vmatprep.subr.mxu0 %v292
  %3429 = vmatpush2.msra.mxu0 %v291
  %3430 = vmatprep.subr.mxu0 %v284
  %3431 = vmatpush2.msra.mxu0 %v283
  %3432 = vmatprep.subr.mxu0 %v276
  %3433 = vmatpush2.msra.mxu0 %v275
  %3434 = vmatprep.subr.mxu0 %v268
  %3435 = vmatpush2.msra.mxu0 %v267
  %3436 = vmatprep.subr.mxu0 %v260
  %3437 = vmatpush2.msra.mxu0 %v259
  %3438 = vmatprep.subr.mxu0 %v252
  %3439 = vmatpush2.msra.mxu0 %v251
  %3440 = vmatprep.subr.mxu0 %v244
  %3441 = vmatpush2.msra.mxu0 %v243
  %3442 = vmatprep.subr.mxu0 %v236
  %3443 = vmatpush2.msra.mxu0 %v235
  %3444 = vmatprep.subr.mxu0 %v228
  %3445 = vmatpush2.msra.mxu0 %v227
  %3446 = vmatprep.subr.mxu0 %v220
  %3447 = vmatpush2.msra.mxu0 %v219
  %3448 = vmatprep.subr.mxu0 %v212
  %3449 = vmatpush2.msra.mxu0 %v211
  %3450 = vmatprep.subr.mxu0 %v204
  %3451 = vmatpush2.msra.mxu0 %v203
  %3452 = vmatprep.subr.mxu0 %v196
  %3453 = vmatpush2.msra.mxu0 %v195
  %3454 = vmatprep.subr.mxu0 %v188
  %3455 = vmatpush2.msra.mxu0 %v187
  %3456 = vmatprep.mubr.f32.mxu0 %v3176
  %3457 = vmatmul.mubr.f32.gmra.mxu0 %v3169
  %v3458 = vpop.f32.mrf.mxu0
  %v3459 = vadd.f32 0.0, %v3458
  %v3460 = vpop.f32.mrf.mxu0
  %v3461 = vadd.f32 0.0, %v3460
  %3462 = vdwg.mxu0
  %v3471 = vcombine.low %v3246, %v3248
  %v3472 = vcombine.low %v3317, %v3319
  %v3473 = vcombine.low %v3388, %v3390
  %v3474 = vcombine.low %v3459, %v3461
  %v3476 = vunpack.c.l.s4 1966171168
  %v3477 = vunpack.c.0.s8 %v3476
  %v3478 = vlaneseq
  %v3479 = vshrl.u32 %v3478, 7
  %v3480 = vsub.s32 %v3477, %v3479
  %v3481 = vrot.slane %v3471, %v3480
  %v3483 = vunpack.c.l.s4 1966171168
  %v3484 = vunpack.c.0.s8 %v3483
  %v3485 = vlaneseq
  %v3486 = vshrl.u32 %v3485, 7
  %v3487 = vsub.s32 %v3484, %v3486
  %v3488 = vrot.slane %v3472, %v3487
  %v3490 = vunpack.c.l.s4 1966171168
  %v3491 = vunpack.c.0.s8 %v3490
  %v3492 = vlaneseq
  %v3493 = vshrl.u32 %v3492, 7
  %v3494 = vsub.s32 %v3491, %v3493
  %v3495 = vrot.slane %v3473, %v3494
  %v3497 = vunpack.c.l.s4 1966171168
  %v3498 = vunpack.c.0.s8 %v3497
  %v3499 = vlaneseq
  %v3500 = vshrl.u32 %v3499, 7
  %v3501 = vsub.s32 %v3498, %v3500
  %v3502 = vrot.slane %v3474, %v3501
  %v3503 = vcombine.low %v3481, %v3488
  %v3504 = vcombine.high %v3481, %v3488
  %v3505 = vcombine.low %v3495, %v3502
  %v3506 = vcombine.high %v3495, %v3502
  %v3508 = vunpack.c.l.s4 1966171168
  %v3509 = vunpack.c.0.s8 %v3508
  %v3510 = vlaneseq
  %v3511 = vshrl.u32 %v3510, 7
  %v3512 = vsub.s32 %v3509, %v3511
  %v3513 = vrot.slane %v3503, %v3512
  %v3515 = vunpack.c.l.s4 1966171168
  %v3516 = vunpack.c.0.s8 %v3515
  %v3517 = vlaneseq
  %v3518 = vshrl.u32 %v3517, 7
  %v3519 = vsub.s32 %v3516, %v3518
  %v3520 = vrot.slane %v3504, %v3519
  %v3522 = vunpack.c.l.s4 1966171168
  %v3523 = vunpack.c.0.s8 %v3522
  %v3524 = vlaneseq
  %v3525 = vshrl.u32 %v3524, 7
  %v3526 = vsub.s32 %v3523, %v3525
  %v3527 = vrot.slane %v3505, %v3526
  %v3529 = vunpack.c.l.s4 1966171168
  %v3530 = vunpack.c.0.s8 %v3529
  %v3531 = vlaneseq
  %v3532 = vshrl.u32 %v3531, 7
  %v3533 = vsub.s32 %v3530, %v3532
  %v3534 = vrot.slane %v3506, %v3533
  %v3535 = vcombine.low %v3513, %v3527
  %v3536 = vcombine.low %v3520, %v3534
  %v3539 = vadd.f32 %v3147, %v3535
  %v3540 = vadd.f32 %v3151, %v3536
  %v3541 = vxor.u32 %v3539, 2147483648
  %v3542 = vxor.u32 %v3540, 2147483648
  %v3543 = vmul.f32 %v3541, 1.442695
  %v3544 = vpow.pop %v3543
  %v3545 = vmul.f32 %v3542, 1.442695
  %v3546 = vpow.pop %v3545
  %v3547 = vadd.f32 %v3544, 1.0
  %v3548 = vadd.f32 %v3546, 1.0
  %v3549 = vrcp.pop %v3547
  %v3550 = vmul.f32 1.0, %v3549
  %v3551 = vrcp.pop %v3548
  %v3552 = vmul.f32 1.0, %v3551
  %v3555 = vrot.slane %v3539, 2
  %v3556 = vrot.slane %v3540, 2
  %v3559 = vxor.u32 %v3555, 2147483648
  %v3560 = vxor.u32 %v3556, 2147483648
  %v3561 = vmul.f32 %v3559, 1.442695
  %v3562 = vpow.pop %v3561
  %v3563 = vmul.f32 %v3560, 1.442695
  %v3564 = vpow.pop %v3563
  %v3565 = vadd.f32 %v3562, 1.0
  %v3566 = vadd.f32 %v3564, 1.0
  %v3567 = vrcp.pop %v3565
  %v3568 = vmul.f32 1.0, %v3567
  %v3569 = vrcp.pop %v3566
  %v3570 = vmul.f32 1.0, %v3569
  %v3571 = vrot.slane %v3539, 4
  %v3572 = vrot.slane %v3540, 4
  %v3575 = vtanh.pop %v3571
  %v3576 = vtanh.pop %v3572
  %v3577 = vrot.slane %v3539, 6
  %v3578 = vrot.slane %v3540, 6
  %v3581 = vxor.u32 %v3577, 2147483648
  %v3582 = vxor.u32 %v3578, 2147483648
  %v3583 = vmul.f32 %v3581, 1.442695
  %v3584 = vpow.pop %v3583
  %v3585 = vmul.f32 %v3582, 1.442695
  %v3586 = vpow.pop %v3585
  %v3587 = vadd.f32 %v3584, 1.0
  %v3588 = vadd.f32 %v3586, 1.0
  %v3589 = vrcp.pop %v3587
  %v3590 = vmul.f32 1.0, %v3589
  %v3591 = vrcp.pop %v3588
  %v3592 = vmul.f32 1.0, %v3591
  %v3593 = vmul.f32 %v3568, %v3132
  %v3594 = vmul.f32 %v3570, %v3133
  %v3595 = vmul.f32 %v3550, %v3575
  %v3596 = vmul.f32 %v3552, %v3576
  %v3597 = vadd.f32 %v3593, %v3595
  %v3598 = vadd.f32 %v3594, %v3596
  %v3599 = vtanh.pop %v3597
  %v3600 = vtanh.pop %v3598
  %v3601 = vmul.f32 %v3590, %v3599
  %v3602 = vmul.f32 %v3592, %v3600
  %s3603 = scalar_lea.vmem [#allocation3], 5
  %3604 = vst.msk [vmem:[%s3603] ss:$8 sm:$0x3] %vm1278, %v3601
  %3605 = vst.msk [vmem:[%s3603] ss:$8 sm:$0x0] %vm1278, %v3601
  %s3606 = scalar_lea.vmem [#allocation3], 21
  %3607 = vst.msk [vmem:[%s3606] ss:$8 sm:$0x3] %vm1278, %v3602
  %3608 = vst.msk [vmem:[%s3606] ss:$8 sm:$0x0] %vm1278, %v3602
  %s3609 = scalar_lea.vmem %s0, 6
  %v3610 = vld [vmem:[%s3609] ss:$8 sm:$0xf]
  %v3611 = vld [vmem:[%s3609] ss:$8 sm:$0xf0]
  %v3612 = vor.u32 %v3610, %v3611
  %s3613 = scalar_lea.vmem %s0, 70
  %v3614 = vld [vmem:[%s3613] ss:$8 sm:$0xf]
  %v3615 = vld [vmem:[%s3613] ss:$8 sm:$0xf0]
  %v3616 = vor.u32 %v3614, %v3615
  %v3619 = vcombine.low %v3601, %v3602
  %v3621 = vunpack.c.l.s4 1966171168
  %v3622 = vunpack.c.0.s8 %v3621
  %v3623 = vlaneseq
  %v3624 = vshrl.u32 %v3623, 7
  %v3625 = vsub.s32 %v3622, %v3624
  %v3626 = vrot.slane %v3619, %v3625
  %v3627 = vcombine.high %v3626, %v3626
  %v3629 = vunpack.c.l.s4 1966171168
  %v3630 = vunpack.c.0.s8 %v3629
  %v3631 = vlaneseq
  %v3632 = vshrl.u32 %v3631, 7
  %v3633 = vsub.s32 %v3630, %v3632
  %v3634 = vrot.slane %v3626, %v3633
  %v3636 = vunpack.c.l.s4 1966171168
  %v3637 = vunpack.c.0.s8 %v3636
  %v3638 = vlaneseq
  %v3639 = vshrl.u32 %v3638, 7
  %v3640 = vsub.s32 %v3637, %v3639
  %v3641 = vrot.slane %v3627, %v3640
  %3644 = vmatprep.subr.mxu0 %v174
  %3645 = vmatpush1.msra.mxu0 %v173
  %3646 = vmatprep.subr.mxu0 %v166
  %3647 = vmatpush1.msra.mxu0 %v165
  %3648 = vmatprep.subr.mxu0 %v158
  %3649 = vmatpush1.msra.mxu0 %v157
  %3650 = vmatprep.subr.mxu0 %v150
  %3651 = vmatpush1.msra.mxu0 %v149
  %3652 = vmatprep.subr.mxu0 %v142
  %3653 = vmatpush1.msra.mxu0 %v141
  %3654 = vmatprep.subr.mxu0 %v134
  %3655 = vmatpush1.msra.mxu0 %v133
  %3656 = vmatprep.subr.mxu0 %v126
  %3657 = vmatpush1.msra.mxu0 %v125
  %3658 = vmatprep.subr.mxu0 %v118
  %3659 = vmatpush1.msra.mxu0 %v117
  %3660 = vmatprep.subr.mxu0 %v110
  %3661 = vmatpush1.msra.mxu0 %v109
  %3662 = vmatprep.subr.mxu0 %v102
  %3663 = vmatpush1.msra.mxu0 %v101
  %3664 = vmatprep.subr.mxu0 %v94
  %3665 = vmatpush1.msra.mxu0 %v93
  %3666 = vmatprep.subr.mxu0 %v86
  %3667 = vmatpush1.msra.mxu0 %v85
  %3668 = vmatprep.subr.mxu0 %v78
  %3669 = vmatpush1.msra.mxu0 %v77
  %3670 = vmatprep.subr.mxu0 %v70
  %3671 = vmatpush1.msra.mxu0 %v69
  %3672 = vmatprep.subr.mxu0 %v62
  %3673 = vmatpush1.msra.mxu0 %v61
  %3674 = vmatprep.subr.mxu0 %v54
  %3675 = vmatpush1.msra.mxu0 %v53
  %3676 = vmatprep.subr.mxu0 %v302
  %3677 = vmatpush2.msra.mxu0 %v301
  %3678 = vmatprep.subr.mxu0 %v294
  %3679 = vmatpush2.msra.mxu0 %v293
  %3680 = vmatprep.subr.mxu0 %v286
  %3681 = vmatpush2.msra.mxu0 %v285
  %3682 = vmatprep.subr.mxu0 %v278
  %3683 = vmatpush2.msra.mxu0 %v277
  %3684 = vmatprep.subr.mxu0 %v270
  %3685 = vmatpush2.msra.mxu0 %v269
  %3686 = vmatprep.subr.mxu0 %v262
  %3687 = vmatpush2.msra.mxu0 %v261
  %3688 = vmatprep.subr.mxu0 %v254
  %3689 = vmatpush2.msra.mxu0 %v253
  %3690 = vmatprep.subr.mxu0 %v246
  %3691 = vmatpush2.msra.mxu0 %v245
  %3692 = vmatprep.subr.mxu0 %v238
  %3693 = vmatpush2.msra.mxu0 %v237
  %3694 = vmatprep.subr.mxu0 %v230
  %3695 = vmatpush2.msra.mxu0 %v229
  %3696 = vmatprep.subr.mxu0 %v222
  %3697 = vmatpush2.msra.mxu0 %v221
  %3698 = vmatprep.subr.mxu0 %v214
  %3699 = vmatpush2.msra.mxu0 %v213
  %3700 = vmatprep.subr.mxu0 %v206
  %3701 = vmatpush2.msra.mxu0 %v205
  %3702 = vmatprep.subr.mxu0 %v198
  %3703 = vmatpush2.msra.mxu0 %v197
  %3704 = vmatprep.subr.mxu0 %v190
  %3705 = vmatpush2.msra.mxu0 %v189
  %3706 = vmatprep.subr.mxu0 %v182
  %3707 = vmatpush2.msra.mxu0 %v181
  %3708 = vmatprep.mubr.f32.mxu0 %v3641
  %3709 = vmatmul.mubr.f32.gmra.mxu0 %v3634
  %v3710 = vpop.f32.mrf.mxu0
  %v3711 = vadd.f32 0.0, %v3710
  %v3712 = vpop.f32.mrf.mxu0
  %v3713 = vadd.f32 0.0, %v3712
  %3714 = vdwg.mxu0
  %3715 = vmatprep.subr.mxu0 %v176
  %3716 = vmatpush1.msra.mxu0 %v175
  %3717 = vmatprep.subr.mxu0 %v168
  %3718 = vmatpush1.msra.mxu0 %v167
  %3719 = vmatprep.subr.mxu0 %v160
  %3720 = vmatpush1.msra.mxu0 %v159
  %3721 = vmatprep.subr.mxu0 %v152
  %3722 = vmatpush1.msra.mxu0 %v151
  %3723 = vmatprep.subr.mxu0 %v144
  %3724 = vmatpush1.msra.mxu0 %v143
  %3725 = vmatprep.subr.mxu0 %v136
  %3726 = vmatpush1.msra.mxu0 %v135
  %3727 = vmatprep.subr.mxu0 %v128
  %3728 = vmatpush1.msra.mxu0 %v127
  %3729 = vmatprep.subr.mxu0 %v120
  %3730 = vmatpush1.msra.mxu0 %v119
  %3731 = vmatprep.subr.mxu0 %v112
  %3732 = vmatpush1.msra.mxu0 %v111
  %3733 = vmatprep.subr.mxu0 %v104
  %3734 = vmatpush1.msra.mxu0 %v103
  %3735 = vmatprep.subr.mxu0 %v96
  %3736 = vmatpush1.msra.mxu0 %v95
  %3737 = vmatprep.subr.mxu0 %v88
  %3738 = vmatpush1.msra.mxu0 %v87
  %3739 = vmatprep.subr.mxu0 %v80
  %3740 = vmatpush1.msra.mxu0 %v79
  %3741 = vmatprep.subr.mxu0 %v72
  %3742 = vmatpush1.msra.mxu0 %v71
  %3743 = vmatprep.subr.mxu0 %v64
  %3744 = vmatpush1.msra.mxu0 %v63
  %3745 = vmatprep.subr.mxu0 %v56
  %3746 = vmatpush1.msra.mxu0 %v55
  %3747 = vmatprep.subr.mxu0 %v304
  %3748 = vmatpush2.msra.mxu0 %v303
  %3749 = vmatprep.subr.mxu0 %v296
  %3750 = vmatpush2.msra.mxu0 %v295
  %3751 = vmatprep.subr.mxu0 %v288
  %3752 = vmatpush2.msra.mxu0 %v287
  %3753 = vmatprep.subr.mxu0 %v280
  %3754 = vmatpush2.msra.mxu0 %v279
  %3755 = vmatprep.subr.mxu0 %v272
  %3756 = vmatpush2.msra.mxu0 %v271
  %3757 = vmatprep.subr.mxu0 %v264
  %3758 = vmatpush2.msra.mxu0 %v263
  %3759 = vmatprep.subr.mxu0 %v256
  %3760 = vmatpush2.msra.mxu0 %v255
  %3761 = vmatprep.subr.mxu0 %v248
  %3762 = vmatpush2.msra.mxu0 %v247
  %3763 = vmatprep.subr.mxu0 %v240
  %3764 = vmatpush2.msra.mxu0 %v239
  %3765 = vmatprep.subr.mxu0 %v232
  %3766 = vmatpush2.msra.mxu0 %v231
  %3767 = vmatprep.subr.mxu0 %v224
  %3768 = vmatpush2.msra.mxu0 %v223
  %3769 = vmatprep.subr.mxu0 %v216
  %3770 = vmatpush2.msra.mxu0 %v215
  %3771 = vmatprep.subr.mxu0 %v208
  %3772 = vmatpush2.msra.mxu0 %v207
  %3773 = vmatprep.subr.mxu0 %v200
  %3774 = vmatpush2.msra.mxu0 %v199
  %3775 = vmatprep.subr.mxu0 %v192
  %3776 = vmatpush2.msra.mxu0 %v191
  %3777 = vmatprep.subr.mxu0 %v184
  %3778 = vmatpush2.msra.mxu0 %v183
  %3779 = vmatprep.mubr.f32.mxu0 %v3641
  %3780 = vmatmul.mubr.f32.gmra.mxu0 %v3634
  %v3781 = vpop.f32.mrf.mxu0
  %v3782 = vadd.f32 0.0, %v3781
  %v3783 = vpop.f32.mrf.mxu0
  %v3784 = vadd.f32 0.0, %v3783
  %3785 = vdwg.mxu0
  %3786 = vmatprep.subr.mxu0 %v178
  %3787 = vmatpush1.msra.mxu0 %v177
  %3788 = vmatprep.subr.mxu0 %v170
  %3789 = vmatpush1.msra.mxu0 %v169
  %3790 = vmatprep.subr.mxu0 %v162
  %3791 = vmatpush1.msra.mxu0 %v161
  %3792 = vmatprep.subr.mxu0 %v154
  %3793 = vmatpush1.msra.mxu0 %v153
  %3794 = vmatprep.subr.mxu0 %v146
  %3795 = vmatpush1.msra.mxu0 %v145
  %3796 = vmatprep.subr.mxu0 %v138
  %3797 = vmatpush1.msra.mxu0 %v137
  %3798 = vmatprep.subr.mxu0 %v130
  %3799 = vmatpush1.msra.mxu0 %v129
  %3800 = vmatprep.subr.mxu0 %v122
  %3801 = vmatpush1.msra.mxu0 %v121
  %3802 = vmatprep.subr.mxu0 %v114
  %3803 = vmatpush1.msra.mxu0 %v113
  %3804 = vmatprep.subr.mxu0 %v106
  %3805 = vmatpush1.msra.mxu0 %v105
  %3806 = vmatprep.subr.mxu0 %v98
  %3807 = vmatpush1.msra.mxu0 %v97
  %3808 = vmatprep.subr.mxu0 %v90
  %3809 = vmatpush1.msra.mxu0 %v89
  %3810 = vmatprep.subr.mxu0 %v82
  %3811 = vmatpush1.msra.mxu0 %v81
  %3812 = vmatprep.subr.mxu0 %v74
  %3813 = vmatpush1.msra.mxu0 %v73
  %3814 = vmatprep.subr.mxu0 %v66
  %3815 = vmatpush1.msra.mxu0 %v65
  %3816 = vmatprep.subr.mxu0 %v58
  %3817 = vmatpush1.msra.mxu0 %v57
  %3818 = vmatprep.subr.mxu0 %v306
  %3819 = vmatpush2.msra.mxu0 %v305
  %3820 = vmatprep.subr.mxu0 %v298
  %3821 = vmatpush2.msra.mxu0 %v297
  %3822 = vmatprep.subr.mxu0 %v290
  %3823 = vmatpush2.msra.mxu0 %v289
  %3824 = vmatprep.subr.mxu0 %v282
  %3825 = vmatpush2.msra.mxu0 %v281
  %3826 = vmatprep.subr.mxu0 %v274
  %3827 = vmatpush2.msra.mxu0 %v273
  %3828 = vmatprep.subr.mxu0 %v266
  %3829 = vmatpush2.msra.mxu0 %v265
  %3830 = vmatprep.subr.mxu0 %v258
  %3831 = vmatpush2.msra.mxu0 %v257
  %3832 = vmatprep.subr.mxu0 %v250
  %3833 = vmatpush2.msra.mxu0 %v249
  %3834 = vmatprep.subr.mxu0 %v242
  %3835 = vmatpush2.msra.mxu0 %v241
  %3836 = vmatprep.subr.mxu0 %v234
  %3837 = vmatpush2.msra.mxu0 %v233
  %3838 = vmatprep.subr.mxu0 %v226
  %3839 = vmatpush2.msra.mxu0 %v225
  %3840 = vmatprep.subr.mxu0 %v218
  %3841 = vmatpush2.msra.mxu0 %v217
  %3842 = vmatprep.subr.mxu0 %v210
  %3843 = vmatpush2.msra.mxu0 %v209
  %3844 = vmatprep.subr.mxu0 %v202
  %3845 = vmatpush2.msra.mxu0 %v201
  %3846 = vmatprep.subr.mxu0 %v194
  %3847 = vmatpush2.msra.mxu0 %v193
  %3848 = vmatprep.subr.mxu0 %v186
  %3849 = vmatpush2.msra.mxu0 %v185
  %3850 = vmatprep.mubr.f32.mxu0 %v3641
  %3851 = vmatmul.mubr.f32.gmra.mxu0 %v3634
  %v3852 = vpop.f32.mrf.mxu0
  %v3853 = vadd.f32 0.0, %v3852
  %v3854 = vpop.f32.mrf.mxu0
  %v3855 = vadd.f32 0.0, %v3854
  %3856 = vdwg.mxu0
  %3857 = vmatprep.subr.mxu0 %v180
  %3858 = vmatpush1.msra.mxu0 %v179
  %3859 = vmatprep.subr.mxu0 %v172
  %3860 = vmatpush1.msra.mxu0 %v171
  %3861 = vmatprep.subr.mxu0 %v164
  %3862 = vmatpush1.msra.mxu0 %v163
  %3863 = vmatprep.subr.mxu0 %v156
  %3864 = vmatpush1.msra.mxu0 %v155
  %3865 = vmatprep.subr.mxu0 %v148
  %3866 = vmatpush1.msra.mxu0 %v147
  %3867 = vmatprep.subr.mxu0 %v140
  %3868 = vmatpush1.msra.mxu0 %v139
  %3869 = vmatprep.subr.mxu0 %v132
  %3870 = vmatpush1.msra.mxu0 %v131
  %3871 = vmatprep.subr.mxu0 %v124
  %3872 = vmatpush1.msra.mxu0 %v123
  %3873 = vmatprep.subr.mxu0 %v116
  %3874 = vmatpush1.msra.mxu0 %v115
  %3875 = vmatprep.subr.mxu0 %v108
  %3876 = vmatpush1.msra.mxu0 %v107
  %3877 = vmatprep.subr.mxu0 %v100
  %3878 = vmatpush1.msra.mxu0 %v99
  %3879 = vmatprep.subr.mxu0 %v92
  %3880 = vmatpush1.msra.mxu0 %v91
  %3881 = vmatprep.subr.mxu0 %v84
  %3882 = vmatpush1.msra.mxu0 %v83
  %3883 = vmatprep.subr.mxu0 %v76
  %3884 = vmatpush1.msra.mxu0 %v75
  %3885 = vmatprep.subr.mxu0 %v68
  %3886 = vmatpush1.msra.mxu0 %v67
  %3887 = vmatprep.subr.mxu0 %v60
  %3888 = vmatpush1.msra.mxu0 %v59
  %3889 = vmatprep.subr.mxu0 %v308
  %3890 = vmatpush2.msra.mxu0 %v307
  %3891 = vmatprep.subr.mxu0 %v300
  %3892 = vmatpush2.msra.mxu0 %v299
  %3893 = vmatprep.subr.mxu0 %v292
  %3894 = vmatpush2.msra.mxu0 %v291
  %3895 = vmatprep.subr.mxu0 %v284
  %3896 = vmatpush2.msra.mxu0 %v283
  %3897 = vmatprep.subr.mxu0 %v276
  %3898 = vmatpush2.msra.mxu0 %v275
  %3899 = vmatprep.subr.mxu0 %v268
  %3900 = vmatpush2.msra.mxu0 %v267
  %3901 = vmatprep.subr.mxu0 %v260
  %3902 = vmatpush2.msra.mxu0 %v259
  %3903 = vmatprep.subr.mxu0 %v252
  %3904 = vmatpush2.msra.mxu0 %v251
  %3905 = vmatprep.subr.mxu0 %v244
  %3906 = vmatpush2.msra.mxu0 %v243
  %3907 = vmatprep.subr.mxu0 %v236
  %3908 = vmatpush2.msra.mxu0 %v235
  %3909 = vmatprep.subr.mxu0 %v228
  %3910 = vmatpush2.msra.mxu0 %v227
  %3911 = vmatprep.subr.mxu0 %v220
  %3912 = vmatpush2.msra.mxu0 %v219
  %3913 = vmatprep.subr.mxu0 %v212
  %3914 = vmatpush2.msra.mxu0 %v211
  %3915 = vmatprep.subr.mxu0 %v204
  %3916 = vmatpush2.msra.mxu0 %v203
  %3917 = vmatprep.subr.mxu0 %v196
  %3918 = vmatpush2.msra.mxu0 %v195
  %3919 = vmatprep.subr.mxu0 %v188
  %3920 = vmatpush2.msra.mxu0 %v187
  %3921 = vmatprep.mubr.f32.mxu0 %v3641
  %3922 = vmatmul.mubr.f32.gmra.mxu0 %v3634
  %v3923 = vpop.f32.mrf.mxu0
  %v3924 = vadd.f32 0.0, %v3923
  %v3925 = vpop.f32.mrf.mxu0
  %v3926 = vadd.f32 0.0, %v3925
  %3927 = vdwg.mxu0
  %v3936 = vcombine.low %v3711, %v3713
  %v3937 = vcombine.low %v3782, %v3784
  %v3938 = vcombine.low %v3853, %v3855
  %v3939 = vcombine.low %v3924, %v3926
  %v3941 = vunpack.c.l.s4 1966171168
  %v3942 = vunpack.c.0.s8 %v3941
  %v3943 = vlaneseq
  %v3944 = vshrl.u32 %v3943, 7
  %v3945 = vsub.s32 %v3942, %v3944
  %v3946 = vrot.slane %v3936, %v3945
  %v3948 = vunpack.c.l.s4 1966171168
  %v3949 = vunpack.c.0.s8 %v3948
  %v3950 = vlaneseq
  %v3951 = vshrl.u32 %v3950, 7
  %v3952 = vsub.s32 %v3949, %v3951
  %v3953 = vrot.slane %v3937, %v3952
  %v3955 = vunpack.c.l.s4 1966171168
  %v3956 = vunpack.c.0.s8 %v3955
  %v3957 = vlaneseq
  %v3958 = vshrl.u32 %v3957, 7
  %v3959 = vsub.s32 %v3956, %v3958
  %v3960 = vrot.slane %v3938, %v3959
  %v3962 = vunpack.c.l.s4 1966171168
  %v3963 = vunpack.c.0.s8 %v3962
  %v3964 = vlaneseq
  %v3965 = vshrl.u32 %v3964, 7
  %v3966 = vsub.s32 %v3963, %v3965
  %v3967 = vrot.slane %v3939, %v3966
  %v3968 = vcombine.low %v3946, %v3953
  %v3969 = vcombine.high %v3946, %v3953
  %v3970 = vcombine.low %v3960, %v3967
  %v3971 = vcombine.high %v3960, %v3967
  %v3973 = vunpack.c.l.s4 1966171168
  %v3974 = vunpack.c.0.s8 %v3973
  %v3975 = vlaneseq
  %v3976 = vshrl.u32 %v3975, 7
  %v3977 = vsub.s32 %v3974, %v3976
  %v3978 = vrot.slane %v3968, %v3977
  %v3980 = vunpack.c.l.s4 1966171168
  %v3981 = vunpack.c.0.s8 %v3980
  %v3982 = vlaneseq
  %v3983 = vshrl.u32 %v3982, 7
  %v3984 = vsub.s32 %v3981, %v3983
  %v3985 = vrot.slane %v3969, %v3984
  %v3987 = vunpack.c.l.s4 1966171168
  %v3988 = vunpack.c.0.s8 %v3987
  %v3989 = vlaneseq
  %v3990 = vshrl.u32 %v3989, 7
  %v3991 = vsub.s32 %v3988, %v3990
  %v3992 = vrot.slane %v3970, %v3991
  %v3994 = vunpack.c.l.s4 1966171168
  %v3995 = vunpack.c.0.s8 %v3994
  %v3996 = vlaneseq
  %v3997 = vshrl.u32 %v3996, 7
  %v3998 = vsub.s32 %v3995, %v3997
  %v3999 = vrot.slane %v3971, %v3998
  %v4000 = vcombine.low %v3978, %v3992
  %v4001 = vcombine.low %v3985, %v3999
  %v4004 = vadd.f32 %v3612, %v4000
  %v4005 = vadd.f32 %v3616, %v4001
  %v4006 = vxor.u32 %v4004, 2147483648
  %v4007 = vxor.u32 %v4005, 2147483648
  %v4008 = vmul.f32 %v4006, 1.442695
  %v4009 = vpow.pop %v4008
  %v4010 = vmul.f32 %v4007, 1.442695
  %v4011 = vpow.pop %v4010
  %v4012 = vadd.f32 %v4009, 1.0
  %v4013 = vadd.f32 %v4011, 1.0
  %v4014 = vrcp.pop %v4012
  %v4015 = vmul.f32 1.0, %v4014
  %v4016 = vrcp.pop %v4013
  %v4017 = vmul.f32 1.0, %v4016
  %v4020 = vrot.slane %v4004, 2
  %v4021 = vrot.slane %v4005, 2
  %v4024 = vxor.u32 %v4020, 2147483648
  %v4025 = vxor.u32 %v4021, 2147483648
  %v4026 = vmul.f32 %v4024, 1.442695
  %v4027 = vpow.pop %v4026
  %v4028 = vmul.f32 %v4025, 1.442695
  %v4029 = vpow.pop %v4028
  %v4030 = vadd.f32 %v4027, 1.0
  %v4031 = vadd.f32 %v4029, 1.0
  %v4032 = vrcp.pop %v4030
  %v4033 = vmul.f32 1.0, %v4032
  %v4034 = vrcp.pop %v4031
  %v4035 = vmul.f32 1.0, %v4034
  %v4036 = vrot.slane %v4004, 4
  %v4037 = vrot.slane %v4005, 4
  %v4040 = vtanh.pop %v4036
  %v4041 = vtanh.pop %v4037
  %v4042 = vrot.slane %v4004, 6
  %v4043 = vrot.slane %v4005, 6
  %v4046 = vxor.u32 %v4042, 2147483648
  %v4047 = vxor.u32 %v4043, 2147483648
  %v4048 = vmul.f32 %v4046, 1.442695
  %v4049 = vpow.pop %v4048
  %v4050 = vmul.f32 %v4047, 1.442695
  %v4051 = vpow.pop %v4050
  %v4052 = vadd.f32 %v4049, 1.0
  %v4053 = vadd.f32 %v4051, 1.0
  %v4054 = vrcp.pop %v4052
  %v4055 = vmul.f32 1.0, %v4054
  %v4056 = vrcp.pop %v4053
  %v4057 = vmul.f32 1.0, %v4056
  %v4058 = vmul.f32 %v4033, %v3597
  %v4059 = vmul.f32 %v4035, %v3598
  %v4060 = vmul.f32 %v4015, %v4040
  %v4061 = vmul.f32 %v4017, %v4041
  %v4062 = vadd.f32 %v4058, %v4060
  %v4063 = vadd.f32 %v4059, %v4061
  %v4064 = vtanh.pop %v4062
  %v4065 = vtanh.pop %v4063
  %v4066 = vmul.f32 %v4055, %v4064
  %v4067 = vmul.f32 %v4057, %v4065
  %s4068 = scalar_lea.vmem [#allocation3], 6
  %4069 = vst.msk [vmem:[%s4068] ss:$8 sm:$0x3] %vm1278, %v4066
  %4070 = vst.msk [vmem:[%s4068] ss:$8 sm:$0x0] %vm1278, %v4066
  %s4071 = scalar_lea.vmem [#allocation3], 22
  %4072 = vst.msk [vmem:[%s4071] ss:$8 sm:$0x3] %vm1278, %v4067
  %4073 = vst.msk [vmem:[%s4071] ss:$8 sm:$0x0] %vm1278, %v4067
  %s4074 = scalar_lea.vmem %s0, 7
  %v4075 = vld [vmem:[%s4074] ss:$8 sm:$0xf]
  %v4076 = vld [vmem:[%s4074] ss:$8 sm:$0xf0]
  %v4077 = vor.u32 %v4075, %v4076
  %s4078 = scalar_lea.vmem %s0, 71
  %v4079 = vld [vmem:[%s4078] ss:$8 sm:$0xf]
  %v4080 = vld [vmem:[%s4078] ss:$8 sm:$0xf0]
  %v4081 = vor.u32 %v4079, %v4080
  %v4084 = vcombine.low %v4066, %v4067
  %v4086 = vunpack.c.l.s4 1966171168
  %v4087 = vunpack.c.0.s8 %v4086
  %v4088 = vlaneseq
  %v4089 = vshrl.u32 %v4088, 7
  %v4090 = vsub.s32 %v4087, %v4089
  %v4091 = vrot.slane %v4084, %v4090
  %v4092 = vcombine.high %v4091, %v4091
  %v4094 = vunpack.c.l.s4 1966171168
  %v4095 = vunpack.c.0.s8 %v4094
  %v4096 = vlaneseq
  %v4097 = vshrl.u32 %v4096, 7
  %v4098 = vsub.s32 %v4095, %v4097
  %v4099 = vrot.slane %v4091, %v4098
  %v4101 = vunpack.c.l.s4 1966171168
  %v4102 = vunpack.c.0.s8 %v4101
  %v4103 = vlaneseq
  %v4104 = vshrl.u32 %v4103, 7
  %v4105 = vsub.s32 %v4102, %v4104
  %v4106 = vrot.slane %v4092, %v4105
  %4109 = vmatprep.subr.mxu0 %v174
  %4110 = vmatpush1.msra.mxu0 %v173
  %4111 = vmatprep.subr.mxu0 %v166
  %4112 = vmatpush1.msra.mxu0 %v165
  %4113 = vmatprep.subr.mxu0 %v158
  %4114 = vmatpush1.msra.mxu0 %v157
  %4115 = vmatprep.subr.mxu0 %v150
  %4116 = vmatpush1.msra.mxu0 %v149
  %4117 = vmatprep.subr.mxu0 %v142
  %4118 = vmatpush1.msra.mxu0 %v141
  %4119 = vmatprep.subr.mxu0 %v134
  %4120 = vmatpush1.msra.mxu0 %v133
  %4121 = vmatprep.subr.mxu0 %v126
  %4122 = vmatpush1.msra.mxu0 %v125
  %4123 = vmatprep.subr.mxu0 %v118
  %4124 = vmatpush1.msra.mxu0 %v117
  %4125 = vmatprep.subr.mxu0 %v110
  %4126 = vmatpush1.msra.mxu0 %v109
  %4127 = vmatprep.subr.mxu0 %v102
  %4128 = vmatpush1.msra.mxu0 %v101
  %4129 = vmatprep.subr.mxu0 %v94
  %4130 = vmatpush1.msra.mxu0 %v93
  %4131 = vmatprep.subr.mxu0 %v86
  %4132 = vmatpush1.msra.mxu0 %v85
  %4133 = vmatprep.subr.mxu0 %v78
  %4134 = vmatpush1.msra.mxu0 %v77
  %4135 = vmatprep.subr.mxu0 %v70
  %4136 = vmatpush1.msra.mxu0 %v69
  %4137 = vmatprep.subr.mxu0 %v62
  %4138 = vmatpush1.msra.mxu0 %v61
  %4139 = vmatprep.subr.mxu0 %v54
  %4140 = vmatpush1.msra.mxu0 %v53
  %4141 = vmatprep.subr.mxu0 %v302
  %4142 = vmatpush2.msra.mxu0 %v301
  %4143 = vmatprep.subr.mxu0 %v294
  %4144 = vmatpush2.msra.mxu0 %v293
  %4145 = vmatprep.subr.mxu0 %v286
  %4146 = vmatpush2.msra.mxu0 %v285
  %4147 = vmatprep.subr.mxu0 %v278
  %4148 = vmatpush2.msra.mxu0 %v277
  %4149 = vmatprep.subr.mxu0 %v270
  %4150 = vmatpush2.msra.mxu0 %v269
  %4151 = vmatprep.subr.mxu0 %v262
  %4152 = vmatpush2.msra.mxu0 %v261
  %4153 = vmatprep.subr.mxu0 %v254
  %4154 = vmatpush2.msra.mxu0 %v253
  %4155 = vmatprep.subr.mxu0 %v246
  %4156 = vmatpush2.msra.mxu0 %v245
  %4157 = vmatprep.subr.mxu0 %v238
  %4158 = vmatpush2.msra.mxu0 %v237
  %4159 = vmatprep.subr.mxu0 %v230
  %4160 = vmatpush2.msra.mxu0 %v229
  %4161 = vmatprep.subr.mxu0 %v222
  %4162 = vmatpush2.msra.mxu0 %v221
  %4163 = vmatprep.subr.mxu0 %v214
  %4164 = vmatpush2.msra.mxu0 %v213
  %4165 = vmatprep.subr.mxu0 %v206
  %4166 = vmatpush2.msra.mxu0 %v205
  %4167 = vmatprep.subr.mxu0 %v198
  %4168 = vmatpush2.msra.mxu0 %v197
  %4169 = vmatprep.subr.mxu0 %v190
  %4170 = vmatpush2.msra.mxu0 %v189
  %4171 = vmatprep.subr.mxu0 %v182
  %4172 = vmatpush2.msra.mxu0 %v181
  %4173 = vmatprep.mubr.f32.mxu0 %v4106
  %4174 = vmatmul.mubr.f32.gmra.mxu0 %v4099
  %v4175 = vpop.f32.mrf.mxu0
  %v4176 = vadd.f32 0.0, %v4175
  %v4177 = vpop.f32.mrf.mxu0
  %v4178 = vadd.f32 0.0, %v4177
  %4179 = vdwg.mxu0
  %4180 = vmatprep.subr.mxu0 %v176
  %4181 = vmatpush1.msra.mxu0 %v175
  %4182 = vmatprep.subr.mxu0 %v168
  %4183 = vmatpush1.msra.mxu0 %v167
  %4184 = vmatprep.subr.mxu0 %v160
  %4185 = vmatpush1.msra.mxu0 %v159
  %4186 = vmatprep.subr.mxu0 %v152
  %4187 = vmatpush1.msra.mxu0 %v151
  %4188 = vmatprep.subr.mxu0 %v144
  %4189 = vmatpush1.msra.mxu0 %v143
  %4190 = vmatprep.subr.mxu0 %v136
  %4191 = vmatpush1.msra.mxu0 %v135
  %4192 = vmatprep.subr.mxu0 %v128
  %4193 = vmatpush1.msra.mxu0 %v127
  %4194 = vmatprep.subr.mxu0 %v120
  %4195 = vmatpush1.msra.mxu0 %v119
  %4196 = vmatprep.subr.mxu0 %v112
  %4197 = vmatpush1.msra.mxu0 %v111
  %4198 = vmatprep.subr.mxu0 %v104
  %4199 = vmatpush1.msra.mxu0 %v103
  %4200 = vmatprep.subr.mxu0 %v96
  %4201 = vmatpush1.msra.mxu0 %v95
  %4202 = vmatprep.subr.mxu0 %v88
  %4203 = vmatpush1.msra.mxu0 %v87
  %4204 = vmatprep.subr.mxu0 %v80
  %4205 = vmatpush1.msra.mxu0 %v79
  %4206 = vmatprep.subr.mxu0 %v72
  %4207 = vmatpush1.msra.mxu0 %v71
  %4208 = vmatprep.subr.mxu0 %v64
  %4209 = vmatpush1.msra.mxu0 %v63
  %4210 = vmatprep.subr.mxu0 %v56
  %4211 = vmatpush1.msra.mxu0 %v55
  %4212 = vmatprep.subr.mxu0 %v304
  %4213 = vmatpush2.msra.mxu0 %v303
  %4214 = vmatprep.subr.mxu0 %v296
  %4215 = vmatpush2.msra.mxu0 %v295
  %4216 = vmatprep.subr.mxu0 %v288
  %4217 = vmatpush2.msra.mxu0 %v287
  %4218 = vmatprep.subr.mxu0 %v280
  %4219 = vmatpush2.msra.mxu0 %v279
  %4220 = vmatprep.subr.mxu0 %v272
  %4221 = vmatpush2.msra.mxu0 %v271
  %4222 = vmatprep.subr.mxu0 %v264
  %4223 = vmatpush2.msra.mxu0 %v263
  %4224 = vmatprep.subr.mxu0 %v256
  %4225 = vmatpush2.msra.mxu0 %v255
  %4226 = vmatprep.subr.mxu0 %v248
  %4227 = vmatpush2.msra.mxu0 %v247
  %4228 = vmatprep.subr.mxu0 %v240
  %4229 = vmatpush2.msra.mxu0 %v239
  %4230 = vmatprep.subr.mxu0 %v232
  %4231 = vmatpush2.msra.mxu0 %v231
  %4232 = vmatprep.subr.mxu0 %v224
  %4233 = vmatpush2.msra.mxu0 %v223
  %4234 = vmatprep.subr.mxu0 %v216
  %4235 = vmatpush2.msra.mxu0 %v215
  %4236 = vmatprep.subr.mxu0 %v208
  %4237 = vmatpush2.msra.mxu0 %v207
  %4238 = vmatprep.subr.mxu0 %v200
  %4239 = vmatpush2.msra.mxu0 %v199
  %4240 = vmatprep.subr.mxu0 %v192
  %4241 = vmatpush2.msra.mxu0 %v191
  %4242 = vmatprep.subr.mxu0 %v184
  %4243 = vmatpush2.msra.mxu0 %v183
  %4244 = vmatprep.mubr.f32.mxu0 %v4106
  %4245 = vmatmul.mubr.f32.gmra.mxu0 %v4099
  %v4246 = vpop.f32.mrf.mxu0
  %v4247 = vadd.f32 0.0, %v4246
  %v4248 = vpop.f32.mrf.mxu0
  %v4249 = vadd.f32 0.0, %v4248
  %4250 = vdwg.mxu0
  %4251 = vmatprep.subr.mxu0 %v178
  %4252 = vmatpush1.msra.mxu0 %v177
  %4253 = vmatprep.subr.mxu0 %v170
  %4254 = vmatpush1.msra.mxu0 %v169
  %4255 = vmatprep.subr.mxu0 %v162
  %4256 = vmatpush1.msra.mxu0 %v161
  %4257 = vmatprep.subr.mxu0 %v154
  %4258 = vmatpush1.msra.mxu0 %v153
  %4259 = vmatprep.subr.mxu0 %v146
  %4260 = vmatpush1.msra.mxu0 %v145
  %4261 = vmatprep.subr.mxu0 %v138
  %4262 = vmatpush1.msra.mxu0 %v137
  %4263 = vmatprep.subr.mxu0 %v130
  %4264 = vmatpush1.msra.mxu0 %v129
  %4265 = vmatprep.subr.mxu0 %v122
  %4266 = vmatpush1.msra.mxu0 %v121
  %4267 = vmatprep.subr.mxu0 %v114
  %4268 = vmatpush1.msra.mxu0 %v113
  %4269 = vmatprep.subr.mxu0 %v106
  %4270 = vmatpush1.msra.mxu0 %v105
  %4271 = vmatprep.subr.mxu0 %v98
  %4272 = vmatpush1.msra.mxu0 %v97
  %4273 = vmatprep.subr.mxu0 %v90
  %4274 = vmatpush1.msra.mxu0 %v89
  %4275 = vmatprep.subr.mxu0 %v82
  %4276 = vmatpush1.msra.mxu0 %v81
  %4277 = vmatprep.subr.mxu0 %v74
  %4278 = vmatpush1.msra.mxu0 %v73
  %4279 = vmatprep.subr.mxu0 %v66
  %4280 = vmatpush1.msra.mxu0 %v65
  %4281 = vmatprep.subr.mxu0 %v58
  %4282 = vmatpush1.msra.mxu0 %v57
  %4283 = vmatprep.subr.mxu0 %v306
  %4284 = vmatpush2.msra.mxu0 %v305
  %4285 = vmatprep.subr.mxu0 %v298
  %4286 = vmatpush2.msra.mxu0 %v297
  %4287 = vmatprep.subr.mxu0 %v290
  %4288 = vmatpush2.msra.mxu0 %v289
  %4289 = vmatprep.subr.mxu0 %v282
  %4290 = vmatpush2.msra.mxu0 %v281
  %4291 = vmatprep.subr.mxu0 %v274
  %4292 = vmatpush2.msra.mxu0 %v273
  %4293 = vmatprep.subr.mxu0 %v266
  %4294 = vmatpush2.msra.mxu0 %v265
  %4295 = vmatprep.subr.mxu0 %v258
  %4296 = vmatpush2.msra.mxu0 %v257
  %4297 = vmatprep.subr.mxu0 %v250
  %4298 = vmatpush2.msra.mxu0 %v249
  %4299 = vmatprep.subr.mxu0 %v242
  %4300 = vmatpush2.msra.mxu0 %v241
  %4301 = vmatprep.subr.mxu0 %v234
  %4302 = vmatpush2.msra.mxu0 %v233
  %4303 = vmatprep.subr.mxu0 %v226
  %4304 = vmatpush2.msra.mxu0 %v225
  %4305 = vmatprep.subr.mxu0 %v218
  %4306 = vmatpush2.msra.mxu0 %v217
  %4307 = vmatprep.subr.mxu0 %v210
  %4308 = vmatpush2.msra.mxu0 %v209
  %4309 = vmatprep.subr.mxu0 %v202
  %4310 = vmatpush2.msra.mxu0 %v201
  %4311 = vmatprep.subr.mxu0 %v194
  %4312 = vmatpush2.msra.mxu0 %v193
  %4313 = vmatprep.subr.mxu0 %v186
  %4314 = vmatpush2.msra.mxu0 %v185
  %4315 = vmatprep.mubr.f32.mxu0 %v4106
  %4316 = vmatmul.mubr.f32.gmra.mxu0 %v4099
  %v4317 = vpop.f32.mrf.mxu0
  %v4318 = vadd.f32 0.0, %v4317
  %v4319 = vpop.f32.mrf.mxu0
  %v4320 = vadd.f32 0.0, %v4319
  %4321 = vdwg.mxu0
  %4322 = vmatprep.subr.mxu0 %v180
  %4323 = vmatpush1.msra.mxu0 %v179
  %4324 = vmatprep.subr.mxu0 %v172
  %4325 = vmatpush1.msra.mxu0 %v171
  %4326 = vmatprep.subr.mxu0 %v164
  %4327 = vmatpush1.msra.mxu0 %v163
  %4328 = vmatprep.subr.mxu0 %v156
  %4329 = vmatpush1.msra.mxu0 %v155
  %4330 = vmatprep.subr.mxu0 %v148
  %4331 = vmatpush1.msra.mxu0 %v147
  %4332 = vmatprep.subr.mxu0 %v140
  %4333 = vmatpush1.msra.mxu0 %v139
  %4334 = vmatprep.subr.mxu0 %v132
  %4335 = vmatpush1.msra.mxu0 %v131
  %4336 = vmatprep.subr.mxu0 %v124
  %4337 = vmatpush1.msra.mxu0 %v123
  %4338 = vmatprep.subr.mxu0 %v116
  %4339 = vmatpush1.msra.mxu0 %v115
  %4340 = vmatprep.subr.mxu0 %v108
  %4341 = vmatpush1.msra.mxu0 %v107
  %4342 = vmatprep.subr.mxu0 %v100
  %4343 = vmatpush1.msra.mxu0 %v99
  %4344 = vmatprep.subr.mxu0 %v92
  %4345 = vmatpush1.msra.mxu0 %v91
  %4346 = vmatprep.subr.mxu0 %v84
  %4347 = vmatpush1.msra.mxu0 %v83
  %4348 = vmatprep.subr.mxu0 %v76
  %4349 = vmatpush1.msra.mxu0 %v75
  %4350 = vmatprep.subr.mxu0 %v68
  %4351 = vmatpush1.msra.mxu0 %v67
  %4352 = vmatprep.subr.mxu0 %v60
  %4353 = vmatpush1.msra.mxu0 %v59
  %4354 = vmatprep.subr.mxu0 %v308
  %4355 = vmatpush2.msra.mxu0 %v307
  %4356 = vmatprep.subr.mxu0 %v300
  %4357 = vmatpush2.msra.mxu0 %v299
  %4358 = vmatprep.subr.mxu0 %v292
  %4359 = vmatpush2.msra.mxu0 %v291
  %4360 = vmatprep.subr.mxu0 %v284
  %4361 = vmatpush2.msra.mxu0 %v283
  %4362 = vmatprep.subr.mxu0 %v276
  %4363 = vmatpush2.msra.mxu0 %v275
  %4364 = vmatprep.subr.mxu0 %v268
  %4365 = vmatpush2.msra.mxu0 %v267
  %4366 = vmatprep.subr.mxu0 %v260
  %4367 = vmatpush2.msra.mxu0 %v259
  %4368 = vmatprep.subr.mxu0 %v252
  %4369 = vmatpush2.msra.mxu0 %v251
  %4370 = vmatprep.subr.mxu0 %v244
  %4371 = vmatpush2.msra.mxu0 %v243
  %4372 = vmatprep.subr.mxu0 %v236
  %4373 = vmatpush2.msra.mxu0 %v235
  %4374 = vmatprep.subr.mxu0 %v228
  %4375 = vmatpush2.msra.mxu0 %v227
  %4376 = vmatprep.subr.mxu0 %v220
  %4377 = vmatpush2.msra.mxu0 %v219
  %4378 = vmatprep.subr.mxu0 %v212
  %4379 = vmatpush2.msra.mxu0 %v211
  %4380 = vmatprep.subr.mxu0 %v204
  %4381 = vmatpush2.msra.mxu0 %v203
  %4382 = vmatprep.subr.mxu0 %v196
  %4383 = vmatpush2.msra.mxu0 %v195
  %4384 = vmatprep.subr.mxu0 %v188
  %4385 = vmatpush2.msra.mxu0 %v187
  %4386 = vmatprep.mubr.f32.mxu0 %v4106
  %4387 = vmatmul.mubr.f32.gmra.mxu0 %v4099
  %v4388 = vpop.f32.mrf.mxu0
  %v4389 = vadd.f32 0.0, %v4388
  %v4390 = vpop.f32.mrf.mxu0
  %v4391 = vadd.f32 0.0, %v4390
  %4392 = vdwg.mxu0
  %v4401 = vcombine.low %v4176, %v4178
  %v4402 = vcombine.low %v4247, %v4249
  %v4403 = vcombine.low %v4318, %v4320
  %v4404 = vcombine.low %v4389, %v4391
  %v4406 = vunpack.c.l.s4 1966171168
  %v4407 = vunpack.c.0.s8 %v4406
  %v4408 = vlaneseq
  %v4409 = vshrl.u32 %v4408, 7
  %v4410 = vsub.s32 %v4407, %v4409
  %v4411 = vrot.slane %v4401, %v4410
  %v4413 = vunpack.c.l.s4 1966171168
  %v4414 = vunpack.c.0.s8 %v4413
  %v4415 = vlaneseq
  %v4416 = vshrl.u32 %v4415, 7
  %v4417 = vsub.s32 %v4414, %v4416
  %v4418 = vrot.slane %v4402, %v4417
  %v4420 = vunpack.c.l.s4 1966171168
  %v4421 = vunpack.c.0.s8 %v4420
  %v4422 = vlaneseq
  %v4423 = vshrl.u32 %v4422, 7
  %v4424 = vsub.s32 %v4421, %v4423
  %v4425 = vrot.slane %v4403, %v4424
  %v4427 = vunpack.c.l.s4 1966171168
  %v4428 = vunpack.c.0.s8 %v4427
  %v4429 = vlaneseq
  %v4430 = vshrl.u32 %v4429, 7
  %v4431 = vsub.s32 %v4428, %v4430
  %v4432 = vrot.slane %v4404, %v4431
  %v4433 = vcombine.low %v4411, %v4418
  %v4434 = vcombine.high %v4411, %v4418
  %v4435 = vcombine.low %v4425, %v4432
  %v4436 = vcombine.high %v4425, %v4432
  %v4438 = vunpack.c.l.s4 1966171168
  %v4439 = vunpack.c.0.s8 %v4438
  %v4440 = vlaneseq
  %v4441 = vshrl.u32 %v4440, 7
  %v4442 = vsub.s32 %v4439, %v4441
  %v4443 = vrot.slane %v4433, %v4442
  %v4445 = vunpack.c.l.s4 1966171168
  %v4446 = vunpack.c.0.s8 %v4445
  %v4447 = vlaneseq
  %v4448 = vshrl.u32 %v4447, 7
  %v4449 = vsub.s32 %v4446, %v4448
  %v4450 = vrot.slane %v4434, %v4449
  %v4452 = vunpack.c.l.s4 1966171168
  %v4453 = vunpack.c.0.s8 %v4452
  %v4454 = vlaneseq
  %v4455 = vshrl.u32 %v4454, 7
  %v4456 = vsub.s32 %v4453, %v4455
  %v4457 = vrot.slane %v4435, %v4456
  %v4459 = vunpack.c.l.s4 1966171168
  %v4460 = vunpack.c.0.s8 %v4459
  %v4461 = vlaneseq
  %v4462 = vshrl.u32 %v4461, 7
  %v4463 = vsub.s32 %v4460, %v4462
  %v4464 = vrot.slane %v4436, %v4463
  %v4465 = vcombine.low %v4443, %v4457
  %v4466 = vcombine.low %v4450, %v4464
  %v4469 = vadd.f32 %v4077, %v4465
  %v4470 = vadd.f32 %v4081, %v4466
  %v4471 = vxor.u32 %v4469, 2147483648
  %v4472 = vxor.u32 %v4470, 2147483648
  %v4473 = vmul.f32 %v4471, 1.442695
  %v4474 = vpow.pop %v4473
  %v4475 = vmul.f32 %v4472, 1.442695
  %v4476 = vpow.pop %v4475
  %v4477 = vadd.f32 %v4474, 1.0
  %v4478 = vadd.f32 %v4476, 1.0
  %v4479 = vrcp.pop %v4477
  %v4480 = vmul.f32 1.0, %v4479
  %v4481 = vrcp.pop %v4478
  %v4482 = vmul.f32 1.0, %v4481
  %v4485 = vrot.slane %v4469, 2
  %v4486 = vrot.slane %v4470, 2
  %v4489 = vxor.u32 %v4485, 2147483648
  %v4490 = vxor.u32 %v4486, 2147483648
  %v4491 = vmul.f32 %v4489, 1.442695
  %v4492 = vpow.pop %v4491
  %v4493 = vmul.f32 %v4490, 1.442695
  %v4494 = vpow.pop %v4493
  %v4495 = vadd.f32 %v4492, 1.0
  %v4496 = vadd.f32 %v4494, 1.0
  %v4497 = vrcp.pop %v4495
  %v4498 = vmul.f32 1.0, %v4497
  %v4499 = vrcp.pop %v4496
  %v4500 = vmul.f32 1.0, %v4499
  %v4501 = vrot.slane %v4469, 4
  %v4502 = vrot.slane %v4470, 4
  %v4505 = vtanh.pop %v4501
  %v4506 = vtanh.pop %v4502
  %v4507 = vrot.slane %v4469, 6
  %v4508 = vrot.slane %v4470, 6
  %v4511 = vxor.u32 %v4507, 2147483648
  %v4512 = vxor.u32 %v4508, 2147483648
  %v4513 = vmul.f32 %v4511, 1.442695
  %v4514 = vpow.pop %v4513
  %v4515 = vmul.f32 %v4512, 1.442695
  %v4516 = vpow.pop %v4515
  %v4517 = vadd.f32 %v4514, 1.0
  %v4518 = vadd.f32 %v4516, 1.0
  %v4519 = vrcp.pop %v4517
  %v4520 = vmul.f32 1.0, %v4519
  %v4521 = vrcp.pop %v4518
  %v4522 = vmul.f32 1.0, %v4521
  %v4523 = vmul.f32 %v4498, %v4062
  %v4524 = vmul.f32 %v4500, %v4063
  %v4525 = vmul.f32 %v4480, %v4505
  %v4526 = vmul.f32 %v4482, %v4506
  %v4527 = vadd.f32 %v4523, %v4525
  %v4528 = vadd.f32 %v4524, %v4526
  %v4529 = vtanh.pop %v4527
  %v4530 = vtanh.pop %v4528
  %v4531 = vmul.f32 %v4520, %v4529
  %v4532 = vmul.f32 %v4522, %v4530
  %s4533 = scalar_lea.vmem [#allocation3], 7
  %4534 = vst.msk [vmem:[%s4533] ss:$8 sm:$0x3] %vm1278, %v4531
  %4535 = vst.msk [vmem:[%s4533] ss:$8 sm:$0x0] %vm1278, %v4531
  %s4536 = scalar_lea.vmem [#allocation3], 23
  %4537 = vst.msk [vmem:[%s4536] ss:$8 sm:$0x3] %vm1278, %v4532
  %4538 = vst.msk [vmem:[%s4536] ss:$8 sm:$0x0] %vm1278, %v4532
  %v4539 = vld [vmem:[#allocation3] sm:$0xff]
  %v4540 = vld [vmem:[#allocation3 + $0x8] sm:$0xff]
  %v4542 = vlaneseq
  %v4543 = vshrl.u32 %v4542, 7
  %v4544 = vsub.s32 0, %v4543
  %v4545 = vrot.slane %v821, %v4544
  %v4546 = vlaneseq
  %v4547 = vshrl.u32 %v4546, 7
  %v4548 = vsub.s32 1, %v4547
  %v4549 = vrot.slane %v821, %v4548
  %v4550 = vlaneseq
  %v4551 = vshrl.u32 %v4550, 7
  %v4552 = vsub.s32 2, %v4551
  %v4553 = vrot.slane %v821, %v4552
  %v4554 = vlaneseq
  %v4555 = vshrl.u32 %v4554, 7
  %v4556 = vsub.s32 3, %v4555
  %v4557 = vrot.slane %v821, %v4556
  %v4558 = vlaneseq
  %v4559 = vshrl.u32 %v4558, 7
  %v4560 = vsub.s32 4, %v4559
  %v4561 = vrot.slane %v821, %v4560
  %v4562 = vlaneseq
  %v4563 = vshrl.u32 %v4562, 7
  %v4564 = vsub.s32 5, %v4563
  %v4565 = vrot.slane %v821, %v4564
  %v4566 = vlaneseq
  %v4567 = vshrl.u32 %v4566, 7
  %v4568 = vsub.s32 6, %v4567
  %v4569 = vrot.slane %v821, %v4568
  %v4570 = vlaneseq
  %v4571 = vshrl.u32 %v4570, 7
  %v4572 = vsub.s32 7, %v4571
  %v4573 = vrot.slane %v821, %v4572
  %4582 = vmatprep.subr.mxu0 %v686
  %4583 = vmatpush1.msra.mxu0 %v685
  %4584 = vmatprep.subr.mxu0 %v678
  %4585 = vmatpush1.msra.mxu0 %v677
  %4586 = vmatprep.subr.mxu0 %v670
  %4587 = vmatpush1.msra.mxu0 %v669
  %4588 = vmatprep.subr.mxu0 %v662
  %4589 = vmatpush1.msra.mxu0 %v661
  %4590 = vmatprep.subr.mxu0 %v654
  %4591 = vmatpush1.msra.mxu0 %v653
  %4592 = vmatprep.subr.mxu0 %v646
  %4593 = vmatpush1.msra.mxu0 %v645
  %4594 = vmatprep.subr.mxu0 %v638
  %4595 = vmatpush1.msra.mxu0 %v637
  %4596 = vmatprep.subr.mxu0 %v630
  %4597 = vmatpush1.msra.mxu0 %v629
  %4598 = vmatprep.subr.mxu0 %v622
  %4599 = vmatpush1.msra.mxu0 %v621
  %4600 = vmatprep.subr.mxu0 %v614
  %4601 = vmatpush1.msra.mxu0 %v613
  %4602 = vmatprep.subr.mxu0 %v606
  %4603 = vmatpush1.msra.mxu0 %v605
  %4604 = vmatprep.subr.mxu0 %v598
  %4605 = vmatpush1.msra.mxu0 %v597
  %4606 = vmatprep.subr.mxu0 %v590
  %4607 = vmatpush1.msra.mxu0 %v589
  %4608 = vmatprep.subr.mxu0 %v582
  %4609 = vmatpush1.msra.mxu0 %v581
  %4610 = vmatprep.subr.mxu0 %v574
  %4611 = vmatpush1.msra.mxu0 %v573
  %4612 = vmatprep.subr.mxu0 %v566
  %4613 = vmatpush1.msra.mxu0 %v565
  %4614 = vmatprep.subr.mxu0 %v814
  %4615 = vmatpush2.msra.mxu0 %v813
  %4616 = vmatprep.subr.mxu0 %v806
  %4617 = vmatpush2.msra.mxu0 %v805
  %4618 = vmatprep.subr.mxu0 %v798
  %4619 = vmatpush2.msra.mxu0 %v797
  %4620 = vmatprep.subr.mxu0 %v790
  %4621 = vmatpush2.msra.mxu0 %v789
  %4622 = vmatprep.subr.mxu0 %v782
  %4623 = vmatpush2.msra.mxu0 %v781
  %4624 = vmatprep.subr.mxu0 %v774
  %4625 = vmatpush2.msra.mxu0 %v773
  %4626 = vmatprep.subr.mxu0 %v766
  %4627 = vmatpush2.msra.mxu0 %v765
  %4628 = vmatprep.subr.mxu0 %v758
  %4629 = vmatpush2.msra.mxu0 %v757
  %4630 = vmatprep.subr.mxu0 %v750
  %4631 = vmatpush2.msra.mxu0 %v749
  %4632 = vmatprep.subr.mxu0 %v742
  %4633 = vmatpush2.msra.mxu0 %v741
  %4634 = vmatprep.subr.mxu0 %v734
  %4635 = vmatpush2.msra.mxu0 %v733
  %4636 = vmatprep.subr.mxu0 %v726
  %4637 = vmatpush2.msra.mxu0 %v725
  %4638 = vmatprep.subr.mxu0 %v718
  %4639 = vmatpush2.msra.mxu0 %v717
  %4640 = vmatprep.subr.mxu0 %v710
  %4641 = vmatpush2.msra.mxu0 %v709
  %4642 = vmatprep.subr.mxu0 %v702
  %4643 = vmatpush2.msra.mxu0 %v701
  %4644 = vmatprep.subr.mxu0 %v694
  %4645 = vmatpush2.msra.mxu0 %v693
  %4646 = vmatprep.mubr.f32.mxu0 %v4540
  %4647 = vmatmul.mubr.f32.gmra.mxu0 %v4539
  %v4648 = vpop.f32.mrf.mxu0
  %v4649 = vadd.f32 %v4545, %v4648
  %v4650 = vpop.f32.mrf.mxu0
  %v4651 = vadd.f32 %v4549, %v4650
  %4652 = vdwg.mxu0
  %4653 = vmatprep.subr.mxu0 %v688
  %4654 = vmatpush1.msra.mxu0 %v687
  %4655 = vmatprep.subr.mxu0 %v680
  %4656 = vmatpush1.msra.mxu0 %v679
  %4657 = vmatprep.subr.mxu0 %v672
  %4658 = vmatpush1.msra.mxu0 %v671
  %4659 = vmatprep.subr.mxu0 %v664
  %4660 = vmatpush1.msra.mxu0 %v663
  %4661 = vmatprep.subr.mxu0 %v656
  %4662 = vmatpush1.msra.mxu0 %v655
  %4663 = vmatprep.subr.mxu0 %v648
  %4664 = vmatpush1.msra.mxu0 %v647
  %4665 = vmatprep.subr.mxu0 %v640
  %4666 = vmatpush1.msra.mxu0 %v639
  %4667 = vmatprep.subr.mxu0 %v632
  %4668 = vmatpush1.msra.mxu0 %v631
  %4669 = vmatprep.subr.mxu0 %v624
  %4670 = vmatpush1.msra.mxu0 %v623
  %4671 = vmatprep.subr.mxu0 %v616
  %4672 = vmatpush1.msra.mxu0 %v615
  %4673 = vmatprep.subr.mxu0 %v608
  %4674 = vmatpush1.msra.mxu0 %v607
  %4675 = vmatprep.subr.mxu0 %v600
  %4676 = vmatpush1.msra.mxu0 %v599
  %4677 = vmatprep.subr.mxu0 %v592
  %4678 = vmatpush1.msra.mxu0 %v591
  %4679 = vmatprep.subr.mxu0 %v584
  %4680 = vmatpush1.msra.mxu0 %v583
  %4681 = vmatprep.subr.mxu0 %v576
  %4682 = vmatpush1.msra.mxu0 %v575
  %4683 = vmatprep.subr.mxu0 %v568
  %4684 = vmatpush1.msra.mxu0 %v567
  %4685 = vmatprep.subr.mxu0 %v816
  %4686 = vmatpush2.msra.mxu0 %v815
  %4687 = vmatprep.subr.mxu0 %v808
  %4688 = vmatpush2.msra.mxu0 %v807
  %4689 = vmatprep.subr.mxu0 %v800
  %4690 = vmatpush2.msra.mxu0 %v799
  %4691 = vmatprep.subr.mxu0 %v792
  %4692 = vmatpush2.msra.mxu0 %v791
  %4693 = vmatprep.subr.mxu0 %v784
  %4694 = vmatpush2.msra.mxu0 %v783
  %4695 = vmatprep.subr.mxu0 %v776
  %4696 = vmatpush2.msra.mxu0 %v775
  %4697 = vmatprep.subr.mxu0 %v768
  %4698 = vmatpush2.msra.mxu0 %v767
  %4699 = vmatprep.subr.mxu0 %v760
  %4700 = vmatpush2.msra.mxu0 %v759
  %4701 = vmatprep.subr.mxu0 %v752
  %4702 = vmatpush2.msra.mxu0 %v751
  %4703 = vmatprep.subr.mxu0 %v744
  %4704 = vmatpush2.msra.mxu0 %v743
  %4705 = vmatprep.subr.mxu0 %v736
  %4706 = vmatpush2.msra.mxu0 %v735
  %4707 = vmatprep.subr.mxu0 %v728
  %4708 = vmatpush2.msra.mxu0 %v727
  %4709 = vmatprep.subr.mxu0 %v720
  %4710 = vmatpush2.msra.mxu0 %v719
  %4711 = vmatprep.subr.mxu0 %v712
  %4712 = vmatpush2.msra.mxu0 %v711
  %4713 = vmatprep.subr.mxu0 %v704
  %4714 = vmatpush2.msra.mxu0 %v703
  %4715 = vmatprep.subr.mxu0 %v696
  %4716 = vmatpush2.msra.mxu0 %v695
  %4717 = vmatprep.mubr.f32.mxu0 %v4540
  %4718 = vmatmul.mubr.f32.gmra.mxu0 %v4539
  %v4719 = vpop.f32.mrf.mxu0
  %v4720 = vadd.f32 %v4553, %v4719
  %v4721 = vpop.f32.mrf.mxu0
  %v4722 = vadd.f32 %v4557, %v4721
  %4723 = vdwg.mxu0
  %4724 = vmatprep.subr.mxu0 %v690
  %4725 = vmatpush1.msra.mxu0 %v689
  %4726 = vmatprep.subr.mxu0 %v682
  %4727 = vmatpush1.msra.mxu0 %v681
  %4728 = vmatprep.subr.mxu0 %v674
  %4729 = vmatpush1.msra.mxu0 %v673
  %4730 = vmatprep.subr.mxu0 %v666
  %4731 = vmatpush1.msra.mxu0 %v665
  %4732 = vmatprep.subr.mxu0 %v658
  %4733 = vmatpush1.msra.mxu0 %v657
  %4734 = vmatprep.subr.mxu0 %v650
  %4735 = vmatpush1.msra.mxu0 %v649
  %4736 = vmatprep.subr.mxu0 %v642
  %4737 = vmatpush1.msra.mxu0 %v641
  %4738 = vmatprep.subr.mxu0 %v634
  %4739 = vmatpush1.msra.mxu0 %v633
  %4740 = vmatprep.subr.mxu0 %v626
  %4741 = vmatpush1.msra.mxu0 %v625
  %4742 = vmatprep.subr.mxu0 %v618
  %4743 = vmatpush1.msra.mxu0 %v617
  %4744 = vmatprep.subr.mxu0 %v610
  %4745 = vmatpush1.msra.mxu0 %v609
  %4746 = vmatprep.subr.mxu0 %v602
  %4747 = vmatpush1.msra.mxu0 %v601
  %4748 = vmatprep.subr.mxu0 %v594
  %4749 = vmatpush1.msra.mxu0 %v593
  %4750 = vmatprep.subr.mxu0 %v586
  %4751 = vmatpush1.msra.mxu0 %v585
  %4752 = vmatprep.subr.mxu0 %v578
  %4753 = vmatpush1.msra.mxu0 %v577
  %4754 = vmatprep.subr.mxu0 %v570
  %4755 = vmatpush1.msra.mxu0 %v569
  %4756 = vmatprep.subr.mxu0 %v818
  %4757 = vmatpush2.msra.mxu0 %v817
  %4758 = vmatprep.subr.mxu0 %v810
  %4759 = vmatpush2.msra.mxu0 %v809
  %4760 = vmatprep.subr.mxu0 %v802
  %4761 = vmatpush2.msra.mxu0 %v801
  %4762 = vmatprep.subr.mxu0 %v794
  %4763 = vmatpush2.msra.mxu0 %v793
  %4764 = vmatprep.subr.mxu0 %v786
  %4765 = vmatpush2.msra.mxu0 %v785
  %4766 = vmatprep.subr.mxu0 %v778
  %4767 = vmatpush2.msra.mxu0 %v777
  %4768 = vmatprep.subr.mxu0 %v770
  %4769 = vmatpush2.msra.mxu0 %v769
  %4770 = vmatprep.subr.mxu0 %v762
  %4771 = vmatpush2.msra.mxu0 %v761
  %4772 = vmatprep.subr.mxu0 %v754
  %4773 = vmatpush2.msra.mxu0 %v753
  %4774 = vmatprep.subr.mxu0 %v746
  %4775 = vmatpush2.msra.mxu0 %v745
  %4776 = vmatprep.subr.mxu0 %v738
  %4777 = vmatpush2.msra.mxu0 %v737
  %4778 = vmatprep.subr.mxu0 %v730
  %4779 = vmatpush2.msra.mxu0 %v729
  %4780 = vmatprep.subr.mxu0 %v722
  %4781 = vmatpush2.msra.mxu0 %v721
  %4782 = vmatprep.subr.mxu0 %v714
  %4783 = vmatpush2.msra.mxu0 %v713
  %4784 = vmatprep.subr.mxu0 %v706
  %4785 = vmatpush2.msra.mxu0 %v705
  %4786 = vmatprep.subr.mxu0 %v698
  %4787 = vmatpush2.msra.mxu0 %v697
  %4788 = vmatprep.mubr.f32.mxu0 %v4540
  %4789 = vmatmul.mubr.f32.gmra.mxu0 %v4539
  %v4790 = vpop.f32.mrf.mxu0
  %v4791 = vadd.f32 %v4561, %v4790
  %v4792 = vpop.f32.mrf.mxu0
  %v4793 = vadd.f32 %v4565, %v4792
  %4794 = vdwg.mxu0
  %4795 = vmatprep.subr.mxu0 %v692
  %4796 = vmatpush1.msra.mxu0 %v691
  %4797 = vmatprep.subr.mxu0 %v684
  %4798 = vmatpush1.msra.mxu0 %v683
  %4799 = vmatprep.subr.mxu0 %v676
  %4800 = vmatpush1.msra.mxu0 %v675
  %4801 = vmatprep.subr.mxu0 %v668
  %4802 = vmatpush1.msra.mxu0 %v667
  %4803 = vmatprep.subr.mxu0 %v660
  %4804 = vmatpush1.msra.mxu0 %v659
  %4805 = vmatprep.subr.mxu0 %v652
  %4806 = vmatpush1.msra.mxu0 %v651
  %4807 = vmatprep.subr.mxu0 %v644
  %4808 = vmatpush1.msra.mxu0 %v643
  %4809 = vmatprep.subr.mxu0 %v636
  %4810 = vmatpush1.msra.mxu0 %v635
  %4811 = vmatprep.subr.mxu0 %v628
  %4812 = vmatpush1.msra.mxu0 %v627
  %4813 = vmatprep.subr.mxu0 %v620
  %4814 = vmatpush1.msra.mxu0 %v619
  %4815 = vmatprep.subr.mxu0 %v612
  %4816 = vmatpush1.msra.mxu0 %v611
  %4817 = vmatprep.subr.mxu0 %v604
  %4818 = vmatpush1.msra.mxu0 %v603
  %4819 = vmatprep.subr.mxu0 %v596
  %4820 = vmatpush1.msra.mxu0 %v595
  %4821 = vmatprep.subr.mxu0 %v588
  %4822 = vmatpush1.msra.mxu0 %v587
  %4823 = vmatprep.subr.mxu0 %v580
  %4824 = vmatpush1.msra.mxu0 %v579
  %4825 = vmatprep.subr.mxu0 %v572
  %4826 = vmatpush1.msra.mxu0 %v571
  %4827 = vmatprep.subr.mxu0 %v820
  %4828 = vmatpush2.msra.mxu0 %v819
  %4829 = vmatprep.subr.mxu0 %v812
  %4830 = vmatpush2.msra.mxu0 %v811
  %4831 = vmatprep.subr.mxu0 %v804
  %4832 = vmatpush2.msra.mxu0 %v803
  %4833 = vmatprep.subr.mxu0 %v796
  %4834 = vmatpush2.msra.mxu0 %v795
  %4835 = vmatprep.subr.mxu0 %v788
  %4836 = vmatpush2.msra.mxu0 %v787
  %4837 = vmatprep.subr.mxu0 %v780
  %4838 = vmatpush2.msra.mxu0 %v779
  %4839 = vmatprep.subr.mxu0 %v772
  %4840 = vmatpush2.msra.mxu0 %v771
  %4841 = vmatprep.subr.mxu0 %v764
  %4842 = vmatpush2.msra.mxu0 %v763
  %4843 = vmatprep.subr.mxu0 %v756
  %4844 = vmatpush2.msra.mxu0 %v755
  %4845 = vmatprep.subr.mxu0 %v748
  %4846 = vmatpush2.msra.mxu0 %v747
  %4847 = vmatprep.subr.mxu0 %v740
  %4848 = vmatpush2.msra.mxu0 %v739
  %4849 = vmatprep.subr.mxu0 %v732
  %4850 = vmatpush2.msra.mxu0 %v731
  %4851 = vmatprep.subr.mxu0 %v724
  %4852 = vmatpush2.msra.mxu0 %v723
  %4853 = vmatprep.subr.mxu0 %v716
  %4854 = vmatpush2.msra.mxu0 %v715
  %4855 = vmatprep.subr.mxu0 %v708
  %4856 = vmatpush2.msra.mxu0 %v707
  %4857 = vmatprep.subr.mxu0 %v700
  %4858 = vmatpush2.msra.mxu0 %v699
  %4859 = vmatprep.mubr.f32.mxu0 %v4540
  %4860 = vmatmul.mubr.f32.gmra.mxu0 %v4539
  %v4861 = vpop.f32.mrf.mxu0
  %v4862 = vadd.f32 %v4569, %v4861
  %v4863 = vpop.f32.mrf.mxu0
  %v4864 = vadd.f32 %v4573, %v4863
  %4865 = vdwg.mxu0
  %4866 = vst [vmem:[#allocation4] sm:$0xff] %v4649
  %4867 = vst [vmem:[#allocation4 + $0x8] sm:$0xff] %v4651
  %4868 = vst [vmem:[#allocation4 + $0x10] sm:$0xff] %v4720
  %4869 = vst [vmem:[#allocation4 + $0x18] sm:$0xff] %v4722
  %4870 = vst [vmem:[#allocation4 + $0x20] sm:$0xff] %v4791
  %4871 = vst [vmem:[#allocation4 + $0x28] sm:$0xff] %v4793
  %4872 = vst [vmem:[#allocation4 + $0x30] sm:$0xff] %v4862
  %4873 = vst [vmem:[#allocation4 + $0x38] sm:$0xff] %v4864
  %s4874 = scalar_lea.vmem [#allocation3], 16
  %v4875 = vld [vmem:[%s4874] sm:$0xff]
  %v4876 = vld [vmem:[%s4874 + $0x8] sm:$0xff]
  %4877 = vmatprep.subr.mxu0 %v686
  %4878 = vmatpush1.msra.mxu0 %v685
  %4879 = vmatprep.subr.mxu0 %v678
  %4880 = vmatpush1.msra.mxu0 %v677
  %4881 = vmatprep.subr.mxu0 %v670
  %4882 = vmatpush1.msra.mxu0 %v669
  %4883 = vmatprep.subr.mxu0 %v662
  %4884 = vmatpush1.msra.mxu0 %v661
  %4885 = vmatprep.subr.mxu0 %v654
  %4886 = vmatpush1.msra.mxu0 %v653
  %4887 = vmatprep.subr.mxu0 %v646
  %4888 = vmatpush1.msra.mxu0 %v645
  %4889 = vmatprep.subr.mxu0 %v638
  %4890 = vmatpush1.msra.mxu0 %v637
  %4891 = vmatprep.subr.mxu0 %v630
  %4892 = vmatpush1.msra.mxu0 %v629
  %4893 = vmatprep.subr.mxu0 %v622
  %4894 = vmatpush1.msra.mxu0 %v621
  %4895 = vmatprep.subr.mxu0 %v614
  %4896 = vmatpush1.msra.mxu0 %v613
  %4897 = vmatprep.subr.mxu0 %v606
  %4898 = vmatpush1.msra.mxu0 %v605
  %4899 = vmatprep.subr.mxu0 %v598
  %4900 = vmatpush1.msra.mxu0 %v597
  %4901 = vmatprep.subr.mxu0 %v590
  %4902 = vmatpush1.msra.mxu0 %v589
  %4903 = vmatprep.subr.mxu0 %v582
  %4904 = vmatpush1.msra.mxu0 %v581
  %4905 = vmatprep.subr.mxu0 %v574
  %4906 = vmatpush1.msra.mxu0 %v573
  %4907 = vmatprep.subr.mxu0 %v566
  %4908 = vmatpush1.msra.mxu0 %v565
  %4909 = vmatprep.subr.mxu0 %v814
  %4910 = vmatpush2.msra.mxu0 %v813
  %4911 = vmatprep.subr.mxu0 %v806
  %4912 = vmatpush2.msra.mxu0 %v805
  %4913 = vmatprep.subr.mxu0 %v798
  %4914 = vmatpush2.msra.mxu0 %v797
  %4915 = vmatprep.subr.mxu0 %v790
  %4916 = vmatpush2.msra.mxu0 %v789
  %4917 = vmatprep.subr.mxu0 %v782
  %4918 = vmatpush2.msra.mxu0 %v781
  %4919 = vmatprep.subr.mxu0 %v774
  %4920 = vmatpush2.msra.mxu0 %v773
  %4921 = vmatprep.subr.mxu0 %v766
  %4922 = vmatpush2.msra.mxu0 %v765
  %4923 = vmatprep.subr.mxu0 %v758
  %4924 = vmatpush2.msra.mxu0 %v757
  %4925 = vmatprep.subr.mxu0 %v750
  %4926 = vmatpush2.msra.mxu0 %v749
  %4927 = vmatprep.subr.mxu0 %v742
  %4928 = vmatpush2.msra.mxu0 %v741
  %4929 = vmatprep.subr.mxu0 %v734
  %4930 = vmatpush2.msra.mxu0 %v733
  %4931 = vmatprep.subr.mxu0 %v726
  %4932 = vmatpush2.msra.mxu0 %v725
  %4933 = vmatprep.subr.mxu0 %v718
  %4934 = vmatpush2.msra.mxu0 %v717
  %4935 = vmatprep.subr.mxu0 %v710
  %4936 = vmatpush2.msra.mxu0 %v709
  %4937 = vmatprep.subr.mxu0 %v702
  %4938 = vmatpush2.msra.mxu0 %v701
  %4939 = vmatprep.subr.mxu0 %v694
  %4940 = vmatpush2.msra.mxu0 %v693
  %4941 = vmatprep.mubr.f32.mxu0 %v4876
  %4942 = vmatmul.mubr.f32.gmra.mxu0 %v4875
  %v4943 = vpop.f32.mrf.mxu0
  %v4944 = vadd.f32 %v4545, %v4943
  %v4945 = vpop.f32.mrf.mxu0
  %v4946 = vadd.f32 %v4549, %v4945
  %4947 = vdwg.mxu0
  %4948 = vmatprep.subr.mxu0 %v688
  %4949 = vmatpush1.msra.mxu0 %v687
  %4950 = vmatprep.subr.mxu0 %v680
  %4951 = vmatpush1.msra.mxu0 %v679
  %4952 = vmatprep.subr.mxu0 %v672
  %4953 = vmatpush1.msra.mxu0 %v671
  %4954 = vmatprep.subr.mxu0 %v664
  %4955 = vmatpush1.msra.mxu0 %v663
  %4956 = vmatprep.subr.mxu0 %v656
  %4957 = vmatpush1.msra.mxu0 %v655
  %4958 = vmatprep.subr.mxu0 %v648
  %4959 = vmatpush1.msra.mxu0 %v647
  %4960 = vmatprep.subr.mxu0 %v640
  %4961 = vmatpush1.msra.mxu0 %v639
  %4962 = vmatprep.subr.mxu0 %v632
  %4963 = vmatpush1.msra.mxu0 %v631
  %4964 = vmatprep.subr.mxu0 %v624
  %4965 = vmatpush1.msra.mxu0 %v623
  %4966 = vmatprep.subr.mxu0 %v616
  %4967 = vmatpush1.msra.mxu0 %v615
  %4968 = vmatprep.subr.mxu0 %v608
  %4969 = vmatpush1.msra.mxu0 %v607
  %4970 = vmatprep.subr.mxu0 %v600
  %4971 = vmatpush1.msra.mxu0 %v599
  %4972 = vmatprep.subr.mxu0 %v592
  %4973 = vmatpush1.msra.mxu0 %v591
  %4974 = vmatprep.subr.mxu0 %v584
  %4975 = vmatpush1.msra.mxu0 %v583
  %4976 = vmatprep.subr.mxu0 %v576
  %4977 = vmatpush1.msra.mxu0 %v575
  %4978 = vmatprep.subr.mxu0 %v568
  %4979 = vmatpush1.msra.mxu0 %v567
  %4980 = vmatprep.subr.mxu0 %v816
  %4981 = vmatpush2.msra.mxu0 %v815
  %4982 = vmatprep.subr.mxu0 %v808
  %4983 = vmatpush2.msra.mxu0 %v807
  %4984 = vmatprep.subr.mxu0 %v800
  %4985 = vmatpush2.msra.mxu0 %v799
  %4986 = vmatprep.subr.mxu0 %v792
  %4987 = vmatpush2.msra.mxu0 %v791
  %4988 = vmatprep.subr.mxu0 %v784
  %4989 = vmatpush2.msra.mxu0 %v783
  %4990 = vmatprep.subr.mxu0 %v776
  %4991 = vmatpush2.msra.mxu0 %v775
  %4992 = vmatprep.subr.mxu0 %v768
  %4993 = vmatpush2.msra.mxu0 %v767
  %4994 = vmatprep.subr.mxu0 %v760
  %4995 = vmatpush2.msra.mxu0 %v759
  %4996 = vmatprep.subr.mxu0 %v752
  %4997 = vmatpush2.msra.mxu0 %v751
  %4998 = vmatprep.subr.mxu0 %v744
  %4999 = vmatpush2.msra.mxu0 %v743
  %5000 = vmatprep.subr.mxu0 %v736
  %5001 = vmatpush2.msra.mxu0 %v735
  %5002 = vmatprep.subr.mxu0 %v728
  %5003 = vmatpush2.msra.mxu0 %v727
  %5004 = vmatprep.subr.mxu0 %v720
  %5005 = vmatpush2.msra.mxu0 %v719
  %5006 = vmatprep.subr.mxu0 %v712
  %5007 = vmatpush2.msra.mxu0 %v711
  %5008 = vmatprep.subr.mxu0 %v704
  %5009 = vmatpush2.msra.mxu0 %v703
  %5010 = vmatprep.subr.mxu0 %v696
  %5011 = vmatpush2.msra.mxu0 %v695
  %5012 = vmatprep.mubr.f32.mxu0 %v4876
  %5013 = vmatmul.mubr.f32.gmra.mxu0 %v4875
  %v5014 = vpop.f32.mrf.mxu0
  %v5015 = vadd.f32 %v4553, %v5014
  %v5016 = vpop.f32.mrf.mxu0
  %v5017 = vadd.f32 %v4557, %v5016
  %5018 = vdwg.mxu0
  %5019 = vmatprep.subr.mxu0 %v690
  %5020 = vmatpush1.msra.mxu0 %v689
  %5021 = vmatprep.subr.mxu0 %v682
  %5022 = vmatpush1.msra.mxu0 %v681
  %5023 = vmatprep.subr.mxu0 %v674
  %5024 = vmatpush1.msra.mxu0 %v673
  %5025 = vmatprep.subr.mxu0 %v666
  %5026 = vmatpush1.msra.mxu0 %v665
  %5027 = vmatprep.subr.mxu0 %v658
  %5028 = vmatpush1.msra.mxu0 %v657
  %5029 = vmatprep.subr.mxu0 %v650
  %5030 = vmatpush1.msra.mxu0 %v649
  %5031 = vmatprep.subr.mxu0 %v642
  %5032 = vmatpush1.msra.mxu0 %v641
  %5033 = vmatprep.subr.mxu0 %v634
  %5034 = vmatpush1.msra.mxu0 %v633
  %5035 = vmatprep.subr.mxu0 %v626
  %5036 = vmatpush1.msra.mxu0 %v625
  %5037 = vmatprep.subr.mxu0 %v618
  %5038 = vmatpush1.msra.mxu0 %v617
  %5039 = vmatprep.subr.mxu0 %v610
  %5040 = vmatpush1.msra.mxu0 %v609
  %5041 = vmatprep.subr.mxu0 %v602
  %5042 = vmatpush1.msra.mxu0 %v601
  %5043 = vmatprep.subr.mxu0 %v594
  %5044 = vmatpush1.msra.mxu0 %v593
  %5045 = vmatprep.subr.mxu0 %v586
  %5046 = vmatpush1.msra.mxu0 %v585
  %5047 = vmatprep.subr.mxu0 %v578
  %5048 = vmatpush1.msra.mxu0 %v577
  %5049 = vmatprep.subr.mxu0 %v570
  %5050 = vmatpush1.msra.mxu0 %v569
  %5051 = vmatprep.subr.mxu0 %v818
  %5052 = vmatpush2.msra.mxu0 %v817
  %5053 = vmatprep.subr.mxu0 %v810
  %5054 = vmatpush2.msra.mxu0 %v809
  %5055 = vmatprep.subr.mxu0 %v802
  %5056 = vmatpush2.msra.mxu0 %v801
  %5057 = vmatprep.subr.mxu0 %v794
  %5058 = vmatpush2.msra.mxu0 %v793
  %5059 = vmatprep.subr.mxu0 %v786
  %5060 = vmatpush2.msra.mxu0 %v785
  %5061 = vmatprep.subr.mxu0 %v778
  %5062 = vmatpush2.msra.mxu0 %v777
  %5063 = vmatprep.subr.mxu0 %v770
  %5064 = vmatpush2.msra.mxu0 %v769
  %5065 = vmatprep.subr.mxu0 %v762
  %5066 = vmatpush2.msra.mxu0 %v761
  %5067 = vmatprep.subr.mxu0 %v754
  %5068 = vmatpush2.msra.mxu0 %v753
  %5069 = vmatprep.subr.mxu0 %v746
  %5070 = vmatpush2.msra.mxu0 %v745
  %5071 = vmatprep.subr.mxu0 %v738
  %5072 = vmatpush2.msra.mxu0 %v737
  %5073 = vmatprep.subr.mxu0 %v730
  %5074 = vmatpush2.msra.mxu0 %v729
  %5075 = vmatprep.subr.mxu0 %v722
  %5076 = vmatpush2.msra.mxu0 %v721
  %5077 = vmatprep.subr.mxu0 %v714
  %5078 = vmatpush2.msra.mxu0 %v713
  %5079 = vmatprep.subr.mxu0 %v706
  %5080 = vmatpush2.msra.mxu0 %v705
  %5081 = vmatprep.subr.mxu0 %v698
  %5082 = vmatpush2.msra.mxu0 %v697
  %5083 = vmatprep.mubr.f32.mxu0 %v4876
  %5084 = vmatmul.mubr.f32.gmra.mxu0 %v4875
  %v5085 = vpop.f32.mrf.mxu0
  %v5086 = vadd.f32 %v4561, %v5085
  %v5087 = vpop.f32.mrf.mxu0
  %v5088 = vadd.f32 %v4565, %v5087
  %5089 = vdwg.mxu0
  %5090 = vmatprep.subr.mxu0 %v692
  %5091 = vmatpush1.msra.mxu0 %v691
  %5092 = vmatprep.subr.mxu0 %v684
  %5093 = vmatpush1.msra.mxu0 %v683
  %5094 = vmatprep.subr.mxu0 %v676
  %5095 = vmatpush1.msra.mxu0 %v675
  %5096 = vmatprep.subr.mxu0 %v668
  %5097 = vmatpush1.msra.mxu0 %v667
  %5098 = vmatprep.subr.mxu0 %v660
  %5099 = vmatpush1.msra.mxu0 %v659
  %5100 = vmatprep.subr.mxu0 %v652
  %5101 = vmatpush1.msra.mxu0 %v651
  %5102 = vmatprep.subr.mxu0 %v644
  %5103 = vmatpush1.msra.mxu0 %v643
  %5104 = vmatprep.subr.mxu0 %v636
  %5105 = vmatpush1.msra.mxu0 %v635
  %5106 = vmatprep.subr.mxu0 %v628
  %5107 = vmatpush1.msra.mxu0 %v627
  %5108 = vmatprep.subr.mxu0 %v620
  %5109 = vmatpush1.msra.mxu0 %v619
  %5110 = vmatprep.subr.mxu0 %v612
  %5111 = vmatpush1.msra.mxu0 %v611
  %5112 = vmatprep.subr.mxu0 %v604
  %5113 = vmatpush1.msra.mxu0 %v603
  %5114 = vmatprep.subr.mxu0 %v596
  %5115 = vmatpush1.msra.mxu0 %v595
  %5116 = vmatprep.subr.mxu0 %v588
  %5117 = vmatpush1.msra.mxu0 %v587
  %5118 = vmatprep.subr.mxu0 %v580
  %5119 = vmatpush1.msra.mxu0 %v579
  %5120 = vmatprep.subr.mxu0 %v572
  %5121 = vmatpush1.msra.mxu0 %v571
  %5122 = vmatprep.subr.mxu0 %v820
  %5123 = vmatpush2.msra.mxu0 %v819
  %5124 = vmatprep.subr.mxu0 %v812
  %5125 = vmatpush2.msra.mxu0 %v811
  %5126 = vmatprep.subr.mxu0 %v804
  %5127 = vmatpush2.msra.mxu0 %v803
  %5128 = vmatprep.subr.mxu0 %v796
  %5129 = vmatpush2.msra.mxu0 %v795
  %5130 = vmatprep.subr.mxu0 %v788
  %5131 = vmatpush2.msra.mxu0 %v787
  %5132 = vmatprep.subr.mxu0 %v780
  %5133 = vmatpush2.msra.mxu0 %v779
  %5134 = vmatprep.subr.mxu0 %v772
  %5135 = vmatpush2.msra.mxu0 %v771
  %5136 = vmatprep.subr.mxu0 %v764
  %5137 = vmatpush2.msra.mxu0 %v763
  %5138 = vmatprep.subr.mxu0 %v756
  %5139 = vmatpush2.msra.mxu0 %v755
  %5140 = vmatprep.subr.mxu0 %v748
  %5141 = vmatpush2.msra.mxu0 %v747
  %5142 = vmatprep.subr.mxu0 %v740
  %5143 = vmatpush2.msra.mxu0 %v739
  %5144 = vmatprep.subr.mxu0 %v732
  %5145 = vmatpush2.msra.mxu0 %v731
  %5146 = vmatprep.subr.mxu0 %v724
  %5147 = vmatpush2.msra.mxu0 %v723
  %5148 = vmatprep.subr.mxu0 %v716
  %5149 = vmatpush2.msra.mxu0 %v715
  %5150 = vmatprep.subr.mxu0 %v708
  %5151 = vmatpush2.msra.mxu0 %v707
  %5152 = vmatprep.subr.mxu0 %v700
  %5153 = vmatpush2.msra.mxu0 %v699
  %5154 = vmatprep.mubr.f32.mxu0 %v4876
  %5155 = vmatmul.mubr.f32.gmra.mxu0 %v4875
  %v5156 = vpop.f32.mrf.mxu0
  %v5157 = vadd.f32 %v4569, %v5156
  %v5158 = vpop.f32.mrf.mxu0
  %v5159 = vadd.f32 %v4573, %v5158
  %5160 = vdwg.mxu0
  %s5161 = scalar_lea.vmem [#allocation4], 64
  %5162 = vst [vmem:[%s5161] sm:$0xff] %v4944
  %5163 = vst [vmem:[%s5161 + $0x8] sm:$0xff] %v4946
  %5164 = vst [vmem:[%s5161 + $0x10] sm:$0xff] %v5015
  %5165 = vst [vmem:[%s5161 + $0x18] sm:$0xff] %v5017
  %5166 = vst [vmem:[%s5161 + $0x20] sm:$0xff] %v5086
  %5167 = vst [vmem:[%s5161 + $0x28] sm:$0xff] %v5088
  %5168 = vst [vmem:[%s5161 + $0x30] sm:$0xff] %v5157
  %5169 = vst [vmem:[%s5161 + $0x38] sm:$0xff] %v5159
  %v5170 = vld [vmem:[#allocation4] ss:$8 sm:$0xf]
  %v5171 = vld [vmem:[#allocation4] ss:$8 sm:$0xf0]
  %v5172 = vor.u32 %v5170, %v5171
  %s5173 = scalar_lea.vmem [#allocation4], 64
  %v5174 = vld [vmem:[%s5173] ss:$8 sm:$0xf]
  %v5175 = vld [vmem:[%s5173] ss:$8 sm:$0xf0]
  %v5176 = vor.u32 %v5174, %v5175
  %v5179 = vunpack.c.l.s4 1983009808
  %v5180 = vunpack.c.0.s8 %v5179
  %v5181 = vlaneseq
  %v5182 = vshrl.u32 %v5181, 7
  %v5183 = vsub.s32 %v5180, %v5182
  %v5184 = vrot.slane %v50, %v5183
  %v5185 = vcombine.high %v5184, %v5184
  %5188 = vmatprep.subr.mxu0 %v430
  %5189 = vmatpush1.msra.mxu0 %v429
  %5190 = vmatprep.subr.mxu0 %v422
  %5191 = vmatpush1.msra.mxu0 %v421
  %5192 = vmatprep.subr.mxu0 %v414
  %5193 = vmatpush1.msra.mxu0 %v413
  %5194 = vmatprep.subr.mxu0 %v406
  %5195 = vmatpush1.msra.mxu0 %v405
  %5196 = vmatprep.subr.mxu0 %v398
  %5197 = vmatpush1.msra.mxu0 %v397
  %5198 = vmatprep.subr.mxu0 %v390
  %5199 = vmatpush1.msra.mxu0 %v389
  %5200 = vmatprep.subr.mxu0 %v382
  %5201 = vmatpush1.msra.mxu0 %v381
  %5202 = vmatprep.subr.mxu0 %v374
  %5203 = vmatpush1.msra.mxu0 %v373
  %5204 = vmatprep.subr.mxu0 %v366
  %5205 = vmatpush1.msra.mxu0 %v365
  %5206 = vmatprep.subr.mxu0 %v358
  %5207 = vmatpush1.msra.mxu0 %v357
  %5208 = vmatprep.subr.mxu0 %v350
  %5209 = vmatpush1.msra.mxu0 %v349
  %5210 = vmatprep.subr.mxu0 %v342
  %5211 = vmatpush1.msra.mxu0 %v341
  %5212 = vmatprep.subr.mxu0 %v334
  %5213 = vmatpush1.msra.mxu0 %v333
  %5214 = vmatprep.subr.mxu0 %v326
  %5215 = vmatpush1.msra.mxu0 %v325
  %5216 = vmatprep.subr.mxu0 %v318
  %5217 = vmatpush1.msra.mxu0 %v317
  %5218 = vmatprep.subr.mxu0 %v310
  %5219 = vmatpush1.msra.mxu0 %v309
  %5220 = vmatprep.subr.mxu0 %v558
  %5221 = vmatpush2.msra.mxu0 %v557
  %5222 = vmatprep.subr.mxu0 %v550
  %5223 = vmatpush2.msra.mxu0 %v549
  %5224 = vmatprep.subr.mxu0 %v542
  %5225 = vmatpush2.msra.mxu0 %v541
  %5226 = vmatprep.subr.mxu0 %v534
  %5227 = vmatpush2.msra.mxu0 %v533
  %5228 = vmatprep.subr.mxu0 %v526
  %5229 = vmatpush2.msra.mxu0 %v525
  %5230 = vmatprep.subr.mxu0 %v518
  %5231 = vmatpush2.msra.mxu0 %v517
  %5232 = vmatprep.subr.mxu0 %v510
  %5233 = vmatpush2.msra.mxu0 %v509
  %5234 = vmatprep.subr.mxu0 %v502
  %5235 = vmatpush2.msra.mxu0 %v501
  %5236 = vmatprep.subr.mxu0 %v494
  %5237 = vmatpush2.msra.mxu0 %v493
  %5238 = vmatprep.subr.mxu0 %v486
  %5239 = vmatpush2.msra.mxu0 %v485
  %5240 = vmatprep.subr.mxu0 %v478
  %5241 = vmatpush2.msra.mxu0 %v477
  %5242 = vmatprep.subr.mxu0 %v470
  %5243 = vmatpush2.msra.mxu0 %v469
  %5244 = vmatprep.subr.mxu0 %v462
  %5245 = vmatpush2.msra.mxu0 %v461
  %5246 = vmatprep.subr.mxu0 %v454
  %5247 = vmatpush2.msra.mxu0 %v453
  %5248 = vmatprep.subr.mxu0 %v446
  %5249 = vmatpush2.msra.mxu0 %v445
  %5250 = vmatprep.subr.mxu0 %v438
  %5251 = vmatpush2.msra.mxu0 %v437
  %5252 = vmatprep.mubr.f32.mxu0 %v5185
  %5253 = vmatmul.mubr.f32.gmra.mxu0 %v5184
  %v5254 = vpop.f32.mrf.mxu0
  %v5255 = vadd.f32 0.0, %v5254
  %v5256 = vpop.f32.mrf.mxu0
  %v5257 = vadd.f32 0.0, %v5256
  %5258 = vdwg.mxu0
  %5259 = vmatprep.subr.mxu0 %v432
  %5260 = vmatpush1.msra.mxu0 %v431
  %5261 = vmatprep.subr.mxu0 %v424
  %5262 = vmatpush1.msra.mxu0 %v423
  %5263 = vmatprep.subr.mxu0 %v416
  %5264 = vmatpush1.msra.mxu0 %v415
  %5265 = vmatprep.subr.mxu0 %v408
  %5266 = vmatpush1.msra.mxu0 %v407
  %5267 = vmatprep.subr.mxu0 %v400
  %5268 = vmatpush1.msra.mxu0 %v399
  %5269 = vmatprep.subr.mxu0 %v392
  %5270 = vmatpush1.msra.mxu0 %v391
  %5271 = vmatprep.subr.mxu0 %v384
  %5272 = vmatpush1.msra.mxu0 %v383
  %5273 = vmatprep.subr.mxu0 %v376
  %5274 = vmatpush1.msra.mxu0 %v375
  %5275 = vmatprep.subr.mxu0 %v368
  %5276 = vmatpush1.msra.mxu0 %v367
  %5277 = vmatprep.subr.mxu0 %v360
  %5278 = vmatpush1.msra.mxu0 %v359
  %5279 = vmatprep.subr.mxu0 %v352
  %5280 = vmatpush1.msra.mxu0 %v351
  %5281 = vmatprep.subr.mxu0 %v344
  %5282 = vmatpush1.msra.mxu0 %v343
  %5283 = vmatprep.subr.mxu0 %v336
  %5284 = vmatpush1.msra.mxu0 %v335
  %5285 = vmatprep.subr.mxu0 %v328
  %5286 = vmatpush1.msra.mxu0 %v327
  %5287 = vmatprep.subr.mxu0 %v320
  %5288 = vmatpush1.msra.mxu0 %v319
  %5289 = vmatprep.subr.mxu0 %v312
  %5290 = vmatpush1.msra.mxu0 %v311
  %5291 = vmatprep.subr.mxu0 %v560
  %5292 = vmatpush2.msra.mxu0 %v559
  %5293 = vmatprep.subr.mxu0 %v552
  %5294 = vmatpush2.msra.mxu0 %v551
  %5295 = vmatprep.subr.mxu0 %v544
  %5296 = vmatpush2.msra.mxu0 %v543
  %5297 = vmatprep.subr.mxu0 %v536
  %5298 = vmatpush2.msra.mxu0 %v535
  %5299 = vmatprep.subr.mxu0 %v528
  %5300 = vmatpush2.msra.mxu0 %v527
  %5301 = vmatprep.subr.mxu0 %v520
  %5302 = vmatpush2.msra.mxu0 %v519
  %5303 = vmatprep.subr.mxu0 %v512
  %5304 = vmatpush2.msra.mxu0 %v511
  %5305 = vmatprep.subr.mxu0 %v504
  %5306 = vmatpush2.msra.mxu0 %v503
  %5307 = vmatprep.subr.mxu0 %v496
  %5308 = vmatpush2.msra.mxu0 %v495
  %5309 = vmatprep.subr.mxu0 %v488
  %5310 = vmatpush2.msra.mxu0 %v487
  %5311 = vmatprep.subr.mxu0 %v480
  %5312 = vmatpush2.msra.mxu0 %v479
  %5313 = vmatprep.subr.mxu0 %v472
  %5314 = vmatpush2.msra.mxu0 %v471
  %5315 = vmatprep.subr.mxu0 %v464
  %5316 = vmatpush2.msra.mxu0 %v463
  %5317 = vmatprep.subr.mxu0 %v456
  %5318 = vmatpush2.msra.mxu0 %v455
  %5319 = vmatprep.subr.mxu0 %v448
  %5320 = vmatpush2.msra.mxu0 %v447
  %5321 = vmatprep.subr.mxu0 %v440
  %5322 = vmatpush2.msra.mxu0 %v439
  %5323 = vmatprep.mubr.f32.mxu0 %v5185
  %5324 = vmatmul.mubr.f32.gmra.mxu0 %v5184
  %v5325 = vpop.f32.mrf.mxu0
  %v5326 = vadd.f32 0.0, %v5325
  %v5327 = vpop.f32.mrf.mxu0
  %v5328 = vadd.f32 0.0, %v5327
  %5329 = vdwg.mxu0
  %5330 = vmatprep.subr.mxu0 %v434
  %5331 = vmatpush1.msra.mxu0 %v433
  %5332 = vmatprep.subr.mxu0 %v426
  %5333 = vmatpush1.msra.mxu0 %v425
  %5334 = vmatprep.subr.mxu0 %v418
  %5335 = vmatpush1.msra.mxu0 %v417
  %5336 = vmatprep.subr.mxu0 %v410
  %5337 = vmatpush1.msra.mxu0 %v409
  %5338 = vmatprep.subr.mxu0 %v402
  %5339 = vmatpush1.msra.mxu0 %v401
  %5340 = vmatprep.subr.mxu0 %v394
  %5341 = vmatpush1.msra.mxu0 %v393
  %5342 = vmatprep.subr.mxu0 %v386
  %5343 = vmatpush1.msra.mxu0 %v385
  %5344 = vmatprep.subr.mxu0 %v378
  %5345 = vmatpush1.msra.mxu0 %v377
  %5346 = vmatprep.subr.mxu0 %v370
  %5347 = vmatpush1.msra.mxu0 %v369
  %5348 = vmatprep.subr.mxu0 %v362
  %5349 = vmatpush1.msra.mxu0 %v361
  %5350 = vmatprep.subr.mxu0 %v354
  %5351 = vmatpush1.msra.mxu0 %v353
  %5352 = vmatprep.subr.mxu0 %v346
  %5353 = vmatpush1.msra.mxu0 %v345
  %5354 = vmatprep.subr.mxu0 %v338
  %5355 = vmatpush1.msra.mxu0 %v337
  %5356 = vmatprep.subr.mxu0 %v330
  %5357 = vmatpush1.msra.mxu0 %v329
  %5358 = vmatprep.subr.mxu0 %v322
  %5359 = vmatpush1.msra.mxu0 %v321
  %5360 = vmatprep.subr.mxu0 %v314
  %5361 = vmatpush1.msra.mxu0 %v313
  %5362 = vmatprep.subr.mxu0 %v562
  %5363 = vmatpush2.msra.mxu0 %v561
  %5364 = vmatprep.subr.mxu0 %v554
  %5365 = vmatpush2.msra.mxu0 %v553
  %5366 = vmatprep.subr.mxu0 %v546
  %5367 = vmatpush2.msra.mxu0 %v545
  %5368 = vmatprep.subr.mxu0 %v538
  %5369 = vmatpush2.msra.mxu0 %v537
  %5370 = vmatprep.subr.mxu0 %v530
  %5371 = vmatpush2.msra.mxu0 %v529
  %5372 = vmatprep.subr.mxu0 %v522
  %5373 = vmatpush2.msra.mxu0 %v521
  %5374 = vmatprep.subr.mxu0 %v514
  %5375 = vmatpush2.msra.mxu0 %v513
  %5376 = vmatprep.subr.mxu0 %v506
  %5377 = vmatpush2.msra.mxu0 %v505
  %5378 = vmatprep.subr.mxu0 %v498
  %5379 = vmatpush2.msra.mxu0 %v497
  %5380 = vmatprep.subr.mxu0 %v490
  %5381 = vmatpush2.msra.mxu0 %v489
  %5382 = vmatprep.subr.mxu0 %v482
  %5383 = vmatpush2.msra.mxu0 %v481
  %5384 = vmatprep.subr.mxu0 %v474
  %5385 = vmatpush2.msra.mxu0 %v473
  %5386 = vmatprep.subr.mxu0 %v466
  %5387 = vmatpush2.msra.mxu0 %v465
  %5388 = vmatprep.subr.mxu0 %v458
  %5389 = vmatpush2.msra.mxu0 %v457
  %5390 = vmatprep.subr.mxu0 %v450
  %5391 = vmatpush2.msra.mxu0 %v449
  %5392 = vmatprep.subr.mxu0 %v442
  %5393 = vmatpush2.msra.mxu0 %v441
  %5394 = vmatprep.mubr.f32.mxu0 %v5185
  %5395 = vmatmul.mubr.f32.gmra.mxu0 %v5184
  %v5396 = vpop.f32.mrf.mxu0
  %v5397 = vadd.f32 0.0, %v5396
  %v5398 = vpop.f32.mrf.mxu0
  %v5399 = vadd.f32 0.0, %v5398
  %5400 = vdwg.mxu0
  %5401 = vmatprep.subr.mxu0 %v436
  %5402 = vmatpush1.msra.mxu0 %v435
  %5403 = vmatprep.subr.mxu0 %v428
  %5404 = vmatpush1.msra.mxu0 %v427
  %5405 = vmatprep.subr.mxu0 %v420
  %5406 = vmatpush1.msra.mxu0 %v419
  %5407 = vmatprep.subr.mxu0 %v412
  %5408 = vmatpush1.msra.mxu0 %v411
  %5409 = vmatprep.subr.mxu0 %v404
  %5410 = vmatpush1.msra.mxu0 %v403
  %5411 = vmatprep.subr.mxu0 %v396
  %5412 = vmatpush1.msra.mxu0 %v395
  %5413 = vmatprep.subr.mxu0 %v388
  %5414 = vmatpush1.msra.mxu0 %v387
  %5415 = vmatprep.subr.mxu0 %v380
  %5416 = vmatpush1.msra.mxu0 %v379
  %5417 = vmatprep.subr.mxu0 %v372
  %5418 = vmatpush1.msra.mxu0 %v371
  %5419 = vmatprep.subr.mxu0 %v364
  %5420 = vmatpush1.msra.mxu0 %v363
  %5421 = vmatprep.subr.mxu0 %v356
  %5422 = vmatpush1.msra.mxu0 %v355
  %5423 = vmatprep.subr.mxu0 %v348
  %5424 = vmatpush1.msra.mxu0 %v347
  %5425 = vmatprep.subr.mxu0 %v340
  %5426 = vmatpush1.msra.mxu0 %v339
  %5427 = vmatprep.subr.mxu0 %v332
  %5428 = vmatpush1.msra.mxu0 %v331
  %5429 = vmatprep.subr.mxu0 %v324
  %5430 = vmatpush1.msra.mxu0 %v323
  %5431 = vmatprep.subr.mxu0 %v316
  %5432 = vmatpush1.msra.mxu0 %v315
  %5433 = vmatprep.subr.mxu0 %v564
  %5434 = vmatpush2.msra.mxu0 %v563
  %5435 = vmatprep.subr.mxu0 %v556
  %5436 = vmatpush2.msra.mxu0 %v555
  %5437 = vmatprep.subr.mxu0 %v548
  %5438 = vmatpush2.msra.mxu0 %v547
  %5439 = vmatprep.subr.mxu0 %v540
  %5440 = vmatpush2.msra.mxu0 %v539
  %5441 = vmatprep.subr.mxu0 %v532
  %5442 = vmatpush2.msra.mxu0 %v531
  %5443 = vmatprep.subr.mxu0 %v524
  %5444 = vmatpush2.msra.mxu0 %v523
  %5445 = vmatprep.subr.mxu0 %v516
  %5446 = vmatpush2.msra.mxu0 %v515
  %5447 = vmatprep.subr.mxu0 %v508
  %5448 = vmatpush2.msra.mxu0 %v507
  %5449 = vmatprep.subr.mxu0 %v500
  %5450 = vmatpush2.msra.mxu0 %v499
  %5451 = vmatprep.subr.mxu0 %v492
  %5452 = vmatpush2.msra.mxu0 %v491
  %5453 = vmatprep.subr.mxu0 %v484
  %5454 = vmatpush2.msra.mxu0 %v483
  %5455 = vmatprep.subr.mxu0 %v476
  %5456 = vmatpush2.msra.mxu0 %v475
  %5457 = vmatprep.subr.mxu0 %v468
  %5458 = vmatpush2.msra.mxu0 %v467
  %5459 = vmatprep.subr.mxu0 %v460
  %5460 = vmatpush2.msra.mxu0 %v459
  %5461 = vmatprep.subr.mxu0 %v452
  %5462 = vmatpush2.msra.mxu0 %v451
  %5463 = vmatprep.subr.mxu0 %v444
  %5464 = vmatpush2.msra.mxu0 %v443
  %5465 = vmatprep.mubr.f32.mxu0 %v5185
  %5466 = vmatmul.mubr.f32.gmra.mxu0 %v5184
  %v5467 = vpop.f32.mrf.mxu0
  %v5468 = vadd.f32 0.0, %v5467
  %v5469 = vpop.f32.mrf.mxu0
  %v5470 = vadd.f32 0.0, %v5469
  %5471 = vdwg.mxu0
  %v5480 = vcombine.low %v5255, %v5257
  %v5481 = vcombine.low %v5326, %v5328
  %v5482 = vcombine.low %v5397, %v5399
  %v5483 = vcombine.low %v5468, %v5470
  %v5485 = vunpack.c.l.s4 1966171168
  %v5486 = vunpack.c.0.s8 %v5485
  %v5487 = vlaneseq
  %v5488 = vshrl.u32 %v5487, 7
  %v5489 = vsub.s32 %v5486, %v5488
  %v5490 = vrot.slane %v5480, %v5489
  %v5492 = vunpack.c.l.s4 1966171168
  %v5493 = vunpack.c.0.s8 %v5492
  %v5494 = vlaneseq
  %v5495 = vshrl.u32 %v5494, 7
  %v5496 = vsub.s32 %v5493, %v5495
  %v5497 = vrot.slane %v5481, %v5496
  %v5499 = vunpack.c.l.s4 1966171168
  %v5500 = vunpack.c.0.s8 %v5499
  %v5501 = vlaneseq
  %v5502 = vshrl.u32 %v5501, 7
  %v5503 = vsub.s32 %v5500, %v5502
  %v5504 = vrot.slane %v5482, %v5503
  %v5506 = vunpack.c.l.s4 1966171168
  %v5507 = vunpack.c.0.s8 %v5506
  %v5508 = vlaneseq
  %v5509 = vshrl.u32 %v5508, 7
  %v5510 = vsub.s32 %v5507, %v5509
  %v5511 = vrot.slane %v5483, %v5510
  %v5512 = vcombine.low %v5490, %v5497
  %v5513 = vcombine.high %v5490, %v5497
  %v5514 = vcombine.low %v5504, %v5511
  %v5515 = vcombine.high %v5504, %v5511
  %v5517 = vunpack.c.l.s4 1966171168
  %v5518 = vunpack.c.0.s8 %v5517
  %v5519 = vlaneseq
  %v5520 = vshrl.u32 %v5519, 7
  %v5521 = vsub.s32 %v5518, %v5520
  %v5522 = vrot.slane %v5512, %v5521
  %v5524 = vunpack.c.l.s4 1966171168
  %v5525 = vunpack.c.0.s8 %v5524
  %v5526 = vlaneseq
  %v5527 = vshrl.u32 %v5526, 7
  %v5528 = vsub.s32 %v5525, %v5527
  %v5529 = vrot.slane %v5513, %v5528
  %v5531 = vunpack.c.l.s4 1966171168
  %v5532 = vunpack.c.0.s8 %v5531
  %v5533 = vlaneseq
  %v5534 = vshrl.u32 %v5533, 7
  %v5535 = vsub.s32 %v5532, %v5534
  %v5536 = vrot.slane %v5514, %v5535
  %v5538 = vunpack.c.l.s4 1966171168
  %v5539 = vunpack.c.0.s8 %v5538
  %v5540 = vlaneseq
  %v5541 = vshrl.u32 %v5540, 7
  %v5542 = vsub.s32 %v5539, %v5541
  %v5543 = vrot.slane %v5515, %v5542
  %v5544 = vcombine.low %v5522, %v5536
  %v5545 = vcombine.low %v5529, %v5543
  %v5548 = vadd.f32 %v5172, %v5544
  %v5549 = vadd.f32 %v5176, %v5545
  %v5550 = vxor.u32 %v5548, 2147483648
  %v5551 = vxor.u32 %v5549, 2147483648
  %v5552 = vmul.f32 %v5550, 1.442695
  %v5553 = vpow.pop %v5552
  %v5554 = vmul.f32 %v5551, 1.442695
  %v5555 = vpow.pop %v5554
  %v5556 = vadd.f32 %v5553, 1.0
  %v5557 = vadd.f32 %v5555, 1.0
  %v5558 = vrcp.pop %v5556
  %v5559 = vmul.f32 1.0, %v5558
  %v5560 = vrcp.pop %v5557
  %v5561 = vmul.f32 1.0, %v5560
  %v5564 = vrot.slane %v5548, 2
  %v5565 = vrot.slane %v5549, 2
  %v5568 = vxor.u32 %v5564, 2147483648
  %v5569 = vxor.u32 %v5565, 2147483648
  %v5570 = vmul.f32 %v5568, 1.442695
  %v5571 = vpow.pop %v5570
  %v5572 = vmul.f32 %v5569, 1.442695
  %v5573 = vpow.pop %v5572
  %v5574 = vadd.f32 %v5571, 1.0
  %v5575 = vadd.f32 %v5573, 1.0
  %v5576 = vrcp.pop %v5574
  %v5577 = vmul.f32 1.0, %v5576
  %v5578 = vrcp.pop %v5575
  %v5579 = vmul.f32 1.0, %v5578
  %v5580 = vrot.slane %v5548, 4
  %v5581 = vrot.slane %v5549, 4
  %v5584 = vtanh.pop %v5580
  %v5585 = vtanh.pop %v5581
  %v5586 = vrot.slane %v5548, 6
  %v5587 = vrot.slane %v5549, 6
  %v5590 = vxor.u32 %v5586, 2147483648
  %v5591 = vxor.u32 %v5587, 2147483648
  %v5592 = vmul.f32 %v5590, 1.442695
  %v5593 = vpow.pop %v5592
  %v5594 = vmul.f32 %v5591, 1.442695
  %v5595 = vpow.pop %v5594
  %v5596 = vadd.f32 %v5593, 1.0
  %v5597 = vadd.f32 %v5595, 1.0
  %v5598 = vrcp.pop %v5596
  %v5599 = vmul.f32 1.0, %v5598
  %v5600 = vrcp.pop %v5597
  %v5601 = vmul.f32 1.0, %v5600
  %v5604 = vunpack.c.l.s4 1966171168
  %v5605 = vunpack.c.0.s8 %v5604
  %v5606 = vlaneseq
  %v5607 = vshrl.u32 %v5606, 7
  %v5608 = vsub.s32 %v5605, %v5607
  %v5609 = vrot.slane %v52, %v5608
  %v5610 = vcombine.high %v5609, %v5609
  %v5613 = vmul.f32 %v5577, %v5609
  %v5614 = vmul.f32 %v5579, %v5610
  %v5615 = vmul.f32 %v5559, %v5584
  %v5616 = vmul.f32 %v5561, %v5585
  %v5617 = vadd.f32 %v5613, %v5615
  %v5618 = vadd.f32 %v5614, %v5616
  %v5619 = vtanh.pop %v5617
  %v5620 = vtanh.pop %v5618
  %v5621 = vmul.f32 %v5599, %v5619
  %v5622 = vmul.f32 %v5601, %v5620
  %s5623 = scalar_lea.vmem [#allocation4], 1
  %v5624 = vld [vmem:[%s5623] ss:$8 sm:$0xf]
  %v5625 = vld [vmem:[%s5623] ss:$8 sm:$0xf0]
  %v5626 = vor.u32 %v5624, %v5625
  %s5627 = scalar_lea.vmem [#allocation4], 65
  %v5628 = vld [vmem:[%s5627] ss:$8 sm:$0xf]
  %v5629 = vld [vmem:[%s5627] ss:$8 sm:$0xf0]
  %v5630 = vor.u32 %v5628, %v5629
  %v5633 = vcombine.low %v5621, %v5622
  %v5635 = vunpack.c.l.s4 1966171168
  %v5636 = vunpack.c.0.s8 %v5635
  %v5637 = vlaneseq
  %v5638 = vshrl.u32 %v5637, 7
  %v5639 = vsub.s32 %v5636, %v5638
  %v5640 = vrot.slane %v5633, %v5639
  %v5641 = vcombine.high %v5640, %v5640
  %v5643 = vunpack.c.l.s4 1966171168
  %v5644 = vunpack.c.0.s8 %v5643
  %v5645 = vlaneseq
  %v5646 = vshrl.u32 %v5645, 7
  %v5647 = vsub.s32 %v5644, %v5646
  %v5648 = vrot.slane %v5640, %v5647
  %v5650 = vunpack.c.l.s4 1966171168
  %v5651 = vunpack.c.0.s8 %v5650
  %v5652 = vlaneseq
  %v5653 = vshrl.u32 %v5652, 7
  %v5654 = vsub.s32 %v5651, %v5653
  %v5655 = vrot.slane %v5641, %v5654
  %5658 = vmatprep.subr.mxu0 %v430
  %5659 = vmatpush1.msra.mxu0 %v429
  %5660 = vmatprep.subr.mxu0 %v422
  %5661 = vmatpush1.msra.mxu0 %v421
  %5662 = vmatprep.subr.mxu0 %v414
  %5663 = vmatpush1.msra.mxu0 %v413
  %5664 = vmatprep.subr.mxu0 %v406
  %5665 = vmatpush1.msra.mxu0 %v405
  %5666 = vmatprep.subr.mxu0 %v398
  %5667 = vmatpush1.msra.mxu0 %v397
  %5668 = vmatprep.subr.mxu0 %v390
  %5669 = vmatpush1.msra.mxu0 %v389
  %5670 = vmatprep.subr.mxu0 %v382
  %5671 = vmatpush1.msra.mxu0 %v381
  %5672 = vmatprep.subr.mxu0 %v374
  %5673 = vmatpush1.msra.mxu0 %v373
  %5674 = vmatprep.subr.mxu0 %v366
  %5675 = vmatpush1.msra.mxu0 %v365
  %5676 = vmatprep.subr.mxu0 %v358
  %5677 = vmatpush1.msra.mxu0 %v357
  %5678 = vmatprep.subr.mxu0 %v350
  %5679 = vmatpush1.msra.mxu0 %v349
  %5680 = vmatprep.subr.mxu0 %v342
  %5681 = vmatpush1.msra.mxu0 %v341
  %5682 = vmatprep.subr.mxu0 %v334
  %5683 = vmatpush1.msra.mxu0 %v333
  %5684 = vmatprep.subr.mxu0 %v326
  %5685 = vmatpush1.msra.mxu0 %v325
  %5686 = vmatprep.subr.mxu0 %v318
  %5687 = vmatpush1.msra.mxu0 %v317
  %5688 = vmatprep.subr.mxu0 %v310
  %5689 = vmatpush1.msra.mxu0 %v309
  %5690 = vmatprep.subr.mxu0 %v558
  %5691 = vmatpush2.msra.mxu0 %v557
  %5692 = vmatprep.subr.mxu0 %v550
  %5693 = vmatpush2.msra.mxu0 %v549
  %5694 = vmatprep.subr.mxu0 %v542
  %5695 = vmatpush2.msra.mxu0 %v541
  %5696 = vmatprep.subr.mxu0 %v534
  %5697 = vmatpush2.msra.mxu0 %v533
  %5698 = vmatprep.subr.mxu0 %v526
  %5699 = vmatpush2.msra.mxu0 %v525
  %5700 = vmatprep.subr.mxu0 %v518
  %5701 = vmatpush2.msra.mxu0 %v517
  %5702 = vmatprep.subr.mxu0 %v510
  %5703 = vmatpush2.msra.mxu0 %v509
  %5704 = vmatprep.subr.mxu0 %v502
  %5705 = vmatpush2.msra.mxu0 %v501
  %5706 = vmatprep.subr.mxu0 %v494
  %5707 = vmatpush2.msra.mxu0 %v493
  %5708 = vmatprep.subr.mxu0 %v486
  %5709 = vmatpush2.msra.mxu0 %v485
  %5710 = vmatprep.subr.mxu0 %v478
  %5711 = vmatpush2.msra.mxu0 %v477
  %5712 = vmatprep.subr.mxu0 %v470
  %5713 = vmatpush2.msra.mxu0 %v469
  %5714 = vmatprep.subr.mxu0 %v462
  %5715 = vmatpush2.msra.mxu0 %v461
  %5716 = vmatprep.subr.mxu0 %v454
  %5717 = vmatpush2.msra.mxu0 %v453
  %5718 = vmatprep.subr.mxu0 %v446
  %5719 = vmatpush2.msra.mxu0 %v445
  %5720 = vmatprep.subr.mxu0 %v438
  %5721 = vmatpush2.msra.mxu0 %v437
  %5722 = vmatprep.mubr.f32.mxu0 %v5655
  %5723 = vmatmul.mubr.f32.gmra.mxu0 %v5648
  %v5724 = vpop.f32.mrf.mxu0
  %v5725 = vadd.f32 0.0, %v5724
  %v5726 = vpop.f32.mrf.mxu0
  %v5727 = vadd.f32 0.0, %v5726
  %5728 = vdwg.mxu0
  %5729 = vmatprep.subr.mxu0 %v432
  %5730 = vmatpush1.msra.mxu0 %v431
  %5731 = vmatprep.subr.mxu0 %v424
  %5732 = vmatpush1.msra.mxu0 %v423
  %5733 = vmatprep.subr.mxu0 %v416
  %5734 = vmatpush1.msra.mxu0 %v415
  %5735 = vmatprep.subr.mxu0 %v408
  %5736 = vmatpush1.msra.mxu0 %v407
  %5737 = vmatprep.subr.mxu0 %v400
  %5738 = vmatpush1.msra.mxu0 %v399
  %5739 = vmatprep.subr.mxu0 %v392
  %5740 = vmatpush1.msra.mxu0 %v391
  %5741 = vmatprep.subr.mxu0 %v384
  %5742 = vmatpush1.msra.mxu0 %v383
  %5743 = vmatprep.subr.mxu0 %v376
  %5744 = vmatpush1.msra.mxu0 %v375
  %5745 = vmatprep.subr.mxu0 %v368
  %5746 = vmatpush1.msra.mxu0 %v367
  %5747 = vmatprep.subr.mxu0 %v360
  %5748 = vmatpush1.msra.mxu0 %v359
  %5749 = vmatprep.subr.mxu0 %v352
  %5750 = vmatpush1.msra.mxu0 %v351
  %5751 = vmatprep.subr.mxu0 %v344
  %5752 = vmatpush1.msra.mxu0 %v343
  %5753 = vmatprep.subr.mxu0 %v336
  %5754 = vmatpush1.msra.mxu0 %v335
  %5755 = vmatprep.subr.mxu0 %v328
  %5756 = vmatpush1.msra.mxu0 %v327
  %5757 = vmatprep.subr.mxu0 %v320
  %5758 = vmatpush1.msra.mxu0 %v319
  %5759 = vmatprep.subr.mxu0 %v312
  %5760 = vmatpush1.msra.mxu0 %v311
  %5761 = vmatprep.subr.mxu0 %v560
  %5762 = vmatpush2.msra.mxu0 %v559
  %5763 = vmatprep.subr.mxu0 %v552
  %5764 = vmatpush2.msra.mxu0 %v551
  %5765 = vmatprep.subr.mxu0 %v544
  %5766 = vmatpush2.msra.mxu0 %v543
  %5767 = vmatprep.subr.mxu0 %v536
  %5768 = vmatpush2.msra.mxu0 %v535
  %5769 = vmatprep.subr.mxu0 %v528
  %5770 = vmatpush2.msra.mxu0 %v527
  %5771 = vmatprep.subr.mxu0 %v520
  %5772 = vmatpush2.msra.mxu0 %v519
  %5773 = vmatprep.subr.mxu0 %v512
  %5774 = vmatpush2.msra.mxu0 %v511
  %5775 = vmatprep.subr.mxu0 %v504
  %5776 = vmatpush2.msra.mxu0 %v503
  %5777 = vmatprep.subr.mxu0 %v496
  %5778 = vmatpush2.msra.mxu0 %v495
  %5779 = vmatprep.subr.mxu0 %v488
  %5780 = vmatpush2.msra.mxu0 %v487
  %5781 = vmatprep.subr.mxu0 %v480
  %5782 = vmatpush2.msra.mxu0 %v479
  %5783 = vmatprep.subr.mxu0 %v472
  %5784 = vmatpush2.msra.mxu0 %v471
  %5785 = vmatprep.subr.mxu0 %v464
  %5786 = vmatpush2.msra.mxu0 %v463
  %5787 = vmatprep.subr.mxu0 %v456
  %5788 = vmatpush2.msra.mxu0 %v455
  %5789 = vmatprep.subr.mxu0 %v448
  %5790 = vmatpush2.msra.mxu0 %v447
  %5791 = vmatprep.subr.mxu0 %v440
  %5792 = vmatpush2.msra.mxu0 %v439
  %5793 = vmatprep.mubr.f32.mxu0 %v5655
  %5794 = vmatmul.mubr.f32.gmra.mxu0 %v5648
  %v5795 = vpop.f32.mrf.mxu0
  %v5796 = vadd.f32 0.0, %v5795
  %v5797 = vpop.f32.mrf.mxu0
  %v5798 = vadd.f32 0.0, %v5797
  %5799 = vdwg.mxu0
  %5800 = vmatprep.subr.mxu0 %v434
  %5801 = vmatpush1.msra.mxu0 %v433
  %5802 = vmatprep.subr.mxu0 %v426
  %5803 = vmatpush1.msra.mxu0 %v425
  %5804 = vmatprep.subr.mxu0 %v418
  %5805 = vmatpush1.msra.mxu0 %v417
  %5806 = vmatprep.subr.mxu0 %v410
  %5807 = vmatpush1.msra.mxu0 %v409
  %5808 = vmatprep.subr.mxu0 %v402
  %5809 = vmatpush1.msra.mxu0 %v401
  %5810 = vmatprep.subr.mxu0 %v394
  %5811 = vmatpush1.msra.mxu0 %v393
  %5812 = vmatprep.subr.mxu0 %v386
  %5813 = vmatpush1.msra.mxu0 %v385
  %5814 = vmatprep.subr.mxu0 %v378
  %5815 = vmatpush1.msra.mxu0 %v377
  %5816 = vmatprep.subr.mxu0 %v370
  %5817 = vmatpush1.msra.mxu0 %v369
  %5818 = vmatprep.subr.mxu0 %v362
  %5819 = vmatpush1.msra.mxu0 %v361
  %5820 = vmatprep.subr.mxu0 %v354
  %5821 = vmatpush1.msra.mxu0 %v353
  %5822 = vmatprep.subr.mxu0 %v346
  %5823 = vmatpush1.msra.mxu0 %v345
  %5824 = vmatprep.subr.mxu0 %v338
  %5825 = vmatpush1.msra.mxu0 %v337
  %5826 = vmatprep.subr.mxu0 %v330
  %5827 = vmatpush1.msra.mxu0 %v329
  %5828 = vmatprep.subr.mxu0 %v322
  %5829 = vmatpush1.msra.mxu0 %v321
  %5830 = vmatprep.subr.mxu0 %v314
  %5831 = vmatpush1.msra.mxu0 %v313
  %5832 = vmatprep.subr.mxu0 %v562
  %5833 = vmatpush2.msra.mxu0 %v561
  %5834 = vmatprep.subr.mxu0 %v554
  %5835 = vmatpush2.msra.mxu0 %v553
  %5836 = vmatprep.subr.mxu0 %v546
  %5837 = vmatpush2.msra.mxu0 %v545
  %5838 = vmatprep.subr.mxu0 %v538
  %5839 = vmatpush2.msra.mxu0 %v537
  %5840 = vmatprep.subr.mxu0 %v530
  %5841 = vmatpush2.msra.mxu0 %v529
  %5842 = vmatprep.subr.mxu0 %v522
  %5843 = vmatpush2.msra.mxu0 %v521
  %5844 = vmatprep.subr.mxu0 %v514
  %5845 = vmatpush2.msra.mxu0 %v513
  %5846 = vmatprep.subr.mxu0 %v506
  %5847 = vmatpush2.msra.mxu0 %v505
  %5848 = vmatprep.subr.mxu0 %v498
  %5849 = vmatpush2.msra.mxu0 %v497
  %5850 = vmatprep.subr.mxu0 %v490
  %5851 = vmatpush2.msra.mxu0 %v489
  %5852 = vmatprep.subr.mxu0 %v482
  %5853 = vmatpush2.msra.mxu0 %v481
  %5854 = vmatprep.subr.mxu0 %v474
  %5855 = vmatpush2.msra.mxu0 %v473
  %5856 = vmatprep.subr.mxu0 %v466
  %5857 = vmatpush2.msra.mxu0 %v465
  %5858 = vmatprep.subr.mxu0 %v458
  %5859 = vmatpush2.msra.mxu0 %v457
  %5860 = vmatprep.subr.mxu0 %v450
  %5861 = vmatpush2.msra.mxu0 %v449
  %5862 = vmatprep.subr.mxu0 %v442
  %5863 = vmatpush2.msra.mxu0 %v441
  %5864 = vmatprep.mubr.f32.mxu0 %v5655
  %5865 = vmatmul.mubr.f32.gmra.mxu0 %v5648
  %v5866 = vpop.f32.mrf.mxu0
  %v5867 = vadd.f32 0.0, %v5866
  %v5868 = vpop.f32.mrf.mxu0
  %v5869 = vadd.f32 0.0, %v5868
  %5870 = vdwg.mxu0
  %5871 = vmatprep.subr.mxu0 %v436
  %5872 = vmatpush1.msra.mxu0 %v435
  %5873 = vmatprep.subr.mxu0 %v428
  %5874 = vmatpush1.msra.mxu0 %v427
  %5875 = vmatprep.subr.mxu0 %v420
  %5876 = vmatpush1.msra.mxu0 %v419
  %5877 = vmatprep.subr.mxu0 %v412
  %5878 = vmatpush1.msra.mxu0 %v411
  %5879 = vmatprep.subr.mxu0 %v404
  %5880 = vmatpush1.msra.mxu0 %v403
  %5881 = vmatprep.subr.mxu0 %v396
  %5882 = vmatpush1.msra.mxu0 %v395
  %5883 = vmatprep.subr.mxu0 %v388
  %5884 = vmatpush1.msra.mxu0 %v387
  %5885 = vmatprep.subr.mxu0 %v380
  %5886 = vmatpush1.msra.mxu0 %v379
  %5887 = vmatprep.subr.mxu0 %v372
  %5888 = vmatpush1.msra.mxu0 %v371
  %5889 = vmatprep.subr.mxu0 %v364
  %5890 = vmatpush1.msra.mxu0 %v363
  %5891 = vmatprep.subr.mxu0 %v356
  %5892 = vmatpush1.msra.mxu0 %v355
  %5893 = vmatprep.subr.mxu0 %v348
  %5894 = vmatpush1.msra.mxu0 %v347
  %5895 = vmatprep.subr.mxu0 %v340
  %5896 = vmatpush1.msra.mxu0 %v339
  %5897 = vmatprep.subr.mxu0 %v332
  %5898 = vmatpush1.msra.mxu0 %v331
  %5899 = vmatprep.subr.mxu0 %v324
  %5900 = vmatpush1.msra.mxu0 %v323
  %5901 = vmatprep.subr.mxu0 %v316
  %5902 = vmatpush1.msra.mxu0 %v315
  %5903 = vmatprep.subr.mxu0 %v564
  %5904 = vmatpush2.msra.mxu0 %v563
  %5905 = vmatprep.subr.mxu0 %v556
  %5906 = vmatpush2.msra.mxu0 %v555
  %5907 = vmatprep.subr.mxu0 %v548
  %5908 = vmatpush2.msra.mxu0 %v547
  %5909 = vmatprep.subr.mxu0 %v540
  %5910 = vmatpush2.msra.mxu0 %v539
  %5911 = vmatprep.subr.mxu0 %v532
  %5912 = vmatpush2.msra.mxu0 %v531
  %5913 = vmatprep.subr.mxu0 %v524
  %5914 = vmatpush2.msra.mxu0 %v523
  %5915 = vmatprep.subr.mxu0 %v516
  %5916 = vmatpush2.msra.mxu0 %v515
  %5917 = vmatprep.subr.mxu0 %v508
  %5918 = vmatpush2.msra.mxu0 %v507
  %5919 = vmatprep.subr.mxu0 %v500
  %5920 = vmatpush2.msra.mxu0 %v499
  %5921 = vmatprep.subr.mxu0 %v492
  %5922 = vmatpush2.msra.mxu0 %v491
  %5923 = vmatprep.subr.mxu0 %v484
  %5924 = vmatpush2.msra.mxu0 %v483
  %5925 = vmatprep.subr.mxu0 %v476
  %5926 = vmatpush2.msra.mxu0 %v475
  %5927 = vmatprep.subr.mxu0 %v468
  %5928 = vmatpush2.msra.mxu0 %v467
  %5929 = vmatprep.subr.mxu0 %v460
  %5930 = vmatpush2.msra.mxu0 %v459
  %5931 = vmatprep.subr.mxu0 %v452
  %5932 = vmatpush2.msra.mxu0 %v451
  %5933 = vmatprep.subr.mxu0 %v444
  %5934 = vmatpush2.msra.mxu0 %v443
  %5935 = vmatprep.mubr.f32.mxu0 %v5655
  %5936 = vmatmul.mubr.f32.gmra.mxu0 %v5648
  %v5937 = vpop.f32.mrf.mxu0
  %v5938 = vadd.f32 0.0, %v5937
  %v5939 = vpop.f32.mrf.mxu0
  %v5940 = vadd.f32 0.0, %v5939
  %5941 = vdwg.mxu0
  %v5950 = vcombine.low %v5725, %v5727
  %v5951 = vcombine.low %v5796, %v5798
  %v5952 = vcombine.low %v5867, %v5869
  %v5953 = vcombine.low %v5938, %v5940
  %v5955 = vunpack.c.l.s4 1966171168
  %v5956 = vunpack.c.0.s8 %v5955
  %v5957 = vlaneseq
  %v5958 = vshrl.u32 %v5957, 7
  %v5959 = vsub.s32 %v5956, %v5958
  %v5960 = vrot.slane %v5950, %v5959
  %v5962 = vunpack.c.l.s4 1966171168
  %v5963 = vunpack.c.0.s8 %v5962
  %v5964 = vlaneseq
  %v5965 = vshrl.u32 %v5964, 7
  %v5966 = vsub.s32 %v5963, %v5965
  %v5967 = vrot.slane %v5951, %v5966
  %v5969 = vunpack.c.l.s4 1966171168
  %v5970 = vunpack.c.0.s8 %v5969
  %v5971 = vlaneseq
  %v5972 = vshrl.u32 %v5971, 7
  %v5973 = vsub.s32 %v5970, %v5972
  %v5974 = vrot.slane %v5952, %v5973
  %v5976 = vunpack.c.l.s4 1966171168
  %v5977 = vunpack.c.0.s8 %v5976
  %v5978 = vlaneseq
  %v5979 = vshrl.u32 %v5978, 7
  %v5980 = vsub.s32 %v5977, %v5979
  %v5981 = vrot.slane %v5953, %v5980
  %v5982 = vcombine.low %v5960, %v5967
  %v5983 = vcombine.high %v5960, %v5967
  %v5984 = vcombine.low %v5974, %v5981
  %v5985 = vcombine.high %v5974, %v5981
  %v5987 = vunpack.c.l.s4 1966171168
  %v5988 = vunpack.c.0.s8 %v5987
  %v5989 = vlaneseq
  %v5990 = vshrl.u32 %v5989, 7
  %v5991 = vsub.s32 %v5988, %v5990
  %v5992 = vrot.slane %v5982, %v5991
  %v5994 = vunpack.c.l.s4 1966171168
  %v5995 = vunpack.c.0.s8 %v5994
  %v5996 = vlaneseq
  %v5997 = vshrl.u32 %v5996, 7
  %v5998 = vsub.s32 %v5995, %v5997
  %v5999 = vrot.slane %v5983, %v5998
  %v6001 = vunpack.c.l.s4 1966171168
  %v6002 = vunpack.c.0.s8 %v6001
  %v6003 = vlaneseq
  %v6004 = vshrl.u32 %v6003, 7
  %v6005 = vsub.s32 %v6002, %v6004
  %v6006 = vrot.slane %v5984, %v6005
  %v6008 = vunpack.c.l.s4 1966171168
  %v6009 = vunpack.c.0.s8 %v6008
  %v6010 = vlaneseq
  %v6011 = vshrl.u32 %v6010, 7
  %v6012 = vsub.s32 %v6009, %v6011
  %v6013 = vrot.slane %v5985, %v6012
  %v6014 = vcombine.low %v5992, %v6006
  %v6015 = vcombine.low %v5999, %v6013
  %v6018 = vadd.f32 %v5626, %v6014
  %v6019 = vadd.f32 %v5630, %v6015
  %v6020 = vxor.u32 %v6018, 2147483648
  %v6021 = vxor.u32 %v6019, 2147483648
  %v6022 = vmul.f32 %v6020, 1.442695
  %v6023 = vpow.pop %v6022
  %v6024 = vmul.f32 %v6021, 1.442695
  %v6025 = vpow.pop %v6024
  %v6026 = vadd.f32 %v6023, 1.0
  %v6027 = vadd.f32 %v6025, 1.0
  %v6028 = vrcp.pop %v6026
  %v6029 = vmul.f32 1.0, %v6028
  %v6030 = vrcp.pop %v6027
  %v6031 = vmul.f32 1.0, %v6030
  %v6034 = vrot.slane %v6018, 2
  %v6035 = vrot.slane %v6019, 2
  %v6038 = vxor.u32 %v6034, 2147483648
  %v6039 = vxor.u32 %v6035, 2147483648
  %v6040 = vmul.f32 %v6038, 1.442695
  %v6041 = vpow.pop %v6040
  %v6042 = vmul.f32 %v6039, 1.442695
  %v6043 = vpow.pop %v6042
  %v6044 = vadd.f32 %v6041, 1.0
  %v6045 = vadd.f32 %v6043, 1.0
  %v6046 = vrcp.pop %v6044
  %v6047 = vmul.f32 1.0, %v6046
  %v6048 = vrcp.pop %v6045
  %v6049 = vmul.f32 1.0, %v6048
  %v6050 = vrot.slane %v6018, 4
  %v6051 = vrot.slane %v6019, 4
  %v6054 = vtanh.pop %v6050
  %v6055 = vtanh.pop %v6051
  %v6056 = vrot.slane %v6018, 6
  %v6057 = vrot.slane %v6019, 6
  %v6060 = vxor.u32 %v6056, 2147483648
  %v6061 = vxor.u32 %v6057, 2147483648
  %v6062 = vmul.f32 %v6060, 1.442695
  %v6063 = vpow.pop %v6062
  %v6064 = vmul.f32 %v6061, 1.442695
  %v6065 = vpow.pop %v6064
  %v6066 = vadd.f32 %v6063, 1.0
  %v6067 = vadd.f32 %v6065, 1.0
  %v6068 = vrcp.pop %v6066
  %v6069 = vmul.f32 1.0, %v6068
  %v6070 = vrcp.pop %v6067
  %v6071 = vmul.f32 1.0, %v6070
  %v6072 = vmul.f32 %v6047, %v5617
  %v6073 = vmul.f32 %v6049, %v5618
  %v6074 = vmul.f32 %v6029, %v6054
  %v6075 = vmul.f32 %v6031, %v6055
  %v6076 = vadd.f32 %v6072, %v6074
  %v6077 = vadd.f32 %v6073, %v6075
  %v6078 = vtanh.pop %v6076
  %v6079 = vtanh.pop %v6077
  %v6080 = vmul.f32 %v6069, %v6078
  %v6081 = vmul.f32 %v6071, %v6079
  %s6082 = scalar_lea.vmem [#allocation4], 2
  %v6083 = vld [vmem:[%s6082] ss:$8 sm:$0xf]
  %v6084 = vld [vmem:[%s6082] ss:$8 sm:$0xf0]
  %v6085 = vor.u32 %v6083, %v6084
  %s6086 = scalar_lea.vmem [#allocation4], 66
  %v6087 = vld [vmem:[%s6086] ss:$8 sm:$0xf]
  %v6088 = vld [vmem:[%s6086] ss:$8 sm:$0xf0]
  %v6089 = vor.u32 %v6087, %v6088
  %v6092 = vcombine.low %v6080, %v6081
  %v6094 = vunpack.c.l.s4 1966171168
  %v6095 = vunpack.c.0.s8 %v6094
  %v6096 = vlaneseq
  %v6097 = vshrl.u32 %v6096, 7
  %v6098 = vsub.s32 %v6095, %v6097
  %v6099 = vrot.slane %v6092, %v6098
  %v6100 = vcombine.high %v6099, %v6099
  %v6102 = vunpack.c.l.s4 1966171168
  %v6103 = vunpack.c.0.s8 %v6102
  %v6104 = vlaneseq
  %v6105 = vshrl.u32 %v6104, 7
  %v6106 = vsub.s32 %v6103, %v6105
  %v6107 = vrot.slane %v6099, %v6106
  %v6109 = vunpack.c.l.s4 1966171168
  %v6110 = vunpack.c.0.s8 %v6109
  %v6111 = vlaneseq
  %v6112 = vshrl.u32 %v6111, 7
  %v6113 = vsub.s32 %v6110, %v6112
  %v6114 = vrot.slane %v6100, %v6113
  %6117 = vmatprep.subr.mxu0 %v430
  %6118 = vmatpush1.msra.mxu0 %v429
  %6119 = vmatprep.subr.mxu0 %v422
  %6120 = vmatpush1.msra.mxu0 %v421
  %6121 = vmatprep.subr.mxu0 %v414
  %6122 = vmatpush1.msra.mxu0 %v413
  %6123 = vmatprep.subr.mxu0 %v406
  %6124 = vmatpush1.msra.mxu0 %v405
  %6125 = vmatprep.subr.mxu0 %v398
  %6126 = vmatpush1.msra.mxu0 %v397
  %6127 = vmatprep.subr.mxu0 %v390
  %6128 = vmatpush1.msra.mxu0 %v389
  %6129 = vmatprep.subr.mxu0 %v382
  %6130 = vmatpush1.msra.mxu0 %v381
  %6131 = vmatprep.subr.mxu0 %v374
  %6132 = vmatpush1.msra.mxu0 %v373
  %6133 = vmatprep.subr.mxu0 %v366
  %6134 = vmatpush1.msra.mxu0 %v365
  %6135 = vmatprep.subr.mxu0 %v358
  %6136 = vmatpush1.msra.mxu0 %v357
  %6137 = vmatprep.subr.mxu0 %v350
  %6138 = vmatpush1.msra.mxu0 %v349
  %6139 = vmatprep.subr.mxu0 %v342
  %6140 = vmatpush1.msra.mxu0 %v341
  %6141 = vmatprep.subr.mxu0 %v334
  %6142 = vmatpush1.msra.mxu0 %v333
  %6143 = vmatprep.subr.mxu0 %v326
  %6144 = vmatpush1.msra.mxu0 %v325
  %6145 = vmatprep.subr.mxu0 %v318
  %6146 = vmatpush1.msra.mxu0 %v317
  %6147 = vmatprep.subr.mxu0 %v310
  %6148 = vmatpush1.msra.mxu0 %v309
  %6149 = vmatprep.subr.mxu0 %v558
  %6150 = vmatpush2.msra.mxu0 %v557
  %6151 = vmatprep.subr.mxu0 %v550
  %6152 = vmatpush2.msra.mxu0 %v549
  %6153 = vmatprep.subr.mxu0 %v542
  %6154 = vmatpush2.msra.mxu0 %v541
  %6155 = vmatprep.subr.mxu0 %v534
  %6156 = vmatpush2.msra.mxu0 %v533
  %6157 = vmatprep.subr.mxu0 %v526
  %6158 = vmatpush2.msra.mxu0 %v525
  %6159 = vmatprep.subr.mxu0 %v518
  %6160 = vmatpush2.msra.mxu0 %v517
  %6161 = vmatprep.subr.mxu0 %v510
  %6162 = vmatpush2.msra.mxu0 %v509
  %6163 = vmatprep.subr.mxu0 %v502
  %6164 = vmatpush2.msra.mxu0 %v501
  %6165 = vmatprep.subr.mxu0 %v494
  %6166 = vmatpush2.msra.mxu0 %v493
  %6167 = vmatprep.subr.mxu0 %v486
  %6168 = vmatpush2.msra.mxu0 %v485
  %6169 = vmatprep.subr.mxu0 %v478
  %6170 = vmatpush2.msra.mxu0 %v477
  %6171 = vmatprep.subr.mxu0 %v470
  %6172 = vmatpush2.msra.mxu0 %v469
  %6173 = vmatprep.subr.mxu0 %v462
  %6174 = vmatpush2.msra.mxu0 %v461
  %6175 = vmatprep.subr.mxu0 %v454
  %6176 = vmatpush2.msra.mxu0 %v453
  %6177 = vmatprep.subr.mxu0 %v446
  %6178 = vmatpush2.msra.mxu0 %v445
  %6179 = vmatprep.subr.mxu0 %v438
  %6180 = vmatpush2.msra.mxu0 %v437
  %6181 = vmatprep.mubr.f32.mxu0 %v6114
  %6182 = vmatmul.mubr.f32.gmra.mxu0 %v6107
  %v6183 = vpop.f32.mrf.mxu0
  %v6184 = vadd.f32 0.0, %v6183
  %v6185 = vpop.f32.mrf.mxu0
  %v6186 = vadd.f32 0.0, %v6185
  %6187 = vdwg.mxu0
  %6188 = vmatprep.subr.mxu0 %v432
  %6189 = vmatpush1.msra.mxu0 %v431
  %6190 = vmatprep.subr.mxu0 %v424
  %6191 = vmatpush1.msra.mxu0 %v423
  %6192 = vmatprep.subr.mxu0 %v416
  %6193 = vmatpush1.msra.mxu0 %v415
  %6194 = vmatprep.subr.mxu0 %v408
  %6195 = vmatpush1.msra.mxu0 %v407
  %6196 = vmatprep.subr.mxu0 %v400
  %6197 = vmatpush1.msra.mxu0 %v399
  %6198 = vmatprep.subr.mxu0 %v392
  %6199 = vmatpush1.msra.mxu0 %v391
  %6200 = vmatprep.subr.mxu0 %v384
  %6201 = vmatpush1.msra.mxu0 %v383
  %6202 = vmatprep.subr.mxu0 %v376
  %6203 = vmatpush1.msra.mxu0 %v375
  %6204 = vmatprep.subr.mxu0 %v368
  %6205 = vmatpush1.msra.mxu0 %v367
  %6206 = vmatprep.subr.mxu0 %v360
  %6207 = vmatpush1.msra.mxu0 %v359
  %6208 = vmatprep.subr.mxu0 %v352
  %6209 = vmatpush1.msra.mxu0 %v351
  %6210 = vmatprep.subr.mxu0 %v344
  %6211 = vmatpush1.msra.mxu0 %v343
  %6212 = vmatprep.subr.mxu0 %v336
  %6213 = vmatpush1.msra.mxu0 %v335
  %6214 = vmatprep.subr.mxu0 %v328
  %6215 = vmatpush1.msra.mxu0 %v327
  %6216 = vmatprep.subr.mxu0 %v320
  %6217 = vmatpush1.msra.mxu0 %v319
  %6218 = vmatprep.subr.mxu0 %v312
  %6219 = vmatpush1.msra.mxu0 %v311
  %6220 = vmatprep.subr.mxu0 %v560
  %6221 = vmatpush2.msra.mxu0 %v559
  %6222 = vmatprep.subr.mxu0 %v552
  %6223 = vmatpush2.msra.mxu0 %v551
  %6224 = vmatprep.subr.mxu0 %v544
  %6225 = vmatpush2.msra.mxu0 %v543
  %6226 = vmatprep.subr.mxu0 %v536
  %6227 = vmatpush2.msra.mxu0 %v535
  %6228 = vmatprep.subr.mxu0 %v528
  %6229 = vmatpush2.msra.mxu0 %v527
  %6230 = vmatprep.subr.mxu0 %v520
  %6231 = vmatpush2.msra.mxu0 %v519
  %6232 = vmatprep.subr.mxu0 %v512
  %6233 = vmatpush2.msra.mxu0 %v511
  %6234 = vmatprep.subr.mxu0 %v504
  %6235 = vmatpush2.msra.mxu0 %v503
  %6236 = vmatprep.subr.mxu0 %v496
  %6237 = vmatpush2.msra.mxu0 %v495
  %6238 = vmatprep.subr.mxu0 %v488
  %6239 = vmatpush2.msra.mxu0 %v487
  %6240 = vmatprep.subr.mxu0 %v480
  %6241 = vmatpush2.msra.mxu0 %v479
  %6242 = vmatprep.subr.mxu0 %v472
  %6243 = vmatpush2.msra.mxu0 %v471
  %6244 = vmatprep.subr.mxu0 %v464
  %6245 = vmatpush2.msra.mxu0 %v463
  %6246 = vmatprep.subr.mxu0 %v456
  %6247 = vmatpush2.msra.mxu0 %v455
  %6248 = vmatprep.subr.mxu0 %v448
  %6249 = vmatpush2.msra.mxu0 %v447
  %6250 = vmatprep.subr.mxu0 %v440
  %6251 = vmatpush2.msra.mxu0 %v439
  %6252 = vmatprep.mubr.f32.mxu0 %v6114
  %6253 = vmatmul.mubr.f32.gmra.mxu0 %v6107
  %v6254 = vpop.f32.mrf.mxu0
  %v6255 = vadd.f32 0.0, %v6254
  %v6256 = vpop.f32.mrf.mxu0
  %v6257 = vadd.f32 0.0, %v6256
  %6258 = vdwg.mxu0
  %6259 = vmatprep.subr.mxu0 %v434
  %6260 = vmatpush1.msra.mxu0 %v433
  %6261 = vmatprep.subr.mxu0 %v426
  %6262 = vmatpush1.msra.mxu0 %v425
  %6263 = vmatprep.subr.mxu0 %v418
  %6264 = vmatpush1.msra.mxu0 %v417
  %6265 = vmatprep.subr.mxu0 %v410
  %6266 = vmatpush1.msra.mxu0 %v409
  %6267 = vmatprep.subr.mxu0 %v402
  %6268 = vmatpush1.msra.mxu0 %v401
  %6269 = vmatprep.subr.mxu0 %v394
  %6270 = vmatpush1.msra.mxu0 %v393
  %6271 = vmatprep.subr.mxu0 %v386
  %6272 = vmatpush1.msra.mxu0 %v385
  %6273 = vmatprep.subr.mxu0 %v378
  %6274 = vmatpush1.msra.mxu0 %v377
  %6275 = vmatprep.subr.mxu0 %v370
  %6276 = vmatpush1.msra.mxu0 %v369
  %6277 = vmatprep.subr.mxu0 %v362
  %6278 = vmatpush1.msra.mxu0 %v361
  %6279 = vmatprep.subr.mxu0 %v354
  %6280 = vmatpush1.msra.mxu0 %v353
  %6281 = vmatprep.subr.mxu0 %v346
  %6282 = vmatpush1.msra.mxu0 %v345
  %6283 = vmatprep.subr.mxu0 %v338
  %6284 = vmatpush1.msra.mxu0 %v337
  %6285 = vmatprep.subr.mxu0 %v330
  %6286 = vmatpush1.msra.mxu0 %v329
  %6287 = vmatprep.subr.mxu0 %v322
  %6288 = vmatpush1.msra.mxu0 %v321
  %6289 = vmatprep.subr.mxu0 %v314
  %6290 = vmatpush1.msra.mxu0 %v313
  %6291 = vmatprep.subr.mxu0 %v562
  %6292 = vmatpush2.msra.mxu0 %v561
  %6293 = vmatprep.subr.mxu0 %v554
  %6294 = vmatpush2.msra.mxu0 %v553
  %6295 = vmatprep.subr.mxu0 %v546
  %6296 = vmatpush2.msra.mxu0 %v545
  %6297 = vmatprep.subr.mxu0 %v538
  %6298 = vmatpush2.msra.mxu0 %v537
  %6299 = vmatprep.subr.mxu0 %v530
  %6300 = vmatpush2.msra.mxu0 %v529
  %6301 = vmatprep.subr.mxu0 %v522
  %6302 = vmatpush2.msra.mxu0 %v521
  %6303 = vmatprep.subr.mxu0 %v514
  %6304 = vmatpush2.msra.mxu0 %v513
  %6305 = vmatprep.subr.mxu0 %v506
  %6306 = vmatpush2.msra.mxu0 %v505
  %6307 = vmatprep.subr.mxu0 %v498
  %6308 = vmatpush2.msra.mxu0 %v497
  %6309 = vmatprep.subr.mxu0 %v490
  %6310 = vmatpush2.msra.mxu0 %v489
  %6311 = vmatprep.subr.mxu0 %v482
  %6312 = vmatpush2.msra.mxu0 %v481
  %6313 = vmatprep.subr.mxu0 %v474
  %6314 = vmatpush2.msra.mxu0 %v473
  %6315 = vmatprep.subr.mxu0 %v466
  %6316 = vmatpush2.msra.mxu0 %v465
  %6317 = vmatprep.subr.mxu0 %v458
  %6318 = vmatpush2.msra.mxu0 %v457
  %6319 = vmatprep.subr.mxu0 %v450
  %6320 = vmatpush2.msra.mxu0 %v449
  %6321 = vmatprep.subr.mxu0 %v442
  %6322 = vmatpush2.msra.mxu0 %v441
  %6323 = vmatprep.mubr.f32.mxu0 %v6114
  %6324 = vmatmul.mubr.f32.gmra.mxu0 %v6107
  %v6325 = vpop.f32.mrf.mxu0
  %v6326 = vadd.f32 0.0, %v6325
  %v6327 = vpop.f32.mrf.mxu0
  %v6328 = vadd.f32 0.0, %v6327
  %6329 = vdwg.mxu0
  %6330 = vmatprep.subr.mxu0 %v436
  %6331 = vmatpush1.msra.mxu0 %v435
  %6332 = vmatprep.subr.mxu0 %v428
  %6333 = vmatpush1.msra.mxu0 %v427
  %6334 = vmatprep.subr.mxu0 %v420
  %6335 = vmatpush1.msra.mxu0 %v419
  %6336 = vmatprep.subr.mxu0 %v412
  %6337 = vmatpush1.msra.mxu0 %v411
  %6338 = vmatprep.subr.mxu0 %v404
  %6339 = vmatpush1.msra.mxu0 %v403
  %6340 = vmatprep.subr.mxu0 %v396
  %6341 = vmatpush1.msra.mxu0 %v395
  %6342 = vmatprep.subr.mxu0 %v388
  %6343 = vmatpush1.msra.mxu0 %v387
  %6344 = vmatprep.subr.mxu0 %v380
  %6345 = vmatpush1.msra.mxu0 %v379
  %6346 = vmatprep.subr.mxu0 %v372
  %6347 = vmatpush1.msra.mxu0 %v371
  %6348 = vmatprep.subr.mxu0 %v364
  %6349 = vmatpush1.msra.mxu0 %v363
  %6350 = vmatprep.subr.mxu0 %v356
  %6351 = vmatpush1.msra.mxu0 %v355
  %6352 = vmatprep.subr.mxu0 %v348
  %6353 = vmatpush1.msra.mxu0 %v347
  %6354 = vmatprep.subr.mxu0 %v340
  %6355 = vmatpush1.msra.mxu0 %v339
  %6356 = vmatprep.subr.mxu0 %v332
  %6357 = vmatpush1.msra.mxu0 %v331
  %6358 = vmatprep.subr.mxu0 %v324
  %6359 = vmatpush1.msra.mxu0 %v323
  %6360 = vmatprep.subr.mxu0 %v316
  %6361 = vmatpush1.msra.mxu0 %v315
  %6362 = vmatprep.subr.mxu0 %v564
  %6363 = vmatpush2.msra.mxu0 %v563
  %6364 = vmatprep.subr.mxu0 %v556
  %6365 = vmatpush2.msra.mxu0 %v555
  %6366 = vmatprep.subr.mxu0 %v548
  %6367 = vmatpush2.msra.mxu0 %v547
  %6368 = vmatprep.subr.mxu0 %v540
  %6369 = vmatpush2.msra.mxu0 %v539
  %6370 = vmatprep.subr.mxu0 %v532
  %6371 = vmatpush2.msra.mxu0 %v531
  %6372 = vmatprep.subr.mxu0 %v524
  %6373 = vmatpush2.msra.mxu0 %v523
  %6374 = vmatprep.subr.mxu0 %v516
  %6375 = vmatpush2.msra.mxu0 %v515
  %6376 = vmatprep.subr.mxu0 %v508
  %6377 = vmatpush2.msra.mxu0 %v507
  %6378 = vmatprep.subr.mxu0 %v500
  %6379 = vmatpush2.msra.mxu0 %v499
  %6380 = vmatprep.subr.mxu0 %v492
  %6381 = vmatpush2.msra.mxu0 %v491
  %6382 = vmatprep.subr.mxu0 %v484
  %6383 = vmatpush2.msra.mxu0 %v483
  %6384 = vmatprep.subr.mxu0 %v476
  %6385 = vmatpush2.msra.mxu0 %v475
  %6386 = vmatprep.subr.mxu0 %v468
  %6387 = vmatpush2.msra.mxu0 %v467
  %6388 = vmatprep.subr.mxu0 %v460
  %6389 = vmatpush2.msra.mxu0 %v459
  %6390 = vmatprep.subr.mxu0 %v452
  %6391 = vmatpush2.msra.mxu0 %v451
  %6392 = vmatprep.subr.mxu0 %v444
  %6393 = vmatpush2.msra.mxu0 %v443
  %6394 = vmatprep.mubr.f32.mxu0 %v6114
  %6395 = vmatmul.mubr.f32.gmra.mxu0 %v6107
  %v6396 = vpop.f32.mrf.mxu0
  %v6397 = vadd.f32 0.0, %v6396
  %v6398 = vpop.f32.mrf.mxu0
  %v6399 = vadd.f32 0.0, %v6398
  %6400 = vdwg.mxu0
  %v6409 = vcombine.low %v6184, %v6186
  %v6410 = vcombine.low %v6255, %v6257
  %v6411 = vcombine.low %v6326, %v6328
  %v6412 = vcombine.low %v6397, %v6399
  %v6414 = vunpack.c.l.s4 1966171168
  %v6415 = vunpack.c.0.s8 %v6414
  %v6416 = vlaneseq
  %v6417 = vshrl.u32 %v6416, 7
  %v6418 = vsub.s32 %v6415, %v6417
  %v6419 = vrot.slane %v6409, %v6418
  %v6421 = vunpack.c.l.s4 1966171168
  %v6422 = vunpack.c.0.s8 %v6421
  %v6423 = vlaneseq
  %v6424 = vshrl.u32 %v6423, 7
  %v6425 = vsub.s32 %v6422, %v6424
  %v6426 = vrot.slane %v6410, %v6425
  %v6428 = vunpack.c.l.s4 1966171168
  %v6429 = vunpack.c.0.s8 %v6428
  %v6430 = vlaneseq
  %v6431 = vshrl.u32 %v6430, 7
  %v6432 = vsub.s32 %v6429, %v6431
  %v6433 = vrot.slane %v6411, %v6432
  %v6435 = vunpack.c.l.s4 1966171168
  %v6436 = vunpack.c.0.s8 %v6435
  %v6437 = vlaneseq
  %v6438 = vshrl.u32 %v6437, 7
  %v6439 = vsub.s32 %v6436, %v6438
  %v6440 = vrot.slane %v6412, %v6439
  %v6441 = vcombine.low %v6419, %v6426
  %v6442 = vcombine.high %v6419, %v6426
  %v6443 = vcombine.low %v6433, %v6440
  %v6444 = vcombine.high %v6433, %v6440
  %v6446 = vunpack.c.l.s4 1966171168
  %v6447 = vunpack.c.0.s8 %v6446
  %v6448 = vlaneseq
  %v6449 = vshrl.u32 %v6448, 7
  %v6450 = vsub.s32 %v6447, %v6449
  %v6451 = vrot.slane %v6441, %v6450
  %v6453 = vunpack.c.l.s4 1966171168
  %v6454 = vunpack.c.0.s8 %v6453
  %v6455 = vlaneseq
  %v6456 = vshrl.u32 %v6455, 7
  %v6457 = vsub.s32 %v6454, %v6456
  %v6458 = vrot.slane %v6442, %v6457
  %v6460 = vunpack.c.l.s4 1966171168
  %v6461 = vunpack.c.0.s8 %v6460
  %v6462 = vlaneseq
  %v6463 = vshrl.u32 %v6462, 7
  %v6464 = vsub.s32 %v6461, %v6463
  %v6465 = vrot.slane %v6443, %v6464
  %v6467 = vunpack.c.l.s4 1966171168
  %v6468 = vunpack.c.0.s8 %v6467
  %v6469 = vlaneseq
  %v6470 = vshrl.u32 %v6469, 7
  %v6471 = vsub.s32 %v6468, %v6470
  %v6472 = vrot.slane %v6444, %v6471
  %v6473 = vcombine.low %v6451, %v6465
  %v6474 = vcombine.low %v6458, %v6472
  %v6477 = vadd.f32 %v6085, %v6473
  %v6478 = vadd.f32 %v6089, %v6474
  %v6479 = vxor.u32 %v6477, 2147483648
  %v6480 = vxor.u32 %v6478, 2147483648
  %v6481 = vmul.f32 %v6479, 1.442695
  %v6482 = vpow.pop %v6481
  %v6483 = vmul.f32 %v6480, 1.442695
  %v6484 = vpow.pop %v6483
  %v6485 = vadd.f32 %v6482, 1.0
  %v6486 = vadd.f32 %v6484, 1.0
  %v6487 = vrcp.pop %v6485
  %v6488 = vmul.f32 1.0, %v6487
  %v6489 = vrcp.pop %v6486
  %v6490 = vmul.f32 1.0, %v6489
  %v6493 = vrot.slane %v6477, 2
  %v6494 = vrot.slane %v6478, 2
  %v6497 = vxor.u32 %v6493, 2147483648
  %v6498 = vxor.u32 %v6494, 2147483648
  %v6499 = vmul.f32 %v6497, 1.442695
  %v6500 = vpow.pop %v6499
  %v6501 = vmul.f32 %v6498, 1.442695
  %v6502 = vpow.pop %v6501
  %v6503 = vadd.f32 %v6500, 1.0
  %v6504 = vadd.f32 %v6502, 1.0
  %v6505 = vrcp.pop %v6503
  %v6506 = vmul.f32 1.0, %v6505
  %v6507 = vrcp.pop %v6504
  %v6508 = vmul.f32 1.0, %v6507
  %v6509 = vrot.slane %v6477, 4
  %v6510 = vrot.slane %v6478, 4
  %v6513 = vtanh.pop %v6509
  %v6514 = vtanh.pop %v6510
  %v6515 = vrot.slane %v6477, 6
  %v6516 = vrot.slane %v6478, 6
  %v6519 = vxor.u32 %v6515, 2147483648
  %v6520 = vxor.u32 %v6516, 2147483648
  %v6521 = vmul.f32 %v6519, 1.442695
  %v6522 = vpow.pop %v6521
  %v6523 = vmul.f32 %v6520, 1.442695
  %v6524 = vpow.pop %v6523
  %v6525 = vadd.f32 %v6522, 1.0
  %v6526 = vadd.f32 %v6524, 1.0
  %v6527 = vrcp.pop %v6525
  %v6528 = vmul.f32 1.0, %v6527
  %v6529 = vrcp.pop %v6526
  %v6530 = vmul.f32 1.0, %v6529
  %v6531 = vmul.f32 %v6506, %v6076
  %v6532 = vmul.f32 %v6508, %v6077
  %v6533 = vmul.f32 %v6488, %v6513
  %v6534 = vmul.f32 %v6490, %v6514
  %v6535 = vadd.f32 %v6531, %v6533
  %v6536 = vadd.f32 %v6532, %v6534
  %v6537 = vtanh.pop %v6535
  %v6538 = vtanh.pop %v6536
  %v6539 = vmul.f32 %v6528, %v6537
  %v6540 = vmul.f32 %v6530, %v6538
  %s6541 = scalar_lea.vmem [#allocation4], 3
  %v6542 = vld [vmem:[%s6541] ss:$8 sm:$0xf]
  %v6543 = vld [vmem:[%s6541] ss:$8 sm:$0xf0]
  %v6544 = vor.u32 %v6542, %v6543
  %s6545 = scalar_lea.vmem [#allocation4], 67
  %v6546 = vld [vmem:[%s6545] ss:$8 sm:$0xf]
  %v6547 = vld [vmem:[%s6545] ss:$8 sm:$0xf0]
  %v6548 = vor.u32 %v6546, %v6547
  %v6551 = vcombine.low %v6539, %v6540
  %v6553 = vunpack.c.l.s4 1966171168
  %v6554 = vunpack.c.0.s8 %v6553
  %v6555 = vlaneseq
  %v6556 = vshrl.u32 %v6555, 7
  %v6557 = vsub.s32 %v6554, %v6556
  %v6558 = vrot.slane %v6551, %v6557
  %v6559 = vcombine.high %v6558, %v6558
  %v6561 = vunpack.c.l.s4 1966171168
  %v6562 = vunpack.c.0.s8 %v6561
  %v6563 = vlaneseq
  %v6564 = vshrl.u32 %v6563, 7
  %v6565 = vsub.s32 %v6562, %v6564
  %v6566 = vrot.slane %v6558, %v6565
  %v6568 = vunpack.c.l.s4 1966171168
  %v6569 = vunpack.c.0.s8 %v6568
  %v6570 = vlaneseq
  %v6571 = vshrl.u32 %v6570, 7
  %v6572 = vsub.s32 %v6569, %v6571
  %v6573 = vrot.slane %v6559, %v6572
  %6576 = vmatprep.subr.mxu0 %v430
  %6577 = vmatpush1.msra.mxu0 %v429
  %6578 = vmatprep.subr.mxu0 %v422
  %6579 = vmatpush1.msra.mxu0 %v421
  %6580 = vmatprep.subr.mxu0 %v414
  %6581 = vmatpush1.msra.mxu0 %v413
  %6582 = vmatprep.subr.mxu0 %v406
  %6583 = vmatpush1.msra.mxu0 %v405
  %6584 = vmatprep.subr.mxu0 %v398
  %6585 = vmatpush1.msra.mxu0 %v397
  %6586 = vmatprep.subr.mxu0 %v390
  %6587 = vmatpush1.msra.mxu0 %v389
  %6588 = vmatprep.subr.mxu0 %v382
  %6589 = vmatpush1.msra.mxu0 %v381
  %6590 = vmatprep.subr.mxu0 %v374
  %6591 = vmatpush1.msra.mxu0 %v373
  %6592 = vmatprep.subr.mxu0 %v366
  %6593 = vmatpush1.msra.mxu0 %v365
  %6594 = vmatprep.subr.mxu0 %v358
  %6595 = vmatpush1.msra.mxu0 %v357
  %6596 = vmatprep.subr.mxu0 %v350
  %6597 = vmatpush1.msra.mxu0 %v349
  %6598 = vmatprep.subr.mxu0 %v342
  %6599 = vmatpush1.msra.mxu0 %v341
  %6600 = vmatprep.subr.mxu0 %v334
  %6601 = vmatpush1.msra.mxu0 %v333
  %6602 = vmatprep.subr.mxu0 %v326
  %6603 = vmatpush1.msra.mxu0 %v325
  %6604 = vmatprep.subr.mxu0 %v318
  %6605 = vmatpush1.msra.mxu0 %v317
  %6606 = vmatprep.subr.mxu0 %v310
  %6607 = vmatpush1.msra.mxu0 %v309
  %6608 = vmatprep.subr.mxu0 %v558
  %6609 = vmatpush2.msra.mxu0 %v557
  %6610 = vmatprep.subr.mxu0 %v550
  %6611 = vmatpush2.msra.mxu0 %v549
  %6612 = vmatprep.subr.mxu0 %v542
  %6613 = vmatpush2.msra.mxu0 %v541
  %6614 = vmatprep.subr.mxu0 %v534
  %6615 = vmatpush2.msra.mxu0 %v533
  %6616 = vmatprep.subr.mxu0 %v526
  %6617 = vmatpush2.msra.mxu0 %v525
  %6618 = vmatprep.subr.mxu0 %v518
  %6619 = vmatpush2.msra.mxu0 %v517
  %6620 = vmatprep.subr.mxu0 %v510
  %6621 = vmatpush2.msra.mxu0 %v509
  %6622 = vmatprep.subr.mxu0 %v502
  %6623 = vmatpush2.msra.mxu0 %v501
  %6624 = vmatprep.subr.mxu0 %v494
  %6625 = vmatpush2.msra.mxu0 %v493
  %6626 = vmatprep.subr.mxu0 %v486
  %6627 = vmatpush2.msra.mxu0 %v485
  %6628 = vmatprep.subr.mxu0 %v478
  %6629 = vmatpush2.msra.mxu0 %v477
  %6630 = vmatprep.subr.mxu0 %v470
  %6631 = vmatpush2.msra.mxu0 %v469
  %6632 = vmatprep.subr.mxu0 %v462
  %6633 = vmatpush2.msra.mxu0 %v461
  %6634 = vmatprep.subr.mxu0 %v454
  %6635 = vmatpush2.msra.mxu0 %v453
  %6636 = vmatprep.subr.mxu0 %v446
  %6637 = vmatpush2.msra.mxu0 %v445
  %6638 = vmatprep.subr.mxu0 %v438
  %6639 = vmatpush2.msra.mxu0 %v437
  %6640 = vmatprep.mubr.f32.mxu0 %v6573
  %6641 = vmatmul.mubr.f32.gmra.mxu0 %v6566
  %v6642 = vpop.f32.mrf.mxu0
  %v6643 = vadd.f32 0.0, %v6642
  %v6644 = vpop.f32.mrf.mxu0
  %v6645 = vadd.f32 0.0, %v6644
  %6646 = vdwg.mxu0
  %6647 = vmatprep.subr.mxu0 %v432
  %6648 = vmatpush1.msra.mxu0 %v431
  %6649 = vmatprep.subr.mxu0 %v424
  %6650 = vmatpush1.msra.mxu0 %v423
  %6651 = vmatprep.subr.mxu0 %v416
  %6652 = vmatpush1.msra.mxu0 %v415
  %6653 = vmatprep.subr.mxu0 %v408
  %6654 = vmatpush1.msra.mxu0 %v407
  %6655 = vmatprep.subr.mxu0 %v400
  %6656 = vmatpush1.msra.mxu0 %v399
  %6657 = vmatprep.subr.mxu0 %v392
  %6658 = vmatpush1.msra.mxu0 %v391
  %6659 = vmatprep.subr.mxu0 %v384
  %6660 = vmatpush1.msra.mxu0 %v383
  %6661 = vmatprep.subr.mxu0 %v376
  %6662 = vmatpush1.msra.mxu0 %v375
  %6663 = vmatprep.subr.mxu0 %v368
  %6664 = vmatpush1.msra.mxu0 %v367
  %6665 = vmatprep.subr.mxu0 %v360
  %6666 = vmatpush1.msra.mxu0 %v359
  %6667 = vmatprep.subr.mxu0 %v352
  %6668 = vmatpush1.msra.mxu0 %v351
  %6669 = vmatprep.subr.mxu0 %v344
  %6670 = vmatpush1.msra.mxu0 %v343
  %6671 = vmatprep.subr.mxu0 %v336
  %6672 = vmatpush1.msra.mxu0 %v335
  %6673 = vmatprep.subr.mxu0 %v328
  %6674 = vmatpush1.msra.mxu0 %v327
  %6675 = vmatprep.subr.mxu0 %v320
  %6676 = vmatpush1.msra.mxu0 %v319
  %6677 = vmatprep.subr.mxu0 %v312
  %6678 = vmatpush1.msra.mxu0 %v311
  %6679 = vmatprep.subr.mxu0 %v560
  %6680 = vmatpush2.msra.mxu0 %v559
  %6681 = vmatprep.subr.mxu0 %v552
  %6682 = vmatpush2.msra.mxu0 %v551
  %6683 = vmatprep.subr.mxu0 %v544
  %6684 = vmatpush2.msra.mxu0 %v543
  %6685 = vmatprep.subr.mxu0 %v536
  %6686 = vmatpush2.msra.mxu0 %v535
  %6687 = vmatprep.subr.mxu0 %v528
  %6688 = vmatpush2.msra.mxu0 %v527
  %6689 = vmatprep.subr.mxu0 %v520
  %6690 = vmatpush2.msra.mxu0 %v519
  %6691 = vmatprep.subr.mxu0 %v512
  %6692 = vmatpush2.msra.mxu0 %v511
  %6693 = vmatprep.subr.mxu0 %v504
  %6694 = vmatpush2.msra.mxu0 %v503
  %6695 = vmatprep.subr.mxu0 %v496
  %6696 = vmatpush2.msra.mxu0 %v495
  %6697 = vmatprep.subr.mxu0 %v488
  %6698 = vmatpush2.msra.mxu0 %v487
  %6699 = vmatprep.subr.mxu0 %v480
  %6700 = vmatpush2.msra.mxu0 %v479
  %6701 = vmatprep.subr.mxu0 %v472
  %6702 = vmatpush2.msra.mxu0 %v471
  %6703 = vmatprep.subr.mxu0 %v464
  %6704 = vmatpush2.msra.mxu0 %v463
  %6705 = vmatprep.subr.mxu0 %v456
  %6706 = vmatpush2.msra.mxu0 %v455
  %6707 = vmatprep.subr.mxu0 %v448
  %6708 = vmatpush2.msra.mxu0 %v447
  %6709 = vmatprep.subr.mxu0 %v440
  %6710 = vmatpush2.msra.mxu0 %v439
  %6711 = vmatprep.mubr.f32.mxu0 %v6573
  %6712 = vmatmul.mubr.f32.gmra.mxu0 %v6566
  %v6713 = vpop.f32.mrf.mxu0
  %v6714 = vadd.f32 0.0, %v6713
  %v6715 = vpop.f32.mrf.mxu0
  %v6716 = vadd.f32 0.0, %v6715
  %6717 = vdwg.mxu0
  %6718 = vmatprep.subr.mxu0 %v434
  %6719 = vmatpush1.msra.mxu0 %v433
  %6720 = vmatprep.subr.mxu0 %v426
  %6721 = vmatpush1.msra.mxu0 %v425
  %6722 = vmatprep.subr.mxu0 %v418
  %6723 = vmatpush1.msra.mxu0 %v417
  %6724 = vmatprep.subr.mxu0 %v410
  %6725 = vmatpush1.msra.mxu0 %v409
  %6726 = vmatprep.subr.mxu0 %v402
  %6727 = vmatpush1.msra.mxu0 %v401
  %6728 = vmatprep.subr.mxu0 %v394
  %6729 = vmatpush1.msra.mxu0 %v393
  %6730 = vmatprep.subr.mxu0 %v386
  %6731 = vmatpush1.msra.mxu0 %v385
  %6732 = vmatprep.subr.mxu0 %v378
  %6733 = vmatpush1.msra.mxu0 %v377
  %6734 = vmatprep.subr.mxu0 %v370
  %6735 = vmatpush1.msra.mxu0 %v369
  %6736 = vmatprep.subr.mxu0 %v362
  %6737 = vmatpush1.msra.mxu0 %v361
  %6738 = vmatprep.subr.mxu0 %v354
  %6739 = vmatpush1.msra.mxu0 %v353
  %6740 = vmatprep.subr.mxu0 %v346
  %6741 = vmatpush1.msra.mxu0 %v345
  %6742 = vmatprep.subr.mxu0 %v338
  %6743 = vmatpush1.msra.mxu0 %v337
  %6744 = vmatprep.subr.mxu0 %v330
  %6745 = vmatpush1.msra.mxu0 %v329
  %6746 = vmatprep.subr.mxu0 %v322
  %6747 = vmatpush1.msra.mxu0 %v321
  %6748 = vmatprep.subr.mxu0 %v314
  %6749 = vmatpush1.msra.mxu0 %v313
  %6750 = vmatprep.subr.mxu0 %v562
  %6751 = vmatpush2.msra.mxu0 %v561
  %6752 = vmatprep.subr.mxu0 %v554
  %6753 = vmatpush2.msra.mxu0 %v553
  %6754 = vmatprep.subr.mxu0 %v546
  %6755 = vmatpush2.msra.mxu0 %v545
  %6756 = vmatprep.subr.mxu0 %v538
  %6757 = vmatpush2.msra.mxu0 %v537
  %6758 = vmatprep.subr.mxu0 %v530
  %6759 = vmatpush2.msra.mxu0 %v529
  %6760 = vmatprep.subr.mxu0 %v522
  %6761 = vmatpush2.msra.mxu0 %v521
  %6762 = vmatprep.subr.mxu0 %v514
  %6763 = vmatpush2.msra.mxu0 %v513
  %6764 = vmatprep.subr.mxu0 %v506
  %6765 = vmatpush2.msra.mxu0 %v505
  %6766 = vmatprep.subr.mxu0 %v498
  %6767 = vmatpush2.msra.mxu0 %v497
  %6768 = vmatprep.subr.mxu0 %v490
  %6769 = vmatpush2.msra.mxu0 %v489
  %6770 = vmatprep.subr.mxu0 %v482
  %6771 = vmatpush2.msra.mxu0 %v481
  %6772 = vmatprep.subr.mxu0 %v474
  %6773 = vmatpush2.msra.mxu0 %v473
  %6774 = vmatprep.subr.mxu0 %v466
  %6775 = vmatpush2.msra.mxu0 %v465
  %6776 = vmatprep.subr.mxu0 %v458
  %6777 = vmatpush2.msra.mxu0 %v457
  %6778 = vmatprep.subr.mxu0 %v450
  %6779 = vmatpush2.msra.mxu0 %v449
  %6780 = vmatprep.subr.mxu0 %v442
  %6781 = vmatpush2.msra.mxu0 %v441
  %6782 = vmatprep.mubr.f32.mxu0 %v6573
  %6783 = vmatmul.mubr.f32.gmra.mxu0 %v6566
  %v6784 = vpop.f32.mrf.mxu0
  %v6785 = vadd.f32 0.0, %v6784
  %v6786 = vpop.f32.mrf.mxu0
  %v6787 = vadd.f32 0.0, %v6786
  %6788 = vdwg.mxu0
  %6789 = vmatprep.subr.mxu0 %v436
  %6790 = vmatpush1.msra.mxu0 %v435
  %6791 = vmatprep.subr.mxu0 %v428
  %6792 = vmatpush1.msra.mxu0 %v427
  %6793 = vmatprep.subr.mxu0 %v420
  %6794 = vmatpush1.msra.mxu0 %v419
  %6795 = vmatprep.subr.mxu0 %v412
  %6796 = vmatpush1.msra.mxu0 %v411
  %6797 = vmatprep.subr.mxu0 %v404
  %6798 = vmatpush1.msra.mxu0 %v403
  %6799 = vmatprep.subr.mxu0 %v396
  %6800 = vmatpush1.msra.mxu0 %v395
  %6801 = vmatprep.subr.mxu0 %v388
  %6802 = vmatpush1.msra.mxu0 %v387
  %6803 = vmatprep.subr.mxu0 %v380
  %6804 = vmatpush1.msra.mxu0 %v379
  %6805 = vmatprep.subr.mxu0 %v372
  %6806 = vmatpush1.msra.mxu0 %v371
  %6807 = vmatprep.subr.mxu0 %v364
  %6808 = vmatpush1.msra.mxu0 %v363
  %6809 = vmatprep.subr.mxu0 %v356
  %6810 = vmatpush1.msra.mxu0 %v355
  %6811 = vmatprep.subr.mxu0 %v348
  %6812 = vmatpush1.msra.mxu0 %v347
  %6813 = vmatprep.subr.mxu0 %v340
  %6814 = vmatpush1.msra.mxu0 %v339
  %6815 = vmatprep.subr.mxu0 %v332
  %6816 = vmatpush1.msra.mxu0 %v331
  %6817 = vmatprep.subr.mxu0 %v324
  %6818 = vmatpush1.msra.mxu0 %v323
  %6819 = vmatprep.subr.mxu0 %v316
  %6820 = vmatpush1.msra.mxu0 %v315
  %6821 = vmatprep.subr.mxu0 %v564
  %6822 = vmatpush2.msra.mxu0 %v563
  %6823 = vmatprep.subr.mxu0 %v556
  %6824 = vmatpush2.msra.mxu0 %v555
  %6825 = vmatprep.subr.mxu0 %v548
  %6826 = vmatpush2.msra.mxu0 %v547
  %6827 = vmatprep.subr.mxu0 %v540
  %6828 = vmatpush2.msra.mxu0 %v539
  %6829 = vmatprep.subr.mxu0 %v532
  %6830 = vmatpush2.msra.mxu0 %v531
  %6831 = vmatprep.subr.mxu0 %v524
  %6832 = vmatpush2.msra.mxu0 %v523
  %6833 = vmatprep.subr.mxu0 %v516
  %6834 = vmatpush2.msra.mxu0 %v515
  %6835 = vmatprep.subr.mxu0 %v508
  %6836 = vmatpush2.msra.mxu0 %v507
  %6837 = vmatprep.subr.mxu0 %v500
  %6838 = vmatpush2.msra.mxu0 %v499
  %6839 = vmatprep.subr.mxu0 %v492
  %6840 = vmatpush2.msra.mxu0 %v491
  %6841 = vmatprep.subr.mxu0 %v484
  %6842 = vmatpush2.msra.mxu0 %v483
  %6843 = vmatprep.subr.mxu0 %v476
  %6844 = vmatpush2.msra.mxu0 %v475
  %6845 = vmatprep.subr.mxu0 %v468
  %6846 = vmatpush2.msra.mxu0 %v467
  %6847 = vmatprep.subr.mxu0 %v460
  %6848 = vmatpush2.msra.mxu0 %v459
  %6849 = vmatprep.subr.mxu0 %v452
  %6850 = vmatpush2.msra.mxu0 %v451
  %6851 = vmatprep.subr.mxu0 %v444
  %6852 = vmatpush2.msra.mxu0 %v443
  %6853 = vmatprep.mubr.f32.mxu0 %v6573
  %6854 = vmatmul.mubr.f32.gmra.mxu0 %v6566
  %v6855 = vpop.f32.mrf.mxu0
  %v6856 = vadd.f32 0.0, %v6855
  %v6857 = vpop.f32.mrf.mxu0
  %v6858 = vadd.f32 0.0, %v6857
  %6859 = vdwg.mxu0
  %v6868 = vcombine.low %v6643, %v6645
  %v6869 = vcombine.low %v6714, %v6716
  %v6870 = vcombine.low %v6785, %v6787
  %v6871 = vcombine.low %v6856, %v6858
  %v6873 = vunpack.c.l.s4 1966171168
  %v6874 = vunpack.c.0.s8 %v6873
  %v6875 = vlaneseq
  %v6876 = vshrl.u32 %v6875, 7
  %v6877 = vsub.s32 %v6874, %v6876
  %v6878 = vrot.slane %v6868, %v6877
  %v6880 = vunpack.c.l.s4 1966171168
  %v6881 = vunpack.c.0.s8 %v6880
  %v6882 = vlaneseq
  %v6883 = vshrl.u32 %v6882, 7
  %v6884 = vsub.s32 %v6881, %v6883
  %v6885 = vrot.slane %v6869, %v6884
  %v6887 = vunpack.c.l.s4 1966171168
  %v6888 = vunpack.c.0.s8 %v6887
  %v6889 = vlaneseq
  %v6890 = vshrl.u32 %v6889, 7
  %v6891 = vsub.s32 %v6888, %v6890
  %v6892 = vrot.slane %v6870, %v6891
  %v6894 = vunpack.c.l.s4 1966171168
  %v6895 = vunpack.c.0.s8 %v6894
  %v6896 = vlaneseq
  %v6897 = vshrl.u32 %v6896, 7
  %v6898 = vsub.s32 %v6895, %v6897
  %v6899 = vrot.slane %v6871, %v6898
  %v6900 = vcombine.low %v6878, %v6885
  %v6901 = vcombine.high %v6878, %v6885
  %v6902 = vcombine.low %v6892, %v6899
  %v6903 = vcombine.high %v6892, %v6899
  %v6905 = vunpack.c.l.s4 1966171168
  %v6906 = vunpack.c.0.s8 %v6905
  %v6907 = vlaneseq
  %v6908 = vshrl.u32 %v6907, 7
  %v6909 = vsub.s32 %v6906, %v6908
  %v6910 = vrot.slane %v6900, %v6909
  %v6912 = vunpack.c.l.s4 1966171168
  %v6913 = vunpack.c.0.s8 %v6912
  %v6914 = vlaneseq
  %v6915 = vshrl.u32 %v6914, 7
  %v6916 = vsub.s32 %v6913, %v6915
  %v6917 = vrot.slane %v6901, %v6916
  %v6919 = vunpack.c.l.s4 1966171168
  %v6920 = vunpack.c.0.s8 %v6919
  %v6921 = vlaneseq
  %v6922 = vshrl.u32 %v6921, 7
  %v6923 = vsub.s32 %v6920, %v6922
  %v6924 = vrot.slane %v6902, %v6923
  %v6926 = vunpack.c.l.s4 1966171168
  %v6927 = vunpack.c.0.s8 %v6926
  %v6928 = vlaneseq
  %v6929 = vshrl.u32 %v6928, 7
  %v6930 = vsub.s32 %v6927, %v6929
  %v6931 = vrot.slane %v6903, %v6930
  %v6932 = vcombine.low %v6910, %v6924
  %v6933 = vcombine.low %v6917, %v6931
  %v6936 = vadd.f32 %v6544, %v6932
  %v6937 = vadd.f32 %v6548, %v6933
  %v6938 = vxor.u32 %v6936, 2147483648
  %v6939 = vxor.u32 %v6937, 2147483648
  %v6940 = vmul.f32 %v6938, 1.442695
  %v6941 = vpow.pop %v6940
  %v6942 = vmul.f32 %v6939, 1.442695
  %v6943 = vpow.pop %v6942
  %v6944 = vadd.f32 %v6941, 1.0
  %v6945 = vadd.f32 %v6943, 1.0
  %v6946 = vrcp.pop %v6944
  %v6947 = vmul.f32 1.0, %v6946
  %v6948 = vrcp.pop %v6945
  %v6949 = vmul.f32 1.0, %v6948
  %v6952 = vrot.slane %v6936, 2
  %v6953 = vrot.slane %v6937, 2
  %v6956 = vxor.u32 %v6952, 2147483648
  %v6957 = vxor.u32 %v6953, 2147483648
  %v6958 = vmul.f32 %v6956, 1.442695
  %v6959 = vpow.pop %v6958
  %v6960 = vmul.f32 %v6957, 1.442695
  %v6961 = vpow.pop %v6960
  %v6962 = vadd.f32 %v6959, 1.0
  %v6963 = vadd.f32 %v6961, 1.0
  %v6964 = vrcp.pop %v6962
  %v6965 = vmul.f32 1.0, %v6964
  %v6966 = vrcp.pop %v6963
  %v6967 = vmul.f32 1.0, %v6966
  %v6968 = vrot.slane %v6936, 4
  %v6969 = vrot.slane %v6937, 4
  %v6972 = vtanh.pop %v6968
  %v6973 = vtanh.pop %v6969
  %v6974 = vrot.slane %v6936, 6
  %v6975 = vrot.slane %v6937, 6
  %v6978 = vxor.u32 %v6974, 2147483648
  %v6979 = vxor.u32 %v6975, 2147483648
  %v6980 = vmul.f32 %v6978, 1.442695
  %v6981 = vpow.pop %v6980
  %v6982 = vmul.f32 %v6979, 1.442695
  %v6983 = vpow.pop %v6982
  %v6984 = vadd.f32 %v6981, 1.0
  %v6985 = vadd.f32 %v6983, 1.0
  %v6986 = vrcp.pop %v6984
  %v6987 = vmul.f32 1.0, %v6986
  %v6988 = vrcp.pop %v6985
  %v6989 = vmul.f32 1.0, %v6988
  %v6990 = vmul.f32 %v6965, %v6535
  %v6991 = vmul.f32 %v6967, %v6536
  %v6992 = vmul.f32 %v6947, %v6972
  %v6993 = vmul.f32 %v6949, %v6973
  %v6994 = vadd.f32 %v6990, %v6992
  %v6995 = vadd.f32 %v6991, %v6993
  %v6996 = vtanh.pop %v6994
  %v6997 = vtanh.pop %v6995
  %v6998 = vmul.f32 %v6987, %v6996
  %v6999 = vmul.f32 %v6989, %v6997
  %s7000 = scalar_lea.vmem [#allocation4], 4
  %v7001 = vld [vmem:[%s7000] ss:$8 sm:$0xf]
  %v7002 = vld [vmem:[%s7000] ss:$8 sm:$0xf0]
  %v7003 = vor.u32 %v7001, %v7002
  %s7004 = scalar_lea.vmem [#allocation4], 68
  %v7005 = vld [vmem:[%s7004] ss:$8 sm:$0xf]
  %v7006 = vld [vmem:[%s7004] ss:$8 sm:$0xf0]
  %v7007 = vor.u32 %v7005, %v7006
  %v7010 = vcombine.low %v6998, %v6999
  %v7012 = vunpack.c.l.s4 1966171168
  %v7013 = vunpack.c.0.s8 %v7012
  %v7014 = vlaneseq
  %v7015 = vshrl.u32 %v7014, 7
  %v7016 = vsub.s32 %v7013, %v7015
  %v7017 = vrot.slane %v7010, %v7016
  %v7018 = vcombine.high %v7017, %v7017
  %v7020 = vunpack.c.l.s4 1966171168
  %v7021 = vunpack.c.0.s8 %v7020
  %v7022 = vlaneseq
  %v7023 = vshrl.u32 %v7022, 7
  %v7024 = vsub.s32 %v7021, %v7023
  %v7025 = vrot.slane %v7017, %v7024
  %v7027 = vunpack.c.l.s4 1966171168
  %v7028 = vunpack.c.0.s8 %v7027
  %v7029 = vlaneseq
  %v7030 = vshrl.u32 %v7029, 7
  %v7031 = vsub.s32 %v7028, %v7030
  %v7032 = vrot.slane %v7018, %v7031
  %7035 = vmatprep.subr.mxu0 %v430
  %7036 = vmatpush1.msra.mxu0 %v429
  %7037 = vmatprep.subr.mxu0 %v422
  %7038 = vmatpush1.msra.mxu0 %v421
  %7039 = vmatprep.subr.mxu0 %v414
  %7040 = vmatpush1.msra.mxu0 %v413
  %7041 = vmatprep.subr.mxu0 %v406
  %7042 = vmatpush1.msra.mxu0 %v405
  %7043 = vmatprep.subr.mxu0 %v398
  %7044 = vmatpush1.msra.mxu0 %v397
  %7045 = vmatprep.subr.mxu0 %v390
  %7046 = vmatpush1.msra.mxu0 %v389
  %7047 = vmatprep.subr.mxu0 %v382
  %7048 = vmatpush1.msra.mxu0 %v381
  %7049 = vmatprep.subr.mxu0 %v374
  %7050 = vmatpush1.msra.mxu0 %v373
  %7051 = vmatprep.subr.mxu0 %v366
  %7052 = vmatpush1.msra.mxu0 %v365
  %7053 = vmatprep.subr.mxu0 %v358
  %7054 = vmatpush1.msra.mxu0 %v357
  %7055 = vmatprep.subr.mxu0 %v350
  %7056 = vmatpush1.msra.mxu0 %v349
  %7057 = vmatprep.subr.mxu0 %v342
  %7058 = vmatpush1.msra.mxu0 %v341
  %7059 = vmatprep.subr.mxu0 %v334
  %7060 = vmatpush1.msra.mxu0 %v333
  %7061 = vmatprep.subr.mxu0 %v326
  %7062 = vmatpush1.msra.mxu0 %v325
  %7063 = vmatprep.subr.mxu0 %v318
  %7064 = vmatpush1.msra.mxu0 %v317
  %7065 = vmatprep.subr.mxu0 %v310
  %7066 = vmatpush1.msra.mxu0 %v309
  %7067 = vmatprep.subr.mxu0 %v558
  %7068 = vmatpush2.msra.mxu0 %v557
  %7069 = vmatprep.subr.mxu0 %v550
  %7070 = vmatpush2.msra.mxu0 %v549
  %7071 = vmatprep.subr.mxu0 %v542
  %7072 = vmatpush2.msra.mxu0 %v541
  %7073 = vmatprep.subr.mxu0 %v534
  %7074 = vmatpush2.msra.mxu0 %v533
  %7075 = vmatprep.subr.mxu0 %v526
  %7076 = vmatpush2.msra.mxu0 %v525
  %7077 = vmatprep.subr.mxu0 %v518
  %7078 = vmatpush2.msra.mxu0 %v517
  %7079 = vmatprep.subr.mxu0 %v510
  %7080 = vmatpush2.msra.mxu0 %v509
  %7081 = vmatprep.subr.mxu0 %v502
  %7082 = vmatpush2.msra.mxu0 %v501
  %7083 = vmatprep.subr.mxu0 %v494
  %7084 = vmatpush2.msra.mxu0 %v493
  %7085 = vmatprep.subr.mxu0 %v486
  %7086 = vmatpush2.msra.mxu0 %v485
  %7087 = vmatprep.subr.mxu0 %v478
  %7088 = vmatpush2.msra.mxu0 %v477
  %7089 = vmatprep.subr.mxu0 %v470
  %7090 = vmatpush2.msra.mxu0 %v469
  %7091 = vmatprep.subr.mxu0 %v462
  %7092 = vmatpush2.msra.mxu0 %v461
  %7093 = vmatprep.subr.mxu0 %v454
  %7094 = vmatpush2.msra.mxu0 %v453
  %7095 = vmatprep.subr.mxu0 %v446
  %7096 = vmatpush2.msra.mxu0 %v445
  %7097 = vmatprep.subr.mxu0 %v438
  %7098 = vmatpush2.msra.mxu0 %v437
  %7099 = vmatprep.mubr.f32.mxu0 %v7032
  %7100 = vmatmul.mubr.f32.gmra.mxu0 %v7025
  %v7101 = vpop.f32.mrf.mxu0
  %v7102 = vadd.f32 0.0, %v7101
  %v7103 = vpop.f32.mrf.mxu0
  %v7104 = vadd.f32 0.0, %v7103
  %7105 = vdwg.mxu0
  %7106 = vmatprep.subr.mxu0 %v432
  %7107 = vmatpush1.msra.mxu0 %v431
  %7108 = vmatprep.subr.mxu0 %v424
  %7109 = vmatpush1.msra.mxu0 %v423
  %7110 = vmatprep.subr.mxu0 %v416
  %7111 = vmatpush1.msra.mxu0 %v415
  %7112 = vmatprep.subr.mxu0 %v408
  %7113 = vmatpush1.msra.mxu0 %v407
  %7114 = vmatprep.subr.mxu0 %v400
  %7115 = vmatpush1.msra.mxu0 %v399
  %7116 = vmatprep.subr.mxu0 %v392
  %7117 = vmatpush1.msra.mxu0 %v391
  %7118 = vmatprep.subr.mxu0 %v384
  %7119 = vmatpush1.msra.mxu0 %v383
  %7120 = vmatprep.subr.mxu0 %v376
  %7121 = vmatpush1.msra.mxu0 %v375
  %7122 = vmatprep.subr.mxu0 %v368
  %7123 = vmatpush1.msra.mxu0 %v367
  %7124 = vmatprep.subr.mxu0 %v360
  %7125 = vmatpush1.msra.mxu0 %v359
  %7126 = vmatprep.subr.mxu0 %v352
  %7127 = vmatpush1.msra.mxu0 %v351
  %7128 = vmatprep.subr.mxu0 %v344
  %7129 = vmatpush1.msra.mxu0 %v343
  %7130 = vmatprep.subr.mxu0 %v336
  %7131 = vmatpush1.msra.mxu0 %v335
  %7132 = vmatprep.subr.mxu0 %v328
  %7133 = vmatpush1.msra.mxu0 %v327
  %7134 = vmatprep.subr.mxu0 %v320
  %7135 = vmatpush1.msra.mxu0 %v319
  %7136 = vmatprep.subr.mxu0 %v312
  %7137 = vmatpush1.msra.mxu0 %v311
  %7138 = vmatprep.subr.mxu0 %v560
  %7139 = vmatpush2.msra.mxu0 %v559
  %7140 = vmatprep.subr.mxu0 %v552
  %7141 = vmatpush2.msra.mxu0 %v551
  %7142 = vmatprep.subr.mxu0 %v544
  %7143 = vmatpush2.msra.mxu0 %v543
  %7144 = vmatprep.subr.mxu0 %v536
  %7145 = vmatpush2.msra.mxu0 %v535
  %7146 = vmatprep.subr.mxu0 %v528
  %7147 = vmatpush2.msra.mxu0 %v527
  %7148 = vmatprep.subr.mxu0 %v520
  %7149 = vmatpush2.msra.mxu0 %v519
  %7150 = vmatprep.subr.mxu0 %v512
  %7151 = vmatpush2.msra.mxu0 %v511
  %7152 = vmatprep.subr.mxu0 %v504
  %7153 = vmatpush2.msra.mxu0 %v503
  %7154 = vmatprep.subr.mxu0 %v496
  %7155 = vmatpush2.msra.mxu0 %v495
  %7156 = vmatprep.subr.mxu0 %v488
  %7157 = vmatpush2.msra.mxu0 %v487
  %7158 = vmatprep.subr.mxu0 %v480
  %7159 = vmatpush2.msra.mxu0 %v479
  %7160 = vmatprep.subr.mxu0 %v472
  %7161 = vmatpush2.msra.mxu0 %v471
  %7162 = vmatprep.subr.mxu0 %v464
  %7163 = vmatpush2.msra.mxu0 %v463
  %7164 = vmatprep.subr.mxu0 %v456
  %7165 = vmatpush2.msra.mxu0 %v455
  %7166 = vmatprep.subr.mxu0 %v448
  %7167 = vmatpush2.msra.mxu0 %v447
  %7168 = vmatprep.subr.mxu0 %v440
  %7169 = vmatpush2.msra.mxu0 %v439
  %7170 = vmatprep.mubr.f32.mxu0 %v7032
  %7171 = vmatmul.mubr.f32.gmra.mxu0 %v7025
  %v7172 = vpop.f32.mrf.mxu0
  %v7173 = vadd.f32 0.0, %v7172
  %v7174 = vpop.f32.mrf.mxu0
  %v7175 = vadd.f32 0.0, %v7174
  %7176 = vdwg.mxu0
  %7177 = vmatprep.subr.mxu0 %v434
  %7178 = vmatpush1.msra.mxu0 %v433
  %7179 = vmatprep.subr.mxu0 %v426
  %7180 = vmatpush1.msra.mxu0 %v425
  %7181 = vmatprep.subr.mxu0 %v418
  %7182 = vmatpush1.msra.mxu0 %v417
  %7183 = vmatprep.subr.mxu0 %v410
  %7184 = vmatpush1.msra.mxu0 %v409
  %7185 = vmatprep.subr.mxu0 %v402
  %7186 = vmatpush1.msra.mxu0 %v401
  %7187 = vmatprep.subr.mxu0 %v394
  %7188 = vmatpush1.msra.mxu0 %v393
  %7189 = vmatprep.subr.mxu0 %v386
  %7190 = vmatpush1.msra.mxu0 %v385
  %7191 = vmatprep.subr.mxu0 %v378
  %7192 = vmatpush1.msra.mxu0 %v377
  %7193 = vmatprep.subr.mxu0 %v370
  %7194 = vmatpush1.msra.mxu0 %v369
  %7195 = vmatprep.subr.mxu0 %v362
  %7196 = vmatpush1.msra.mxu0 %v361
  %7197 = vmatprep.subr.mxu0 %v354
  %7198 = vmatpush1.msra.mxu0 %v353
  %7199 = vmatprep.subr.mxu0 %v346
  %7200 = vmatpush1.msra.mxu0 %v345
  %7201 = vmatprep.subr.mxu0 %v338
  %7202 = vmatpush1.msra.mxu0 %v337
  %7203 = vmatprep.subr.mxu0 %v330
  %7204 = vmatpush1.msra.mxu0 %v329
  %7205 = vmatprep.subr.mxu0 %v322
  %7206 = vmatpush1.msra.mxu0 %v321
  %7207 = vmatprep.subr.mxu0 %v314
  %7208 = vmatpush1.msra.mxu0 %v313
  %7209 = vmatprep.subr.mxu0 %v562
  %7210 = vmatpush2.msra.mxu0 %v561
  %7211 = vmatprep.subr.mxu0 %v554
  %7212 = vmatpush2.msra.mxu0 %v553
  %7213 = vmatprep.subr.mxu0 %v546
  %7214 = vmatpush2.msra.mxu0 %v545
  %7215 = vmatprep.subr.mxu0 %v538
  %7216 = vmatpush2.msra.mxu0 %v537
  %7217 = vmatprep.subr.mxu0 %v530
  %7218 = vmatpush2.msra.mxu0 %v529
  %7219 = vmatprep.subr.mxu0 %v522
  %7220 = vmatpush2.msra.mxu0 %v521
  %7221 = vmatprep.subr.mxu0 %v514
  %7222 = vmatpush2.msra.mxu0 %v513
  %7223 = vmatprep.subr.mxu0 %v506
  %7224 = vmatpush2.msra.mxu0 %v505
  %7225 = vmatprep.subr.mxu0 %v498
  %7226 = vmatpush2.msra.mxu0 %v497
  %7227 = vmatprep.subr.mxu0 %v490
  %7228 = vmatpush2.msra.mxu0 %v489
  %7229 = vmatprep.subr.mxu0 %v482
  %7230 = vmatpush2.msra.mxu0 %v481
  %7231 = vmatprep.subr.mxu0 %v474
  %7232 = vmatpush2.msra.mxu0 %v473
  %7233 = vmatprep.subr.mxu0 %v466
  %7234 = vmatpush2.msra.mxu0 %v465
  %7235 = vmatprep.subr.mxu0 %v458
  %7236 = vmatpush2.msra.mxu0 %v457
  %7237 = vmatprep.subr.mxu0 %v450
  %7238 = vmatpush2.msra.mxu0 %v449
  %7239 = vmatprep.subr.mxu0 %v442
  %7240 = vmatpush2.msra.mxu0 %v441
  %7241 = vmatprep.mubr.f32.mxu0 %v7032
  %7242 = vmatmul.mubr.f32.gmra.mxu0 %v7025
  %v7243 = vpop.f32.mrf.mxu0
  %v7244 = vadd.f32 0.0, %v7243
  %v7245 = vpop.f32.mrf.mxu0
  %v7246 = vadd.f32 0.0, %v7245
  %7247 = vdwg.mxu0
  %7248 = vmatprep.subr.mxu0 %v436
  %7249 = vmatpush1.msra.mxu0 %v435
  %7250 = vmatprep.subr.mxu0 %v428
  %7251 = vmatpush1.msra.mxu0 %v427
  %7252 = vmatprep.subr.mxu0 %v420
  %7253 = vmatpush1.msra.mxu0 %v419
  %7254 = vmatprep.subr.mxu0 %v412
  %7255 = vmatpush1.msra.mxu0 %v411
  %7256 = vmatprep.subr.mxu0 %v404
  %7257 = vmatpush1.msra.mxu0 %v403
  %7258 = vmatprep.subr.mxu0 %v396
  %7259 = vmatpush1.msra.mxu0 %v395
  %7260 = vmatprep.subr.mxu0 %v388
  %7261 = vmatpush1.msra.mxu0 %v387
  %7262 = vmatprep.subr.mxu0 %v380
  %7263 = vmatpush1.msra.mxu0 %v379
  %7264 = vmatprep.subr.mxu0 %v372
  %7265 = vmatpush1.msra.mxu0 %v371
  %7266 = vmatprep.subr.mxu0 %v364
  %7267 = vmatpush1.msra.mxu0 %v363
  %7268 = vmatprep.subr.mxu0 %v356
  %7269 = vmatpush1.msra.mxu0 %v355
  %7270 = vmatprep.subr.mxu0 %v348
  %7271 = vmatpush1.msra.mxu0 %v347
  %7272 = vmatprep.subr.mxu0 %v340
  %7273 = vmatpush1.msra.mxu0 %v339
  %7274 = vmatprep.subr.mxu0 %v332
  %7275 = vmatpush1.msra.mxu0 %v331
  %7276 = vmatprep.subr.mxu0 %v324
  %7277 = vmatpush1.msra.mxu0 %v323
  %7278 = vmatprep.subr.mxu0 %v316
  %7279 = vmatpush1.msra.mxu0 %v315
  %7280 = vmatprep.subr.mxu0 %v564
  %7281 = vmatpush2.msra.mxu0 %v563
  %7282 = vmatprep.subr.mxu0 %v556
  %7283 = vmatpush2.msra.mxu0 %v555
  %7284 = vmatprep.subr.mxu0 %v548
  %7285 = vmatpush2.msra.mxu0 %v547
  %7286 = vmatprep.subr.mxu0 %v540
  %7287 = vmatpush2.msra.mxu0 %v539
  %7288 = vmatprep.subr.mxu0 %v532
  %7289 = vmatpush2.msra.mxu0 %v531
  %7290 = vmatprep.subr.mxu0 %v524
  %7291 = vmatpush2.msra.mxu0 %v523
  %7292 = vmatprep.subr.mxu0 %v516
  %7293 = vmatpush2.msra.mxu0 %v515
  %7294 = vmatprep.subr.mxu0 %v508
  %7295 = vmatpush2.msra.mxu0 %v507
  %7296 = vmatprep.subr.mxu0 %v500
  %7297 = vmatpush2.msra.mxu0 %v499
  %7298 = vmatprep.subr.mxu0 %v492
  %7299 = vmatpush2.msra.mxu0 %v491
  %7300 = vmatprep.subr.mxu0 %v484
  %7301 = vmatpush2.msra.mxu0 %v483
  %7302 = vmatprep.subr.mxu0 %v476
  %7303 = vmatpush2.msra.mxu0 %v475
  %7304 = vmatprep.subr.mxu0 %v468
  %7305 = vmatpush2.msra.mxu0 %v467
  %7306 = vmatprep.subr.mxu0 %v460
  %7307 = vmatpush2.msra.mxu0 %v459
  %7308 = vmatprep.subr.mxu0 %v452
  %7309 = vmatpush2.msra.mxu0 %v451
  %7310 = vmatprep.subr.mxu0 %v444
  %7311 = vmatpush2.msra.mxu0 %v443
  %7312 = vmatprep.mubr.f32.mxu0 %v7032
  %7313 = vmatmul.mubr.f32.gmra.mxu0 %v7025
  %v7314 = vpop.f32.mrf.mxu0
  %v7315 = vadd.f32 0.0, %v7314
  %v7316 = vpop.f32.mrf.mxu0
  %v7317 = vadd.f32 0.0, %v7316
  %7318 = vdwg.mxu0
  %v7327 = vcombine.low %v7102, %v7104
  %v7328 = vcombine.low %v7173, %v7175
  %v7329 = vcombine.low %v7244, %v7246
  %v7330 = vcombine.low %v7315, %v7317
  %v7332 = vunpack.c.l.s4 1966171168
  %v7333 = vunpack.c.0.s8 %v7332
  %v7334 = vlaneseq
  %v7335 = vshrl.u32 %v7334, 7
  %v7336 = vsub.s32 %v7333, %v7335
  %v7337 = vrot.slane %v7327, %v7336
  %v7339 = vunpack.c.l.s4 1966171168
  %v7340 = vunpack.c.0.s8 %v7339
  %v7341 = vlaneseq
  %v7342 = vshrl.u32 %v7341, 7
  %v7343 = vsub.s32 %v7340, %v7342
  %v7344 = vrot.slane %v7328, %v7343
  %v7346 = vunpack.c.l.s4 1966171168
  %v7347 = vunpack.c.0.s8 %v7346
  %v7348 = vlaneseq
  %v7349 = vshrl.u32 %v7348, 7
  %v7350 = vsub.s32 %v7347, %v7349
  %v7351 = vrot.slane %v7329, %v7350
  %v7353 = vunpack.c.l.s4 1966171168
  %v7354 = vunpack.c.0.s8 %v7353
  %v7355 = vlaneseq
  %v7356 = vshrl.u32 %v7355, 7
  %v7357 = vsub.s32 %v7354, %v7356
  %v7358 = vrot.slane %v7330, %v7357
  %v7359 = vcombine.low %v7337, %v7344
  %v7360 = vcombine.high %v7337, %v7344
  %v7361 = vcombine.low %v7351, %v7358
  %v7362 = vcombine.high %v7351, %v7358
  %v7364 = vunpack.c.l.s4 1966171168
  %v7365 = vunpack.c.0.s8 %v7364
  %v7366 = vlaneseq
  %v7367 = vshrl.u32 %v7366, 7
  %v7368 = vsub.s32 %v7365, %v7367
  %v7369 = vrot.slane %v7359, %v7368
  %v7371 = vunpack.c.l.s4 1966171168
  %v7372 = vunpack.c.0.s8 %v7371
  %v7373 = vlaneseq
  %v7374 = vshrl.u32 %v7373, 7
  %v7375 = vsub.s32 %v7372, %v7374
  %v7376 = vrot.slane %v7360, %v7375
  %v7378 = vunpack.c.l.s4 1966171168
  %v7379 = vunpack.c.0.s8 %v7378
  %v7380 = vlaneseq
  %v7381 = vshrl.u32 %v7380, 7
  %v7382 = vsub.s32 %v7379, %v7381
  %v7383 = vrot.slane %v7361, %v7382
  %v7385 = vunpack.c.l.s4 1966171168
  %v7386 = vunpack.c.0.s8 %v7385
  %v7387 = vlaneseq
  %v7388 = vshrl.u32 %v7387, 7
  %v7389 = vsub.s32 %v7386, %v7388
  %v7390 = vrot.slane %v7362, %v7389
  %v7391 = vcombine.low %v7369, %v7383
  %v7392 = vcombine.low %v7376, %v7390
  %v7395 = vadd.f32 %v7003, %v7391
  %v7396 = vadd.f32 %v7007, %v7392
  %v7397 = vxor.u32 %v7395, 2147483648
  %v7398 = vxor.u32 %v7396, 2147483648
  %v7399 = vmul.f32 %v7397, 1.442695
  %v7400 = vpow.pop %v7399
  %v7401 = vmul.f32 %v7398, 1.442695
  %v7402 = vpow.pop %v7401
  %v7403 = vadd.f32 %v7400, 1.0
  %v7404 = vadd.f32 %v7402, 1.0
  %v7405 = vrcp.pop %v7403
  %v7406 = vmul.f32 1.0, %v7405
  %v7407 = vrcp.pop %v7404
  %v7408 = vmul.f32 1.0, %v7407
  %v7411 = vrot.slane %v7395, 2
  %v7412 = vrot.slane %v7396, 2
  %v7415 = vxor.u32 %v7411, 2147483648
  %v7416 = vxor.u32 %v7412, 2147483648
  %v7417 = vmul.f32 %v7415, 1.442695
  %v7418 = vpow.pop %v7417
  %v7419 = vmul.f32 %v7416, 1.442695
  %v7420 = vpow.pop %v7419
  %v7421 = vadd.f32 %v7418, 1.0
  %v7422 = vadd.f32 %v7420, 1.0
  %v7423 = vrcp.pop %v7421
  %v7424 = vmul.f32 1.0, %v7423
  %v7425 = vrcp.pop %v7422
  %v7426 = vmul.f32 1.0, %v7425
  %v7427 = vrot.slane %v7395, 4
  %v7428 = vrot.slane %v7396, 4
  %v7431 = vtanh.pop %v7427
  %v7432 = vtanh.pop %v7428
  %v7433 = vrot.slane %v7395, 6
  %v7434 = vrot.slane %v7396, 6
  %v7437 = vxor.u32 %v7433, 2147483648
  %v7438 = vxor.u32 %v7434, 2147483648
  %v7439 = vmul.f32 %v7437, 1.442695
  %v7440 = vpow.pop %v7439
  %v7441 = vmul.f32 %v7438, 1.442695
  %v7442 = vpow.pop %v7441
  %v7443 = vadd.f32 %v7440, 1.0
  %v7444 = vadd.f32 %v7442, 1.0
  %v7445 = vrcp.pop %v7443
  %v7446 = vmul.f32 1.0, %v7445
  %v7447 = vrcp.pop %v7444
  %v7448 = vmul.f32 1.0, %v7447
  %v7449 = vmul.f32 %v7424, %v6994
  %v7450 = vmul.f32 %v7426, %v6995
  %v7451 = vmul.f32 %v7406, %v7431
  %v7452 = vmul.f32 %v7408, %v7432
  %v7453 = vadd.f32 %v7449, %v7451
  %v7454 = vadd.f32 %v7450, %v7452
  %v7455 = vtanh.pop %v7453
  %v7456 = vtanh.pop %v7454
  %v7457 = vmul.f32 %v7446, %v7455
  %v7458 = vmul.f32 %v7448, %v7456
  %s7459 = scalar_lea.vmem [#allocation4], 5
  %v7460 = vld [vmem:[%s7459] ss:$8 sm:$0xf]
  %v7461 = vld [vmem:[%s7459] ss:$8 sm:$0xf0]
  %v7462 = vor.u32 %v7460, %v7461
  %s7463 = scalar_lea.vmem [#allocation4], 69
  %v7464 = vld [vmem:[%s7463] ss:$8 sm:$0xf]
  %v7465 = vld [vmem:[%s7463] ss:$8 sm:$0xf0]
  %v7466 = vor.u32 %v7464, %v7465
  %v7469 = vcombine.low %v7457, %v7458
  %v7471 = vunpack.c.l.s4 1966171168
  %v7472 = vunpack.c.0.s8 %v7471
  %v7473 = vlaneseq
  %v7474 = vshrl.u32 %v7473, 7
  %v7475 = vsub.s32 %v7472, %v7474
  %v7476 = vrot.slane %v7469, %v7475
  %v7477 = vcombine.high %v7476, %v7476
  %v7479 = vunpack.c.l.s4 1966171168
  %v7480 = vunpack.c.0.s8 %v7479
  %v7481 = vlaneseq
  %v7482 = vshrl.u32 %v7481, 7
  %v7483 = vsub.s32 %v7480, %v7482
  %v7484 = vrot.slane %v7476, %v7483
  %v7486 = vunpack.c.l.s4 1966171168
  %v7487 = vunpack.c.0.s8 %v7486
  %v7488 = vlaneseq
  %v7489 = vshrl.u32 %v7488, 7
  %v7490 = vsub.s32 %v7487, %v7489
  %v7491 = vrot.slane %v7477, %v7490
  %7494 = vmatprep.subr.mxu0 %v430
  %7495 = vmatpush1.msra.mxu0 %v429
  %7496 = vmatprep.subr.mxu0 %v422
  %7497 = vmatpush1.msra.mxu0 %v421
  %7498 = vmatprep.subr.mxu0 %v414
  %7499 = vmatpush1.msra.mxu0 %v413
  %7500 = vmatprep.subr.mxu0 %v406
  %7501 = vmatpush1.msra.mxu0 %v405
  %7502 = vmatprep.subr.mxu0 %v398
  %7503 = vmatpush1.msra.mxu0 %v397
  %7504 = vmatprep.subr.mxu0 %v390
  %7505 = vmatpush1.msra.mxu0 %v389
  %7506 = vmatprep.subr.mxu0 %v382
  %7507 = vmatpush1.msra.mxu0 %v381
  %7508 = vmatprep.subr.mxu0 %v374
  %7509 = vmatpush1.msra.mxu0 %v373
  %7510 = vmatprep.subr.mxu0 %v366
  %7511 = vmatpush1.msra.mxu0 %v365
  %7512 = vmatprep.subr.mxu0 %v358
  %7513 = vmatpush1.msra.mxu0 %v357
  %7514 = vmatprep.subr.mxu0 %v350
  %7515 = vmatpush1.msra.mxu0 %v349
  %7516 = vmatprep.subr.mxu0 %v342
  %7517 = vmatpush1.msra.mxu0 %v341
  %7518 = vmatprep.subr.mxu0 %v334
  %7519 = vmatpush1.msra.mxu0 %v333
  %7520 = vmatprep.subr.mxu0 %v326
  %7521 = vmatpush1.msra.mxu0 %v325
  %7522 = vmatprep.subr.mxu0 %v318
  %7523 = vmatpush1.msra.mxu0 %v317
  %7524 = vmatprep.subr.mxu0 %v310
  %7525 = vmatpush1.msra.mxu0 %v309
  %7526 = vmatprep.subr.mxu0 %v558
  %7527 = vmatpush2.msra.mxu0 %v557
  %7528 = vmatprep.subr.mxu0 %v550
  %7529 = vmatpush2.msra.mxu0 %v549
  %7530 = vmatprep.subr.mxu0 %v542
  %7531 = vmatpush2.msra.mxu0 %v541
  %7532 = vmatprep.subr.mxu0 %v534
  %7533 = vmatpush2.msra.mxu0 %v533
  %7534 = vmatprep.subr.mxu0 %v526
  %7535 = vmatpush2.msra.mxu0 %v525
  %7536 = vmatprep.subr.mxu0 %v518
  %7537 = vmatpush2.msra.mxu0 %v517
  %7538 = vmatprep.subr.mxu0 %v510
  %7539 = vmatpush2.msra.mxu0 %v509
  %7540 = vmatprep.subr.mxu0 %v502
  %7541 = vmatpush2.msra.mxu0 %v501
  %7542 = vmatprep.subr.mxu0 %v494
  %7543 = vmatpush2.msra.mxu0 %v493
  %7544 = vmatprep.subr.mxu0 %v486
  %7545 = vmatpush2.msra.mxu0 %v485
  %7546 = vmatprep.subr.mxu0 %v478
  %7547 = vmatpush2.msra.mxu0 %v477
  %7548 = vmatprep.subr.mxu0 %v470
  %7549 = vmatpush2.msra.mxu0 %v469
  %7550 = vmatprep.subr.mxu0 %v462
  %7551 = vmatpush2.msra.mxu0 %v461
  %7552 = vmatprep.subr.mxu0 %v454
  %7553 = vmatpush2.msra.mxu0 %v453
  %7554 = vmatprep.subr.mxu0 %v446
  %7555 = vmatpush2.msra.mxu0 %v445
  %7556 = vmatprep.subr.mxu0 %v438
  %7557 = vmatpush2.msra.mxu0 %v437
  %7558 = vmatprep.mubr.f32.mxu0 %v7491
  %7559 = vmatmul.mubr.f32.gmra.mxu0 %v7484
  %v7560 = vpop.f32.mrf.mxu0
  %v7561 = vadd.f32 0.0, %v7560
  %v7562 = vpop.f32.mrf.mxu0
  %v7563 = vadd.f32 0.0, %v7562
  %7564 = vdwg.mxu0
  %7565 = vmatprep.subr.mxu0 %v432
  %7566 = vmatpush1.msra.mxu0 %v431
  %7567 = vmatprep.subr.mxu0 %v424
  %7568 = vmatpush1.msra.mxu0 %v423
  %7569 = vmatprep.subr.mxu0 %v416
  %7570 = vmatpush1.msra.mxu0 %v415
  %7571 = vmatprep.subr.mxu0 %v408
  %7572 = vmatpush1.msra.mxu0 %v407
  %7573 = vmatprep.subr.mxu0 %v400
  %7574 = vmatpush1.msra.mxu0 %v399
  %7575 = vmatprep.subr.mxu0 %v392
  %7576 = vmatpush1.msra.mxu0 %v391
  %7577 = vmatprep.subr.mxu0 %v384
  %7578 = vmatpush1.msra.mxu0 %v383
  %7579 = vmatprep.subr.mxu0 %v376
  %7580 = vmatpush1.msra.mxu0 %v375
  %7581 = vmatprep.subr.mxu0 %v368
  %7582 = vmatpush1.msra.mxu0 %v367
  %7583 = vmatprep.subr.mxu0 %v360
  %7584 = vmatpush1.msra.mxu0 %v359
  %7585 = vmatprep.subr.mxu0 %v352
  %7586 = vmatpush1.msra.mxu0 %v351
  %7587 = vmatprep.subr.mxu0 %v344
  %7588 = vmatpush1.msra.mxu0 %v343
  %7589 = vmatprep.subr.mxu0 %v336
  %7590 = vmatpush1.msra.mxu0 %v335
  %7591 = vmatprep.subr.mxu0 %v328
  %7592 = vmatpush1.msra.mxu0 %v327
  %7593 = vmatprep.subr.mxu0 %v320
  %7594 = vmatpush1.msra.mxu0 %v319
  %7595 = vmatprep.subr.mxu0 %v312
  %7596 = vmatpush1.msra.mxu0 %v311
  %7597 = vmatprep.subr.mxu0 %v560
  %7598 = vmatpush2.msra.mxu0 %v559
  %7599 = vmatprep.subr.mxu0 %v552
  %7600 = vmatpush2.msra.mxu0 %v551
  %7601 = vmatprep.subr.mxu0 %v544
  %7602 = vmatpush2.msra.mxu0 %v543
  %7603 = vmatprep.subr.mxu0 %v536
  %7604 = vmatpush2.msra.mxu0 %v535
  %7605 = vmatprep.subr.mxu0 %v528
  %7606 = vmatpush2.msra.mxu0 %v527
  %7607 = vmatprep.subr.mxu0 %v520
  %7608 = vmatpush2.msra.mxu0 %v519
  %7609 = vmatprep.subr.mxu0 %v512
  %7610 = vmatpush2.msra.mxu0 %v511
  %7611 = vmatprep.subr.mxu0 %v504
  %7612 = vmatpush2.msra.mxu0 %v503
  %7613 = vmatprep.subr.mxu0 %v496
  %7614 = vmatpush2.msra.mxu0 %v495
  %7615 = vmatprep.subr.mxu0 %v488
  %7616 = vmatpush2.msra.mxu0 %v487
  %7617 = vmatprep.subr.mxu0 %v480
  %7618 = vmatpush2.msra.mxu0 %v479
  %7619 = vmatprep.subr.mxu0 %v472
  %7620 = vmatpush2.msra.mxu0 %v471
  %7621 = vmatprep.subr.mxu0 %v464
  %7622 = vmatpush2.msra.mxu0 %v463
  %7623 = vmatprep.subr.mxu0 %v456
  %7624 = vmatpush2.msra.mxu0 %v455
  %7625 = vmatprep.subr.mxu0 %v448
  %7626 = vmatpush2.msra.mxu0 %v447
  %7627 = vmatprep.subr.mxu0 %v440
  %7628 = vmatpush2.msra.mxu0 %v439
  %7629 = vmatprep.mubr.f32.mxu0 %v7491
  %7630 = vmatmul.mubr.f32.gmra.mxu0 %v7484
  %v7631 = vpop.f32.mrf.mxu0
  %v7632 = vadd.f32 0.0, %v7631
  %v7633 = vpop.f32.mrf.mxu0
  %v7634 = vadd.f32 0.0, %v7633
  %7635 = vdwg.mxu0
  %7636 = vmatprep.subr.mxu0 %v434
  %7637 = vmatpush1.msra.mxu0 %v433
  %7638 = vmatprep.subr.mxu0 %v426
  %7639 = vmatpush1.msra.mxu0 %v425
  %7640 = vmatprep.subr.mxu0 %v418
  %7641 = vmatpush1.msra.mxu0 %v417
  %7642 = vmatprep.subr.mxu0 %v410
  %7643 = vmatpush1.msra.mxu0 %v409
  %7644 = vmatprep.subr.mxu0 %v402
  %7645 = vmatpush1.msra.mxu0 %v401
  %7646 = vmatprep.subr.mxu0 %v394
  %7647 = vmatpush1.msra.mxu0 %v393
  %7648 = vmatprep.subr.mxu0 %v386
  %7649 = vmatpush1.msra.mxu0 %v385
  %7650 = vmatprep.subr.mxu0 %v378
  %7651 = vmatpush1.msra.mxu0 %v377
  %7652 = vmatprep.subr.mxu0 %v370
  %7653 = vmatpush1.msra.mxu0 %v369
  %7654 = vmatprep.subr.mxu0 %v362
  %7655 = vmatpush1.msra.mxu0 %v361
  %7656 = vmatprep.subr.mxu0 %v354
  %7657 = vmatpush1.msra.mxu0 %v353
  %7658 = vmatprep.subr.mxu0 %v346
  %7659 = vmatpush1.msra.mxu0 %v345
  %7660 = vmatprep.subr.mxu0 %v338
  %7661 = vmatpush1.msra.mxu0 %v337
  %7662 = vmatprep.subr.mxu0 %v330
  %7663 = vmatpush1.msra.mxu0 %v329
  %7664 = vmatprep.subr.mxu0 %v322
  %7665 = vmatpush1.msra.mxu0 %v321
  %7666 = vmatprep.subr.mxu0 %v314
  %7667 = vmatpush1.msra.mxu0 %v313
  %7668 = vmatprep.subr.mxu0 %v562
  %7669 = vmatpush2.msra.mxu0 %v561
  %7670 = vmatprep.subr.mxu0 %v554
  %7671 = vmatpush2.msra.mxu0 %v553
  %7672 = vmatprep.subr.mxu0 %v546
  %7673 = vmatpush2.msra.mxu0 %v545
  %7674 = vmatprep.subr.mxu0 %v538
  %7675 = vmatpush2.msra.mxu0 %v537
  %7676 = vmatprep.subr.mxu0 %v530
  %7677 = vmatpush2.msra.mxu0 %v529
  %7678 = vmatprep.subr.mxu0 %v522
  %7679 = vmatpush2.msra.mxu0 %v521
  %7680 = vmatprep.subr.mxu0 %v514
  %7681 = vmatpush2.msra.mxu0 %v513
  %7682 = vmatprep.subr.mxu0 %v506
  %7683 = vmatpush2.msra.mxu0 %v505
  %7684 = vmatprep.subr.mxu0 %v498
  %7685 = vmatpush2.msra.mxu0 %v497
  %7686 = vmatprep.subr.mxu0 %v490
  %7687 = vmatpush2.msra.mxu0 %v489
  %7688 = vmatprep.subr.mxu0 %v482
  %7689 = vmatpush2.msra.mxu0 %v481
  %7690 = vmatprep.subr.mxu0 %v474
  %7691 = vmatpush2.msra.mxu0 %v473
  %7692 = vmatprep.subr.mxu0 %v466
  %7693 = vmatpush2.msra.mxu0 %v465
  %7694 = vmatprep.subr.mxu0 %v458
  %7695 = vmatpush2.msra.mxu0 %v457
  %7696 = vmatprep.subr.mxu0 %v450
  %7697 = vmatpush2.msra.mxu0 %v449
  %7698 = vmatprep.subr.mxu0 %v442
  %7699 = vmatpush2.msra.mxu0 %v441
  %7700 = vmatprep.mubr.f32.mxu0 %v7491
  %7701 = vmatmul.mubr.f32.gmra.mxu0 %v7484
  %v7702 = vpop.f32.mrf.mxu0
  %v7703 = vadd.f32 0.0, %v7702
  %v7704 = vpop.f32.mrf.mxu0
  %v7705 = vadd.f32 0.0, %v7704
  %7706 = vdwg.mxu0
  %7707 = vmatprep.subr.mxu0 %v436
  %7708 = vmatpush1.msra.mxu0 %v435
  %7709 = vmatprep.subr.mxu0 %v428
  %7710 = vmatpush1.msra.mxu0 %v427
  %7711 = vmatprep.subr.mxu0 %v420
  %7712 = vmatpush1.msra.mxu0 %v419
  %7713 = vmatprep.subr.mxu0 %v412
  %7714 = vmatpush1.msra.mxu0 %v411
  %7715 = vmatprep.subr.mxu0 %v404
  %7716 = vmatpush1.msra.mxu0 %v403
  %7717 = vmatprep.subr.mxu0 %v396
  %7718 = vmatpush1.msra.mxu0 %v395
  %7719 = vmatprep.subr.mxu0 %v388
  %7720 = vmatpush1.msra.mxu0 %v387
  %7721 = vmatprep.subr.mxu0 %v380
  %7722 = vmatpush1.msra.mxu0 %v379
  %7723 = vmatprep.subr.mxu0 %v372
  %7724 = vmatpush1.msra.mxu0 %v371
  %7725 = vmatprep.subr.mxu0 %v364
  %7726 = vmatpush1.msra.mxu0 %v363
  %7727 = vmatprep.subr.mxu0 %v356
  %7728 = vmatpush1.msra.mxu0 %v355
  %7729 = vmatprep.subr.mxu0 %v348
  %7730 = vmatpush1.msra.mxu0 %v347
  %7731 = vmatprep.subr.mxu0 %v340
  %7732 = vmatpush1.msra.mxu0 %v339
  %7733 = vmatprep.subr.mxu0 %v332
  %7734 = vmatpush1.msra.mxu0 %v331
  %7735 = vmatprep.subr.mxu0 %v324
  %7736 = vmatpush1.msra.mxu0 %v323
  %7737 = vmatprep.subr.mxu0 %v316
  %7738 = vmatpush1.msra.mxu0 %v315
  %7739 = vmatprep.subr.mxu0 %v564
  %7740 = vmatpush2.msra.mxu0 %v563
  %7741 = vmatprep.subr.mxu0 %v556
  %7742 = vmatpush2.msra.mxu0 %v555
  %7743 = vmatprep.subr.mxu0 %v548
  %7744 = vmatpush2.msra.mxu0 %v547
  %7745 = vmatprep.subr.mxu0 %v540
  %7746 = vmatpush2.msra.mxu0 %v539
  %7747 = vmatprep.subr.mxu0 %v532
  %7748 = vmatpush2.msra.mxu0 %v531
  %7749 = vmatprep.subr.mxu0 %v524
  %7750 = vmatpush2.msra.mxu0 %v523
  %7751 = vmatprep.subr.mxu0 %v516
  %7752 = vmatpush2.msra.mxu0 %v515
  %7753 = vmatprep.subr.mxu0 %v508
  %7754 = vmatpush2.msra.mxu0 %v507
  %7755 = vmatprep.subr.mxu0 %v500
  %7756 = vmatpush2.msra.mxu0 %v499
  %7757 = vmatprep.subr.mxu0 %v492
  %7758 = vmatpush2.msra.mxu0 %v491
  %7759 = vmatprep.subr.mxu0 %v484
  %7760 = vmatpush2.msra.mxu0 %v483
  %7761 = vmatprep.subr.mxu0 %v476
  %7762 = vmatpush2.msra.mxu0 %v475
  %7763 = vmatprep.subr.mxu0 %v468
  %7764 = vmatpush2.msra.mxu0 %v467
  %7765 = vmatprep.subr.mxu0 %v460
  %7766 = vmatpush2.msra.mxu0 %v459
  %7767 = vmatprep.subr.mxu0 %v452
  %7768 = vmatpush2.msra.mxu0 %v451
  %7769 = vmatprep.subr.mxu0 %v444
  %7770 = vmatpush2.msra.mxu0 %v443
  %7771 = vmatprep.mubr.f32.mxu0 %v7491
  %7772 = vmatmul.mubr.f32.gmra.mxu0 %v7484
  %v7773 = vpop.f32.mrf.mxu0
  %v7774 = vadd.f32 0.0, %v7773
  %v7775 = vpop.f32.mrf.mxu0
  %v7776 = vadd.f32 0.0, %v7775
  %7777 = vdwg.mxu0
  %v7786 = vcombine.low %v7561, %v7563
  %v7787 = vcombine.low %v7632, %v7634
  %v7788 = vcombine.low %v7703, %v7705
  %v7789 = vcombine.low %v7774, %v7776
  %v7791 = vunpack.c.l.s4 1966171168
  %v7792 = vunpack.c.0.s8 %v7791
  %v7793 = vlaneseq
  %v7794 = vshrl.u32 %v7793, 7
  %v7795 = vsub.s32 %v7792, %v7794
  %v7796 = vrot.slane %v7786, %v7795
  %v7798 = vunpack.c.l.s4 1966171168
  %v7799 = vunpack.c.0.s8 %v7798
  %v7800 = vlaneseq
  %v7801 = vshrl.u32 %v7800, 7
  %v7802 = vsub.s32 %v7799, %v7801
  %v7803 = vrot.slane %v7787, %v7802
  %v7805 = vunpack.c.l.s4 1966171168
  %v7806 = vunpack.c.0.s8 %v7805
  %v7807 = vlaneseq
  %v7808 = vshrl.u32 %v7807, 7
  %v7809 = vsub.s32 %v7806, %v7808
  %v7810 = vrot.slane %v7788, %v7809
  %v7812 = vunpack.c.l.s4 1966171168
  %v7813 = vunpack.c.0.s8 %v7812
  %v7814 = vlaneseq
  %v7815 = vshrl.u32 %v7814, 7
  %v7816 = vsub.s32 %v7813, %v7815
  %v7817 = vrot.slane %v7789, %v7816
  %v7818 = vcombine.low %v7796, %v7803
  %v7819 = vcombine.high %v7796, %v7803
  %v7820 = vcombine.low %v7810, %v7817
  %v7821 = vcombine.high %v7810, %v7817
  %v7823 = vunpack.c.l.s4 1966171168
  %v7824 = vunpack.c.0.s8 %v7823
  %v7825 = vlaneseq
  %v7826 = vshrl.u32 %v7825, 7
  %v7827 = vsub.s32 %v7824, %v7826
  %v7828 = vrot.slane %v7818, %v7827
  %v7830 = vunpack.c.l.s4 1966171168
  %v7831 = vunpack.c.0.s8 %v7830
  %v7832 = vlaneseq
  %v7833 = vshrl.u32 %v7832, 7
  %v7834 = vsub.s32 %v7831, %v7833
  %v7835 = vrot.slane %v7819, %v7834
  %v7837 = vunpack.c.l.s4 1966171168
  %v7838 = vunpack.c.0.s8 %v7837
  %v7839 = vlaneseq
  %v7840 = vshrl.u32 %v7839, 7
  %v7841 = vsub.s32 %v7838, %v7840
  %v7842 = vrot.slane %v7820, %v7841
  %v7844 = vunpack.c.l.s4 1966171168
  %v7845 = vunpack.c.0.s8 %v7844
  %v7846 = vlaneseq
  %v7847 = vshrl.u32 %v7846, 7
  %v7848 = vsub.s32 %v7845, %v7847
  %v7849 = vrot.slane %v7821, %v7848
  %v7850 = vcombine.low %v7828, %v7842
  %v7851 = vcombine.low %v7835, %v7849
  %v7854 = vadd.f32 %v7462, %v7850
  %v7855 = vadd.f32 %v7466, %v7851
  %v7856 = vxor.u32 %v7854, 2147483648
  %v7857 = vxor.u32 %v7855, 2147483648
  %v7858 = vmul.f32 %v7856, 1.442695
  %v7859 = vpow.pop %v7858
  %v7860 = vmul.f32 %v7857, 1.442695
  %v7861 = vpow.pop %v7860
  %v7862 = vadd.f32 %v7859, 1.0
  %v7863 = vadd.f32 %v7861, 1.0
  %v7864 = vrcp.pop %v7862
  %v7865 = vmul.f32 1.0, %v7864
  %v7866 = vrcp.pop %v7863
  %v7867 = vmul.f32 1.0, %v7866
  %v7870 = vrot.slane %v7854, 2
  %v7871 = vrot.slane %v7855, 2
  %v7874 = vxor.u32 %v7870, 2147483648
  %v7875 = vxor.u32 %v7871, 2147483648
  %v7876 = vmul.f32 %v7874, 1.442695
  %v7877 = vpow.pop %v7876
  %v7878 = vmul.f32 %v7875, 1.442695
  %v7879 = vpow.pop %v7878
  %v7880 = vadd.f32 %v7877, 1.0
  %v7881 = vadd.f32 %v7879, 1.0
  %v7882 = vrcp.pop %v7880
  %v7883 = vmul.f32 1.0, %v7882
  %v7884 = vrcp.pop %v7881
  %v7885 = vmul.f32 1.0, %v7884
  %v7886 = vrot.slane %v7854, 4
  %v7887 = vrot.slane %v7855, 4
  %v7890 = vtanh.pop %v7886
  %v7891 = vtanh.pop %v7887
  %v7892 = vrot.slane %v7854, 6
  %v7893 = vrot.slane %v7855, 6
  %v7896 = vxor.u32 %v7892, 2147483648
  %v7897 = vxor.u32 %v7893, 2147483648
  %v7898 = vmul.f32 %v7896, 1.442695
  %v7899 = vpow.pop %v7898
  %v7900 = vmul.f32 %v7897, 1.442695
  %v7901 = vpow.pop %v7900
  %v7902 = vadd.f32 %v7899, 1.0
  %v7903 = vadd.f32 %v7901, 1.0
  %v7904 = vrcp.pop %v7902
  %v7905 = vmul.f32 1.0, %v7904
  %v7906 = vrcp.pop %v7903
  %v7907 = vmul.f32 1.0, %v7906
  %v7908 = vmul.f32 %v7883, %v7453
  %v7909 = vmul.f32 %v7885, %v7454
  %v7910 = vmul.f32 %v7865, %v7890
  %v7911 = vmul.f32 %v7867, %v7891
  %v7912 = vadd.f32 %v7908, %v7910
  %v7913 = vadd.f32 %v7909, %v7911
  %v7914 = vtanh.pop %v7912
  %v7915 = vtanh.pop %v7913
  %v7916 = vmul.f32 %v7905, %v7914
  %v7917 = vmul.f32 %v7907, %v7915
  %s7918 = scalar_lea.vmem [#allocation4], 6
  %v7919 = vld [vmem:[%s7918] ss:$8 sm:$0xf]
  %v7920 = vld [vmem:[%s7918] ss:$8 sm:$0xf0]
  %v7921 = vor.u32 %v7919, %v7920
  %s7922 = scalar_lea.vmem [#allocation4], 70
  %v7923 = vld [vmem:[%s7922] ss:$8 sm:$0xf]
  %v7924 = vld [vmem:[%s7922] ss:$8 sm:$0xf0]
  %v7925 = vor.u32 %v7923, %v7924
  %v7928 = vcombine.low %v7916, %v7917
  %v7930 = vunpack.c.l.s4 1966171168
  %v7931 = vunpack.c.0.s8 %v7930
  %v7932 = vlaneseq
  %v7933 = vshrl.u32 %v7932, 7
  %v7934 = vsub.s32 %v7931, %v7933
  %v7935 = vrot.slane %v7928, %v7934
  %v7936 = vcombine.high %v7935, %v7935
  %v7938 = vunpack.c.l.s4 1966171168
  %v7939 = vunpack.c.0.s8 %v7938
  %v7940 = vlaneseq
  %v7941 = vshrl.u32 %v7940, 7
  %v7942 = vsub.s32 %v7939, %v7941
  %v7943 = vrot.slane %v7935, %v7942
  %v7945 = vunpack.c.l.s4 1966171168
  %v7946 = vunpack.c.0.s8 %v7945
  %v7947 = vlaneseq
  %v7948 = vshrl.u32 %v7947, 7
  %v7949 = vsub.s32 %v7946, %v7948
  %v7950 = vrot.slane %v7936, %v7949
  %7953 = vmatprep.subr.mxu0 %v430
  %7954 = vmatpush1.msra.mxu0 %v429
  %7955 = vmatprep.subr.mxu0 %v422
  %7956 = vmatpush1.msra.mxu0 %v421
  %7957 = vmatprep.subr.mxu0 %v414
  %7958 = vmatpush1.msra.mxu0 %v413
  %7959 = vmatprep.subr.mxu0 %v406
  %7960 = vmatpush1.msra.mxu0 %v405
  %7961 = vmatprep.subr.mxu0 %v398
  %7962 = vmatpush1.msra.mxu0 %v397
  %7963 = vmatprep.subr.mxu0 %v390
  %7964 = vmatpush1.msra.mxu0 %v389
  %7965 = vmatprep.subr.mxu0 %v382
  %7966 = vmatpush1.msra.mxu0 %v381
  %7967 = vmatprep.subr.mxu0 %v374
  %7968 = vmatpush1.msra.mxu0 %v373
  %7969 = vmatprep.subr.mxu0 %v366
  %7970 = vmatpush1.msra.mxu0 %v365
  %7971 = vmatprep.subr.mxu0 %v358
  %7972 = vmatpush1.msra.mxu0 %v357
  %7973 = vmatprep.subr.mxu0 %v350
  %7974 = vmatpush1.msra.mxu0 %v349
  %7975 = vmatprep.subr.mxu0 %v342
  %7976 = vmatpush1.msra.mxu0 %v341
  %7977 = vmatprep.subr.mxu0 %v334
  %7978 = vmatpush1.msra.mxu0 %v333
  %7979 = vmatprep.subr.mxu0 %v326
  %7980 = vmatpush1.msra.mxu0 %v325
  %7981 = vmatprep.subr.mxu0 %v318
  %7982 = vmatpush1.msra.mxu0 %v317
  %7983 = vmatprep.subr.mxu0 %v310
  %7984 = vmatpush1.msra.mxu0 %v309
  %7985 = vmatprep.subr.mxu0 %v558
  %7986 = vmatpush2.msra.mxu0 %v557
  %7987 = vmatprep.subr.mxu0 %v550
  %7988 = vmatpush2.msra.mxu0 %v549
  %7989 = vmatprep.subr.mxu0 %v542
  %7990 = vmatpush2.msra.mxu0 %v541
  %7991 = vmatprep.subr.mxu0 %v534
  %7992 = vmatpush2.msra.mxu0 %v533
  %7993 = vmatprep.subr.mxu0 %v526
  %7994 = vmatpush2.msra.mxu0 %v525
  %7995 = vmatprep.subr.mxu0 %v518
  %7996 = vmatpush2.msra.mxu0 %v517
  %7997 = vmatprep.subr.mxu0 %v510
  %7998 = vmatpush2.msra.mxu0 %v509
  %7999 = vmatprep.subr.mxu0 %v502
  %8000 = vmatpush2.msra.mxu0 %v501
  %8001 = vmatprep.subr.mxu0 %v494
  %8002 = vmatpush2.msra.mxu0 %v493
  %8003 = vmatprep.subr.mxu0 %v486
  %8004 = vmatpush2.msra.mxu0 %v485
  %8005 = vmatprep.subr.mxu0 %v478
  %8006 = vmatpush2.msra.mxu0 %v477
  %8007 = vmatprep.subr.mxu0 %v470
  %8008 = vmatpush2.msra.mxu0 %v469
  %8009 = vmatprep.subr.mxu0 %v462
  %8010 = vmatpush2.msra.mxu0 %v461
  %8011 = vmatprep.subr.mxu0 %v454
  %8012 = vmatpush2.msra.mxu0 %v453
  %8013 = vmatprep.subr.mxu0 %v446
  %8014 = vmatpush2.msra.mxu0 %v445
  %8015 = vmatprep.subr.mxu0 %v438
  %8016 = vmatpush2.msra.mxu0 %v437
  %8017 = vmatprep.mubr.f32.mxu0 %v7950
  %8018 = vmatmul.mubr.f32.gmra.mxu0 %v7943
  %v8019 = vpop.f32.mrf.mxu0
  %v8020 = vadd.f32 0.0, %v8019
  %v8021 = vpop.f32.mrf.mxu0
  %v8022 = vadd.f32 0.0, %v8021
  %8023 = vdwg.mxu0
  %8024 = vmatprep.subr.mxu0 %v432
  %8025 = vmatpush1.msra.mxu0 %v431
  %8026 = vmatprep.subr.mxu0 %v424
  %8027 = vmatpush1.msra.mxu0 %v423
  %8028 = vmatprep.subr.mxu0 %v416
  %8029 = vmatpush1.msra.mxu0 %v415
  %8030 = vmatprep.subr.mxu0 %v408
  %8031 = vmatpush1.msra.mxu0 %v407
  %8032 = vmatprep.subr.mxu0 %v400
  %8033 = vmatpush1.msra.mxu0 %v399
  %8034 = vmatprep.subr.mxu0 %v392
  %8035 = vmatpush1.msra.mxu0 %v391
  %8036 = vmatprep.subr.mxu0 %v384
  %8037 = vmatpush1.msra.mxu0 %v383
  %8038 = vmatprep.subr.mxu0 %v376
  %8039 = vmatpush1.msra.mxu0 %v375
  %8040 = vmatprep.subr.mxu0 %v368
  %8041 = vmatpush1.msra.mxu0 %v367
  %8042 = vmatprep.subr.mxu0 %v360
  %8043 = vmatpush1.msra.mxu0 %v359
  %8044 = vmatprep.subr.mxu0 %v352
  %8045 = vmatpush1.msra.mxu0 %v351
  %8046 = vmatprep.subr.mxu0 %v344
  %8047 = vmatpush1.msra.mxu0 %v343
  %8048 = vmatprep.subr.mxu0 %v336
  %8049 = vmatpush1.msra.mxu0 %v335
  %8050 = vmatprep.subr.mxu0 %v328
  %8051 = vmatpush1.msra.mxu0 %v327
  %8052 = vmatprep.subr.mxu0 %v320
  %8053 = vmatpush1.msra.mxu0 %v319
  %8054 = vmatprep.subr.mxu0 %v312
  %8055 = vmatpush1.msra.mxu0 %v311
  %8056 = vmatprep.subr.mxu0 %v560
  %8057 = vmatpush2.msra.mxu0 %v559
  %8058 = vmatprep.subr.mxu0 %v552
  %8059 = vmatpush2.msra.mxu0 %v551
  %8060 = vmatprep.subr.mxu0 %v544
  %8061 = vmatpush2.msra.mxu0 %v543
  %8062 = vmatprep.subr.mxu0 %v536
  %8063 = vmatpush2.msra.mxu0 %v535
  %8064 = vmatprep.subr.mxu0 %v528
  %8065 = vmatpush2.msra.mxu0 %v527
  %8066 = vmatprep.subr.mxu0 %v520
  %8067 = vmatpush2.msra.mxu0 %v519
  %8068 = vmatprep.subr.mxu0 %v512
  %8069 = vmatpush2.msra.mxu0 %v511
  %8070 = vmatprep.subr.mxu0 %v504
  %8071 = vmatpush2.msra.mxu0 %v503
  %8072 = vmatprep.subr.mxu0 %v496
  %8073 = vmatpush2.msra.mxu0 %v495
  %8074 = vmatprep.subr.mxu0 %v488
  %8075 = vmatpush2.msra.mxu0 %v487
  %8076 = vmatprep.subr.mxu0 %v480
  %8077 = vmatpush2.msra.mxu0 %v479
  %8078 = vmatprep.subr.mxu0 %v472
  %8079 = vmatpush2.msra.mxu0 %v471
  %8080 = vmatprep.subr.mxu0 %v464
  %8081 = vmatpush2.msra.mxu0 %v463
  %8082 = vmatprep.subr.mxu0 %v456
  %8083 = vmatpush2.msra.mxu0 %v455
  %8084 = vmatprep.subr.mxu0 %v448
  %8085 = vmatpush2.msra.mxu0 %v447
  %8086 = vmatprep.subr.mxu0 %v440
  %8087 = vmatpush2.msra.mxu0 %v439
  %8088 = vmatprep.mubr.f32.mxu0 %v7950
  %8089 = vmatmul.mubr.f32.gmra.mxu0 %v7943
  %v8090 = vpop.f32.mrf.mxu0
  %v8091 = vadd.f32 0.0, %v8090
  %v8092 = vpop.f32.mrf.mxu0
  %v8093 = vadd.f32 0.0, %v8092
  %8094 = vdwg.mxu0
  %8095 = vmatprep.subr.mxu0 %v434
  %8096 = vmatpush1.msra.mxu0 %v433
  %8097 = vmatprep.subr.mxu0 %v426
  %8098 = vmatpush1.msra.mxu0 %v425
  %8099 = vmatprep.subr.mxu0 %v418
  %8100 = vmatpush1.msra.mxu0 %v417
  %8101 = vmatprep.subr.mxu0 %v410
  %8102 = vmatpush1.msra.mxu0 %v409
  %8103 = vmatprep.subr.mxu0 %v402
  %8104 = vmatpush1.msra.mxu0 %v401
  %8105 = vmatprep.subr.mxu0 %v394
  %8106 = vmatpush1.msra.mxu0 %v393
  %8107 = vmatprep.subr.mxu0 %v386
  %8108 = vmatpush1.msra.mxu0 %v385
  %8109 = vmatprep.subr.mxu0 %v378
  %8110 = vmatpush1.msra.mxu0 %v377
  %8111 = vmatprep.subr.mxu0 %v370
  %8112 = vmatpush1.msra.mxu0 %v369
  %8113 = vmatprep.subr.mxu0 %v362
  %8114 = vmatpush1.msra.mxu0 %v361
  %8115 = vmatprep.subr.mxu0 %v354
  %8116 = vmatpush1.msra.mxu0 %v353
  %8117 = vmatprep.subr.mxu0 %v346
  %8118 = vmatpush1.msra.mxu0 %v345
  %8119 = vmatprep.subr.mxu0 %v338
  %8120 = vmatpush1.msra.mxu0 %v337
  %8121 = vmatprep.subr.mxu0 %v330
  %8122 = vmatpush1.msra.mxu0 %v329
  %8123 = vmatprep.subr.mxu0 %v322
  %8124 = vmatpush1.msra.mxu0 %v321
  %8125 = vmatprep.subr.mxu0 %v314
  %8126 = vmatpush1.msra.mxu0 %v313
  %8127 = vmatprep.subr.mxu0 %v562
  %8128 = vmatpush2.msra.mxu0 %v561
  %8129 = vmatprep.subr.mxu0 %v554
  %8130 = vmatpush2.msra.mxu0 %v553
  %8131 = vmatprep.subr.mxu0 %v546
  %8132 = vmatpush2.msra.mxu0 %v545
  %8133 = vmatprep.subr.mxu0 %v538
  %8134 = vmatpush2.msra.mxu0 %v537
  %8135 = vmatprep.subr.mxu0 %v530
  %8136 = vmatpush2.msra.mxu0 %v529
  %8137 = vmatprep.subr.mxu0 %v522
  %8138 = vmatpush2.msra.mxu0 %v521
  %8139 = vmatprep.subr.mxu0 %v514
  %8140 = vmatpush2.msra.mxu0 %v513
  %8141 = vmatprep.subr.mxu0 %v506
  %8142 = vmatpush2.msra.mxu0 %v505
  %8143 = vmatprep.subr.mxu0 %v498
  %8144 = vmatpush2.msra.mxu0 %v497
  %8145 = vmatprep.subr.mxu0 %v490
  %8146 = vmatpush2.msra.mxu0 %v489
  %8147 = vmatprep.subr.mxu0 %v482
  %8148 = vmatpush2.msra.mxu0 %v481
  %8149 = vmatprep.subr.mxu0 %v474
  %8150 = vmatpush2.msra.mxu0 %v473
  %8151 = vmatprep.subr.mxu0 %v466
  %8152 = vmatpush2.msra.mxu0 %v465
  %8153 = vmatprep.subr.mxu0 %v458
  %8154 = vmatpush2.msra.mxu0 %v457
  %8155 = vmatprep.subr.mxu0 %v450
  %8156 = vmatpush2.msra.mxu0 %v449
  %8157 = vmatprep.subr.mxu0 %v442
  %8158 = vmatpush2.msra.mxu0 %v441
  %8159 = vmatprep.mubr.f32.mxu0 %v7950
  %8160 = vmatmul.mubr.f32.gmra.mxu0 %v7943
  %v8161 = vpop.f32.mrf.mxu0
  %v8162 = vadd.f32 0.0, %v8161
  %v8163 = vpop.f32.mrf.mxu0
  %v8164 = vadd.f32 0.0, %v8163
  %8165 = vdwg.mxu0
  %8166 = vmatprep.subr.mxu0 %v436
  %8167 = vmatpush1.msra.mxu0 %v435
  %8168 = vmatprep.subr.mxu0 %v428
  %8169 = vmatpush1.msra.mxu0 %v427
  %8170 = vmatprep.subr.mxu0 %v420
  %8171 = vmatpush1.msra.mxu0 %v419
  %8172 = vmatprep.subr.mxu0 %v412
  %8173 = vmatpush1.msra.mxu0 %v411
  %8174 = vmatprep.subr.mxu0 %v404
  %8175 = vmatpush1.msra.mxu0 %v403
  %8176 = vmatprep.subr.mxu0 %v396
  %8177 = vmatpush1.msra.mxu0 %v395
  %8178 = vmatprep.subr.mxu0 %v388
  %8179 = vmatpush1.msra.mxu0 %v387
  %8180 = vmatprep.subr.mxu0 %v380
  %8181 = vmatpush1.msra.mxu0 %v379
  %8182 = vmatprep.subr.mxu0 %v372
  %8183 = vmatpush1.msra.mxu0 %v371
  %8184 = vmatprep.subr.mxu0 %v364
  %8185 = vmatpush1.msra.mxu0 %v363
  %8186 = vmatprep.subr.mxu0 %v356
  %8187 = vmatpush1.msra.mxu0 %v355
  %8188 = vmatprep.subr.mxu0 %v348
  %8189 = vmatpush1.msra.mxu0 %v347
  %8190 = vmatprep.subr.mxu0 %v340
  %8191 = vmatpush1.msra.mxu0 %v339
  %8192 = vmatprep.subr.mxu0 %v332
  %8193 = vmatpush1.msra.mxu0 %v331
  %8194 = vmatprep.subr.mxu0 %v324
  %8195 = vmatpush1.msra.mxu0 %v323
  %8196 = vmatprep.subr.mxu0 %v316
  %8197 = vmatpush1.msra.mxu0 %v315
  %8198 = vmatprep.subr.mxu0 %v564
  %8199 = vmatpush2.msra.mxu0 %v563
  %8200 = vmatprep.subr.mxu0 %v556
  %8201 = vmatpush2.msra.mxu0 %v555
  %8202 = vmatprep.subr.mxu0 %v548
  %8203 = vmatpush2.msra.mxu0 %v547
  %8204 = vmatprep.subr.mxu0 %v540
  %8205 = vmatpush2.msra.mxu0 %v539
  %8206 = vmatprep.subr.mxu0 %v532
  %8207 = vmatpush2.msra.mxu0 %v531
  %8208 = vmatprep.subr.mxu0 %v524
  %8209 = vmatpush2.msra.mxu0 %v523
  %8210 = vmatprep.subr.mxu0 %v516
  %8211 = vmatpush2.msra.mxu0 %v515
  %8212 = vmatprep.subr.mxu0 %v508
  %8213 = vmatpush2.msra.mxu0 %v507
  %8214 = vmatprep.subr.mxu0 %v500
  %8215 = vmatpush2.msra.mxu0 %v499
  %8216 = vmatprep.subr.mxu0 %v492
  %8217 = vmatpush2.msra.mxu0 %v491
  %8218 = vmatprep.subr.mxu0 %v484
  %8219 = vmatpush2.msra.mxu0 %v483
  %8220 = vmatprep.subr.mxu0 %v476
  %8221 = vmatpush2.msra.mxu0 %v475
  %8222 = vmatprep.subr.mxu0 %v468
  %8223 = vmatpush2.msra.mxu0 %v467
  %8224 = vmatprep.subr.mxu0 %v460
  %8225 = vmatpush2.msra.mxu0 %v459
  %8226 = vmatprep.subr.mxu0 %v452
  %8227 = vmatpush2.msra.mxu0 %v451
  %8228 = vmatprep.subr.mxu0 %v444
  %8229 = vmatpush2.msra.mxu0 %v443
  %8230 = vmatprep.mubr.f32.mxu0 %v7950
  %8231 = vmatmul.mubr.f32.gmra.mxu0 %v7943
  %v8232 = vpop.f32.mrf.mxu0
  %v8233 = vadd.f32 0.0, %v8232
  %v8234 = vpop.f32.mrf.mxu0
  %v8235 = vadd.f32 0.0, %v8234
  %8236 = vdwg.mxu0
  %v8245 = vcombine.low %v8020, %v8022
  %v8246 = vcombine.low %v8091, %v8093
  %v8247 = vcombine.low %v8162, %v8164
  %v8248 = vcombine.low %v8233, %v8235
  %v8250 = vunpack.c.l.s4 1966171168
  %v8251 = vunpack.c.0.s8 %v8250
  %v8252 = vlaneseq
  %v8253 = vshrl.u32 %v8252, 7
  %v8254 = vsub.s32 %v8251, %v8253
  %v8255 = vrot.slane %v8245, %v8254
  %v8257 = vunpack.c.l.s4 1966171168
  %v8258 = vunpack.c.0.s8 %v8257
  %v8259 = vlaneseq
  %v8260 = vshrl.u32 %v8259, 7
  %v8261 = vsub.s32 %v8258, %v8260
  %v8262 = vrot.slane %v8246, %v8261
  %v8264 = vunpack.c.l.s4 1966171168
  %v8265 = vunpack.c.0.s8 %v8264
  %v8266 = vlaneseq
  %v8267 = vshrl.u32 %v8266, 7
  %v8268 = vsub.s32 %v8265, %v8267
  %v8269 = vrot.slane %v8247, %v8268
  %v8271 = vunpack.c.l.s4 1966171168
  %v8272 = vunpack.c.0.s8 %v8271
  %v8273 = vlaneseq
  %v8274 = vshrl.u32 %v8273, 7
  %v8275 = vsub.s32 %v8272, %v8274
  %v8276 = vrot.slane %v8248, %v8275
  %v8277 = vcombine.low %v8255, %v8262
  %v8278 = vcombine.high %v8255, %v8262
  %v8279 = vcombine.low %v8269, %v8276
  %v8280 = vcombine.high %v8269, %v8276
  %v8282 = vunpack.c.l.s4 1966171168
  %v8283 = vunpack.c.0.s8 %v8282
  %v8284 = vlaneseq
  %v8285 = vshrl.u32 %v8284, 7
  %v8286 = vsub.s32 %v8283, %v8285
  %v8287 = vrot.slane %v8277, %v8286
  %v8289 = vunpack.c.l.s4 1966171168
  %v8290 = vunpack.c.0.s8 %v8289
  %v8291 = vlaneseq
  %v8292 = vshrl.u32 %v8291, 7
  %v8293 = vsub.s32 %v8290, %v8292
  %v8294 = vrot.slane %v8278, %v8293
  %v8296 = vunpack.c.l.s4 1966171168
  %v8297 = vunpack.c.0.s8 %v8296
  %v8298 = vlaneseq
  %v8299 = vshrl.u32 %v8298, 7
  %v8300 = vsub.s32 %v8297, %v8299
  %v8301 = vrot.slane %v8279, %v8300
  %v8303 = vunpack.c.l.s4 1966171168
  %v8304 = vunpack.c.0.s8 %v8303
  %v8305 = vlaneseq
  %v8306 = vshrl.u32 %v8305, 7
  %v8307 = vsub.s32 %v8304, %v8306
  %v8308 = vrot.slane %v8280, %v8307
  %v8309 = vcombine.low %v8287, %v8301
  %v8310 = vcombine.low %v8294, %v8308
  %v8313 = vadd.f32 %v7921, %v8309
  %v8314 = vadd.f32 %v7925, %v8310
  %v8315 = vxor.u32 %v8313, 2147483648
  %v8316 = vxor.u32 %v8314, 2147483648
  %v8317 = vmul.f32 %v8315, 1.442695
  %v8318 = vpow.pop %v8317
  %v8319 = vmul.f32 %v8316, 1.442695
  %v8320 = vpow.pop %v8319
  %v8321 = vadd.f32 %v8318, 1.0
  %v8322 = vadd.f32 %v8320, 1.0
  %v8323 = vrcp.pop %v8321
  %v8324 = vmul.f32 1.0, %v8323
  %v8325 = vrcp.pop %v8322
  %v8326 = vmul.f32 1.0, %v8325
  %v8329 = vrot.slane %v8313, 2
  %v8330 = vrot.slane %v8314, 2
  %v8333 = vxor.u32 %v8329, 2147483648
  %v8334 = vxor.u32 %v8330, 2147483648
  %v8335 = vmul.f32 %v8333, 1.442695
  %v8336 = vpow.pop %v8335
  %v8337 = vmul.f32 %v8334, 1.442695
  %v8338 = vpow.pop %v8337
  %v8339 = vadd.f32 %v8336, 1.0
  %v8340 = vadd.f32 %v8338, 1.0
  %v8341 = vrcp.pop %v8339
  %v8342 = vmul.f32 1.0, %v8341
  %v8343 = vrcp.pop %v8340
  %v8344 = vmul.f32 1.0, %v8343
  %v8345 = vrot.slane %v8313, 4
  %v8346 = vrot.slane %v8314, 4
  %v8349 = vtanh.pop %v8345
  %v8350 = vtanh.pop %v8346
  %v8351 = vrot.slane %v8313, 6
  %v8352 = vrot.slane %v8314, 6
  %v8355 = vxor.u32 %v8351, 2147483648
  %v8356 = vxor.u32 %v8352, 2147483648
  %v8357 = vmul.f32 %v8355, 1.442695
  %v8358 = vpow.pop %v8357
  %v8359 = vmul.f32 %v8356, 1.442695
  %v8360 = vpow.pop %v8359
  %v8361 = vadd.f32 %v8358, 1.0
  %v8362 = vadd.f32 %v8360, 1.0
  %v8363 = vrcp.pop %v8361
  %v8364 = vmul.f32 1.0, %v8363
  %v8365 = vrcp.pop %v8362
  %v8366 = vmul.f32 1.0, %v8365
  %v8367 = vmul.f32 %v8342, %v7912
  %v8368 = vmul.f32 %v8344, %v7913
  %v8369 = vmul.f32 %v8324, %v8349
  %v8370 = vmul.f32 %v8326, %v8350
  %v8371 = vadd.f32 %v8367, %v8369
  %v8372 = vadd.f32 %v8368, %v8370
  %v8373 = vtanh.pop %v8371
  %v8374 = vtanh.pop %v8372
  %v8375 = vmul.f32 %v8364, %v8373
  %v8376 = vmul.f32 %v8366, %v8374
  %s8377 = scalar_lea.vmem [#allocation4], 7
  %v8378 = vld [vmem:[%s8377] ss:$8 sm:$0xf]
  %v8379 = vld [vmem:[%s8377] ss:$8 sm:$0xf0]
  %v8380 = vor.u32 %v8378, %v8379
  %s8381 = scalar_lea.vmem [#allocation4], 71
  %v8382 = vld [vmem:[%s8381] ss:$8 sm:$0xf]
  %v8383 = vld [vmem:[%s8381] ss:$8 sm:$0xf0]
  %v8384 = vor.u32 %v8382, %v8383
  %v8387 = vcombine.low %v8375, %v8376
  %v8389 = vunpack.c.l.s4 1966171168
  %v8390 = vunpack.c.0.s8 %v8389
  %v8391 = vlaneseq
  %v8392 = vshrl.u32 %v8391, 7
  %v8393 = vsub.s32 %v8390, %v8392
  %v8394 = vrot.slane %v8387, %v8393
  %v8395 = vcombine.high %v8394, %v8394
  %v8397 = vunpack.c.l.s4 1966171168
  %v8398 = vunpack.c.0.s8 %v8397
  %v8399 = vlaneseq
  %v8400 = vshrl.u32 %v8399, 7
  %v8401 = vsub.s32 %v8398, %v8400
  %v8402 = vrot.slane %v8394, %v8401
  %v8404 = vunpack.c.l.s4 1966171168
  %v8405 = vunpack.c.0.s8 %v8404
  %v8406 = vlaneseq
  %v8407 = vshrl.u32 %v8406, 7
  %v8408 = vsub.s32 %v8405, %v8407
  %v8409 = vrot.slane %v8395, %v8408
  %8412 = vmatprep.subr.mxu0 %v430
  %8413 = vmatpush1.msra.mxu0 %v429
  %8414 = vmatprep.subr.mxu0 %v422
  %8415 = vmatpush1.msra.mxu0 %v421
  %8416 = vmatprep.subr.mxu0 %v414
  %8417 = vmatpush1.msra.mxu0 %v413
  %8418 = vmatprep.subr.mxu0 %v406
  %8419 = vmatpush1.msra.mxu0 %v405
  %8420 = vmatprep.subr.mxu0 %v398
  %8421 = vmatpush1.msra.mxu0 %v397
  %8422 = vmatprep.subr.mxu0 %v390
  %8423 = vmatpush1.msra.mxu0 %v389
  %8424 = vmatprep.subr.mxu0 %v382
  %8425 = vmatpush1.msra.mxu0 %v381
  %8426 = vmatprep.subr.mxu0 %v374
  %8427 = vmatpush1.msra.mxu0 %v373
  %8428 = vmatprep.subr.mxu0 %v366
  %8429 = vmatpush1.msra.mxu0 %v365
  %8430 = vmatprep.subr.mxu0 %v358
  %8431 = vmatpush1.msra.mxu0 %v357
  %8432 = vmatprep.subr.mxu0 %v350
  %8433 = vmatpush1.msra.mxu0 %v349
  %8434 = vmatprep.subr.mxu0 %v342
  %8435 = vmatpush1.msra.mxu0 %v341
  %8436 = vmatprep.subr.mxu0 %v334
  %8437 = vmatpush1.msra.mxu0 %v333
  %8438 = vmatprep.subr.mxu0 %v326
  %8439 = vmatpush1.msra.mxu0 %v325
  %8440 = vmatprep.subr.mxu0 %v318
  %8441 = vmatpush1.msra.mxu0 %v317
  %8442 = vmatprep.subr.mxu0 %v310
  %8443 = vmatpush1.msra.mxu0 %v309
  %8444 = vmatprep.subr.mxu0 %v558
  %8445 = vmatpush2.msra.mxu0 %v557
  %8446 = vmatprep.subr.mxu0 %v550
  %8447 = vmatpush2.msra.mxu0 %v549
  %8448 = vmatprep.subr.mxu0 %v542
  %8449 = vmatpush2.msra.mxu0 %v541
  %8450 = vmatprep.subr.mxu0 %v534
  %8451 = vmatpush2.msra.mxu0 %v533
  %8452 = vmatprep.subr.mxu0 %v526
  %8453 = vmatpush2.msra.mxu0 %v525
  %8454 = vmatprep.subr.mxu0 %v518
  %8455 = vmatpush2.msra.mxu0 %v517
  %8456 = vmatprep.subr.mxu0 %v510
  %8457 = vmatpush2.msra.mxu0 %v509
  %8458 = vmatprep.subr.mxu0 %v502
  %8459 = vmatpush2.msra.mxu0 %v501
  %8460 = vmatprep.subr.mxu0 %v494
  %8461 = vmatpush2.msra.mxu0 %v493
  %8462 = vmatprep.subr.mxu0 %v486
  %8463 = vmatpush2.msra.mxu0 %v485
  %8464 = vmatprep.subr.mxu0 %v478
  %8465 = vmatpush2.msra.mxu0 %v477
  %8466 = vmatprep.subr.mxu0 %v470
  %8467 = vmatpush2.msra.mxu0 %v469
  %8468 = vmatprep.subr.mxu0 %v462
  %8469 = vmatpush2.msra.mxu0 %v461
  %8470 = vmatprep.subr.mxu0 %v454
  %8471 = vmatpush2.msra.mxu0 %v453
  %8472 = vmatprep.subr.mxu0 %v446
  %8473 = vmatpush2.msra.mxu0 %v445
  %8474 = vmatprep.subr.mxu0 %v438
  %8475 = vmatpush2.msra.mxu0 %v437
  %8476 = vmatprep.mubr.f32.mxu0 %v8409
  %8477 = vmatmul.mubr.f32.gmra.mxu0 %v8402
  %v8478 = vpop.f32.mrf.mxu0
  %v8479 = vadd.f32 0.0, %v8478
  %v8480 = vpop.f32.mrf.mxu0
  %v8481 = vadd.f32 0.0, %v8480
  %8482 = vdwg.mxu0
  %8483 = vmatprep.subr.mxu0 %v432
  %8484 = vmatpush1.msra.mxu0 %v431
  %8485 = vmatprep.subr.mxu0 %v424
  %8486 = vmatpush1.msra.mxu0 %v423
  %8487 = vmatprep.subr.mxu0 %v416
  %8488 = vmatpush1.msra.mxu0 %v415
  %8489 = vmatprep.subr.mxu0 %v408
  %8490 = vmatpush1.msra.mxu0 %v407
  %8491 = vmatprep.subr.mxu0 %v400
  %8492 = vmatpush1.msra.mxu0 %v399
  %8493 = vmatprep.subr.mxu0 %v392
  %8494 = vmatpush1.msra.mxu0 %v391
  %8495 = vmatprep.subr.mxu0 %v384
  %8496 = vmatpush1.msra.mxu0 %v383
  %8497 = vmatprep.subr.mxu0 %v376
  %8498 = vmatpush1.msra.mxu0 %v375
  %8499 = vmatprep.subr.mxu0 %v368
  %8500 = vmatpush1.msra.mxu0 %v367
  %8501 = vmatprep.subr.mxu0 %v360
  %8502 = vmatpush1.msra.mxu0 %v359
  %8503 = vmatprep.subr.mxu0 %v352
  %8504 = vmatpush1.msra.mxu0 %v351
  %8505 = vmatprep.subr.mxu0 %v344
  %8506 = vmatpush1.msra.mxu0 %v343
  %8507 = vmatprep.subr.mxu0 %v336
  %8508 = vmatpush1.msra.mxu0 %v335
  %8509 = vmatprep.subr.mxu0 %v328
  %8510 = vmatpush1.msra.mxu0 %v327
  %8511 = vmatprep.subr.mxu0 %v320
  %8512 = vmatpush1.msra.mxu0 %v319
  %8513 = vmatprep.subr.mxu0 %v312
  %8514 = vmatpush1.msra.mxu0 %v311
  %8515 = vmatprep.subr.mxu0 %v560
  %8516 = vmatpush2.msra.mxu0 %v559
  %8517 = vmatprep.subr.mxu0 %v552
  %8518 = vmatpush2.msra.mxu0 %v551
  %8519 = vmatprep.subr.mxu0 %v544
  %8520 = vmatpush2.msra.mxu0 %v543
  %8521 = vmatprep.subr.mxu0 %v536
  %8522 = vmatpush2.msra.mxu0 %v535
  %8523 = vmatprep.subr.mxu0 %v528
  %8524 = vmatpush2.msra.mxu0 %v527
  %8525 = vmatprep.subr.mxu0 %v520
  %8526 = vmatpush2.msra.mxu0 %v519
  %8527 = vmatprep.subr.mxu0 %v512
  %8528 = vmatpush2.msra.mxu0 %v511
  %8529 = vmatprep.subr.mxu0 %v504
  %8530 = vmatpush2.msra.mxu0 %v503
  %8531 = vmatprep.subr.mxu0 %v496
  %8532 = vmatpush2.msra.mxu0 %v495
  %8533 = vmatprep.subr.mxu0 %v488
  %8534 = vmatpush2.msra.mxu0 %v487
  %8535 = vmatprep.subr.mxu0 %v480
  %8536 = vmatpush2.msra.mxu0 %v479
  %8537 = vmatprep.subr.mxu0 %v472
  %8538 = vmatpush2.msra.mxu0 %v471
  %8539 = vmatprep.subr.mxu0 %v464
  %8540 = vmatpush2.msra.mxu0 %v463
  %8541 = vmatprep.subr.mxu0 %v456
  %8542 = vmatpush2.msra.mxu0 %v455
  %8543 = vmatprep.subr.mxu0 %v448
  %8544 = vmatpush2.msra.mxu0 %v447
  %8545 = vmatprep.subr.mxu0 %v440
  %8546 = vmatpush2.msra.mxu0 %v439
  %8547 = vmatprep.mubr.f32.mxu0 %v8409
  %8548 = vmatmul.mubr.f32.gmra.mxu0 %v8402
  %v8549 = vpop.f32.mrf.mxu0
  %v8550 = vadd.f32 0.0, %v8549
  %v8551 = vpop.f32.mrf.mxu0
  %v8552 = vadd.f32 0.0, %v8551
  %8553 = vdwg.mxu0
  %8554 = vmatprep.subr.mxu0 %v434
  %8555 = vmatpush1.msra.mxu0 %v433
  %8556 = vmatprep.subr.mxu0 %v426
  %8557 = vmatpush1.msra.mxu0 %v425
  %8558 = vmatprep.subr.mxu0 %v418
  %8559 = vmatpush1.msra.mxu0 %v417
  %8560 = vmatprep.subr.mxu0 %v410
  %8561 = vmatpush1.msra.mxu0 %v409
  %8562 = vmatprep.subr.mxu0 %v402
  %8563 = vmatpush1.msra.mxu0 %v401
  %8564 = vmatprep.subr.mxu0 %v394
  %8565 = vmatpush1.msra.mxu0 %v393
  %8566 = vmatprep.subr.mxu0 %v386
  %8567 = vmatpush1.msra.mxu0 %v385
  %8568 = vmatprep.subr.mxu0 %v378
  %8569 = vmatpush1.msra.mxu0 %v377
  %8570 = vmatprep.subr.mxu0 %v370
  %8571 = vmatpush1.msra.mxu0 %v369
  %8572 = vmatprep.subr.mxu0 %v362
  %8573 = vmatpush1.msra.mxu0 %v361
  %8574 = vmatprep.subr.mxu0 %v354
  %8575 = vmatpush1.msra.mxu0 %v353
  %8576 = vmatprep.subr.mxu0 %v346
  %8577 = vmatpush1.msra.mxu0 %v345
  %8578 = vmatprep.subr.mxu0 %v338
  %8579 = vmatpush1.msra.mxu0 %v337
  %8580 = vmatprep.subr.mxu0 %v330
  %8581 = vmatpush1.msra.mxu0 %v329
  %8582 = vmatprep.subr.mxu0 %v322
  %8583 = vmatpush1.msra.mxu0 %v321
  %8584 = vmatprep.subr.mxu0 %v314
  %8585 = vmatpush1.msra.mxu0 %v313
  %8586 = vmatprep.subr.mxu0 %v562
  %8587 = vmatpush2.msra.mxu0 %v561
  %8588 = vmatprep.subr.mxu0 %v554
  %8589 = vmatpush2.msra.mxu0 %v553
  %8590 = vmatprep.subr.mxu0 %v546
  %8591 = vmatpush2.msra.mxu0 %v545
  %8592 = vmatprep.subr.mxu0 %v538
  %8593 = vmatpush2.msra.mxu0 %v537
  %8594 = vmatprep.subr.mxu0 %v530
  %8595 = vmatpush2.msra.mxu0 %v529
  %8596 = vmatprep.subr.mxu0 %v522
  %8597 = vmatpush2.msra.mxu0 %v521
  %8598 = vmatprep.subr.mxu0 %v514
  %8599 = vmatpush2.msra.mxu0 %v513
  %8600 = vmatprep.subr.mxu0 %v506
  %8601 = vmatpush2.msra.mxu0 %v505
  %8602 = vmatprep.subr.mxu0 %v498
  %8603 = vmatpush2.msra.mxu0 %v497
  %8604 = vmatprep.subr.mxu0 %v490
  %8605 = vmatpush2.msra.mxu0 %v489
  %8606 = vmatprep.subr.mxu0 %v482
  %8607 = vmatpush2.msra.mxu0 %v481
  %8608 = vmatprep.subr.mxu0 %v474
  %8609 = vmatpush2.msra.mxu0 %v473
  %8610 = vmatprep.subr.mxu0 %v466
  %8611 = vmatpush2.msra.mxu0 %v465
  %8612 = vmatprep.subr.mxu0 %v458
  %8613 = vmatpush2.msra.mxu0 %v457
  %8614 = vmatprep.subr.mxu0 %v450
  %8615 = vmatpush2.msra.mxu0 %v449
  %8616 = vmatprep.subr.mxu0 %v442
  %8617 = vmatpush2.msra.mxu0 %v441
  %8618 = vmatprep.mubr.f32.mxu0 %v8409
  %8619 = vmatmul.mubr.f32.gmra.mxu0 %v8402
  %v8620 = vpop.f32.mrf.mxu0
  %v8621 = vadd.f32 0.0, %v8620
  %v8622 = vpop.f32.mrf.mxu0
  %v8623 = vadd.f32 0.0, %v8622
  %8624 = vdwg.mxu0
  %8625 = vmatprep.subr.mxu0 %v436
  %8626 = vmatpush1.msra.mxu0 %v435
  %8627 = vmatprep.subr.mxu0 %v428
  %8628 = vmatpush1.msra.mxu0 %v427
  %8629 = vmatprep.subr.mxu0 %v420
  %8630 = vmatpush1.msra.mxu0 %v419
  %8631 = vmatprep.subr.mxu0 %v412
  %8632 = vmatpush1.msra.mxu0 %v411
  %8633 = vmatprep.subr.mxu0 %v404
  %8634 = vmatpush1.msra.mxu0 %v403
  %8635 = vmatprep.subr.mxu0 %v396
  %8636 = vmatpush1.msra.mxu0 %v395
  %8637 = vmatprep.subr.mxu0 %v388
  %8638 = vmatpush1.msra.mxu0 %v387
  %8639 = vmatprep.subr.mxu0 %v380
  %8640 = vmatpush1.msra.mxu0 %v379
  %8641 = vmatprep.subr.mxu0 %v372
  %8642 = vmatpush1.msra.mxu0 %v371
  %8643 = vmatprep.subr.mxu0 %v364
  %8644 = vmatpush1.msra.mxu0 %v363
  %8645 = vmatprep.subr.mxu0 %v356
  %8646 = vmatpush1.msra.mxu0 %v355
  %8647 = vmatprep.subr.mxu0 %v348
  %8648 = vmatpush1.msra.mxu0 %v347
  %8649 = vmatprep.subr.mxu0 %v340
  %8650 = vmatpush1.msra.mxu0 %v339
  %8651 = vmatprep.subr.mxu0 %v332
  %8652 = vmatpush1.msra.mxu0 %v331
  %8653 = vmatprep.subr.mxu0 %v324
  %8654 = vmatpush1.msra.mxu0 %v323
  %8655 = vmatprep.subr.mxu0 %v316
  %8656 = vmatpush1.msra.mxu0 %v315
  %8657 = vmatprep.subr.mxu0 %v564
  %8658 = vmatpush2.msra.mxu0 %v563
  %8659 = vmatprep.subr.mxu0 %v556
  %8660 = vmatpush2.msra.mxu0 %v555
  %8661 = vmatprep.subr.mxu0 %v548
  %8662 = vmatpush2.msra.mxu0 %v547
  %8663 = vmatprep.subr.mxu0 %v540
  %8664 = vmatpush2.msra.mxu0 %v539
  %8665 = vmatprep.subr.mxu0 %v532
  %8666 = vmatpush2.msra.mxu0 %v531
  %8667 = vmatprep.subr.mxu0 %v524
  %8668 = vmatpush2.msra.mxu0 %v523
  %8669 = vmatprep.subr.mxu0 %v516
  %8670 = vmatpush2.msra.mxu0 %v515
  %8671 = vmatprep.subr.mxu0 %v508
  %8672 = vmatpush2.msra.mxu0 %v507
  %8673 = vmatprep.subr.mxu0 %v500
  %8674 = vmatpush2.msra.mxu0 %v499
  %8675 = vmatprep.subr.mxu0 %v492
  %8676 = vmatpush2.msra.mxu0 %v491
  %8677 = vmatprep.subr.mxu0 %v484
  %8678 = vmatpush2.msra.mxu0 %v483
  %8679 = vmatprep.subr.mxu0 %v476
  %8680 = vmatpush2.msra.mxu0 %v475
  %8681 = vmatprep.subr.mxu0 %v468
  %8682 = vmatpush2.msra.mxu0 %v467
  %8683 = vmatprep.subr.mxu0 %v460
  %8684 = vmatpush2.msra.mxu0 %v459
  %8685 = vmatprep.subr.mxu0 %v452
  %8686 = vmatpush2.msra.mxu0 %v451
  %8687 = vmatprep.subr.mxu0 %v444
  %8688 = vmatpush2.msra.mxu0 %v443
  %8689 = vmatprep.mubr.f32.mxu0 %v8409
  %8690 = vmatmul.mubr.f32.gmra.mxu0 %v8402
  %v8691 = vpop.f32.mrf.mxu0
  %v8692 = vadd.f32 0.0, %v8691
  %v8693 = vpop.f32.mrf.mxu0
  %v8694 = vadd.f32 0.0, %v8693
  %8695 = vdwg.mxu0
  %v8704 = vcombine.low %v8479, %v8481
  %v8705 = vcombine.low %v8550, %v8552
  %v8706 = vcombine.low %v8621, %v8623
  %v8707 = vcombine.low %v8692, %v8694
  %v8709 = vunpack.c.l.s4 1966171168
  %v8710 = vunpack.c.0.s8 %v8709
  %v8711 = vlaneseq
  %v8712 = vshrl.u32 %v8711, 7
  %v8713 = vsub.s32 %v8710, %v8712
  %v8714 = vrot.slane %v8704, %v8713
  %v8716 = vunpack.c.l.s4 1966171168
  %v8717 = vunpack.c.0.s8 %v8716
  %v8718 = vlaneseq
  %v8719 = vshrl.u32 %v8718, 7
  %v8720 = vsub.s32 %v8717, %v8719
  %v8721 = vrot.slane %v8705, %v8720
  %v8723 = vunpack.c.l.s4 1966171168
  %v8724 = vunpack.c.0.s8 %v8723
  %v8725 = vlaneseq
  %v8726 = vshrl.u32 %v8725, 7
  %v8727 = vsub.s32 %v8724, %v8726
  %v8728 = vrot.slane %v8706, %v8727
  %v8730 = vunpack.c.l.s4 1966171168
  %v8731 = vunpack.c.0.s8 %v8730
  %v8732 = vlaneseq
  %v8733 = vshrl.u32 %v8732, 7
  %v8734 = vsub.s32 %v8731, %v8733
  %v8735 = vrot.slane %v8707, %v8734
  %v8736 = vcombine.low %v8714, %v8721
  %v8737 = vcombine.high %v8714, %v8721
  %v8738 = vcombine.low %v8728, %v8735
  %v8739 = vcombine.high %v8728, %v8735
  %v8741 = vunpack.c.l.s4 1966171168
  %v8742 = vunpack.c.0.s8 %v8741
  %v8743 = vlaneseq
  %v8744 = vshrl.u32 %v8743, 7
  %v8745 = vsub.s32 %v8742, %v8744
  %v8746 = vrot.slane %v8736, %v8745
  %v8748 = vunpack.c.l.s4 1966171168
  %v8749 = vunpack.c.0.s8 %v8748
  %v8750 = vlaneseq
  %v8751 = vshrl.u32 %v8750, 7
  %v8752 = vsub.s32 %v8749, %v8751
  %v8753 = vrot.slane %v8737, %v8752
  %v8755 = vunpack.c.l.s4 1966171168
  %v8756 = vunpack.c.0.s8 %v8755
  %v8757 = vlaneseq
  %v8758 = vshrl.u32 %v8757, 7
  %v8759 = vsub.s32 %v8756, %v8758
  %v8760 = vrot.slane %v8738, %v8759
  %v8762 = vunpack.c.l.s4 1966171168
  %v8763 = vunpack.c.0.s8 %v8762
  %v8764 = vlaneseq
  %v8765 = vshrl.u32 %v8764, 7
  %v8766 = vsub.s32 %v8763, %v8765
  %v8767 = vrot.slane %v8739, %v8766
  %v8768 = vcombine.low %v8746, %v8760
  %v8769 = vcombine.low %v8753, %v8767
  %v8772 = vadd.f32 %v8380, %v8768
  %v8773 = vadd.f32 %v8384, %v8769
  %v8774 = vxor.u32 %v8772, 2147483648
  %v8775 = vxor.u32 %v8773, 2147483648
  %v8776 = vmul.f32 %v8774, 1.442695
  %v8777 = vpow.pop %v8776
  %v8778 = vmul.f32 %v8775, 1.442695
  %v8779 = vpow.pop %v8778
  %v8780 = vadd.f32 %v8777, 1.0
  %v8781 = vadd.f32 %v8779, 1.0
  %v8782 = vrcp.pop %v8780
  %v8783 = vmul.f32 1.0, %v8782
  %v8784 = vrcp.pop %v8781
  %v8785 = vmul.f32 1.0, %v8784
  %v8788 = vrot.slane %v8772, 2
  %v8789 = vrot.slane %v8773, 2
  %v8792 = vxor.u32 %v8788, 2147483648
  %v8793 = vxor.u32 %v8789, 2147483648
  %v8794 = vmul.f32 %v8792, 1.442695
  %v8795 = vpow.pop %v8794
  %v8796 = vmul.f32 %v8793, 1.442695
  %v8797 = vpow.pop %v8796
  %v8798 = vadd.f32 %v8795, 1.0
  %v8799 = vadd.f32 %v8797, 1.0
  %v8800 = vrcp.pop %v8798
  %v8801 = vmul.f32 1.0, %v8800
  %v8802 = vrcp.pop %v8799
  %v8803 = vmul.f32 1.0, %v8802
  %v8804 = vrot.slane %v8772, 4
  %v8805 = vrot.slane %v8773, 4
  %v8808 = vtanh.pop %v8804
  %v8809 = vtanh.pop %v8805
  %v8810 = vrot.slane %v8772, 6
  %v8811 = vrot.slane %v8773, 6
  %v8814 = vxor.u32 %v8810, 2147483648
  %v8815 = vxor.u32 %v8811, 2147483648
  %v8816 = vmul.f32 %v8814, 1.442695
  %v8817 = vpow.pop %v8816
  %v8818 = vmul.f32 %v8815, 1.442695
  %v8819 = vpow.pop %v8818
  %v8820 = vadd.f32 %v8817, 1.0
  %v8821 = vadd.f32 %v8819, 1.0
  %v8822 = vrcp.pop %v8820
  %v8823 = vmul.f32 1.0, %v8822
  %v8824 = vrcp.pop %v8821
  %v8825 = vmul.f32 1.0, %v8824
  %v8826 = vmul.f32 %v8801, %v8371
  %v8827 = vmul.f32 %v8803, %v8372
  %v8828 = vmul.f32 %v8783, %v8808
  %v8829 = vmul.f32 %v8785, %v8809
  %v8830 = vadd.f32 %v8826, %v8828
  %v8831 = vadd.f32 %v8827, %v8829
  %v8832 = vtanh.pop %v8830
  %v8833 = vtanh.pop %v8831
  %v8834 = vmul.f32 %v8823, %v8832
  %v8835 = vmul.f32 %v8825, %v8833
  %v8838 = vcombine.low %v4531, %v4532
  %v8840 = vunpack.c.l.s4 1935823168
  %v8841 = vunpack.c.0.s8 %v8840
  %v8842 = vlaneseq
  %v8843 = vshrl.u32 %v8842, 7
  %v8844 = vsub.s32 %v8841, %v8843
  %v8845 = vrot.slane %v8838, %v8844
  %8847 = vst [vmem:[#allocation2] sm:$0xf] %v8845
  %v8850 = vcombine.low %v4527, %v4528
  %v8852 = vunpack.c.l.s4 1935823168
  %v8853 = vunpack.c.0.s8 %v8852
  %v8854 = vlaneseq
  %v8855 = vshrl.u32 %v8854, 7
  %v8856 = vsub.s32 %v8853, %v8855
  %v8857 = vrot.slane %v8850, %v8856
  %8859 = vst [vmem:[%s47] sm:$0xf] %v8857
  %v8862 = vcombine.low %v8834, %v8835
  %v8864 = vunpack.c.l.s4 1935823168
  %v8865 = vunpack.c.0.s8 %v8864
  %v8866 = vlaneseq
  %v8867 = vshrl.u32 %v8866, 7
  %v8868 = vsub.s32 %v8865, %v8867
  %v8869 = vrot.slane %v8862, %v8868
  %8871 = vst [vmem:[%s49] sm:$0xf] %v8869
  %v8874 = vcombine.low %v8830, %v8831
  %v8876 = vunpack.c.l.s4 1935823168
  %v8877 = vunpack.c.0.s8 %v8876
  %v8878 = vlaneseq
  %v8879 = vshrl.u32 %v8878, 7
  %v8880 = vsub.s32 %v8877, %v8879
  %v8881 = vrot.slane %v8874, %v8880
  %8883 = vst [vmem:[%s51] sm:$0xf] %v8881
  // Predicated region
  $region50: #{encoder_forward.1} parent=0 // pred_check
    %p8884 = pneg %p38
  $region51: #{encoder_forward.1} parent=0 // pred_check_branch
    %8886 = sbr.rel (%p8884) target = $region53
  $region52: #{encoder_forward.1} parent=0 // pred_region
    %v8887 = vld [vmem:[%s5] sm:$0xff]
    %v8888 = vld [vmem:[%s5 + $0x8] sm:$0xff]
    %v8889 = vld [vmem:[%s5 + $0x10] sm:$0xff]
    %v8890 = vld [vmem:[%s5 + $0x18] sm:$0xff]
    %v8891 = vld [vmem:[%s5 + $0x20] sm:$0xff]
    %v8892 = vld [vmem:[%s5 + $0x28] sm:$0xff]
    %v8893 = vld [vmem:[%s5 + $0x30] sm:$0xff]
    %v8894 = vld [vmem:[%s5 + $0x38] sm:$0xff]
    %v8895 = vld [vmem:[%s5 + $0x40] sm:$0xff]
    %v8896 = vld [vmem:[%s5 + $0x48] sm:$0xff]
    %v8897 = vld [vmem:[%s5 + $0x50] sm:$0xff]
    %v8898 = vld [vmem:[%s5 + $0x58] sm:$0xff]
    %v8899 = vld [vmem:[%s5 + $0x60] sm:$0xff]
    %v8900 = vld [vmem:[%s5 + $0x68] sm:$0xff]
    %v8901 = vld [vmem:[%s5 + $0x70] sm:$0xff]
    %v8902 = vld [vmem:[%s5 + $0x78] sm:$0xff]
    %v8903 = vld [vmem:[%s5 + $0x80] sm:$0xff]
    %v8904 = vld [vmem:[%s5 + $0x88] sm:$0xff]
    %v8905 = vld [vmem:[%s5 + $0x90] sm:$0xff]
    %v8906 = vld [vmem:[%s5 + $0x98] sm:$0xff]
    %v8907 = vld [vmem:[%s5 + $0xa0] sm:$0xff]
    %v8908 = vld [vmem:[%s5 + $0xa8] sm:$0xff]
    %v8909 = vld [vmem:[%s5 + $0xb0] sm:$0xff]
    %v8910 = vld [vmem:[%s5 + $0xb8] sm:$0xff]
    %v8911 = vld [vmem:[%s5 + $0xc0] sm:$0xff]
    %v8912 = vld [vmem:[%s5 + $0xc8] sm:$0xff]
    %v8913 = vld [vmem:[%s5 + $0xd0] sm:$0xff]
    %v8914 = vld [vmem:[%s5 + $0xd8] sm:$0xff]
    %v8915 = vld [vmem:[%s5 + $0xe0] sm:$0xff]
    %v8916 = vld [vmem:[%s5 + $0xe8] sm:$0xff]
    %v8917 = vld [vmem:[%s5 + $0xf0] sm:$0xff]
    %v8918 = vld [vmem:[%s5 + $0xf8] sm:$0xff]
    %v8919 = vld [vmem:[%s5 + $0x100] sm:$0xff]
    %v8920 = vld [vmem:[%s5 + $0x108] sm:$0xff]
    %v8921 = vld [vmem:[%s5 + $0x110] sm:$0xff]
    %v8922 = vld [vmem:[%s5 + $0x118] sm:$0xff]
    %v8923 = vld [vmem:[%s5 + $0x120] sm:$0xff]
    %v8924 = vld [vmem:[%s5 + $0x128] sm:$0xff]
    %v8925 = vld [vmem:[%s5 + $0x130] sm:$0xff]
    %v8926 = vld [vmem:[%s5 + $0x138] sm:$0xff]
    %v8927 = vld [vmem:[%s5 + $0x140] sm:$0xff]
    %v8928 = vld [vmem:[%s5 + $0x148] sm:$0xff]
    %v8929 = vld [vmem:[%s5 + $0x150] sm:$0xff]
    %v8930 = vld [vmem:[%s5 + $0x158] sm:$0xff]
    %v8931 = vld [vmem:[%s5 + $0x160] sm:$0xff]
    %v8932 = vld [vmem:[%s5 + $0x168] sm:$0xff]
    %v8933 = vld [vmem:[%s5 + $0x170] sm:$0xff]
    %v8934 = vld [vmem:[%s5 + $0x178] sm:$0xff]
    %v8935 = vld [vmem:[%s5 + $0x180] sm:$0xff]
    %v8936 = vld [vmem:[%s5 + $0x188] sm:$0xff]
    %v8937 = vld [vmem:[%s5 + $0x190] sm:$0xff]
    %v8938 = vld [vmem:[%s5 + $0x198] sm:$0xff]
    %v8939 = vld [vmem:[%s5 + $0x1a0] sm:$0xff]
    %v8940 = vld [vmem:[%s5 + $0x1a8] sm:$0xff]
    %v8941 = vld [vmem:[%s5 + $0x1b0] sm:$0xff]
    %v8942 = vld [vmem:[%s5 + $0x1b8] sm:$0xff]
    %v8943 = vld [vmem:[%s5 + $0x1c0] sm:$0xff]
    %v8944 = vld [vmem:[%s5 + $0x1c8] sm:$0xff]
    %v8945 = vld [vmem:[%s5 + $0x1d0] sm:$0xff]
    %v8946 = vld [vmem:[%s5 + $0x1d8] sm:$0xff]
    %v8947 = vld [vmem:[%s5 + $0x1e0] sm:$0xff]
    %v8948 = vld [vmem:[%s5 + $0x1e8] sm:$0xff]
    %v8949 = vld [vmem:[%s5 + $0x1f0] sm:$0xff]
    %v8950 = vld [vmem:[%s5 + $0x1f8] sm:$0xff]
    %v8951 = vld [vmem:[%s5 + $0x200] sm:$0xff]
    %v8952 = vld [vmem:[%s5 + $0x208] sm:$0xff]
    %v8953 = vld [vmem:[%s5 + $0x210] sm:$0xff]
    %v8954 = vld [vmem:[%s5 + $0x218] sm:$0xff]
    %v8955 = vld [vmem:[%s5 + $0x220] sm:$0xff]
    %v8956 = vld [vmem:[%s5 + $0x228] sm:$0xff]
    %v8957 = vld [vmem:[%s5 + $0x230] sm:$0xff]
    %v8958 = vld [vmem:[%s5 + $0x238] sm:$0xff]
    %v8959 = vld [vmem:[%s5 + $0x240] sm:$0xff]
    %v8960 = vld [vmem:[%s5 + $0x248] sm:$0xff]
    %v8961 = vld [vmem:[%s5 + $0x250] sm:$0xff]
    %v8962 = vld [vmem:[%s5 + $0x258] sm:$0xff]
    %v8963 = vld [vmem:[%s5 + $0x260] sm:$0xff]
    %v8964 = vld [vmem:[%s5 + $0x268] sm:$0xff]
    %v8965 = vld [vmem:[%s5 + $0x270] sm:$0xff]
    %v8966 = vld [vmem:[%s5 + $0x278] sm:$0xff]
    %v8967 = vld [vmem:[%s5 + $0x280] sm:$0xff]
    %v8968 = vld [vmem:[%s5 + $0x288] sm:$0xff]
    %v8969 = vld [vmem:[%s5 + $0x290] sm:$0xff]
    %v8970 = vld [vmem:[%s5 + $0x298] sm:$0xff]
    %v8971 = vld [vmem:[%s5 + $0x2a0] sm:$0xff]
    %v8972 = vld [vmem:[%s5 + $0x2a8] sm:$0xff]
    %v8973 = vld [vmem:[%s5 + $0x2b0] sm:$0xff]
    %v8974 = vld [vmem:[%s5 + $0x2b8] sm:$0xff]
    %v8975 = vld [vmem:[%s5 + $0x2c0] sm:$0xff]
    %v8976 = vld [vmem:[%s5 + $0x2c8] sm:$0xff]
    %v8977 = vld [vmem:[%s5 + $0x2d0] sm:$0xff]
    %v8978 = vld [vmem:[%s5 + $0x2d8] sm:$0xff]
    %v8979 = vld [vmem:[%s5 + $0x2e0] sm:$0xff]
    %v8980 = vld [vmem:[%s5 + $0x2e8] sm:$0xff]
    %v8981 = vld [vmem:[%s5 + $0x2f0] sm:$0xff]
    %v8982 = vld [vmem:[%s5 + $0x2f8] sm:$0xff]
    %v8983 = vld [vmem:[%s5 + $0x300] sm:$0xff]
    %v8984 = vld [vmem:[%s5 + $0x308] sm:$0xff]
    %v8985 = vld [vmem:[%s5 + $0x310] sm:$0xff]
    %v8986 = vld [vmem:[%s5 + $0x318] sm:$0xff]
    %v8987 = vld [vmem:[%s5 + $0x320] sm:$0xff]
    %v8988 = vld [vmem:[%s5 + $0x328] sm:$0xff]
    %v8989 = vld [vmem:[%s5 + $0x330] sm:$0xff]
    %v8990 = vld [vmem:[%s5 + $0x338] sm:$0xff]
    %v8991 = vld [vmem:[%s5 + $0x340] sm:$0xff]
    %v8992 = vld [vmem:[%s5 + $0x348] sm:$0xff]
    %v8993 = vld [vmem:[%s5 + $0x350] sm:$0xff]
    %v8994 = vld [vmem:[%s5 + $0x358] sm:$0xff]
    %v8995 = vld [vmem:[%s5 + $0x360] sm:$0xff]
    %v8996 = vld [vmem:[%s5 + $0x368] sm:$0xff]
    %v8997 = vld [vmem:[%s5 + $0x370] sm:$0xff]
    %v8998 = vld [vmem:[%s5 + $0x378] sm:$0xff]
    %v8999 = vld [vmem:[%s5 + $0x380] sm:$0xff]
    %v9000 = vld [vmem:[%s5 + $0x388] sm:$0xff]
    %v9001 = vld [vmem:[%s5 + $0x390] sm:$0xff]
    %v9002 = vld [vmem:[%s5 + $0x398] sm:$0xff]
    %v9003 = vld [vmem:[%s5 + $0x3a0] sm:$0xff]
    %v9004 = vld [vmem:[%s5 + $0x3a8] sm:$0xff]
    %v9005 = vld [vmem:[%s5 + $0x3b0] sm:$0xff]
    %v9006 = vld [vmem:[%s5 + $0x3b8] sm:$0xff]
    %v9007 = vld [vmem:[%s5 + $0x3c0] sm:$0xff]
    %v9008 = vld [vmem:[%s5 + $0x3c8] sm:$0xff]
    %v9009 = vld [vmem:[%s5 + $0x3d0] sm:$0xff]
    %v9010 = vld [vmem:[%s5 + $0x3d8] sm:$0xff]
    %v9011 = vld [vmem:[%s5 + $0x3e0] sm:$0xff]
    %v9012 = vld [vmem:[%s5 + $0x3e8] sm:$0xff]
    %v9013 = vld [vmem:[%s5 + $0x3f0] sm:$0xff]
    %v9014 = vld [vmem:[%s5 + $0x3f8] sm:$0xff]
    %v9015 = vld [vmem:[%s6] sm:$0xf]
    %v9017 = vlaneseq
    %v9018 = vshrl.u32 %v9017, 7
    %v9019 = vsub.s32 0, %v9018
    %v9020 = vrot.slane %v9015, %v9019
    %v9021 = vlaneseq
    %v9022 = vshrl.u32 %v9021, 7
    %v9023 = vsub.s32 1, %v9022
    %v9024 = vrot.slane %v9015, %v9023
    %v9025 = vlaneseq
    %v9026 = vshrl.u32 %v9025, 7
    %v9027 = vsub.s32 2, %v9026
    %v9028 = vrot.slane %v9015, %v9027
    %v9029 = vlaneseq
    %v9030 = vshrl.u32 %v9029, 7
    %v9031 = vsub.s32 3, %v9030
    %v9032 = vrot.slane %v9015, %v9031
    %v9038 = vunpack.c.l.s4 1966171168
    %v9039 = vunpack.c.0.s8 %v9038
    %v9040 = vlaneseq
    %v9041 = vshrl.u32 %v9040, 7
    %v9042 = vsub.s32 %v9039, %v9041
    %v9043 = vrot.slane %v8862, %v9042
    %v9044 = vcombine.high %v9043, %v9043
    %v9046 = vunpack.c.l.s4 1966171168
    %v9047 = vunpack.c.0.s8 %v9046
    %v9048 = vlaneseq
    %v9049 = vshrl.u32 %v9048, 7
    %v9050 = vsub.s32 %v9047, %v9049
    %v9051 = vrot.slane %v9043, %v9050
    %v9053 = vunpack.c.l.s4 1966171168
    %v9054 = vunpack.c.0.s8 %v9053
    %v9055 = vlaneseq
    %v9056 = vshrl.u32 %v9055, 7
    %v9057 = vsub.s32 %v9054, %v9056
    %v9058 = vrot.slane %v9044, %v9057
    %9061 = vmatprep.subr.mxu0 %v8948
    %9062 = vmatpush1.msra.mxu0 %v8947
    %9063 = vmatprep.subr.mxu0 %v8944
    %9064 = vmatpush1.msra.mxu0 %v8943
    %9065 = vmatprep.subr.mxu0 %v8940
    %9066 = vmatpush1.msra.mxu0 %v8939
    %9067 = vmatprep.subr.mxu0 %v8936
    %9068 = vmatpush1.msra.mxu0 %v8935
    %9069 = vmatprep.subr.mxu0 %v8932
    %9070 = vmatpush1.msra.mxu0 %v8931
    %9071 = vmatprep.subr.mxu0 %v8928
    %9072 = vmatpush1.msra.mxu0 %v8927
    %9073 = vmatprep.subr.mxu0 %v8924
    %9074 = vmatpush1.msra.mxu0 %v8923
    %9075 = vmatprep.subr.mxu0 %v8920
    %9076 = vmatpush1.msra.mxu0 %v8919
    %9077 = vmatprep.subr.mxu0 %v8916
    %9078 = vmatpush1.msra.mxu0 %v8915
    %9079 = vmatprep.subr.mxu0 %v8912
    %9080 = vmatpush1.msra.mxu0 %v8911
    %9081 = vmatprep.subr.mxu0 %v8908
    %9082 = vmatpush1.msra.mxu0 %v8907
    %9083 = vmatprep.subr.mxu0 %v8904
    %9084 = vmatpush1.msra.mxu0 %v8903
    %9085 = vmatprep.subr.mxu0 %v8900
    %9086 = vmatpush1.msra.mxu0 %v8899
    %9087 = vmatprep.subr.mxu0 %v8896
    %9088 = vmatpush1.msra.mxu0 %v8895
    %9089 = vmatprep.subr.mxu0 %v8892
    %9090 = vmatpush1.msra.mxu0 %v8891
    %9091 = vmatprep.subr.mxu0 %v8888
    %9092 = vmatpush1.msra.mxu0 %v8887
    %9093 = vmatprep.subr.mxu0 %v9012
    %9094 = vmatpush2.msra.mxu0 %v9011
    %9095 = vmatprep.subr.mxu0 %v9008
    %9096 = vmatpush2.msra.mxu0 %v9007
    %9097 = vmatprep.subr.mxu0 %v9004
    %9098 = vmatpush2.msra.mxu0 %v9003
    %9099 = vmatprep.subr.mxu0 %v9000
    %9100 = vmatpush2.msra.mxu0 %v8999
    %9101 = vmatprep.subr.mxu0 %v8996
    %9102 = vmatpush2.msra.mxu0 %v8995
    %9103 = vmatprep.subr.mxu0 %v8992
    %9104 = vmatpush2.msra.mxu0 %v8991
    %9105 = vmatprep.subr.mxu0 %v8988
    %9106 = vmatpush2.msra.mxu0 %v8987
    %9107 = vmatprep.subr.mxu0 %v8984
    %9108 = vmatpush2.msra.mxu0 %v8983
    %9109 = vmatprep.subr.mxu0 %v8980
    %9110 = vmatpush2.msra.mxu0 %v8979
    %9111 = vmatprep.subr.mxu0 %v8976
    %9112 = vmatpush2.msra.mxu0 %v8975
    %9113 = vmatprep.subr.mxu0 %v8972
    %9114 = vmatpush2.msra.mxu0 %v8971
    %9115 = vmatprep.subr.mxu0 %v8968
    %9116 = vmatpush2.msra.mxu0 %v8967
    %9117 = vmatprep.subr.mxu0 %v8964
    %9118 = vmatpush2.msra.mxu0 %v8963
    %9119 = vmatprep.subr.mxu0 %v8960
    %9120 = vmatpush2.msra.mxu0 %v8959
    %9121 = vmatprep.subr.mxu0 %v8956
    %9122 = vmatpush2.msra.mxu0 %v8955
    %9123 = vmatprep.subr.mxu0 %v8952
    %9124 = vmatpush2.msra.mxu0 %v8951
    %9125 = vmatprep.mubr.f32.mxu0 %v9058
    %9126 = vmatmul.mubr.f32.gmra.mxu0 %v9051
    %v9127 = vpop.f32.mrf.mxu0
    %v9128 = vadd.f32 %v9020, %v9127
    %v9129 = vpop.f32.mrf.mxu0
    %v9130 = vadd.f32 %v9024, %v9129
    %9131 = vdwg.mxu0
    %9132 = vmatprep.subr.mxu0 %v8950
    %9133 = vmatpush1.msra.mxu0 %v8949
    %9134 = vmatprep.subr.mxu0 %v8946
    %9135 = vmatpush1.msra.mxu0 %v8945
    %9136 = vmatprep.subr.mxu0 %v8942
    %9137 = vmatpush1.msra.mxu0 %v8941
    %9138 = vmatprep.subr.mxu0 %v8938
    %9139 = vmatpush1.msra.mxu0 %v8937
    %9140 = vmatprep.subr.mxu0 %v8934
    %9141 = vmatpush1.msra.mxu0 %v8933
    %9142 = vmatprep.subr.mxu0 %v8930
    %9143 = vmatpush1.msra.mxu0 %v8929
    %9144 = vmatprep.subr.mxu0 %v8926
    %9145 = vmatpush1.msra.mxu0 %v8925
    %9146 = vmatprep.subr.mxu0 %v8922
    %9147 = vmatpush1.msra.mxu0 %v8921
    %9148 = vmatprep.subr.mxu0 %v8918
    %9149 = vmatpush1.msra.mxu0 %v8917
    %9150 = vmatprep.subr.mxu0 %v8914
    %9151 = vmatpush1.msra.mxu0 %v8913
    %9152 = vmatprep.subr.mxu0 %v8910
    %9153 = vmatpush1.msra.mxu0 %v8909
    %9154 = vmatprep.subr.mxu0 %v8906
    %9155 = vmatpush1.msra.mxu0 %v8905
    %9156 = vmatprep.subr.mxu0 %v8902
    %9157 = vmatpush1.msra.mxu0 %v8901
    %9158 = vmatprep.subr.mxu0 %v8898
    %9159 = vmatpush1.msra.mxu0 %v8897
    %9160 = vmatprep.subr.mxu0 %v8894
    %9161 = vmatpush1.msra.mxu0 %v8893
    %9162 = vmatprep.subr.mxu0 %v8890
    %9163 = vmatpush1.msra.mxu0 %v8889
    %9164 = vmatprep.subr.mxu0 %v9014
    %9165 = vmatpush2.msra.mxu0 %v9013
    %9166 = vmatprep.subr.mxu0 %v9010
    %9167 = vmatpush2.msra.mxu0 %v9009
    %9168 = vmatprep.subr.mxu0 %v9006
    %9169 = vmatpush2.msra.mxu0 %v9005
    %9170 = vmatprep.subr.mxu0 %v9002
    %9171 = vmatpush2.msra.mxu0 %v9001
    %9172 = vmatprep.subr.mxu0 %v8998
    %9173 = vmatpush2.msra.mxu0 %v8997
    %9174 = vmatprep.subr.mxu0 %v8994
    %9175 = vmatpush2.msra.mxu0 %v8993
    %9176 = vmatprep.subr.mxu0 %v8990
    %9177 = vmatpush2.msra.mxu0 %v8989
    %9178 = vmatprep.subr.mxu0 %v8986
    %9179 = vmatpush2.msra.mxu0 %v8985
    %9180 = vmatprep.subr.mxu0 %v8982
    %9181 = vmatpush2.msra.mxu0 %v8981
    %9182 = vmatprep.subr.mxu0 %v8978
    %9183 = vmatpush2.msra.mxu0 %v8977
    %9184 = vmatprep.subr.mxu0 %v8974
    %9185 = vmatpush2.msra.mxu0 %v8973
    %9186 = vmatprep.subr.mxu0 %v8970
    %9187 = vmatpush2.msra.mxu0 %v8969
    %9188 = vmatprep.subr.mxu0 %v8966
    %9189 = vmatpush2.msra.mxu0 %v8965
    %9190 = vmatprep.subr.mxu0 %v8962
    %9191 = vmatpush2.msra.mxu0 %v8961
    %9192 = vmatprep.subr.mxu0 %v8958
    %9193 = vmatpush2.msra.mxu0 %v8957
    %9194 = vmatprep.subr.mxu0 %v8954
    %9195 = vmatpush2.msra.mxu0 %v8953
    %9196 = vmatprep.mubr.f32.mxu0 %v9058
    %9197 = vmatmul.mubr.f32.gmra.mxu0 %v9051
    %v9198 = vpop.f32.mrf.mxu0
    %v9199 = vadd.f32 %v9028, %v9198
    %v9200 = vpop.f32.mrf.mxu0
    %v9201 = vadd.f32 %v9032, %v9200
    %9202 = vdwg.mxu0
    %v9203 = vmul.f32 %v9128, 0.2
    %v9204 = vmul.f32 %v9130, 0.2
    %v9205 = vmul.f32 %v9199, 0.2
    %v9206 = vmul.f32 %v9201, 0.2
    %v9207 = vmax.f32 %v9128, %v9203
    %v9208 = vmax.f32 %v9130, %v9204
    %v9209 = vmax.f32 %v9199, %v9205
    %v9210 = vmax.f32 %v9201, %v9206
    %v9211 = vld [vmem:[%s7] sm:$0xff]
    %v9212 = vld [vmem:[%s7 + $0x8] sm:$0xff]
    %v9213 = vld [vmem:[%s7 + $0x10] sm:$0xff]
    %v9214 = vld [vmem:[%s7 + $0x18] sm:$0xff]
    %v9215 = vld [vmem:[%s7 + $0x20] sm:$0xff]
    %v9216 = vld [vmem:[%s7 + $0x28] sm:$0xff]
    %v9217 = vld [vmem:[%s7 + $0x30] sm:$0xff]
    %v9218 = vld [vmem:[%s7 + $0x38] sm:$0xff]
    %v9219 = vld [vmem:[%s7 + $0x40] sm:$0xff]
    %v9220 = vld [vmem:[%s7 + $0x48] sm:$0xff]
    %v9221 = vld [vmem:[%s7 + $0x50] sm:$0xff]
    %v9222 = vld [vmem:[%s7 + $0x58] sm:$0xff]
    %v9223 = vld [vmem:[%s7 + $0x60] sm:$0xff]
    %v9224 = vld [vmem:[%s7 + $0x68] sm:$0xff]
    %v9225 = vld [vmem:[%s7 + $0x70] sm:$0xff]
    %v9226 = vld [vmem:[%s7 + $0x78] sm:$0xff]
    %v9227 = vld [vmem:[%s7 + $0x80] sm:$0xff]
    %v9228 = vld [vmem:[%s7 + $0x88] sm:$0xff]
    %v9229 = vld [vmem:[%s7 + $0x90] sm:$0xff]
    %v9230 = vld [vmem:[%s7 + $0x98] sm:$0xff]
    %v9231 = vld [vmem:[%s7 + $0xa0] sm:$0xff]
    %v9232 = vld [vmem:[%s7 + $0xa8] sm:$0xff]
    %v9233 = vld [vmem:[%s7 + $0xb0] sm:$0xff]
    %v9234 = vld [vmem:[%s7 + $0xb8] sm:$0xff]
    %v9235 = vld [vmem:[%s7 + $0xc0] sm:$0xff]
    %v9236 = vld [vmem:[%s7 + $0xc8] sm:$0xff]
    %v9237 = vld [vmem:[%s7 + $0xd0] sm:$0xff]
    %v9238 = vld [vmem:[%s7 + $0xd8] sm:$0xff]
    %v9239 = vld [vmem:[%s7 + $0xe0] sm:$0xff]
    %v9240 = vld [vmem:[%s7 + $0xe8] sm:$0xff]
    %v9241 = vld [vmem:[%s7 + $0xf0] sm:$0xff]
    %v9242 = vld [vmem:[%s7 + $0xf8] sm:$0xff]
    %v9243 = vld [vmem:[%s7 + $0x100] sm:$0xff]
    %v9244 = vld [vmem:[%s7 + $0x108] sm:$0xff]
    %v9245 = vld [vmem:[%s7 + $0x110] sm:$0xff]
    %v9246 = vld [vmem:[%s7 + $0x118] sm:$0xff]
    %v9247 = vld [vmem:[%s7 + $0x120] sm:$0xff]
    %v9248 = vld [vmem:[%s7 + $0x128] sm:$0xff]
    %v9249 = vld [vmem:[%s7 + $0x130] sm:$0xff]
    %v9250 = vld [vmem:[%s7 + $0x138] sm:$0xff]
    %v9251 = vld [vmem:[%s7 + $0x140] sm:$0xff]
    %v9252 = vld [vmem:[%s7 + $0x148] sm:$0xff]
    %v9253 = vld [vmem:[%s7 + $0x150] sm:$0xff]
    %v9254 = vld [vmem:[%s7 + $0x158] sm:$0xff]
    %v9255 = vld [vmem:[%s7 + $0x160] sm:$0xff]
    %v9256 = vld [vmem:[%s7 + $0x168] sm:$0xff]
    %v9257 = vld [vmem:[%s7 + $0x170] sm:$0xff]
    %v9258 = vld [vmem:[%s7 + $0x178] sm:$0xff]
    %v9259 = vld [vmem:[%s7 + $0x180] sm:$0xff]
    %v9260 = vld [vmem:[%s7 + $0x188] sm:$0xff]
    %v9261 = vld [vmem:[%s7 + $0x190] sm:$0xff]
    %v9262 = vld [vmem:[%s7 + $0x198] sm:$0xff]
    %v9263 = vld [vmem:[%s7 + $0x1a0] sm:$0xff]
    %v9264 = vld [vmem:[%s7 + $0x1a8] sm:$0xff]
    %v9265 = vld [vmem:[%s7 + $0x1b0] sm:$0xff]
    %v9266 = vld [vmem:[%s7 + $0x1b8] sm:$0xff]
    %v9267 = vld [vmem:[%s7 + $0x1c0] sm:$0xff]
    %v9268 = vld [vmem:[%s7 + $0x1c8] sm:$0xff]
    %v9269 = vld [vmem:[%s7 + $0x1d0] sm:$0xff]
    %v9270 = vld [vmem:[%s7 + $0x1d8] sm:$0xff]
    %v9271 = vld [vmem:[%s7 + $0x1e0] sm:$0xff]
    %v9272 = vld [vmem:[%s7 + $0x1e8] sm:$0xff]
    %v9273 = vld [vmem:[%s7 + $0x1f0] sm:$0xff]
    %v9274 = vld [vmem:[%s7 + $0x1f8] sm:$0xff]
    %v9275 = vld [vmem:[%s7 + $0x200] sm:$0xff]
    %v9276 = vld [vmem:[%s7 + $0x208] sm:$0xff]
    %v9277 = vld [vmem:[%s7 + $0x210] sm:$0xff]
    %v9278 = vld [vmem:[%s7 + $0x218] sm:$0xff]
    %v9279 = vld [vmem:[%s7 + $0x220] sm:$0xff]
    %v9280 = vld [vmem:[%s7 + $0x228] sm:$0xff]
    %v9281 = vld [vmem:[%s7 + $0x230] sm:$0xff]
    %v9282 = vld [vmem:[%s7 + $0x238] sm:$0xff]
    %v9283 = vld [vmem:[%s7 + $0x240] sm:$0xff]
    %v9284 = vld [vmem:[%s7 + $0x248] sm:$0xff]
    %v9285 = vld [vmem:[%s7 + $0x250] sm:$0xff]
    %v9286 = vld [vmem:[%s7 + $0x258] sm:$0xff]
    %v9287 = vld [vmem:[%s7 + $0x260] sm:$0xff]
    %v9288 = vld [vmem:[%s7 + $0x268] sm:$0xff]
    %v9289 = vld [vmem:[%s7 + $0x270] sm:$0xff]
    %v9290 = vld [vmem:[%s7 + $0x278] sm:$0xff]
    %v9291 = vld [vmem:[%s7 + $0x280] sm:$0xff]
    %v9292 = vld [vmem:[%s7 + $0x288] sm:$0xff]
    %v9293 = vld [vmem:[%s7 + $0x290] sm:$0xff]
    %v9294 = vld [vmem:[%s7 + $0x298] sm:$0xff]
    %v9295 = vld [vmem:[%s7 + $0x2a0] sm:$0xff]
    %v9296 = vld [vmem:[%s7 + $0x2a8] sm:$0xff]
    %v9297 = vld [vmem:[%s7 + $0x2b0] sm:$0xff]
    %v9298 = vld [vmem:[%s7 + $0x2b8] sm:$0xff]
    %v9299 = vld [vmem:[%s7 + $0x2c0] sm:$0xff]
    %v9300 = vld [vmem:[%s7 + $0x2c8] sm:$0xff]
    %v9301 = vld [vmem:[%s7 + $0x2d0] sm:$0xff]
    %v9302 = vld [vmem:[%s7 + $0x2d8] sm:$0xff]
    %v9303 = vld [vmem:[%s7 + $0x2e0] sm:$0xff]
    %v9304 = vld [vmem:[%s7 + $0x2e8] sm:$0xff]
    %v9305 = vld [vmem:[%s7 + $0x2f0] sm:$0xff]
    %v9306 = vld [vmem:[%s7 + $0x2f8] sm:$0xff]
    %v9307 = vld [vmem:[%s7 + $0x300] sm:$0xff]
    %v9308 = vld [vmem:[%s7 + $0x308] sm:$0xff]
    %v9309 = vld [vmem:[%s7 + $0x310] sm:$0xff]
    %v9310 = vld [vmem:[%s7 + $0x318] sm:$0xff]
    %v9311 = vld [vmem:[%s7 + $0x320] sm:$0xff]
    %v9312 = vld [vmem:[%s7 + $0x328] sm:$0xff]
    %v9313 = vld [vmem:[%s7 + $0x330] sm:$0xff]
    %v9314 = vld [vmem:[%s7 + $0x338] sm:$0xff]
    %v9315 = vld [vmem:[%s7 + $0x340] sm:$0xff]
    %v9316 = vld [vmem:[%s7 + $0x348] sm:$0xff]
    %v9317 = vld [vmem:[%s7 + $0x350] sm:$0xff]
    %v9318 = vld [vmem:[%s7 + $0x358] sm:$0xff]
    %v9319 = vld [vmem:[%s7 + $0x360] sm:$0xff]
    %v9320 = vld [vmem:[%s7 + $0x368] sm:$0xff]
    %v9321 = vld [vmem:[%s7 + $0x370] sm:$0xff]
    %v9322 = vld [vmem:[%s7 + $0x378] sm:$0xff]
    %v9323 = vld [vmem:[%s7 + $0x380] sm:$0xff]
    %v9324 = vld [vmem:[%s7 + $0x388] sm:$0xff]
    %v9325 = vld [vmem:[%s7 + $0x390] sm:$0xff]
    %v9326 = vld [vmem:[%s7 + $0x398] sm:$0xff]
    %v9327 = vld [vmem:[%s7 + $0x3a0] sm:$0xff]
    %v9328 = vld [vmem:[%s7 + $0x3a8] sm:$0xff]
    %v9329 = vld [vmem:[%s7 + $0x3b0] sm:$0xff]
    %v9330 = vld [vmem:[%s7 + $0x3b8] sm:$0xff]
    %v9331 = vld [vmem:[%s7 + $0x3c0] sm:$0xff]
    %v9332 = vld [vmem:[%s7 + $0x3c8] sm:$0xff]
    %v9333 = vld [vmem:[%s7 + $0x3d0] sm:$0xff]
    %v9334 = vld [vmem:[%s7 + $0x3d8] sm:$0xff]
    %v9335 = vld [vmem:[%s7 + $0x3e0] sm:$0xff]
    %v9336 = vld [vmem:[%s7 + $0x3e8] sm:$0xff]
    %v9337 = vld [vmem:[%s7 + $0x3f0] sm:$0xff]
    %v9338 = vld [vmem:[%s7 + $0x3f8] sm:$0xff]
    %v9339 = vld [vmem:[%s7 + $0x400] sm:$0xff]
    %v9340 = vld [vmem:[%s7 + $0x408] sm:$0xff]
    %v9341 = vld [vmem:[%s7 + $0x410] sm:$0xff]
    %v9342 = vld [vmem:[%s7 + $0x418] sm:$0xff]
    %v9343 = vld [vmem:[%s7 + $0x420] sm:$0xff]
    %v9344 = vld [vmem:[%s7 + $0x428] sm:$0xff]
    %v9345 = vld [vmem:[%s7 + $0x430] sm:$0xff]
    %v9346 = vld [vmem:[%s7 + $0x438] sm:$0xff]
    %v9347 = vld [vmem:[%s7 + $0x440] sm:$0xff]
    %v9348 = vld [vmem:[%s7 + $0x448] sm:$0xff]
    %v9349 = vld [vmem:[%s7 + $0x450] sm:$0xff]
    %v9350 = vld [vmem:[%s7 + $0x458] sm:$0xff]
    %v9351 = vld [vmem:[%s7 + $0x460] sm:$0xff]
    %v9352 = vld [vmem:[%s7 + $0x468] sm:$0xff]
    %v9353 = vld [vmem:[%s7 + $0x470] sm:$0xff]
    %v9354 = vld [vmem:[%s7 + $0x478] sm:$0xff]
    %v9355 = vld [vmem:[%s7 + $0x480] sm:$0xff]
    %v9356 = vld [vmem:[%s7 + $0x488] sm:$0xff]
    %v9357 = vld [vmem:[%s7 + $0x490] sm:$0xff]
    %v9358 = vld [vmem:[%s7 + $0x498] sm:$0xff]
    %v9359 = vld [vmem:[%s7 + $0x4a0] sm:$0xff]
    %v9360 = vld [vmem:[%s7 + $0x4a8] sm:$0xff]
    %v9361 = vld [vmem:[%s7 + $0x4b0] sm:$0xff]
    %v9362 = vld [vmem:[%s7 + $0x4b8] sm:$0xff]
    %v9363 = vld [vmem:[%s7 + $0x4c0] sm:$0xff]
    %v9364 = vld [vmem:[%s7 + $0x4c8] sm:$0xff]
    %v9365 = vld [vmem:[%s7 + $0x4d0] sm:$0xff]
    %v9366 = vld [vmem:[%s7 + $0x4d8] sm:$0xff]
    %v9367 = vld [vmem:[%s7 + $0x4e0] sm:$0xff]
    %v9368 = vld [vmem:[%s7 + $0x4e8] sm:$0xff]
    %v9369 = vld [vmem:[%s7 + $0x4f0] sm:$0xff]
    %v9370 = vld [vmem:[%s7 + $0x4f8] sm:$0xff]
    %v9371 = vld [vmem:[%s7 + $0x500] sm:$0xff]
    %v9372 = vld [vmem:[%s7 + $0x508] sm:$0xff]
    %v9373 = vld [vmem:[%s7 + $0x510] sm:$0xff]
    %v9374 = vld [vmem:[%s7 + $0x518] sm:$0xff]
    %v9375 = vld [vmem:[%s7 + $0x520] sm:$0xff]
    %v9376 = vld [vmem:[%s7 + $0x528] sm:$0xff]
    %v9377 = vld [vmem:[%s7 + $0x530] sm:$0xff]
    %v9378 = vld [vmem:[%s7 + $0x538] sm:$0xff]
    %v9379 = vld [vmem:[%s7 + $0x540] sm:$0xff]
    %v9380 = vld [vmem:[%s7 + $0x548] sm:$0xff]
    %v9381 = vld [vmem:[%s7 + $0x550] sm:$0xff]
    %v9382 = vld [vmem:[%s7 + $0x558] sm:$0xff]
    %v9383 = vld [vmem:[%s7 + $0x560] sm:$0xff]
    %v9384 = vld [vmem:[%s7 + $0x568] sm:$0xff]
    %v9385 = vld [vmem:[%s7 + $0x570] sm:$0xff]
    %v9386 = vld [vmem:[%s7 + $0x578] sm:$0xff]
    %v9387 = vld [vmem:[%s7 + $0x580] sm:$0xff]
    %v9388 = vld [vmem:[%s7 + $0x588] sm:$0xff]
    %v9389 = vld [vmem:[%s7 + $0x590] sm:$0xff]
    %v9390 = vld [vmem:[%s7 + $0x598] sm:$0xff]
    %v9391 = vld [vmem:[%s7 + $0x5a0] sm:$0xff]
    %v9392 = vld [vmem:[%s7 + $0x5a8] sm:$0xff]
    %v9393 = vld [vmem:[%s7 + $0x5b0] sm:$0xff]
    %v9394 = vld [vmem:[%s7 + $0x5b8] sm:$0xff]
    %v9395 = vld [vmem:[%s7 + $0x5c0] sm:$0xff]
    %v9396 = vld [vmem:[%s7 + $0x5c8] sm:$0xff]
    %v9397 = vld [vmem:[%s7 + $0x5d0] sm:$0xff]
    %v9398 = vld [vmem:[%s7 + $0x5d8] sm:$0xff]
    %v9399 = vld [vmem:[%s7 + $0x5e0] sm:$0xff]
    %v9400 = vld [vmem:[%s7 + $0x5e8] sm:$0xff]
    %v9401 = vld [vmem:[%s7 + $0x5f0] sm:$0xff]
    %v9402 = vld [vmem:[%s7 + $0x5f8] sm:$0xff]
    %v9403 = vld [vmem:[%s7 + $0x600] sm:$0xff]
    %v9404 = vld [vmem:[%s7 + $0x608] sm:$0xff]
    %v9405 = vld [vmem:[%s7 + $0x610] sm:$0xff]
    %v9406 = vld [vmem:[%s7 + $0x618] sm:$0xff]
    %v9407 = vld [vmem:[%s7 + $0x620] sm:$0xff]
    %v9408 = vld [vmem:[%s7 + $0x628] sm:$0xff]
    %v9409 = vld [vmem:[%s7 + $0x630] sm:$0xff]
    %v9410 = vld [vmem:[%s7 + $0x638] sm:$0xff]
    %v9411 = vld [vmem:[%s7 + $0x640] sm:$0xff]
    %v9412 = vld [vmem:[%s7 + $0x648] sm:$0xff]
    %v9413 = vld [vmem:[%s7 + $0x650] sm:$0xff]
    %v9414 = vld [vmem:[%s7 + $0x658] sm:$0xff]
    %v9415 = vld [vmem:[%s7 + $0x660] sm:$0xff]
    %v9416 = vld [vmem:[%s7 + $0x668] sm:$0xff]
    %v9417 = vld [vmem:[%s7 + $0x670] sm:$0xff]
    %v9418 = vld [vmem:[%s7 + $0x678] sm:$0xff]
    %v9419 = vld [vmem:[%s7 + $0x680] sm:$0xff]
    %v9420 = vld [vmem:[%s7 + $0x688] sm:$0xff]
    %v9421 = vld [vmem:[%s7 + $0x690] sm:$0xff]
    %v9422 = vld [vmem:[%s7 + $0x698] sm:$0xff]
    %v9423 = vld [vmem:[%s7 + $0x6a0] sm:$0xff]
    %v9424 = vld [vmem:[%s7 + $0x6a8] sm:$0xff]
    %v9425 = vld [vmem:[%s7 + $0x6b0] sm:$0xff]
    %v9426 = vld [vmem:[%s7 + $0x6b8] sm:$0xff]
    %v9427 = vld [vmem:[%s7 + $0x6c0] sm:$0xff]
    %v9428 = vld [vmem:[%s7 + $0x6c8] sm:$0xff]
    %v9429 = vld [vmem:[%s7 + $0x6d0] sm:$0xff]
    %v9430 = vld [vmem:[%s7 + $0x6d8] sm:$0xff]
    %v9431 = vld [vmem:[%s7 + $0x6e0] sm:$0xff]
    %v9432 = vld [vmem:[%s7 + $0x6e8] sm:$0xff]
    %v9433 = vld [vmem:[%s7 + $0x6f0] sm:$0xff]
    %v9434 = vld [vmem:[%s7 + $0x6f8] sm:$0xff]
    %v9435 = vld [vmem:[%s7 + $0x700] sm:$0xff]
    %v9436 = vld [vmem:[%s7 + $0x708] sm:$0xff]
    %v9437 = vld [vmem:[%s7 + $0x710] sm:$0xff]
    %v9438 = vld [vmem:[%s7 + $0x718] sm:$0xff]
    %v9439 = vld [vmem:[%s7 + $0x720] sm:$0xff]
    %v9440 = vld [vmem:[%s7 + $0x728] sm:$0xff]
    %v9441 = vld [vmem:[%s7 + $0x730] sm:$0xff]
    %v9442 = vld [vmem:[%s7 + $0x738] sm:$0xff]
    %v9443 = vld [vmem:[%s7 + $0x740] sm:$0xff]
    %v9444 = vld [vmem:[%s7 + $0x748] sm:$0xff]
    %v9445 = vld [vmem:[%s7 + $0x750] sm:$0xff]
    %v9446 = vld [vmem:[%s7 + $0x758] sm:$0xff]
    %v9447 = vld [vmem:[%s7 + $0x760] sm:$0xff]
    %v9448 = vld [vmem:[%s7 + $0x768] sm:$0xff]
    %v9449 = vld [vmem:[%s7 + $0x770] sm:$0xff]
    %v9450 = vld [vmem:[%s7 + $0x778] sm:$0xff]
    %v9451 = vld [vmem:[%s7 + $0x780] sm:$0xff]
    %v9452 = vld [vmem:[%s7 + $0x788] sm:$0xff]
    %v9453 = vld [vmem:[%s7 + $0x790] sm:$0xff]
    %v9454 = vld [vmem:[%s7 + $0x798] sm:$0xff]
    %v9455 = vld [vmem:[%s7 + $0x7a0] sm:$0xff]
    %v9456 = vld [vmem:[%s7 + $0x7a8] sm:$0xff]
    %v9457 = vld [vmem:[%s7 + $0x7b0] sm:$0xff]
    %v9458 = vld [vmem:[%s7 + $0x7b8] sm:$0xff]
    %v9459 = vld [vmem:[%s7 + $0x7c0] sm:$0xff]
    %v9460 = vld [vmem:[%s7 + $0x7c8] sm:$0xff]
    %v9461 = vld [vmem:[%s7 + $0x7d0] sm:$0xff]
    %v9462 = vld [vmem:[%s7 + $0x7d8] sm:$0xff]
    %v9463 = vld [vmem:[%s7 + $0x7e0] sm:$0xff]
    %v9464 = vld [vmem:[%s7 + $0x7e8] sm:$0xff]
    %v9465 = vld [vmem:[%s7 + $0x7f0] sm:$0xff]
    %v9466 = vld [vmem:[%s7 + $0x7f8] sm:$0xff]
    %v9467 = vld [vmem:[%s7 + $0x800] sm:$0xff]
    %v9468 = vld [vmem:[%s7 + $0x808] sm:$0xff]
    %v9469 = vld [vmem:[%s7 + $0x810] sm:$0xff]
    %v9470 = vld [vmem:[%s7 + $0x818] sm:$0xff]
    %v9471 = vld [vmem:[%s7 + $0x820] sm:$0xff]
    %v9472 = vld [vmem:[%s7 + $0x828] sm:$0xff]
    %v9473 = vld [vmem:[%s7 + $0x830] sm:$0xff]
    %v9474 = vld [vmem:[%s7 + $0x838] sm:$0xff]
    %v9475 = vld [vmem:[%s7 + $0x840] sm:$0xff]
    %v9476 = vld [vmem:[%s7 + $0x848] sm:$0xff]
    %v9477 = vld [vmem:[%s7 + $0x850] sm:$0xff]
    %v9478 = vld [vmem:[%s7 + $0x858] sm:$0xff]
    %v9479 = vld [vmem:[%s7 + $0x860] sm:$0xff]
    %v9480 = vld [vmem:[%s7 + $0x868] sm:$0xff]
    %v9481 = vld [vmem:[%s7 + $0x870] sm:$0xff]
    %v9482 = vld [vmem:[%s7 + $0x878] sm:$0xff]
    %v9483 = vld [vmem:[%s7 + $0x880] sm:$0xff]
    %v9484 = vld [vmem:[%s7 + $0x888] sm:$0xff]
    %v9485 = vld [vmem:[%s7 + $0x890] sm:$0xff]
    %v9486 = vld [vmem:[%s7 + $0x898] sm:$0xff]
    %v9487 = vld [vmem:[%s7 + $0x8a0] sm:$0xff]
    %v9488 = vld [vmem:[%s7 + $0x8a8] sm:$0xff]
    %v9489 = vld [vmem:[%s7 + $0x8b0] sm:$0xff]
    %v9490 = vld [vmem:[%s7 + $0x8b8] sm:$0xff]
    %v9491 = vld [vmem:[%s7 + $0x8c0] sm:$0xff]
    %v9492 = vld [vmem:[%s7 + $0x8c8] sm:$0xff]
    %v9493 = vld [vmem:[%s7 + $0x8d0] sm:$0xff]
    %v9494 = vld [vmem:[%s7 + $0x8d8] sm:$0xff]
    %v9495 = vld [vmem:[%s7 + $0x8e0] sm:$0xff]
    %v9496 = vld [vmem:[%s7 + $0x8e8] sm:$0xff]
    %v9497 = vld [vmem:[%s7 + $0x8f0] sm:$0xff]
    %v9498 = vld [vmem:[%s7 + $0x8f8] sm:$0xff]
    %v9499 = vld [vmem:[%s7 + $0x900] sm:$0xff]
    %v9500 = vld [vmem:[%s7 + $0x908] sm:$0xff]
    %v9501 = vld [vmem:[%s7 + $0x910] sm:$0xff]
    %v9502 = vld [vmem:[%s7 + $0x918] sm:$0xff]
    %v9503 = vld [vmem:[%s7 + $0x920] sm:$0xff]
    %v9504 = vld [vmem:[%s7 + $0x928] sm:$0xff]
    %v9505 = vld [vmem:[%s7 + $0x930] sm:$0xff]
    %v9506 = vld [vmem:[%s7 + $0x938] sm:$0xff]
    %v9507 = vld [vmem:[%s7 + $0x940] sm:$0xff]
    %v9508 = vld [vmem:[%s7 + $0x948] sm:$0xff]
    %v9509 = vld [vmem:[%s7 + $0x950] sm:$0xff]
    %v9510 = vld [vmem:[%s7 + $0x958] sm:$0xff]
    %v9511 = vld [vmem:[%s7 + $0x960] sm:$0xff]
    %v9512 = vld [vmem:[%s7 + $0x968] sm:$0xff]
    %v9513 = vld [vmem:[%s7 + $0x970] sm:$0xff]
    %v9514 = vld [vmem:[%s7 + $0x978] sm:$0xff]
    %v9515 = vld [vmem:[%s7 + $0x980] sm:$0xff]
    %v9516 = vld [vmem:[%s7 + $0x988] sm:$0xff]
    %v9517 = vld [vmem:[%s7 + $0x990] sm:$0xff]
    %v9518 = vld [vmem:[%s7 + $0x998] sm:$0xff]
    %v9519 = vld [vmem:[%s7 + $0x9a0] sm:$0xff]
    %v9520 = vld [vmem:[%s7 + $0x9a8] sm:$0xff]
    %v9521 = vld [vmem:[%s7 + $0x9b0] sm:$0xff]
    %v9522 = vld [vmem:[%s7 + $0x9b8] sm:$0xff]
    %v9523 = vld [vmem:[%s7 + $0x9c0] sm:$0xff]
    %v9524 = vld [vmem:[%s7 + $0x9c8] sm:$0xff]
    %v9525 = vld [vmem:[%s7 + $0x9d0] sm:$0xff]
    %v9526 = vld [vmem:[%s7 + $0x9d8] sm:$0xff]
    %v9527 = vld [vmem:[%s7 + $0x9e0] sm:$0xff]
    %v9528 = vld [vmem:[%s7 + $0x9e8] sm:$0xff]
    %v9529 = vld [vmem:[%s7 + $0x9f0] sm:$0xff]
    %v9530 = vld [vmem:[%s7 + $0x9f8] sm:$0xff]
    %v9531 = vld [vmem:[%s7 + $0xa00] sm:$0xff]
    %v9532 = vld [vmem:[%s7 + $0xa08] sm:$0xff]
    %v9533 = vld [vmem:[%s7 + $0xa10] sm:$0xff]
    %v9534 = vld [vmem:[%s7 + $0xa18] sm:$0xff]
    %v9535 = vld [vmem:[%s7 + $0xa20] sm:$0xff]
    %v9536 = vld [vmem:[%s7 + $0xa28] sm:$0xff]
    %v9537 = vld [vmem:[%s7 + $0xa30] sm:$0xff]
    %v9538 = vld [vmem:[%s7 + $0xa38] sm:$0xff]
    %v9539 = vld [vmem:[%s7 + $0xa40] sm:$0xff]
    %v9540 = vld [vmem:[%s7 + $0xa48] sm:$0xff]
    %v9541 = vld [vmem:[%s7 + $0xa50] sm:$0xff]
    %v9542 = vld [vmem:[%s7 + $0xa58] sm:$0xff]
    %v9543 = vld [vmem:[%s7 + $0xa60] sm:$0xff]
    %v9544 = vld [vmem:[%s7 + $0xa68] sm:$0xff]
    %v9545 = vld [vmem:[%s7 + $0xa70] sm:$0xff]
    %v9546 = vld [vmem:[%s7 + $0xa78] sm:$0xff]
    %v9547 = vld [vmem:[%s7 + $0xa80] sm:$0xff]
    %v9548 = vld [vmem:[%s7 + $0xa88] sm:$0xff]
    %v9549 = vld [vmem:[%s7 + $0xa90] sm:$0xff]
    %v9550 = vld [vmem:[%s7 + $0xa98] sm:$0xff]
    %v9551 = vld [vmem:[%s7 + $0xaa0] sm:$0xff]
    %v9552 = vld [vmem:[%s7 + $0xaa8] sm:$0xff]
    %v9553 = vld [vmem:[%s7 + $0xab0] sm:$0xff]
    %v9554 = vld [vmem:[%s7 + $0xab8] sm:$0xff]
    %v9555 = vld [vmem:[%s7 + $0xac0] sm:$0xff]
    %v9556 = vld [vmem:[%s7 + $0xac8] sm:$0xff]
    %v9557 = vld [vmem:[%s7 + $0xad0] sm:$0xff]
    %v9558 = vld [vmem:[%s7 + $0xad8] sm:$0xff]
    %v9559 = vld [vmem:[%s7 + $0xae0] sm:$0xff]
    %v9560 = vld [vmem:[%s7 + $0xae8] sm:$0xff]
    %v9561 = vld [vmem:[%s7 + $0xaf0] sm:$0xff]
    %v9562 = vld [vmem:[%s7 + $0xaf8] sm:$0xff]
    %v9563 = vld [vmem:[%s7 + $0xb00] sm:$0xff]
    %v9564 = vld [vmem:[%s7 + $0xb08] sm:$0xff]
    %v9565 = vld [vmem:[%s7 + $0xb10] sm:$0xff]
    %v9566 = vld [vmem:[%s7 + $0xb18] sm:$0xff]
    %v9567 = vld [vmem:[%s7 + $0xb20] sm:$0xff]
    %v9568 = vld [vmem:[%s7 + $0xb28] sm:$0xff]
    %v9569 = vld [vmem:[%s7 + $0xb30] sm:$0xff]
    %v9570 = vld [vmem:[%s7 + $0xb38] sm:$0xff]
    %v9571 = vld [vmem:[%s7 + $0xb40] sm:$0xff]
    %v9572 = vld [vmem:[%s7 + $0xb48] sm:$0xff]
    %v9573 = vld [vmem:[%s7 + $0xb50] sm:$0xff]
    %v9574 = vld [vmem:[%s7 + $0xb58] sm:$0xff]
    %v9575 = vld [vmem:[%s7 + $0xb60] sm:$0xff]
    %v9576 = vld [vmem:[%s7 + $0xb68] sm:$0xff]
    %v9577 = vld [vmem:[%s7 + $0xb70] sm:$0xff]
    %v9578 = vld [vmem:[%s7 + $0xb78] sm:$0xff]
    %v9579 = vld [vmem:[%s7 + $0xb80] sm:$0xff]
    %v9580 = vld [vmem:[%s7 + $0xb88] sm:$0xff]
    %v9581 = vld [vmem:[%s7 + $0xb90] sm:$0xff]
    %v9582 = vld [vmem:[%s7 + $0xb98] sm:$0xff]
    %v9583 = vld [vmem:[%s7 + $0xba0] sm:$0xff]
    %v9584 = vld [vmem:[%s7 + $0xba8] sm:$0xff]
    %v9585 = vld [vmem:[%s7 + $0xbb0] sm:$0xff]
    %v9586 = vld [vmem:[%s7 + $0xbb8] sm:$0xff]
    %v9587 = vld [vmem:[%s7 + $0xbc0] sm:$0xff]
    %v9588 = vld [vmem:[%s7 + $0xbc8] sm:$0xff]
    %v9589 = vld [vmem:[%s7 + $0xbd0] sm:$0xff]
    %v9590 = vld [vmem:[%s7 + $0xbd8] sm:$0xff]
    %v9591 = vld [vmem:[%s7 + $0xbe0] sm:$0xff]
    %v9592 = vld [vmem:[%s7 + $0xbe8] sm:$0xff]
    %v9593 = vld [vmem:[%s7 + $0xbf0] sm:$0xff]
    %v9594 = vld [vmem:[%s7 + $0xbf8] sm:$0xff]
    %v9595 = vld [vmem:[%s7 + $0xc00] sm:$0xff]
    %v9596 = vld [vmem:[%s7 + $0xc08] sm:$0xff]
    %v9597 = vld [vmem:[%s7 + $0xc10] sm:$0xff]
    %v9598 = vld [vmem:[%s7 + $0xc18] sm:$0xff]
    %v9599 = vld [vmem:[%s7 + $0xc20] sm:$0xff]
    %v9600 = vld [vmem:[%s7 + $0xc28] sm:$0xff]
    %v9601 = vld [vmem:[%s7 + $0xc30] sm:$0xff]
    %v9602 = vld [vmem:[%s7 + $0xc38] sm:$0xff]
    %v9603 = vld [vmem:[%s7 + $0xc40] sm:$0xff]
    %v9604 = vld [vmem:[%s7 + $0xc48] sm:$0xff]
    %v9605 = vld [vmem:[%s7 + $0xc50] sm:$0xff]
    %v9606 = vld [vmem:[%s7 + $0xc58] sm:$0xff]
    %v9607 = vld [vmem:[%s7 + $0xc60] sm:$0xff]
    %v9608 = vld [vmem:[%s7 + $0xc68] sm:$0xff]
    %v9609 = vld [vmem:[%s7 + $0xc70] sm:$0xff]
    %v9610 = vld [vmem:[%s7 + $0xc78] sm:$0xff]
    %v9611 = vld [vmem:[%s7 + $0xc80] sm:$0xff]
    %v9612 = vld [vmem:[%s7 + $0xc88] sm:$0xff]
    %v9613 = vld [vmem:[%s7 + $0xc90] sm:$0xff]
    %v9614 = vld [vmem:[%s7 + $0xc98] sm:$0xff]
    %v9615 = vld [vmem:[%s7 + $0xca0] sm:$0xff]
    %v9616 = vld [vmem:[%s7 + $0xca8] sm:$0xff]
    %v9617 = vld [vmem:[%s7 + $0xcb0] sm:$0xff]
    %v9618 = vld [vmem:[%s7 + $0xcb8] sm:$0xff]
    %v9619 = vld [vmem:[%s7 + $0xcc0] sm:$0xff]
    %v9620 = vld [vmem:[%s7 + $0xcc8] sm:$0xff]
    %v9621 = vld [vmem:[%s7 + $0xcd0] sm:$0xff]
    %v9622 = vld [vmem:[%s7 + $0xcd8] sm:$0xff]
    %v9623 = vld [vmem:[%s7 + $0xce0] sm:$0xff]
    %v9624 = vld [vmem:[%s7 + $0xce8] sm:$0xff]
    %v9625 = vld [vmem:[%s7 + $0xcf0] sm:$0xff]
    %v9626 = vld [vmem:[%s7 + $0xcf8] sm:$0xff]
    %v9627 = vld [vmem:[%s7 + $0xd00] sm:$0xff]
    %v9628 = vld [vmem:[%s7 + $0xd08] sm:$0xff]
    %v9629 = vld [vmem:[%s7 + $0xd10] sm:$0xff]
    %v9630 = vld [vmem:[%s7 + $0xd18] sm:$0xff]
    %v9631 = vld [vmem:[%s7 + $0xd20] sm:$0xff]
    %v9632 = vld [vmem:[%s7 + $0xd28] sm:$0xff]
    %v9633 = vld [vmem:[%s7 + $0xd30] sm:$0xff]
    %v9634 = vld [vmem:[%s7 + $0xd38] sm:$0xff]
    %v9635 = vld [vmem:[%s7 + $0xd40] sm:$0xff]
    %v9636 = vld [vmem:[%s7 + $0xd48] sm:$0xff]
    %v9637 = vld [vmem:[%s7 + $0xd50] sm:$0xff]
    %v9638 = vld [vmem:[%s7 + $0xd58] sm:$0xff]
    %v9639 = vld [vmem:[%s7 + $0xd60] sm:$0xff]
    %v9640 = vld [vmem:[%s7 + $0xd68] sm:$0xff]
    %v9641 = vld [vmem:[%s7 + $0xd70] sm:$0xff]
    %v9642 = vld [vmem:[%s7 + $0xd78] sm:$0xff]
    %v9643 = vld [vmem:[%s7 + $0xd80] sm:$0xff]
    %v9644 = vld [vmem:[%s7 + $0xd88] sm:$0xff]
    %v9645 = vld [vmem:[%s7 + $0xd90] sm:$0xff]
    %v9646 = vld [vmem:[%s7 + $0xd98] sm:$0xff]
    %v9647 = vld [vmem:[%s7 + $0xda0] sm:$0xff]
    %v9648 = vld [vmem:[%s7 + $0xda8] sm:$0xff]
    %v9649 = vld [vmem:[%s7 + $0xdb0] sm:$0xff]
    %v9650 = vld [vmem:[%s7 + $0xdb8] sm:$0xff]
    %v9651 = vld [vmem:[%s7 + $0xdc0] sm:$0xff]
    %v9652 = vld [vmem:[%s7 + $0xdc8] sm:$0xff]
    %v9653 = vld [vmem:[%s7 + $0xdd0] sm:$0xff]
    %v9654 = vld [vmem:[%s7 + $0xdd8] sm:$0xff]
    %v9655 = vld [vmem:[%s7 + $0xde0] sm:$0xff]
    %v9656 = vld [vmem:[%s7 + $0xde8] sm:$0xff]
    %v9657 = vld [vmem:[%s7 + $0xdf0] sm:$0xff]
    %v9658 = vld [vmem:[%s7 + $0xdf8] sm:$0xff]
    %v9659 = vld [vmem:[%s7 + $0xe00] sm:$0xff]
    %v9660 = vld [vmem:[%s7 + $0xe08] sm:$0xff]
    %v9661 = vld [vmem:[%s7 + $0xe10] sm:$0xff]
    %v9662 = vld [vmem:[%s7 + $0xe18] sm:$0xff]
    %v9663 = vld [vmem:[%s7 + $0xe20] sm:$0xff]
    %v9664 = vld [vmem:[%s7 + $0xe28] sm:$0xff]
    %v9665 = vld [vmem:[%s7 + $0xe30] sm:$0xff]
    %v9666 = vld [vmem:[%s7 + $0xe38] sm:$0xff]
    %v9667 = vld [vmem:[%s7 + $0xe40] sm:$0xff]
    %v9668 = vld [vmem:[%s7 + $0xe48] sm:$0xff]
    %v9669 = vld [vmem:[%s7 + $0xe50] sm:$0xff]
    %v9670 = vld [vmem:[%s7 + $0xe58] sm:$0xff]
    %v9671 = vld [vmem:[%s7 + $0xe60] sm:$0xff]
    %v9672 = vld [vmem:[%s7 + $0xe68] sm:$0xff]
    %v9673 = vld [vmem:[%s7 + $0xe70] sm:$0xff]
    %v9674 = vld [vmem:[%s7 + $0xe78] sm:$0xff]
    %v9675 = vld [vmem:[%s7 + $0xe80] sm:$0xff]
    %v9676 = vld [vmem:[%s7 + $0xe88] sm:$0xff]
    %v9677 = vld [vmem:[%s7 + $0xe90] sm:$0xff]
    %v9678 = vld [vmem:[%s7 + $0xe98] sm:$0xff]
    %v9679 = vld [vmem:[%s7 + $0xea0] sm:$0xff]
    %v9680 = vld [vmem:[%s7 + $0xea8] sm:$0xff]
    %v9681 = vld [vmem:[%s7 + $0xeb0] sm:$0xff]
    %v9682 = vld [vmem:[%s7 + $0xeb8] sm:$0xff]
    %v9683 = vld [vmem:[%s7 + $0xec0] sm:$0xff]
    %v9684 = vld [vmem:[%s7 + $0xec8] sm:$0xff]
    %v9685 = vld [vmem:[%s7 + $0xed0] sm:$0xff]
    %v9686 = vld [vmem:[%s7 + $0xed8] sm:$0xff]
    %v9687 = vld [vmem:[%s7 + $0xee0] sm:$0xff]
    %v9688 = vld [vmem:[%s7 + $0xee8] sm:$0xff]
    %v9689 = vld [vmem:[%s7 + $0xef0] sm:$0xff]
    %v9690 = vld [vmem:[%s7 + $0xef8] sm:$0xff]
    %v9691 = vld [vmem:[%s7 + $0xf00] sm:$0xff]
    %v9692 = vld [vmem:[%s7 + $0xf08] sm:$0xff]
    %v9693 = vld [vmem:[%s7 + $0xf10] sm:$0xff]
    %v9694 = vld [vmem:[%s7 + $0xf18] sm:$0xff]
    %v9695 = vld [vmem:[%s7 + $0xf20] sm:$0xff]
    %v9696 = vld [vmem:[%s7 + $0xf28] sm:$0xff]
    %v9697 = vld [vmem:[%s7 + $0xf30] sm:$0xff]
    %v9698 = vld [vmem:[%s7 + $0xf38] sm:$0xff]
    %v9699 = vld [vmem:[%s7 + $0xf40] sm:$0xff]
    %v9700 = vld [vmem:[%s7 + $0xf48] sm:$0xff]
    %v9701 = vld [vmem:[%s7 + $0xf50] sm:$0xff]
    %v9702 = vld [vmem:[%s7 + $0xf58] sm:$0xff]
    %v9703 = vld [vmem:[%s7 + $0xf60] sm:$0xff]
    %v9704 = vld [vmem:[%s7 + $0xf68] sm:$0xff]
    %v9705 = vld [vmem:[%s7 + $0xf70] sm:$0xff]
    %v9706 = vld [vmem:[%s7 + $0xf78] sm:$0xff]
    %v9707 = vld [vmem:[%s7 + $0xf80] sm:$0xff]
    %v9708 = vld [vmem:[%s7 + $0xf88] sm:$0xff]
    %v9709 = vld [vmem:[%s7 + $0xf90] sm:$0xff]
    %v9710 = vld [vmem:[%s7 + $0xf98] sm:$0xff]
    %v9711 = vld [vmem:[%s7 + $0xfa0] sm:$0xff]
    %v9712 = vld [vmem:[%s7 + $0xfa8] sm:$0xff]
    %v9713 = vld [vmem:[%s7 + $0xfb0] sm:$0xff]
    %v9714 = vld [vmem:[%s7 + $0xfb8] sm:$0xff]
    %v9715 = vld [vmem:[%s7 + $0xfc0] sm:$0xff]
    %v9716 = vld [vmem:[%s7 + $0xfc8] sm:$0xff]
    %v9717 = vld [vmem:[%s7 + $0xfd0] sm:$0xff]
    %v9718 = vld [vmem:[%s7 + $0xfd8] sm:$0xff]
    %v9719 = vld [vmem:[%s7 + $0xfe0] sm:$0xff]
    %v9720 = vld [vmem:[%s7 + $0xfe8] sm:$0xff]
    %v9721 = vld [vmem:[%s7 + $0xff0] sm:$0xff]
    %v9722 = vld [vmem:[%s7 + $0xff8] sm:$0xff]
    %v9723 = vld [vmem:[%s8] sm:$0xff]
    %v9725 = vlaneseq
    %v9726 = vshrl.u32 %v9725, 7
    %v9727 = vsub.s32 0, %v9726
    %v9728 = vrot.slane %v9723, %v9727
    %v9729 = vlaneseq
    %v9730 = vshrl.u32 %v9729, 7
    %v9731 = vsub.s32 1, %v9730
    %v9732 = vrot.slane %v9723, %v9731
    %v9733 = vlaneseq
    %v9734 = vshrl.u32 %v9733, 7
    %v9735 = vsub.s32 2, %v9734
    %v9736 = vrot.slane %v9723, %v9735
    %v9737 = vlaneseq
    %v9738 = vshrl.u32 %v9737, 7
    %v9739 = vsub.s32 3, %v9738
    %v9740 = vrot.slane %v9723, %v9739
    %v9741 = vlaneseq
    %v9742 = vshrl.u32 %v9741, 7
    %v9743 = vsub.s32 4, %v9742
    %v9744 = vrot.slane %v9723, %v9743
    %v9745 = vlaneseq
    %v9746 = vshrl.u32 %v9745, 7
    %v9747 = vsub.s32 5, %v9746
    %v9748 = vrot.slane %v9723, %v9747
    %v9749 = vlaneseq
    %v9750 = vshrl.u32 %v9749, 7
    %v9751 = vsub.s32 6, %v9750
    %v9752 = vrot.slane %v9723, %v9751
    %v9753 = vlaneseq
    %v9754 = vshrl.u32 %v9753, 7
    %v9755 = vsub.s32 7, %v9754
    %v9756 = vrot.slane %v9723, %v9755
    %9765 = vmatprep.subr.mxu0 %v9332
    %9766 = vmatpush1.msra.mxu0 %v9331
    %9767 = vmatprep.subr.mxu0 %v9324
    %9768 = vmatpush1.msra.mxu0 %v9323
    %9769 = vmatprep.subr.mxu0 %v9316
    %9770 = vmatpush1.msra.mxu0 %v9315
    %9771 = vmatprep.subr.mxu0 %v9308
    %9772 = vmatpush1.msra.mxu0 %v9307
    %9773 = vmatprep.subr.mxu0 %v9300
    %9774 = vmatpush1.msra.mxu0 %v9299
    %9775 = vmatprep.subr.mxu0 %v9292
    %9776 = vmatpush1.msra.mxu0 %v9291
    %9777 = vmatprep.subr.mxu0 %v9284
    %9778 = vmatpush1.msra.mxu0 %v9283
    %9779 = vmatprep.subr.mxu0 %v9276
    %9780 = vmatpush1.msra.mxu0 %v9275
    %9781 = vmatprep.subr.mxu0 %v9268
    %9782 = vmatpush1.msra.mxu0 %v9267
    %9783 = vmatprep.subr.mxu0 %v9260
    %9784 = vmatpush1.msra.mxu0 %v9259
    %9785 = vmatprep.subr.mxu0 %v9252
    %9786 = vmatpush1.msra.mxu0 %v9251
    %9787 = vmatprep.subr.mxu0 %v9244
    %9788 = vmatpush1.msra.mxu0 %v9243
    %9789 = vmatprep.subr.mxu0 %v9236
    %9790 = vmatpush1.msra.mxu0 %v9235
    %9791 = vmatprep.subr.mxu0 %v9228
    %9792 = vmatpush1.msra.mxu0 %v9227
    %9793 = vmatprep.subr.mxu0 %v9220
    %9794 = vmatpush1.msra.mxu0 %v9219
    %9795 = vmatprep.subr.mxu0 %v9212
    %9796 = vmatpush1.msra.mxu0 %v9211
    %9797 = vmatprep.subr.mxu0 %v9460
    %9798 = vmatpush2.msra.mxu0 %v9459
    %9799 = vmatprep.subr.mxu0 %v9452
    %9800 = vmatpush2.msra.mxu0 %v9451
    %9801 = vmatprep.subr.mxu0 %v9444
    %9802 = vmatpush2.msra.mxu0 %v9443
    %9803 = vmatprep.subr.mxu0 %v9436
    %9804 = vmatpush2.msra.mxu0 %v9435
    %9805 = vmatprep.subr.mxu0 %v9428
    %9806 = vmatpush2.msra.mxu0 %v9427
    %9807 = vmatprep.subr.mxu0 %v9420
    %9808 = vmatpush2.msra.mxu0 %v9419
    %9809 = vmatprep.subr.mxu0 %v9412
    %9810 = vmatpush2.msra.mxu0 %v9411
    %9811 = vmatprep.subr.mxu0 %v9404
    %9812 = vmatpush2.msra.mxu0 %v9403
    %9813 = vmatprep.subr.mxu0 %v9396
    %9814 = vmatpush2.msra.mxu0 %v9395
    %9815 = vmatprep.subr.mxu0 %v9388
    %9816 = vmatpush2.msra.mxu0 %v9387
    %9817 = vmatprep.subr.mxu0 %v9380
    %9818 = vmatpush2.msra.mxu0 %v9379
    %9819 = vmatprep.subr.mxu0 %v9372
    %9820 = vmatpush2.msra.mxu0 %v9371
    %9821 = vmatprep.subr.mxu0 %v9364
    %9822 = vmatpush2.msra.mxu0 %v9363
    %9823 = vmatprep.subr.mxu0 %v9356
    %9824 = vmatpush2.msra.mxu0 %v9355
    %9825 = vmatprep.subr.mxu0 %v9348
    %9826 = vmatpush2.msra.mxu0 %v9347
    %9827 = vmatprep.subr.mxu0 %v9340
    %9828 = vmatpush2.msra.mxu0 %v9339
    %9829 = vmatprep.mubr.f32.mxu0 %v9208
    %9830 = vmatmul.mubr.f32.gmra.mxu0 %v9207
    %v9831 = vpop.f32.mrf.mxu0
    %v9832 = vadd.f32 %v9728, %v9831
    %v9833 = vpop.f32.mrf.mxu0
    %v9834 = vadd.f32 %v9732, %v9833
    %9835 = vdwg.mxu0
    %9836 = vmatprep.subr.mxu0 %v9588
    %9837 = vmatpush1.msra.mxu0 %v9587
    %9838 = vmatprep.subr.mxu0 %v9580
    %9839 = vmatpush1.msra.mxu0 %v9579
    %9840 = vmatprep.subr.mxu0 %v9572
    %9841 = vmatpush1.msra.mxu0 %v9571
    %9842 = vmatprep.subr.mxu0 %v9564
    %9843 = vmatpush1.msra.mxu0 %v9563
    %9844 = vmatprep.subr.mxu0 %v9556
    %9845 = vmatpush1.msra.mxu0 %v9555
    %9846 = vmatprep.subr.mxu0 %v9548
    %9847 = vmatpush1.msra.mxu0 %v9547
    %9848 = vmatprep.subr.mxu0 %v9540
    %9849 = vmatpush1.msra.mxu0 %v9539
    %9850 = vmatprep.subr.mxu0 %v9532
    %9851 = vmatpush1.msra.mxu0 %v9531
    %9852 = vmatprep.subr.mxu0 %v9524
    %9853 = vmatpush1.msra.mxu0 %v9523
    %9854 = vmatprep.subr.mxu0 %v9516
    %9855 = vmatpush1.msra.mxu0 %v9515
    %9856 = vmatprep.subr.mxu0 %v9508
    %9857 = vmatpush1.msra.mxu0 %v9507
    %9858 = vmatprep.subr.mxu0 %v9500
    %9859 = vmatpush1.msra.mxu0 %v9499
    %9860 = vmatprep.subr.mxu0 %v9492
    %9861 = vmatpush1.msra.mxu0 %v9491
    %9862 = vmatprep.subr.mxu0 %v9484
    %9863 = vmatpush1.msra.mxu0 %v9483
    %9864 = vmatprep.subr.mxu0 %v9476
    %9865 = vmatpush1.msra.mxu0 %v9475
    %9866 = vmatprep.subr.mxu0 %v9468
    %9867 = vmatpush1.msra.mxu0 %v9467
    %9868 = vmatprep.subr.mxu0 %v9716
    %9869 = vmatpush2.msra.mxu0 %v9715
    %9870 = vmatprep.subr.mxu0 %v9708
    %9871 = vmatpush2.msra.mxu0 %v9707
    %9872 = vmatprep.subr.mxu0 %v9700
    %9873 = vmatpush2.msra.mxu0 %v9699
    %9874 = vmatprep.subr.mxu0 %v9692
    %9875 = vmatpush2.msra.mxu0 %v9691
    %9876 = vmatprep.subr.mxu0 %v9684
    %9877 = vmatpush2.msra.mxu0 %v9683
    %9878 = vmatprep.subr.mxu0 %v9676
    %9879 = vmatpush2.msra.mxu0 %v9675
    %9880 = vmatprep.subr.mxu0 %v9668
    %9881 = vmatpush2.msra.mxu0 %v9667
    %9882 = vmatprep.subr.mxu0 %v9660
    %9883 = vmatpush2.msra.mxu0 %v9659
    %9884 = vmatprep.subr.mxu0 %v9652
    %9885 = vmatpush2.msra.mxu0 %v9651
    %9886 = vmatprep.subr.mxu0 %v9644
    %9887 = vmatpush2.msra.mxu0 %v9643
    %9888 = vmatprep.subr.mxu0 %v9636
    %9889 = vmatpush2.msra.mxu0 %v9635
    %9890 = vmatprep.subr.mxu0 %v9628
    %9891 = vmatpush2.msra.mxu0 %v9627
    %9892 = vmatprep.subr.mxu0 %v9620
    %9893 = vmatpush2.msra.mxu0 %v9619
    %9894 = vmatprep.subr.mxu0 %v9612
    %9895 = vmatpush2.msra.mxu0 %v9611
    %9896 = vmatprep.subr.mxu0 %v9604
    %9897 = vmatpush2.msra.mxu0 %v9603
    %9898 = vmatprep.subr.mxu0 %v9596
    %9899 = vmatpush2.msra.mxu0 %v9595
    %9900 = vmatprep.mubr.f32.mxu0 %v9210
    %9901 = vmatmul.mubr.f32.gmra.mxu0 %v9209
    %v9902 = vpop.f32.mrf.mxu0
    %v9903 = vadd.f32 %v9832, %v9902
    %v9904 = vpop.f32.mrf.mxu0
    %v9905 = vadd.f32 %v9834, %v9904
    %9906 = vdwg.mxu0
    %9907 = vmatprep.subr.mxu0 %v9334
    %9908 = vmatpush1.msra.mxu0 %v9333
    %9909 = vmatprep.subr.mxu0 %v9326
    %9910 = vmatpush1.msra.mxu0 %v9325
    %9911 = vmatprep.subr.mxu0 %v9318
    %9912 = vmatpush1.msra.mxu0 %v9317
    %9913 = vmatprep.subr.mxu0 %v9310
    %9914 = vmatpush1.msra.mxu0 %v9309
    %9915 = vmatprep.subr.mxu0 %v9302
    %9916 = vmatpush1.msra.mxu0 %v9301
    %9917 = vmatprep.subr.mxu0 %v9294
    %9918 = vmatpush1.msra.mxu0 %v9293
    %9919 = vmatprep.subr.mxu0 %v9286
    %9920 = vmatpush1.msra.mxu0 %v9285
    %9921 = vmatprep.subr.mxu0 %v9278
    %9922 = vmatpush1.msra.mxu0 %v9277
    %9923 = vmatprep.subr.mxu0 %v9270
    %9924 = vmatpush1.msra.mxu0 %v9269
    %9925 = vmatprep.subr.mxu0 %v9262
    %9926 = vmatpush1.msra.mxu0 %v9261
    %9927 = vmatprep.subr.mxu0 %v9254
    %9928 = vmatpush1.msra.mxu0 %v9253
    %9929 = vmatprep.subr.mxu0 %v9246
    %9930 = vmatpush1.msra.mxu0 %v9245
    %9931 = vmatprep.subr.mxu0 %v9238
    %9932 = vmatpush1.msra.mxu0 %v9237
    %9933 = vmatprep.subr.mxu0 %v9230
    %9934 = vmatpush1.msra.mxu0 %v9229
    %9935 = vmatprep.subr.mxu0 %v9222
    %9936 = vmatpush1.msra.mxu0 %v9221
    %9937 = vmatprep.subr.mxu0 %v9214
    %9938 = vmatpush1.msra.mxu0 %v9213
    %9939 = vmatprep.subr.mxu0 %v9462
    %9940 = vmatpush2.msra.mxu0 %v9461
    %9941 = vmatprep.subr.mxu0 %v9454
    %9942 = vmatpush2.msra.mxu0 %v9453
    %9943 = vmatprep.subr.mxu0 %v9446
    %9944 = vmatpush2.msra.mxu0 %v9445
    %9945 = vmatprep.subr.mxu0 %v9438
    %9946 = vmatpush2.msra.mxu0 %v9437
    %9947 = vmatprep.subr.mxu0 %v9430
    %9948 = vmatpush2.msra.mxu0 %v9429
    %9949 = vmatprep.subr.mxu0 %v9422
    %9950 = vmatpush2.msra.mxu0 %v9421
    %9951 = vmatprep.subr.mxu0 %v9414
    %9952 = vmatpush2.msra.mxu0 %v9413
    %9953 = vmatprep.subr.mxu0 %v9406
    %9954 = vmatpush2.msra.mxu0 %v9405
    %9955 = vmatprep.subr.mxu0 %v9398
    %9956 = vmatpush2.msra.mxu0 %v9397
    %9957 = vmatprep.subr.mxu0 %v9390
    %9958 = vmatpush2.msra.mxu0 %v9389
    %9959 = vmatprep.subr.mxu0 %v9382
    %9960 = vmatpush2.msra.mxu0 %v9381
    %9961 = vmatprep.subr.mxu0 %v9374
    %9962 = vmatpush2.msra.mxu0 %v9373
    %9963 = vmatprep.subr.mxu0 %v9366
    %9964 = vmatpush2.msra.mxu0 %v9365
    %9965 = vmatprep.subr.mxu0 %v9358
    %9966 = vmatpush2.msra.mxu0 %v9357
    %9967 = vmatprep.subr.mxu0 %v9350
    %9968 = vmatpush2.msra.mxu0 %v9349
    %9969 = vmatprep.subr.mxu0 %v9342
    %9970 = vmatpush2.msra.mxu0 %v9341
    %9971 = vmatprep.mubr.f32.mxu0 %v9208
    %9972 = vmatmul.mubr.f32.gmra.mxu0 %v9207
    %v9973 = vpop.f32.mrf.mxu0
    %v9974 = vadd.f32 %v9736, %v9973
    %v9975 = vpop.f32.mrf.mxu0
    %v9976 = vadd.f32 %v9740, %v9975
    %9977 = vdwg.mxu0
    %9978 = vmatprep.subr.mxu0 %v9590
    %9979 = vmatpush1.msra.mxu0 %v9589
    %9980 = vmatprep.subr.mxu0 %v9582
    %9981 = vmatpush1.msra.mxu0 %v9581
    %9982 = vmatprep.subr.mxu0 %v9574
    %9983 = vmatpush1.msra.mxu0 %v9573
    %9984 = vmatprep.subr.mxu0 %v9566
    %9985 = vmatpush1.msra.mxu0 %v9565
    %9986 = vmatprep.subr.mxu0 %v9558
    %9987 = vmatpush1.msra.mxu0 %v9557
    %9988 = vmatprep.subr.mxu0 %v9550
    %9989 = vmatpush1.msra.mxu0 %v9549
    %9990 = vmatprep.subr.mxu0 %v9542
    %9991 = vmatpush1.msra.mxu0 %v9541
    %9992 = vmatprep.subr.mxu0 %v9534
    %9993 = vmatpush1.msra.mxu0 %v9533
    %9994 = vmatprep.subr.mxu0 %v9526
    %9995 = vmatpush1.msra.mxu0 %v9525
    %9996 = vmatprep.subr.mxu0 %v9518
    %9997 = vmatpush1.msra.mxu0 %v9517
    %9998 = vmatprep.subr.mxu0 %v9510
    %9999 = vmatpush1.msra.mxu0 %v9509
    %10000 = vmatprep.subr.mxu0 %v9502
    %10001 = vmatpush1.msra.mxu0 %v9501
    %10002 = vmatprep.subr.mxu0 %v9494
    %10003 = vmatpush1.msra.mxu0 %v9493
    %10004 = vmatprep.subr.mxu0 %v9486
    %10005 = vmatpush1.msra.mxu0 %v9485
    %10006 = vmatprep.subr.mxu0 %v9478
    %10007 = vmatpush1.msra.mxu0 %v9477
    %10008 = vmatprep.subr.mxu0 %v9470
    %10009 = vmatpush1.msra.mxu0 %v9469
    %10010 = vmatprep.subr.mxu0 %v9718
    %10011 = vmatpush2.msra.mxu0 %v9717
    %10012 = vmatprep.subr.mxu0 %v9710
    %10013 = vmatpush2.msra.mxu0 %v9709
    %10014 = vmatprep.subr.mxu0 %v9702
    %10015 = vmatpush2.msra.mxu0 %v9701
    %10016 = vmatprep.subr.mxu0 %v9694
    %10017 = vmatpush2.msra.mxu0 %v9693
    %10018 = vmatprep.subr.mxu0 %v9686
    %10019 = vmatpush2.msra.mxu0 %v9685
    %10020 = vmatprep.subr.mxu0 %v9678
    %10021 = vmatpush2.msra.mxu0 %v9677
    %10022 = vmatprep.subr.mxu0 %v9670
    %10023 = vmatpush2.msra.mxu0 %v9669
    %10024 = vmatprep.subr.mxu0 %v9662
    %10025 = vmatpush2.msra.mxu0 %v9661
    %10026 = vmatprep.subr.mxu0 %v9654
    %10027 = vmatpush2.msra.mxu0 %v9653
    %10028 = vmatprep.subr.mxu0 %v9646
    %10029 = vmatpush2.msra.mxu0 %v9645
    %10030 = vmatprep.subr.mxu0 %v9638
    %10031 = vmatpush2.msra.mxu0 %v9637
    %10032 = vmatprep.subr.mxu0 %v9630
    %10033 = vmatpush2.msra.mxu0 %v9629
    %10034 = vmatprep.subr.mxu0 %v9622
    %10035 = vmatpush2.msra.mxu0 %v9621
    %10036 = vmatprep.subr.mxu0 %v9614
    %10037 = vmatpush2.msra.mxu0 %v9613
    %10038 = vmatprep.subr.mxu0 %v9606
    %10039 = vmatpush2.msra.mxu0 %v9605
    %10040 = vmatprep.subr.mxu0 %v9598
    %10041 = vmatpush2.msra.mxu0 %v9597
    %10042 = vmatprep.mubr.f32.mxu0 %v9210
    %10043 = vmatmul.mubr.f32.gmra.mxu0 %v9209
    %v10044 = vpop.f32.mrf.mxu0
    %v10045 = vadd.f32 %v9974, %v10044
    %v10046 = vpop.f32.mrf.mxu0
    %v10047 = vadd.f32 %v9976, %v10046
    %10048 = vdwg.mxu0
    %10049 = vmatprep.subr.mxu0 %v9336
    %10050 = vmatpush1.msra.mxu0 %v9335
    %10051 = vmatprep.subr.mxu0 %v9328
    %10052 = vmatpush1.msra.mxu0 %v9327
    %10053 = vmatprep.subr.mxu0 %v9320
    %10054 = vmatpush1.msra.mxu0 %v9319
    %10055 = vmatprep.subr.mxu0 %v9312
    %10056 = vmatpush1.msra.mxu0 %v9311
    %10057 = vmatprep.subr.mxu0 %v9304
    %10058 = vmatpush1.msra.mxu0 %v9303
    %10059 = vmatprep.subr.mxu0 %v9296
    %10060 = vmatpush1.msra.mxu0 %v9295
    %10061 = vmatprep.subr.mxu0 %v9288
    %10062 = vmatpush1.msra.mxu0 %v9287
    %10063 = vmatprep.subr.mxu0 %v9280
    %10064 = vmatpush1.msra.mxu0 %v9279
    %10065 = vmatprep.subr.mxu0 %v9272
    %10066 = vmatpush1.msra.mxu0 %v9271
    %10067 = vmatprep.subr.mxu0 %v9264
    %10068 = vmatpush1.msra.mxu0 %v9263
    %10069 = vmatprep.subr.mxu0 %v9256
    %10070 = vmatpush1.msra.mxu0 %v9255
    %10071 = vmatprep.subr.mxu0 %v9248
    %10072 = vmatpush1.msra.mxu0 %v9247
    %10073 = vmatprep.subr.mxu0 %v9240
    %10074 = vmatpush1.msra.mxu0 %v9239
    %10075 = vmatprep.subr.mxu0 %v9232
    %10076 = vmatpush1.msra.mxu0 %v9231
    %10077 = vmatprep.subr.mxu0 %v9224
    %10078 = vmatpush1.msra.mxu0 %v9223
    %10079 = vmatprep.subr.mxu0 %v9216
    %10080 = vmatpush1.msra.mxu0 %v9215
    %10081 = vmatprep.subr.mxu0 %v9464
    %10082 = vmatpush2.msra.mxu0 %v9463
    %10083 = vmatprep.subr.mxu0 %v9456
    %10084 = vmatpush2.msra.mxu0 %v9455
    %10085 = vmatprep.subr.mxu0 %v9448
    %10086 = vmatpush2.msra.mxu0 %v9447
    %10087 = vmatprep.subr.mxu0 %v9440
    %10088 = vmatpush2.msra.mxu0 %v9439
    %10089 = vmatprep.subr.mxu0 %v9432
    %10090 = vmatpush2.msra.mxu0 %v9431
    %10091 = vmatprep.subr.mxu0 %v9424
    %10092 = vmatpush2.msra.mxu0 %v9423
    %10093 = vmatprep.subr.mxu0 %v9416
    %10094 = vmatpush2.msra.mxu0 %v9415
    %10095 = vmatprep.subr.mxu0 %v9408
    %10096 = vmatpush2.msra.mxu0 %v9407
    %10097 = vmatprep.subr.mxu0 %v9400
    %10098 = vmatpush2.msra.mxu0 %v9399
    %10099 = vmatprep.subr.mxu0 %v9392
    %10100 = vmatpush2.msra.mxu0 %v9391
    %10101 = vmatprep.subr.mxu0 %v9384
    %10102 = vmatpush2.msra.mxu0 %v9383
    %10103 = vmatprep.subr.mxu0 %v9376
    %10104 = vmatpush2.msra.mxu0 %v9375
    %10105 = vmatprep.subr.mxu0 %v9368
    %10106 = vmatpush2.msra.mxu0 %v9367
    %10107 = vmatprep.subr.mxu0 %v9360
    %10108 = vmatpush2.msra.mxu0 %v9359
    %10109 = vmatprep.subr.mxu0 %v9352
    %10110 = vmatpush2.msra.mxu0 %v9351
    %10111 = vmatprep.subr.mxu0 %v9344
    %10112 = vmatpush2.msra.mxu0 %v9343
    %10113 = vmatprep.mubr.f32.mxu0 %v9208
    %10114 = vmatmul.mubr.f32.gmra.mxu0 %v9207
    %v10115 = vpop.f32.mrf.mxu0
    %v10116 = vadd.f32 %v9744, %v10115
    %v10117 = vpop.f32.mrf.mxu0
    %v10118 = vadd.f32 %v9748, %v10117
    %10119 = vdwg.mxu0
    %10120 = vmatprep.subr.mxu0 %v9592
    %10121 = vmatpush1.msra.mxu0 %v9591
    %10122 = vmatprep.subr.mxu0 %v9584
    %10123 = vmatpush1.msra.mxu0 %v9583
    %10124 = vmatprep.subr.mxu0 %v9576
    %10125 = vmatpush1.msra.mxu0 %v9575
    %10126 = vmatprep.subr.mxu0 %v9568
    %10127 = vmatpush1.msra.mxu0 %v9567
    %10128 = vmatprep.subr.mxu0 %v9560
    %10129 = vmatpush1.msra.mxu0 %v9559
    %10130 = vmatprep.subr.mxu0 %v9552
    %10131 = vmatpush1.msra.mxu0 %v9551
    %10132 = vmatprep.subr.mxu0 %v9544
    %10133 = vmatpush1.msra.mxu0 %v9543
    %10134 = vmatprep.subr.mxu0 %v9536
    %10135 = vmatpush1.msra.mxu0 %v9535
    %10136 = vmatprep.subr.mxu0 %v9528
    %10137 = vmatpush1.msra.mxu0 %v9527
    %10138 = vmatprep.subr.mxu0 %v9520
    %10139 = vmatpush1.msra.mxu0 %v9519
    %10140 = vmatprep.subr.mxu0 %v9512
    %10141 = vmatpush1.msra.mxu0 %v9511
    %10142 = vmatprep.subr.mxu0 %v9504
    %10143 = vmatpush1.msra.mxu0 %v9503
    %10144 = vmatprep.subr.mxu0 %v9496
    %10145 = vmatpush1.msra.mxu0 %v9495
    %10146 = vmatprep.subr.mxu0 %v9488
    %10147 = vmatpush1.msra.mxu0 %v9487
    %10148 = vmatprep.subr.mxu0 %v9480
    %10149 = vmatpush1.msra.mxu0 %v9479
    %10150 = vmatprep.subr.mxu0 %v9472
    %10151 = vmatpush1.msra.mxu0 %v9471
    %10152 = vmatprep.subr.mxu0 %v9720
    %10153 = vmatpush2.msra.mxu0 %v9719
    %10154 = vmatprep.subr.mxu0 %v9712
    %10155 = vmatpush2.msra.mxu0 %v9711
    %10156 = vmatprep.subr.mxu0 %v9704
    %10157 = vmatpush2.msra.mxu0 %v9703
    %10158 = vmatprep.subr.mxu0 %v9696
    %10159 = vmatpush2.msra.mxu0 %v9695
    %10160 = vmatprep.subr.mxu0 %v9688
    %10161 = vmatpush2.msra.mxu0 %v9687
    %10162 = vmatprep.subr.mxu0 %v9680
    %10163 = vmatpush2.msra.mxu0 %v9679
    %10164 = vmatprep.subr.mxu0 %v9672
    %10165 = vmatpush2.msra.mxu0 %v9671
    %10166 = vmatprep.subr.mxu0 %v9664
    %10167 = vmatpush2.msra.mxu0 %v9663
    %10168 = vmatprep.subr.mxu0 %v9656
    %10169 = vmatpush2.msra.mxu0 %v9655
    %10170 = vmatprep.subr.mxu0 %v9648
    %10171 = vmatpush2.msra.mxu0 %v9647
    %10172 = vmatprep.subr.mxu0 %v9640
    %10173 = vmatpush2.msra.mxu0 %v9639
    %10174 = vmatprep.subr.mxu0 %v9632
    %10175 = vmatpush2.msra.mxu0 %v9631
    %10176 = vmatprep.subr.mxu0 %v9624
    %10177 = vmatpush2.msra.mxu0 %v9623
    %10178 = vmatprep.subr.mxu0 %v9616
    %10179 = vmatpush2.msra.mxu0 %v9615
    %10180 = vmatprep.subr.mxu0 %v9608
    %10181 = vmatpush2.msra.mxu0 %v9607
    %10182 = vmatprep.subr.mxu0 %v9600
    %10183 = vmatpush2.msra.mxu0 %v9599
    %10184 = vmatprep.mubr.f32.mxu0 %v9210
    %10185 = vmatmul.mubr.f32.gmra.mxu0 %v9209
    %v10186 = vpop.f32.mrf.mxu0
    %v10187 = vadd.f32 %v10116, %v10186
    %v10188 = vpop.f32.mrf.mxu0
    %v10189 = vadd.f32 %v10118, %v10188
    %10190 = vdwg.mxu0
    %10191 = vmatprep.subr.mxu0 %v9338
    %10192 = vmatpush1.msra.mxu0 %v9337
    %10193 = vmatprep.subr.mxu0 %v9330
    %10194 = vmatpush1.msra.mxu0 %v9329
    %10195 = vmatprep.subr.mxu0 %v9322
    %10196 = vmatpush1.msra.mxu0 %v9321
    %10197 = vmatprep.subr.mxu0 %v9314
    %10198 = vmatpush1.msra.mxu0 %v9313
    %10199 = vmatprep.subr.mxu0 %v9306
    %10200 = vmatpush1.msra.mxu0 %v9305
    %10201 = vmatprep.subr.mxu0 %v9298
    %10202 = vmatpush1.msra.mxu0 %v9297
    %10203 = vmatprep.subr.mxu0 %v9290
    %10204 = vmatpush1.msra.mxu0 %v9289
    %10205 = vmatprep.subr.mxu0 %v9282
    %10206 = vmatpush1.msra.mxu0 %v9281
    %10207 = vmatprep.subr.mxu0 %v9274
    %10208 = vmatpush1.msra.mxu0 %v9273
    %10209 = vmatprep.subr.mxu0 %v9266
    %10210 = vmatpush1.msra.mxu0 %v9265
    %10211 = vmatprep.subr.mxu0 %v9258
    %10212 = vmatpush1.msra.mxu0 %v9257
    %10213 = vmatprep.subr.mxu0 %v9250
    %10214 = vmatpush1.msra.mxu0 %v9249
    %10215 = vmatprep.subr.mxu0 %v9242
    %10216 = vmatpush1.msra.mxu0 %v9241
    %10217 = vmatprep.subr.mxu0 %v9234
    %10218 = vmatpush1.msra.mxu0 %v9233
    %10219 = vmatprep.subr.mxu0 %v9226
    %10220 = vmatpush1.msra.mxu0 %v9225
    %10221 = vmatprep.subr.mxu0 %v9218
    %10222 = vmatpush1.msra.mxu0 %v9217
    %10223 = vmatprep.subr.mxu0 %v9466
    %10224 = vmatpush2.msra.mxu0 %v9465
    %10225 = vmatprep.subr.mxu0 %v9458
    %10226 = vmatpush2.msra.mxu0 %v9457
    %10227 = vmatprep.subr.mxu0 %v9450
    %10228 = vmatpush2.msra.mxu0 %v9449
    %10229 = vmatprep.subr.mxu0 %v9442
    %10230 = vmatpush2.msra.mxu0 %v9441
    %10231 = vmatprep.subr.mxu0 %v9434
    %10232 = vmatpush2.msra.mxu0 %v9433
    %10233 = vmatprep.subr.mxu0 %v9426
    %10234 = vmatpush2.msra.mxu0 %v9425
    %10235 = vmatprep.subr.mxu0 %v9418
    %10236 = vmatpush2.msra.mxu0 %v9417
    %10237 = vmatprep.subr.mxu0 %v9410
    %10238 = vmatpush2.msra.mxu0 %v9409
    %10239 = vmatprep.subr.mxu0 %v9402
    %10240 = vmatpush2.msra.mxu0 %v9401
    %10241 = vmatprep.subr.mxu0 %v9394
    %10242 = vmatpush2.msra.mxu0 %v9393
    %10243 = vmatprep.subr.mxu0 %v9386
    %10244 = vmatpush2.msra.mxu0 %v9385
    %10245 = vmatprep.subr.mxu0 %v9378
    %10246 = vmatpush2.msra.mxu0 %v9377
    %10247 = vmatprep.subr.mxu0 %v9370
    %10248 = vmatpush2.msra.mxu0 %v9369
    %10249 = vmatprep.subr.mxu0 %v9362
    %10250 = vmatpush2.msra.mxu0 %v9361
    %10251 = vmatprep.subr.mxu0 %v9354
    %10252 = vmatpush2.msra.mxu0 %v9353
    %10253 = vmatprep.subr.mxu0 %v9346
    %10254 = vmatpush2.msra.mxu0 %v9345
    %10255 = vmatprep.mubr.f32.mxu0 %v9208
    %10256 = vmatmul.mubr.f32.gmra.mxu0 %v9207
    %v10257 = vpop.f32.mrf.mxu0
    %v10258 = vadd.f32 %v9752, %v10257
    %v10259 = vpop.f32.mrf.mxu0
    %v10260 = vadd.f32 %v9756, %v10259
    %10261 = vdwg.mxu0
    %10262 = vmatprep.subr.mxu0 %v9594
    %10263 = vmatpush1.msra.mxu0 %v9593
    %10264 = vmatprep.subr.mxu0 %v9586
    %10265 = vmatpush1.msra.mxu0 %v9585
    %10266 = vmatprep.subr.mxu0 %v9578
    %10267 = vmatpush1.msra.mxu0 %v9577
    %10268 = vmatprep.subr.mxu0 %v9570
    %10269 = vmatpush1.msra.mxu0 %v9569
    %10270 = vmatprep.subr.mxu0 %v9562
    %10271 = vmatpush1.msra.mxu0 %v9561
    %10272 = vmatprep.subr.mxu0 %v9554
    %10273 = vmatpush1.msra.mxu0 %v9553
    %10274 = vmatprep.subr.mxu0 %v9546
    %10275 = vmatpush1.msra.mxu0 %v9545
    %10276 = vmatprep.subr.mxu0 %v9538
    %10277 = vmatpush1.msra.mxu0 %v9537
    %10278 = vmatprep.subr.mxu0 %v9530
    %10279 = vmatpush1.msra.mxu0 %v9529
    %10280 = vmatprep.subr.mxu0 %v9522
    %10281 = vmatpush1.msra.mxu0 %v9521
    %10282 = vmatprep.subr.mxu0 %v9514
    %10283 = vmatpush1.msra.mxu0 %v9513
    %10284 = vmatprep.subr.mxu0 %v9506
    %10285 = vmatpush1.msra.mxu0 %v9505
    %10286 = vmatprep.subr.mxu0 %v9498
    %10287 = vmatpush1.msra.mxu0 %v9497
    %10288 = vmatprep.subr.mxu0 %v9490
    %10289 = vmatpush1.msra.mxu0 %v9489
    %10290 = vmatprep.subr.mxu0 %v9482
    %10291 = vmatpush1.msra.mxu0 %v9481
    %10292 = vmatprep.subr.mxu0 %v9474
    %10293 = vmatpush1.msra.mxu0 %v9473
    %10294 = vmatprep.subr.mxu0 %v9722
    %10295 = vmatpush2.msra.mxu0 %v9721
    %10296 = vmatprep.subr.mxu0 %v9714
    %10297 = vmatpush2.msra.mxu0 %v9713
    %10298 = vmatprep.subr.mxu0 %v9706
    %10299 = vmatpush2.msra.mxu0 %v9705
    %10300 = vmatprep.subr.mxu0 %v9698
    %10301 = vmatpush2.msra.mxu0 %v9697
    %10302 = vmatprep.subr.mxu0 %v9690
    %10303 = vmatpush2.msra.mxu0 %v9689
    %10304 = vmatprep.subr.mxu0 %v9682
    %10305 = vmatpush2.msra.mxu0 %v9681
    %10306 = vmatprep.subr.mxu0 %v9674
    %10307 = vmatpush2.msra.mxu0 %v9673
    %10308 = vmatprep.subr.mxu0 %v9666
    %10309 = vmatpush2.msra.mxu0 %v9665
    %10310 = vmatprep.subr.mxu0 %v9658
    %10311 = vmatpush2.msra.mxu0 %v9657
    %10312 = vmatprep.subr.mxu0 %v9650
    %10313 = vmatpush2.msra.mxu0 %v9649
    %10314 = vmatprep.subr.mxu0 %v9642
    %10315 = vmatpush2.msra.mxu0 %v9641
    %10316 = vmatprep.subr.mxu0 %v9634
    %10317 = vmatpush2.msra.mxu0 %v9633
    %10318 = vmatprep.subr.mxu0 %v9626
    %10319 = vmatpush2.msra.mxu0 %v9625
    %10320 = vmatprep.subr.mxu0 %v9618
    %10321 = vmatpush2.msra.mxu0 %v9617
    %10322 = vmatprep.subr.mxu0 %v9610
    %10323 = vmatpush2.msra.mxu0 %v9609
    %10324 = vmatprep.subr.mxu0 %v9602
    %10325 = vmatpush2.msra.mxu0 %v9601
    %10326 = vmatprep.mubr.f32.mxu0 %v9210
    %10327 = vmatmul.mubr.f32.gmra.mxu0 %v9209
    %v10328 = vpop.f32.mrf.mxu0
    %v10329 = vadd.f32 %v10258, %v10328
    %v10330 = vpop.f32.mrf.mxu0
    %v10331 = vadd.f32 %v10260, %v10330
    %10332 = vdwg.mxu0
    %v10333 = vmul.f32 %v9903, 0.2
    %v10334 = vmul.f32 %v9905, 0.2
    %v10335 = vmul.f32 %v10045, 0.2
    %v10336 = vmul.f32 %v10047, 0.2
    %v10337 = vmul.f32 %v10187, 0.2
    %v10338 = vmul.f32 %v10189, 0.2
    %v10339 = vmul.f32 %v10329, 0.2
    %v10340 = vmul.f32 %v10331, 0.2
    %v10341 = vmax.f32 %v9903, %v10333
    %v10342 = vmax.f32 %v9905, %v10334
    %v10343 = vmax.f32 %v10045, %v10335
    %v10344 = vmax.f32 %v10047, %v10336
    %v10345 = vmax.f32 %v10187, %v10337
    %v10346 = vmax.f32 %v10189, %v10338
    %v10347 = vmax.f32 %v10329, %v10339
    %v10348 = vmax.f32 %v10331, %v10340
    %v10349 = vld [vmem:[%s9] sm:$0xff]
    %v10350 = vld [vmem:[%s9 + $0x8] sm:$0xff]
    %v10351 = vld [vmem:[%s9 + $0x10] sm:$0xff]
    %v10352 = vld [vmem:[%s9 + $0x18] sm:$0xff]
    %v10353 = vld [vmem:[%s9 + $0x20] sm:$0xff]
    %v10354 = vld [vmem:[%s9 + $0x28] sm:$0xff]
    %v10355 = vld [vmem:[%s9 + $0x30] sm:$0xff]
    %v10356 = vld [vmem:[%s9 + $0x38] sm:$0xff]
    %v10357 = vld [vmem:[%s9 + $0x40] sm:$0xff]
    %v10358 = vld [vmem:[%s9 + $0x48] sm:$0xff]
    %v10359 = vld [vmem:[%s9 + $0x50] sm:$0xff]
    %v10360 = vld [vmem:[%s9 + $0x58] sm:$0xff]
    %v10361 = vld [vmem:[%s9 + $0x60] sm:$0xff]
    %v10362 = vld [vmem:[%s9 + $0x68] sm:$0xff]
    %v10363 = vld [vmem:[%s9 + $0x70] sm:$0xff]
    %v10364 = vld [vmem:[%s9 + $0x78] sm:$0xff]
    %v10365 = vld [vmem:[%s9 + $0x80] sm:$0xff]
    %v10366 = vld [vmem:[%s9 + $0x88] sm:$0xff]
    %v10367 = vld [vmem:[%s9 + $0x90] sm:$0xff]
    %v10368 = vld [vmem:[%s9 + $0x98] sm:$0xff]
    %v10369 = vld [vmem:[%s9 + $0xa0] sm:$0xff]
    %v10370 = vld [vmem:[%s9 + $0xa8] sm:$0xff]
    %v10371 = vld [vmem:[%s9 + $0xb0] sm:$0xff]
    %v10372 = vld [vmem:[%s9 + $0xb8] sm:$0xff]
    %v10373 = vld [vmem:[%s9 + $0xc0] sm:$0xff]
    %v10374 = vld [vmem:[%s9 + $0xc8] sm:$0xff]
    %v10375 = vld [vmem:[%s9 + $0xd0] sm:$0xff]
    %v10376 = vld [vmem:[%s9 + $0xd8] sm:$0xff]
    %v10377 = vld [vmem:[%s9 + $0xe0] sm:$0xff]
    %v10378 = vld [vmem:[%s9 + $0xe8] sm:$0xff]
    %v10379 = vld [vmem:[%s9 + $0xf0] sm:$0xff]
    %v10380 = vld [vmem:[%s9 + $0xf8] sm:$0xff]
    %v10381 = vld [vmem:[%s9 + $0x100] sm:$0xff]
    %v10382 = vld [vmem:[%s9 + $0x108] sm:$0xff]
    %v10383 = vld [vmem:[%s9 + $0x110] sm:$0xff]
    %v10384 = vld [vmem:[%s9 + $0x118] sm:$0xff]
    %v10385 = vld [vmem:[%s9 + $0x120] sm:$0xff]
    %v10386 = vld [vmem:[%s9 + $0x128] sm:$0xff]
    %v10387 = vld [vmem:[%s9 + $0x130] sm:$0xff]
    %v10388 = vld [vmem:[%s9 + $0x138] sm:$0xff]
    %v10389 = vld [vmem:[%s9 + $0x140] sm:$0xff]
    %v10390 = vld [vmem:[%s9 + $0x148] sm:$0xff]
    %v10391 = vld [vmem:[%s9 + $0x150] sm:$0xff]
    %v10392 = vld [vmem:[%s9 + $0x158] sm:$0xff]
    %v10393 = vld [vmem:[%s9 + $0x160] sm:$0xff]
    %v10394 = vld [vmem:[%s9 + $0x168] sm:$0xff]
    %v10395 = vld [vmem:[%s9 + $0x170] sm:$0xff]
    %v10396 = vld [vmem:[%s9 + $0x178] sm:$0xff]
    %v10397 = vld [vmem:[%s9 + $0x180] sm:$0xff]
    %v10398 = vld [vmem:[%s9 + $0x188] sm:$0xff]
    %v10399 = vld [vmem:[%s9 + $0x190] sm:$0xff]
    %v10400 = vld [vmem:[%s9 + $0x198] sm:$0xff]
    %v10401 = vld [vmem:[%s9 + $0x1a0] sm:$0xff]
    %v10402 = vld [vmem:[%s9 + $0x1a8] sm:$0xff]
    %v10403 = vld [vmem:[%s9 + $0x1b0] sm:$0xff]
    %v10404 = vld [vmem:[%s9 + $0x1b8] sm:$0xff]
    %v10405 = vld [vmem:[%s9 + $0x1c0] sm:$0xff]
    %v10406 = vld [vmem:[%s9 + $0x1c8] sm:$0xff]
    %v10407 = vld [vmem:[%s9 + $0x1d0] sm:$0xff]
    %v10408 = vld [vmem:[%s9 + $0x1d8] sm:$0xff]
    %v10409 = vld [vmem:[%s9 + $0x1e0] sm:$0xff]
    %v10410 = vld [vmem:[%s9 + $0x1e8] sm:$0xff]
    %v10411 = vld [vmem:[%s9 + $0x1f0] sm:$0xff]
    %v10412 = vld [vmem:[%s9 + $0x1f8] sm:$0xff]
    %v10413 = vld [vmem:[%s9 + $0x200] sm:$0xff]
    %v10414 = vld [vmem:[%s9 + $0x208] sm:$0xff]
    %v10415 = vld [vmem:[%s9 + $0x210] sm:$0xff]
    %v10416 = vld [vmem:[%s9 + $0x218] sm:$0xff]
    %v10417 = vld [vmem:[%s9 + $0x220] sm:$0xff]
    %v10418 = vld [vmem:[%s9 + $0x228] sm:$0xff]
    %v10419 = vld [vmem:[%s9 + $0x230] sm:$0xff]
    %v10420 = vld [vmem:[%s9 + $0x238] sm:$0xff]
    %v10421 = vld [vmem:[%s9 + $0x240] sm:$0xff]
    %v10422 = vld [vmem:[%s9 + $0x248] sm:$0xff]
    %v10423 = vld [vmem:[%s9 + $0x250] sm:$0xff]
    %v10424 = vld [vmem:[%s9 + $0x258] sm:$0xff]
    %v10425 = vld [vmem:[%s9 + $0x260] sm:$0xff]
    %v10426 = vld [vmem:[%s9 + $0x268] sm:$0xff]
    %v10427 = vld [vmem:[%s9 + $0x270] sm:$0xff]
    %v10428 = vld [vmem:[%s9 + $0x278] sm:$0xff]
    %v10429 = vld [vmem:[%s9 + $0x280] sm:$0xff]
    %v10430 = vld [vmem:[%s9 + $0x288] sm:$0xff]
    %v10431 = vld [vmem:[%s9 + $0x290] sm:$0xff]
    %v10432 = vld [vmem:[%s9 + $0x298] sm:$0xff]
    %v10433 = vld [vmem:[%s9 + $0x2a0] sm:$0xff]
    %v10434 = vld [vmem:[%s9 + $0x2a8] sm:$0xff]
    %v10435 = vld [vmem:[%s9 + $0x2b0] sm:$0xff]
    %v10436 = vld [vmem:[%s9 + $0x2b8] sm:$0xff]
    %v10437 = vld [vmem:[%s9 + $0x2c0] sm:$0xff]
    %v10438 = vld [vmem:[%s9 + $0x2c8] sm:$0xff]
    %v10439 = vld [vmem:[%s9 + $0x2d0] sm:$0xff]
    %v10440 = vld [vmem:[%s9 + $0x2d8] sm:$0xff]
    %v10441 = vld [vmem:[%s9 + $0x2e0] sm:$0xff]
    %v10442 = vld [vmem:[%s9 + $0x2e8] sm:$0xff]
    %v10443 = vld [vmem:[%s9 + $0x2f0] sm:$0xff]
    %v10444 = vld [vmem:[%s9 + $0x2f8] sm:$0xff]
    %v10445 = vld [vmem:[%s9 + $0x300] sm:$0xff]
    %v10446 = vld [vmem:[%s9 + $0x308] sm:$0xff]
    %v10447 = vld [vmem:[%s9 + $0x310] sm:$0xff]
    %v10448 = vld [vmem:[%s9 + $0x318] sm:$0xff]
    %v10449 = vld [vmem:[%s9 + $0x320] sm:$0xff]
    %v10450 = vld [vmem:[%s9 + $0x328] sm:$0xff]
    %v10451 = vld [vmem:[%s9 + $0x330] sm:$0xff]
    %v10452 = vld [vmem:[%s9 + $0x338] sm:$0xff]
    %v10453 = vld [vmem:[%s9 + $0x340] sm:$0xff]
    %v10454 = vld [vmem:[%s9 + $0x348] sm:$0xff]
    %v10455 = vld [vmem:[%s9 + $0x350] sm:$0xff]
    %v10456 = vld [vmem:[%s9 + $0x358] sm:$0xff]
    %v10457 = vld [vmem:[%s9 + $0x360] sm:$0xff]
    %v10458 = vld [vmem:[%s9 + $0x368] sm:$0xff]
    %v10459 = vld [vmem:[%s9 + $0x370] sm:$0xff]
    %v10460 = vld [vmem:[%s9 + $0x378] sm:$0xff]
    %v10461 = vld [vmem:[%s9 + $0x380] sm:$0xff]
    %v10462 = vld [vmem:[%s9 + $0x388] sm:$0xff]
    %v10463 = vld [vmem:[%s9 + $0x390] sm:$0xff]
    %v10464 = vld [vmem:[%s9 + $0x398] sm:$0xff]
    %v10465 = vld [vmem:[%s9 + $0x3a0] sm:$0xff]
    %v10466 = vld [vmem:[%s9 + $0x3a8] sm:$0xff]
    %v10467 = vld [vmem:[%s9 + $0x3b0] sm:$0xff]
    %v10468 = vld [vmem:[%s9 + $0x3b8] sm:$0xff]
    %v10469 = vld [vmem:[%s9 + $0x3c0] sm:$0xff]
    %v10470 = vld [vmem:[%s9 + $0x3c8] sm:$0xff]
    %v10471 = vld [vmem:[%s9 + $0x3d0] sm:$0xff]
    %v10472 = vld [vmem:[%s9 + $0x3d8] sm:$0xff]
    %v10473 = vld [vmem:[%s9 + $0x3e0] sm:$0xff]
    %v10474 = vld [vmem:[%s9 + $0x3e8] sm:$0xff]
    %v10475 = vld [vmem:[%s9 + $0x3f0] sm:$0xff]
    %v10476 = vld [vmem:[%s9 + $0x3f8] sm:$0xff]
    %v10477 = vld [vmem:[%s9 + $0x400] sm:$0xff]
    %v10478 = vld [vmem:[%s9 + $0x408] sm:$0xff]
    %v10479 = vld [vmem:[%s9 + $0x410] sm:$0xff]
    %v10480 = vld [vmem:[%s9 + $0x418] sm:$0xff]
    %v10481 = vld [vmem:[%s9 + $0x420] sm:$0xff]
    %v10482 = vld [vmem:[%s9 + $0x428] sm:$0xff]
    %v10483 = vld [vmem:[%s9 + $0x430] sm:$0xff]
    %v10484 = vld [vmem:[%s9 + $0x438] sm:$0xff]
    %v10485 = vld [vmem:[%s9 + $0x440] sm:$0xff]
    %v10486 = vld [vmem:[%s9 + $0x448] sm:$0xff]
    %v10487 = vld [vmem:[%s9 + $0x450] sm:$0xff]
    %v10488 = vld [vmem:[%s9 + $0x458] sm:$0xff]
    %v10489 = vld [vmem:[%s9 + $0x460] sm:$0xff]
    %v10490 = vld [vmem:[%s9 + $0x468] sm:$0xff]
    %v10491 = vld [vmem:[%s9 + $0x470] sm:$0xff]
    %v10492 = vld [vmem:[%s9 + $0x478] sm:$0xff]
    %v10493 = vld [vmem:[%s9 + $0x480] sm:$0xff]
    %v10494 = vld [vmem:[%s9 + $0x488] sm:$0xff]
    %v10495 = vld [vmem:[%s9 + $0x490] sm:$0xff]
    %v10496 = vld [vmem:[%s9 + $0x498] sm:$0xff]
    %v10497 = vld [vmem:[%s9 + $0x4a0] sm:$0xff]
    %v10498 = vld [vmem:[%s9 + $0x4a8] sm:$0xff]
    %v10499 = vld [vmem:[%s9 + $0x4b0] sm:$0xff]
    %v10500 = vld [vmem:[%s9 + $0x4b8] sm:$0xff]
    %v10501 = vld [vmem:[%s9 + $0x4c0] sm:$0xff]
    %v10502 = vld [vmem:[%s9 + $0x4c8] sm:$0xff]
    %v10503 = vld [vmem:[%s9 + $0x4d0] sm:$0xff]
    %v10504 = vld [vmem:[%s9 + $0x4d8] sm:$0xff]
    %v10505 = vld [vmem:[%s9 + $0x4e0] sm:$0xff]
    %v10506 = vld [vmem:[%s9 + $0x4e8] sm:$0xff]
    %v10507 = vld [vmem:[%s9 + $0x4f0] sm:$0xff]
    %v10508 = vld [vmem:[%s9 + $0x4f8] sm:$0xff]
    %v10509 = vld [vmem:[%s9 + $0x500] sm:$0xff]
    %v10510 = vld [vmem:[%s9 + $0x508] sm:$0xff]
    %v10511 = vld [vmem:[%s9 + $0x510] sm:$0xff]
    %v10512 = vld [vmem:[%s9 + $0x518] sm:$0xff]
    %v10513 = vld [vmem:[%s9 + $0x520] sm:$0xff]
    %v10514 = vld [vmem:[%s9 + $0x528] sm:$0xff]
    %v10515 = vld [vmem:[%s9 + $0x530] sm:$0xff]
    %v10516 = vld [vmem:[%s9 + $0x538] sm:$0xff]
    %v10517 = vld [vmem:[%s9 + $0x540] sm:$0xff]
    %v10518 = vld [vmem:[%s9 + $0x548] sm:$0xff]
    %v10519 = vld [vmem:[%s9 + $0x550] sm:$0xff]
    %v10520 = vld [vmem:[%s9 + $0x558] sm:$0xff]
    %v10521 = vld [vmem:[%s9 + $0x560] sm:$0xff]
    %v10522 = vld [vmem:[%s9 + $0x568] sm:$0xff]
    %v10523 = vld [vmem:[%s9 + $0x570] sm:$0xff]
    %v10524 = vld [vmem:[%s9 + $0x578] sm:$0xff]
    %v10525 = vld [vmem:[%s9 + $0x580] sm:$0xff]
    %v10526 = vld [vmem:[%s9 + $0x588] sm:$0xff]
    %v10527 = vld [vmem:[%s9 + $0x590] sm:$0xff]
    %v10528 = vld [vmem:[%s9 + $0x598] sm:$0xff]
    %v10529 = vld [vmem:[%s9 + $0x5a0] sm:$0xff]
    %v10530 = vld [vmem:[%s9 + $0x5a8] sm:$0xff]
    %v10531 = vld [vmem:[%s9 + $0x5b0] sm:$0xff]
    %v10532 = vld [vmem:[%s9 + $0x5b8] sm:$0xff]
    %v10533 = vld [vmem:[%s9 + $0x5c0] sm:$0xff]
    %v10534 = vld [vmem:[%s9 + $0x5c8] sm:$0xff]
    %v10535 = vld [vmem:[%s9 + $0x5d0] sm:$0xff]
    %v10536 = vld [vmem:[%s9 + $0x5d8] sm:$0xff]
    %v10537 = vld [vmem:[%s9 + $0x5e0] sm:$0xff]
    %v10538 = vld [vmem:[%s9 + $0x5e8] sm:$0xff]
    %v10539 = vld [vmem:[%s9 + $0x5f0] sm:$0xff]
    %v10540 = vld [vmem:[%s9 + $0x5f8] sm:$0xff]
    %v10541 = vld [vmem:[%s9 + $0x600] sm:$0xff]
    %v10542 = vld [vmem:[%s9 + $0x608] sm:$0xff]
    %v10543 = vld [vmem:[%s9 + $0x610] sm:$0xff]
    %v10544 = vld [vmem:[%s9 + $0x618] sm:$0xff]
    %v10545 = vld [vmem:[%s9 + $0x620] sm:$0xff]
    %v10546 = vld [vmem:[%s9 + $0x628] sm:$0xff]
    %v10547 = vld [vmem:[%s9 + $0x630] sm:$0xff]
    %v10548 = vld [vmem:[%s9 + $0x638] sm:$0xff]
    %v10549 = vld [vmem:[%s9 + $0x640] sm:$0xff]
    %v10550 = vld [vmem:[%s9 + $0x648] sm:$0xff]
    %v10551 = vld [vmem:[%s9 + $0x650] sm:$0xff]
    %v10552 = vld [vmem:[%s9 + $0x658] sm:$0xff]
    %v10553 = vld [vmem:[%s9 + $0x660] sm:$0xff]
    %v10554 = vld [vmem:[%s9 + $0x668] sm:$0xff]
    %v10555 = vld [vmem:[%s9 + $0x670] sm:$0xff]
    %v10556 = vld [vmem:[%s9 + $0x678] sm:$0xff]
    %v10557 = vld [vmem:[%s9 + $0x680] sm:$0xff]
    %v10558 = vld [vmem:[%s9 + $0x688] sm:$0xff]
    %v10559 = vld [vmem:[%s9 + $0x690] sm:$0xff]
    %v10560 = vld [vmem:[%s9 + $0x698] sm:$0xff]
    %v10561 = vld [vmem:[%s9 + $0x6a0] sm:$0xff]
    %v10562 = vld [vmem:[%s9 + $0x6a8] sm:$0xff]
    %v10563 = vld [vmem:[%s9 + $0x6b0] sm:$0xff]
    %v10564 = vld [vmem:[%s9 + $0x6b8] sm:$0xff]
    %v10565 = vld [vmem:[%s9 + $0x6c0] sm:$0xff]
    %v10566 = vld [vmem:[%s9 + $0x6c8] sm:$0xff]
    %v10567 = vld [vmem:[%s9 + $0x6d0] sm:$0xff]
    %v10568 = vld [vmem:[%s9 + $0x6d8] sm:$0xff]
    %v10569 = vld [vmem:[%s9 + $0x6e0] sm:$0xff]
    %v10570 = vld [vmem:[%s9 + $0x6e8] sm:$0xff]
    %v10571 = vld [vmem:[%s9 + $0x6f0] sm:$0xff]
    %v10572 = vld [vmem:[%s9 + $0x6f8] sm:$0xff]
    %v10573 = vld [vmem:[%s9 + $0x700] sm:$0xff]
    %v10574 = vld [vmem:[%s9 + $0x708] sm:$0xff]
    %v10575 = vld [vmem:[%s9 + $0x710] sm:$0xff]
    %v10576 = vld [vmem:[%s9 + $0x718] sm:$0xff]
    %v10577 = vld [vmem:[%s9 + $0x720] sm:$0xff]
    %v10578 = vld [vmem:[%s9 + $0x728] sm:$0xff]
    %v10579 = vld [vmem:[%s9 + $0x730] sm:$0xff]
    %v10580 = vld [vmem:[%s9 + $0x738] sm:$0xff]
    %v10581 = vld [vmem:[%s9 + $0x740] sm:$0xff]
    %v10582 = vld [vmem:[%s9 + $0x748] sm:$0xff]
    %v10583 = vld [vmem:[%s9 + $0x750] sm:$0xff]
    %v10584 = vld [vmem:[%s9 + $0x758] sm:$0xff]
    %v10585 = vld [vmem:[%s9 + $0x760] sm:$0xff]
    %v10586 = vld [vmem:[%s9 + $0x768] sm:$0xff]
    %v10587 = vld [vmem:[%s9 + $0x770] sm:$0xff]
    %v10588 = vld [vmem:[%s9 + $0x778] sm:$0xff]
    %v10589 = vld [vmem:[%s9 + $0x780] sm:$0xff]
    %v10590 = vld [vmem:[%s9 + $0x788] sm:$0xff]
    %v10591 = vld [vmem:[%s9 + $0x790] sm:$0xff]
    %v10592 = vld [vmem:[%s9 + $0x798] sm:$0xff]
    %v10593 = vld [vmem:[%s9 + $0x7a0] sm:$0xff]
    %v10594 = vld [vmem:[%s9 + $0x7a8] sm:$0xff]
    %v10595 = vld [vmem:[%s9 + $0x7b0] sm:$0xff]
    %v10596 = vld [vmem:[%s9 + $0x7b8] sm:$0xff]
    %v10597 = vld [vmem:[%s9 + $0x7c0] sm:$0xff]
    %v10598 = vld [vmem:[%s9 + $0x7c8] sm:$0xff]
    %v10599 = vld [vmem:[%s9 + $0x7d0] sm:$0xff]
    %v10600 = vld [vmem:[%s9 + $0x7d8] sm:$0xff]
    %v10601 = vld [vmem:[%s9 + $0x7e0] sm:$0xff]
    %v10602 = vld [vmem:[%s9 + $0x7e8] sm:$0xff]
    %v10603 = vld [vmem:[%s9 + $0x7f0] sm:$0xff]
    %v10604 = vld [vmem:[%s9 + $0x7f8] sm:$0xff]
    %v10605 = vld [vmem:[%s10] sm:$0x3]
    %v10607 = vlaneseq
    %v10608 = vshrl.u32 %v10607, 7
    %v10609 = vsub.s32 0, %v10608
    %v10610 = vrot.slane %v10605, %v10609
    %v10611 = vlaneseq
    %v10612 = vshrl.u32 %v10611, 7
    %v10613 = vsub.s32 1, %v10612
    %v10614 = vrot.slane %v10605, %v10613
    %10617 = vmatprep.subr.mxu0 %v10380
    %10618 = vmatpush1.msra.mxu0 %v10379
    %10619 = vmatprep.subr.mxu0 %v10378
    %10620 = vmatpush1.msra.mxu0 %v10377
    %10621 = vmatprep.subr.mxu0 %v10376
    %10622 = vmatpush1.msra.mxu0 %v10375
    %10623 = vmatprep.subr.mxu0 %v10374
    %10624 = vmatpush1.msra.mxu0 %v10373
    %10625 = vmatprep.subr.mxu0 %v10372
    %10626 = vmatpush1.msra.mxu0 %v10371
    %10627 = vmatprep.subr.mxu0 %v10370
    %10628 = vmatpush1.msra.mxu0 %v10369
    %10629 = vmatprep.subr.mxu0 %v10368
    %10630 = vmatpush1.msra.mxu0 %v10367
    %10631 = vmatprep.subr.mxu0 %v10366
    %10632 = vmatpush1.msra.mxu0 %v10365
    %10633 = vmatprep.subr.mxu0 %v10364
    %10634 = vmatpush1.msra.mxu0 %v10363
    %10635 = vmatprep.subr.mxu0 %v10362
    %10636 = vmatpush1.msra.mxu0 %v10361
    %10637 = vmatprep.subr.mxu0 %v10360
    %10638 = vmatpush1.msra.mxu0 %v10359
    %10639 = vmatprep.subr.mxu0 %v10358
    %10640 = vmatpush1.msra.mxu0 %v10357
    %10641 = vmatprep.subr.mxu0 %v10356
    %10642 = vmatpush1.msra.mxu0 %v10355
    %10643 = vmatprep.subr.mxu0 %v10354
    %10644 = vmatpush1.msra.mxu0 %v10353
    %10645 = vmatprep.subr.mxu0 %v10352
    %10646 = vmatpush1.msra.mxu0 %v10351
    %10647 = vmatprep.subr.mxu0 %v10350
    %10648 = vmatpush1.msra.mxu0 %v10349
    %10649 = vmatprep.subr.mxu0 %v10412
    %10650 = vmatpush2.msra.mxu0 %v10411
    %10651 = vmatprep.subr.mxu0 %v10410
    %10652 = vmatpush2.msra.mxu0 %v10409
    %10653 = vmatprep.subr.mxu0 %v10408
    %10654 = vmatpush2.msra.mxu0 %v10407
    %10655 = vmatprep.subr.mxu0 %v10406
    %10656 = vmatpush2.msra.mxu0 %v10405
    %10657 = vmatprep.subr.mxu0 %v10404
    %10658 = vmatpush2.msra.mxu0 %v10403
    %10659 = vmatprep.subr.mxu0 %v10402
    %10660 = vmatpush2.msra.mxu0 %v10401
    %10661 = vmatprep.subr.mxu0 %v10400
    %10662 = vmatpush2.msra.mxu0 %v10399
    %10663 = vmatprep.subr.mxu0 %v10398
    %10664 = vmatpush2.msra.mxu0 %v10397
    %10665 = vmatprep.subr.mxu0 %v10396
    %10666 = vmatpush2.msra.mxu0 %v10395
    %10667 = vmatprep.subr.mxu0 %v10394
    %10668 = vmatpush2.msra.mxu0 %v10393
    %10669 = vmatprep.subr.mxu0 %v10392
    %10670 = vmatpush2.msra.mxu0 %v10391
    %10671 = vmatprep.subr.mxu0 %v10390
    %10672 = vmatpush2.msra.mxu0 %v10389
    %10673 = vmatprep.subr.mxu0 %v10388
    %10674 = vmatpush2.msra.mxu0 %v10387
    %10675 = vmatprep.subr.mxu0 %v10386
    %10676 = vmatpush2.msra.mxu0 %v10385
    %10677 = vmatprep.subr.mxu0 %v10384
    %10678 = vmatpush2.msra.mxu0 %v10383
    %10679 = vmatprep.subr.mxu0 %v10382
    %10680 = vmatpush2.msra.mxu0 %v10381
    %10681 = vmatprep.mubr.f32.mxu0 %v10342
    %10682 = vmatmul.mubr.f32.gmra.mxu0 %v10341
    %v10683 = vpop.f32.mrf.mxu0
    %v10684 = vadd.f32 %v10610, %v10683
    %v10685 = vpop.f32.mrf.mxu0
    %v10686 = vadd.f32 %v10614, %v10685
    %10687 = vdwg.mxu0
    %10688 = vmatprep.subr.mxu0 %v10444
    %10689 = vmatpush1.msra.mxu0 %v10443
    %10690 = vmatprep.subr.mxu0 %v10442
    %10691 = vmatpush1.msra.mxu0 %v10441
    %10692 = vmatprep.subr.mxu0 %v10440
    %10693 = vmatpush1.msra.mxu0 %v10439
    %10694 = vmatprep.subr.mxu0 %v10438
    %10695 = vmatpush1.msra.mxu0 %v10437
    %10696 = vmatprep.subr.mxu0 %v10436
    %10697 = vmatpush1.msra.mxu0 %v10435
    %10698 = vmatprep.subr.mxu0 %v10434
    %10699 = vmatpush1.msra.mxu0 %v10433
    %10700 = vmatprep.subr.mxu0 %v10432
    %10701 = vmatpush1.msra.mxu0 %v10431
    %10702 = vmatprep.subr.mxu0 %v10430
    %10703 = vmatpush1.msra.mxu0 %v10429
    %10704 = vmatprep.subr.mxu0 %v10428
    %10705 = vmatpush1.msra.mxu0 %v10427
    %10706 = vmatprep.subr.mxu0 %v10426
    %10707 = vmatpush1.msra.mxu0 %v10425
    %10708 = vmatprep.subr.mxu0 %v10424
    %10709 = vmatpush1.msra.mxu0 %v10423
    %10710 = vmatprep.subr.mxu0 %v10422
    %10711 = vmatpush1.msra.mxu0 %v10421
    %10712 = vmatprep.subr.mxu0 %v10420
    %10713 = vmatpush1.msra.mxu0 %v10419
    %10714 = vmatprep.subr.mxu0 %v10418
    %10715 = vmatpush1.msra.mxu0 %v10417
    %10716 = vmatprep.subr.mxu0 %v10416
    %10717 = vmatpush1.msra.mxu0 %v10415
    %10718 = vmatprep.subr.mxu0 %v10414
    %10719 = vmatpush1.msra.mxu0 %v10413
    %10720 = vmatprep.subr.mxu0 %v10476
    %10721 = vmatpush2.msra.mxu0 %v10475
    %10722 = vmatprep.subr.mxu0 %v10474
    %10723 = vmatpush2.msra.mxu0 %v10473
    %10724 = vmatprep.subr.mxu0 %v10472
    %10725 = vmatpush2.msra.mxu0 %v10471
    %10726 = vmatprep.subr.mxu0 %v10470
    %10727 = vmatpush2.msra.mxu0 %v10469
    %10728 = vmatprep.subr.mxu0 %v10468
    %10729 = vmatpush2.msra.mxu0 %v10467
    %10730 = vmatprep.subr.mxu0 %v10466
    %10731 = vmatpush2.msra.mxu0 %v10465
    %10732 = vmatprep.subr.mxu0 %v10464
    %10733 = vmatpush2.msra.mxu0 %v10463
    %10734 = vmatprep.subr.mxu0 %v10462
    %10735 = vmatpush2.msra.mxu0 %v10461
    %10736 = vmatprep.subr.mxu0 %v10460
    %10737 = vmatpush2.msra.mxu0 %v10459
    %10738 = vmatprep.subr.mxu0 %v10458
    %10739 = vmatpush2.msra.mxu0 %v10457
    %10740 = vmatprep.subr.mxu0 %v10456
    %10741 = vmatpush2.msra.mxu0 %v10455
    %10742 = vmatprep.subr.mxu0 %v10454
    %10743 = vmatpush2.msra.mxu0 %v10453
    %10744 = vmatprep.subr.mxu0 %v10452
    %10745 = vmatpush2.msra.mxu0 %v10451
    %10746 = vmatprep.subr.mxu0 %v10450
    %10747 = vmatpush2.msra.mxu0 %v10449
    %10748 = vmatprep.subr.mxu0 %v10448
    %10749 = vmatpush2.msra.mxu0 %v10447
    %10750 = vmatprep.subr.mxu0 %v10446
    %10751 = vmatpush2.msra.mxu0 %v10445
    %10752 = vmatprep.mubr.f32.mxu0 %v10344
    %10753 = vmatmul.mubr.f32.gmra.mxu0 %v10343
    %v10754 = vpop.f32.mrf.mxu0
    %v10755 = vadd.f32 %v10684, %v10754
    %v10756 = vpop.f32.mrf.mxu0
    %v10757 = vadd.f32 %v10686, %v10756
    %10758 = vdwg.mxu0
    %10759 = vmatprep.subr.mxu0 %v10508
    %10760 = vmatpush1.msra.mxu0 %v10507
    %10761 = vmatprep.subr.mxu0 %v10506
    %10762 = vmatpush1.msra.mxu0 %v10505
    %10763 = vmatprep.subr.mxu0 %v10504
    %10764 = vmatpush1.msra.mxu0 %v10503
    %10765 = vmatprep.subr.mxu0 %v10502
    %10766 = vmatpush1.msra.mxu0 %v10501
    %10767 = vmatprep.subr.mxu0 %v10500
    %10768 = vmatpush1.msra.mxu0 %v10499
    %10769 = vmatprep.subr.mxu0 %v10498
    %10770 = vmatpush1.msra.mxu0 %v10497
    %10771 = vmatprep.subr.mxu0 %v10496
    %10772 = vmatpush1.msra.mxu0 %v10495
    %10773 = vmatprep.subr.mxu0 %v10494
    %10774 = vmatpush1.msra.mxu0 %v10493
    %10775 = vmatprep.subr.mxu0 %v10492
    %10776 = vmatpush1.msra.mxu0 %v10491
    %10777 = vmatprep.subr.mxu0 %v10490
    %10778 = vmatpush1.msra.mxu0 %v10489
    %10779 = vmatprep.subr.mxu0 %v10488
    %10780 = vmatpush1.msra.mxu0 %v10487
    %10781 = vmatprep.subr.mxu0 %v10486
    %10782 = vmatpush1.msra.mxu0 %v10485
    %10783 = vmatprep.subr.mxu0 %v10484
    %10784 = vmatpush1.msra.mxu0 %v10483
    %10785 = vmatprep.subr.mxu0 %v10482
    %10786 = vmatpush1.msra.mxu0 %v10481
    %10787 = vmatprep.subr.mxu0 %v10480
    %10788 = vmatpush1.msra.mxu0 %v10479
    %10789 = vmatprep.subr.mxu0 %v10478
    %10790 = vmatpush1.msra.mxu0 %v10477
    %10791 = vmatprep.subr.mxu0 %v10540
    %10792 = vmatpush2.msra.mxu0 %v10539
    %10793 = vmatprep.subr.mxu0 %v10538
    %10794 = vmatpush2.msra.mxu0 %v10537
    %10795 = vmatprep.subr.mxu0 %v10536
    %10796 = vmatpush2.msra.mxu0 %v10535
    %10797 = vmatprep.subr.mxu0 %v10534
    %10798 = vmatpush2.msra.mxu0 %v10533
    %10799 = vmatprep.subr.mxu0 %v10532
    %10800 = vmatpush2.msra.mxu0 %v10531
    %10801 = vmatprep.subr.mxu0 %v10530
    %10802 = vmatpush2.msra.mxu0 %v10529
    %10803 = vmatprep.subr.mxu0 %v10528
    %10804 = vmatpush2.msra.mxu0 %v10527
    %10805 = vmatprep.subr.mxu0 %v10526
    %10806 = vmatpush2.msra.mxu0 %v10525
    %10807 = vmatprep.subr.mxu0 %v10524
    %10808 = vmatpush2.msra.mxu0 %v10523
    %10809 = vmatprep.subr.mxu0 %v10522
    %10810 = vmatpush2.msra.mxu0 %v10521
    %10811 = vmatprep.subr.mxu0 %v10520
    %10812 = vmatpush2.msra.mxu0 %v10519
    %10813 = vmatprep.subr.mxu0 %v10518
    %10814 = vmatpush2.msra.mxu0 %v10517
    %10815 = vmatprep.subr.mxu0 %v10516
    %10816 = vmatpush2.msra.mxu0 %v10515
    %10817 = vmatprep.subr.mxu0 %v10514
    %10818 = vmatpush2.msra.mxu0 %v10513
    %10819 = vmatprep.subr.mxu0 %v10512
    %10820 = vmatpush2.msra.mxu0 %v10511
    %10821 = vmatprep.subr.mxu0 %v10510
    %10822 = vmatpush2.msra.mxu0 %v10509
    %10823 = vmatprep.mubr.f32.mxu0 %v10346
    %10824 = vmatmul.mubr.f32.gmra.mxu0 %v10345
    %v10825 = vpop.f32.mrf.mxu0
    %v10826 = vadd.f32 %v10755, %v10825
    %v10827 = vpop.f32.mrf.mxu0
    %v10828 = vadd.f32 %v10757, %v10827
    %10829 = vdwg.mxu0
    %10830 = vmatprep.subr.mxu0 %v10572
    %10831 = vmatpush1.msra.mxu0 %v10571
    %10832 = vmatprep.subr.mxu0 %v10570
    %10833 = vmatpush1.msra.mxu0 %v10569
    %10834 = vmatprep.subr.mxu0 %v10568
    %10835 = vmatpush1.msra.mxu0 %v10567
    %10836 = vmatprep.subr.mxu0 %v10566
    %10837 = vmatpush1.msra.mxu0 %v10565
    %10838 = vmatprep.subr.mxu0 %v10564
    %10839 = vmatpush1.msra.mxu0 %v10563
    %10840 = vmatprep.subr.mxu0 %v10562
    %10841 = vmatpush1.msra.mxu0 %v10561
    %10842 = vmatprep.subr.mxu0 %v10560
    %10843 = vmatpush1.msra.mxu0 %v10559
    %10844 = vmatprep.subr.mxu0 %v10558
    %10845 = vmatpush1.msra.mxu0 %v10557
    %10846 = vmatprep.subr.mxu0 %v10556
    %10847 = vmatpush1.msra.mxu0 %v10555
    %10848 = vmatprep.subr.mxu0 %v10554
    %10849 = vmatpush1.msra.mxu0 %v10553
    %10850 = vmatprep.subr.mxu0 %v10552
    %10851 = vmatpush1.msra.mxu0 %v10551
    %10852 = vmatprep.subr.mxu0 %v10550
    %10853 = vmatpush1.msra.mxu0 %v10549
    %10854 = vmatprep.subr.mxu0 %v10548
    %10855 = vmatpush1.msra.mxu0 %v10547
    %10856 = vmatprep.subr.mxu0 %v10546
    %10857 = vmatpush1.msra.mxu0 %v10545
    %10858 = vmatprep.subr.mxu0 %v10544
    %10859 = vmatpush1.msra.mxu0 %v10543
    %10860 = vmatprep.subr.mxu0 %v10542
    %10861 = vmatpush1.msra.mxu0 %v10541
    %10862 = vmatprep.subr.mxu0 %v10604
    %10863 = vmatpush2.msra.mxu0 %v10603
    %10864 = vmatprep.subr.mxu0 %v10602
    %10865 = vmatpush2.msra.mxu0 %v10601
    %10866 = vmatprep.subr.mxu0 %v10600
    %10867 = vmatpush2.msra.mxu0 %v10599
    %10868 = vmatprep.subr.mxu0 %v10598
    %10869 = vmatpush2.msra.mxu0 %v10597
    %10870 = vmatprep.subr.mxu0 %v10596
    %10871 = vmatpush2.msra.mxu0 %v10595
    %10872 = vmatprep.subr.mxu0 %v10594
    %10873 = vmatpush2.msra.mxu0 %v10593
    %10874 = vmatprep.subr.mxu0 %v10592
    %10875 = vmatpush2.msra.mxu0 %v10591
    %10876 = vmatprep.subr.mxu0 %v10590
    %10877 = vmatpush2.msra.mxu0 %v10589
    %10878 = vmatprep.subr.mxu0 %v10588
    %10879 = vmatpush2.msra.mxu0 %v10587
    %10880 = vmatprep.subr.mxu0 %v10586
    %10881 = vmatpush2.msra.mxu0 %v10585
    %10882 = vmatprep.subr.mxu0 %v10584
    %10883 = vmatpush2.msra.mxu0 %v10583
    %10884 = vmatprep.subr.mxu0 %v10582
    %10885 = vmatpush2.msra.mxu0 %v10581
    %10886 = vmatprep.subr.mxu0 %v10580
    %10887 = vmatpush2.msra.mxu0 %v10579
    %10888 = vmatprep.subr.mxu0 %v10578
    %10889 = vmatpush2.msra.mxu0 %v10577
    %10890 = vmatprep.subr.mxu0 %v10576
    %10891 = vmatpush2.msra.mxu0 %v10575
    %10892 = vmatprep.subr.mxu0 %v10574
    %10893 = vmatpush2.msra.mxu0 %v10573
    %10894 = vmatprep.mubr.f32.mxu0 %v10348
    %10895 = vmatmul.mubr.f32.gmra.mxu0 %v10347
    %v10896 = vpop.f32.mrf.mxu0
    %v10897 = vadd.f32 %v10826, %v10896
    %v10898 = vpop.f32.mrf.mxu0
    %v10899 = vadd.f32 %v10828, %v10898
    %10900 = vdwg.mxu0
    %v10903 = vcombine.low %v10897, %v10899
    %v10905 = vunpack.c.l.s4 1983009808
    %v10906 = vunpack.c.0.s8 %v10905
    %v10907 = vlaneseq
    %v10908 = vshrl.u32 %v10907, 7
    %v10909 = vsub.s32 %v10906, %v10908
    %v10910 = vrot.slane %v10903, %v10909
    %10912 = vst [vmem:[%s11] sm:$0xf] %v10910
  $region53: #{encoder_forward.1} parent=0 // pred_fallthru
    _
  // Predicated region
  $region54: #{encoder_forward.1} parent=0 // pred_check
    _
  $region55: #{encoder_forward.1} parent=0 // pred_check_branch
    %10914 = sbr.rel (0) target = $region57
  $region56: #{encoder_forward.1} parent=0 // pred_region
    _
  $region57: #{encoder_forward.1} parent=0 // pred_fallthru
    _
  // Predicated region
  $region58: #{encoder_forward.1} parent=0 // pred_check
    _
  $region59: #{encoder_forward.1} parent=0 // pred_check_branch
    %10916 = sbr.rel (0) target = $region61
  $region60: #{encoder_forward.1} parent=0 // pred_region
    _
  $region61: #{encoder_forward.1} parent=0 // pred_fallthru
    _

</llo_original>
